<compile_context>
chip_gen: v5e
topology: v5e:2x2
jax: 0.10.0
libtpu: 0.0.40
codegen_flags: <defaults>
</compile_context>

<pallas_src>
import jax
import jax.numpy as jnp
from jax.experimental import pallas as pl
from jax.experimental.pallas import tpu as pltpu


def _round_up(n, m):
    return ((n + m - 1) // m) * m


# --------------------------------- kernel ------------------------------------

def _dqn_kernel(x_ref,
                cw1_ref, cwp_ref, cb_ref,
                wh1_ref, bh1_ref, wq_ref, bq_ref,
                out_ref):
    L, BB, C = x_ref.shape

    def conv(h, w_bf16, b):
        # h: (Lin, BB, Cin) f32, w: (3*Cin, Cout) bf16, b: (1, Cout) f32
        # -> (Lout, BB, Cout) f32 via one fused MXU matmul (M = Lout*BB).
        lin, _, cin = h.shape
        lo = lin - 2
        u = jnp.concatenate([h[0:lo], h[1:lo + 1], h[2:lo + 2]], axis=-1)   # (lo, BB, 3*Cin)
        u2 = u.reshape(lo * BB, 3 * cin).astype(jnp.bfloat16)               # BB % 8 == 0 -> aligned
        o = jnp.dot(u2, w_bf16, preferred_element_type=jnp.float32) + b     # (lo*BB, Cout) f32
        return o.reshape(lo, BB, w_bf16.shape[1])

    def pool(h):
        # MaxPool1d(kernel=3, stride=2) over the leading (length) axis:
        # out[i] = max(h[2i], h[2i+1], h[2i+2]); decimation via leading-dim reshape.
        lin = h.shape[0]
        p = (lin - 3) // 2 + 1
        cc = h.shape[2]
        r0 = h[0:2 * p].reshape(p, 2, BB, cc)         # r0[i, 0]=h[2i], r0[i, 1]=h[2i+1]
        r1 = h[1:2 * p + 1].reshape(p, 2, BB, cc)     # r1[i, 1]=h[2i+2]
        return jnp.maximum(jnp.maximum(r0[:, 0], r0[:, 1]), r1[:, 1])

    def relu(t):
        return jnp.maximum(t, 0.0)

    x = x_ref[...].astype(jnp.float32)                # (L, BB, C)

    h = conv(x, cw1_ref[...], cb_ref[0])              # (L-2, BB, 32)
    h = relu(pool(h))
    h = conv(h, cwp_ref[0], cb_ref[1])
    h = relu(pool(h))
    h = conv(h, cwp_ref[1], cb_ref[2])
    h = relu(pool(h))
    h = conv(h, cwp_ref[2], cb_ref[3])
    h = relu(pool(h))
    h = relu(conv(h, cwp_ref[3], cb_ref[4]))          # (3, BB, 32)
    h = relu(conv(h, cwp_ref[4], cb_ref[5]))          # (1, BB, 32)

    # Trunk output length is 1 (asserted in the wrapper) -> flatten == the 32 channels
    # (matches torch's channel-major .view(B, -1)).
    flat = h[0]                                       # (BB, 32)

    # Shared first FC layer of both heads: [vw1 | aw1] -> (BB, 1024).
    z = relu(jnp.dot(flat.astype(jnp.bfloat16), wh1_ref[...],
                     preferred_element_type=jnp.float32) + bh1_ref[...])

    # Fused dueling combination: q = z @ Wq + bq (value, advantage and -mean(adv) all
    # folded into Wq / bq in the wrapper).  Columns >= actions_n are exactly zero.
    q = jnp.dot(z.astype(jnp.bfloat16), wq_ref[...],
                preferred_element_type=jnp.float32) + bq_ref[...]
    out_ref[...] = q                                  # (BB, 128), lane-dense store


# -------------------------------- wrapper -------------------------------------

def dqn_conv1d_large(x_bcl, params, actions_n, *, block_b=64):
    """x_bcl: (B, C, L) float32 (PyTorch NCW layout). Returns (B, actions_n) float32."""
    B, C, L = x_bcl.shape

    # Trunk length bookkeeping: Conv1d(k=3, valid) x6, MaxPool1d(3, 2) x4.
    l = L
    for _ in range(4):
        l = l - 2
        l = (l - 3) // 2 + 1
    l = l - 2 - 2
    # TODO(synk): support trunk output length > 1 (needs vw1/aw1 rows pre-permuted to
    # torch's channel-major flatten order); not needed for the provided config.
    assert l == 1, f"kernel assumes trunk output length == 1, got {l}"
    assert params["vw1"].shape[0] == 32

    # Batch blocking: BB multiple of 16 (bf16 sublane tile); derive from ceil(B/2) so
    # the 'parallel' batch axis has >= 2 grid steps when B allows (both TCs on v7x).
    block_b = max(16, _round_up(block_b, 16))
    BB = min(block_b, _round_up(max(1, (B + 1) // 2), 16))
    B_pad = _round_up(B, BB)

    # x: (B, C, L) -> (L, B_pad, C) bf16.  Length leading => conv taps and pool
    # windows inside the kernel are cheap leading-axis slices.
    x = jnp.transpose(x_bcl, (2, 0, 1)).astype(jnp.bfloat16)
    if B_pad != B:
        x = jnp.pad(x, ((0, 0), (0, B_pad - B), (0, 0)))

    # Prepacked weights (once, outside the kernel); matmul operands in bf16.
    cw1u = params["cw1"].reshape(3 * C, 32).astype(jnp.bfloat16)                   # (3C, 32)
    cwp = jnp.stack([params[f"cw{i}"].reshape(3 * 32, 32)
                     for i in range(2, 7)]).astype(jnp.bfloat16)                   # (5, 96, 32)
    cb = jnp.stack([params[f"cb{i}"].reshape(1, 32)
                    for i in range(1, 7)]).astype(jnp.float32)                     # (6, 1, 32)
    wh1 = jnp.concatenate([params["vw1"], params["aw1"]], axis=1).astype(jnp.bfloat16)  # (32,1024)
    bh1 = jnp.concatenate([params["vb1"], params["ab1"]], axis=1).astype(jnp.float32)   # (1, 1024)

    # Fused dueling head:  q = z @ Wq + bq  with
    #   Wq[:512, a] = vw2[:, 0]                     (value, broadcast over actions)
    #   Wq[512:, a] = aw2[:, a] - mean_k aw2[:, k]  (mean-centered advantage)
    #   bq[a]       = vb2 + ab2[a] - mean_k ab2[k]
    # Columns >= actions_n stay zero (lane-dense 128-wide output, sliced below).
    A_PAD = 128
    aw2c = params["aw2"] - jnp.mean(params["aw2"], axis=1, keepdims=True)
    wq = jnp.zeros((1024, A_PAD), jnp.float32)
    wq = wq.at[:512, :actions_n].set(jnp.broadcast_to(params["vw2"], (512, actions_n)))
    wq = wq.at[512:, :actions_n].set(aw2c)
    wq = wq.astype(jnp.bfloat16)
    bq = jnp.zeros((1, A_PAD), jnp.float32)
    bq = bq.at[0, :actions_n].set(params["vb2"][0, 0] + params["ab2"][0, :]
                                  - jnp.mean(params["ab2"]))

    consts = [cw1u, cwp, cb, wh1, bh1, wq, bq]

    def resident(a):
        # Full-array block at a fixed index: VMEM-resident across the batch grid.
        # (Constants total < 1 MiB, so the second pipeline buffer is negligible.)
        return pl.BlockSpec(a.shape, lambda g, _n=a.ndim: (0,) * _n)

    in_specs = [pl.BlockSpec((L, BB, C), lambda g: (0, g, 0))]
    in_specs += [resident(a) for a in consts]

    out = pl.pallas_call(
        _dqn_kernel,
        out_shape=jax.ShapeDtypeStruct((B_pad, A_PAD), jnp.float32),
        grid_spec=pltpu.PrefetchScalarGridSpec(
            num_scalar_prefetch=0,
            grid=(B_pad // BB,),
            in_specs=in_specs,
            out_specs=pl.BlockSpec((BB, A_PAD), lambda g: (g, 0)),
        ),
        compiler_params=pltpu.CompilerParams(
            dimension_semantics=("parallel",),
            vmem_limit_bytes=48 * 1024 * 1024),
    )(x, *consts)
    return out[:B, :actions_n]


# ------------------------- pure-JAX reference (check) --------------------------

def reference_forward(x_bcl, params):
    HI = jax.lax.Precision.HIGHEST

    def conv(h, w, b):
        K = w.shape[0]
        Lo = h.shape[0] - K + 1
        return sum(jnp.dot(h[k:k + Lo], w[k], precision=HI) for k in range(K)) + b

    def pool(h):
        L = h.shape[0]
        m = jnp.maximum(jnp.maximum(h[:L - 2], h[1:L - 1]), h[2:L])
        p = (L - 3) // 2 + 1
        return m[0:2 * p:2]

    outs = []
    for i in range(x_bcl.shape[0]):
        h = x_bcl[i].T                                    # (L, C)
        h = conv(h, params["cw1"], params["cb1"]); h = pool(h); h = jnp.maximum(h, 0.0)
        h = conv(h, params["cw2"], params["cb2"]); h = pool(h); h = jnp.maximum(h, 0.0)
        h = conv(h, params["cw3"], params["cb3"]); h = pool(h); h = jnp.maximum(h, 0.0)
        h = conv(h, params["cw4"], params["cb4"]); h = pool(h); h = jnp.maximum(h, 0.0)
        h = conv(h, params["cw5"], params["cb5"]); h = jnp.maximum(h, 0.0)
        h = conv(h, params["cw6"], params["cb6"]); h = jnp.maximum(h, 0.0)
        flat = h.T.reshape(1, -1)                         # channel-major, matches torch view
        hv = jnp.maximum(jnp.dot(flat, params["vw1"], precision=HI) + params["vb1"], 0.0)
        val = jnp.dot(hv, params["vw2"], precision=HI) + params["vb2"]
        ha = jnp.maximum(jnp.dot(flat, params["aw1"], precision=HI) + params["ab1"], 0.0)
        adv = jnp.dot(ha, params["aw2"], precision=HI) + params["ab2"]
        q = val + adv - jnp.mean(adv, axis=1, keepdims=True)
        outs.append(q[0])
    return jnp.stack(outs)


# ----------------------------------- main --------------------------------------

if __name__ == "__main__":
    # shape = (C, L). L must be >= 125 so the 6-conv / 4-pool trunk yields length >= 1.
    B, C, L, A = 2, 4, 128, 3

    key = jax.random.PRNGKey(0)
    ks = jax.random.split(key, 32)

    def nrm(k, shape, s=0.1):
        return (s * jax.random.normal(k, shape)).astype(jnp.float32)

    params = {
        "cw1": nrm(ks[0], (3, C, 32)),   "cb1": nrm(ks[1], (1, 32)),
        "cw2": nrm(ks[2], (3, 32, 32)),  "cb2": nrm(ks[3], (1, 32)),
        "cw3": nrm(ks[4], (3, 32, 32)),  "cb3": nrm(ks[5], (1, 32)),
        "cw4": nrm(ks[6], (3, 32, 32)),  "cb4": nrm(ks[7], (1, 32)),
        "cw5": nrm(ks[8], (3, 32, 32)),  "cb5": nrm(ks[9], (1, 32)),
        "cw6": nrm(ks[10], (3, 32, 32)), "cb6": nrm(ks[11], (1, 32)),
        "vw1": nrm(ks[12], (32, 512)),   "vb1": nrm(ks[13], (1, 512)),
        "vw2": nrm(ks[14], (512, 1)),    "vb2": nrm(ks[15], (1, 1)),
        "aw1": nrm(ks[16], (32, 512)),   "ab1": nrm(ks[17], (1, 512)),
        "aw2": nrm(ks[18], (512, A)),    "ab2": nrm(ks[19], (1, A)),
    }
    x = jax.random.normal(ks[20], (B, C, L), jnp.float32)

    out = jax.block_until_ready(dqn_conv1d_large(x, params, A))
    ref = jax.block_until_ready(reference_forward(x, params))

    assert out.shape == (B, A), out.shape
    err = float(jnp.max(jnp.abs(out - ref)))
    if not bool(jnp.allclose(out, ref, atol=1e-2, rtol=1e-2)):
        raise AssertionError(f"Pallas kernel mismatch vs reference, max abs err={err}")
    print("KERNEL_OK")
</pallas_src>

<mosaic_0001>
module attributes {stable_mosaic.version = 11 : i64} {
  func.func @_dqn_kernel(%arg0: i32, %arg1: memref<128x16x4xbf16, #tpu.memory_space<vmem>>, %arg2: memref<12x32xbf16, #tpu.memory_space<vmem>>, %arg3: memref<5x96x32xbf16, #tpu.memory_space<vmem>>, %arg4: memref<6x1x32xf32, #tpu.memory_space<vmem>>, %arg5: memref<32x1024xbf16, #tpu.memory_space<vmem>>, %arg6: memref<1x1024xf32, #tpu.memory_space<vmem>>, %arg7: memref<1024x128xbf16, #tpu.memory_space<vmem>>, %arg8: memref<1x128xf32, #tpu.memory_space<vmem>>, %arg9: memref<16x128xf32, #tpu.memory_space<vmem>>) attributes {dimension_semantics = [#tpu.dimension_semantics<parallel>], iteration_bounds = array<i64: 1>, scalar_prefetch = 0 : i64, scratch_operands = 0 : i64, tpu.core_type = #tpu.core_type<tc>, window_params = [{transform_indices = @transform_0, window_bounds = array<i64: 128, 16, 4>}, {pipeline_mode = #tpu.pipeline_mode<synchronous>, transform_indices = @transform_1, window_bounds = array<i64: 12, 32>}, {pipeline_mode = #tpu.pipeline_mode<synchronous>, transform_indices = @transform_2, window_bounds = array<i64: 5, 96, 32>}, {pipeline_mode = #tpu.pipeline_mode<synchronous>, transform_indices = @transform_3, window_bounds = array<i64: 6, 1, 32>}, {pipeline_mode = #tpu.pipeline_mode<synchronous>, transform_indices = @transform_4, window_bounds = array<i64: 32, 1024>}, {pipeline_mode = #tpu.pipeline_mode<synchronous>, transform_indices = @transform_5, window_bounds = array<i64: 1, 1024>}, {pipeline_mode = #tpu.pipeline_mode<synchronous>, transform_indices = @transform_6, window_bounds = array<i64: 1024, 128>}, {pipeline_mode = #tpu.pipeline_mode<synchronous>, transform_indices = @transform_7, window_bounds = array<i64: 1, 128>}, {transform_indices = @transform_8, window_bounds = array<i64: 16, 128>}]} {
    %c0 = arith.constant 0 : index
    %c0_0 = arith.constant 0 : index
    %c0_1 = arith.constant 0 : index
    %0 = vector.load %arg1[%c0, %c0_0, %c0_1] : memref<128x16x4xbf16, #tpu.memory_space<vmem>>, vector<128x16x4xbf16>
    %1 = arith.extf %0 : vector<128x16x4xbf16> to vector<128x16x4xf32>
    %c0_2 = arith.constant 0 : index
    %c0_3 = arith.constant 0 : index
    %2 = vector.load %arg2[%c0_2, %c0_3] : memref<12x32xbf16, #tpu.memory_space<vmem>>, vector<12x32xbf16>
    %c0_4 = arith.constant 0 : index
    %c0_5 = arith.constant 0 : index
    %c0_6 = arith.constant 0 : index
    %3 = vector.load %arg4[%c0_4, %c0_5, %c0_6] : memref<6x1x32xf32, #tpu.memory_space<vmem>>, vector<1x1x32xf32>
    %4 = vector.shape_cast %3 : vector<1x1x32xf32> to vector<1x32xf32>
    %5 = vector.extract_strided_slice %1 {offsets = [0, 0, 0], sizes = [126, 16, 4], strides = [1, 1, 1]} : vector<128x16x4xf32> to vector<126x16x4xf32>
    %6 = vector.extract_strided_slice %1 {offsets = [1, 0, 0], sizes = [126, 16, 4], strides = [1, 1, 1]} : vector<128x16x4xf32> to vector<126x16x4xf32>
    %7 = vector.extract_strided_slice %1 {offsets = [2, 0, 0], sizes = [126, 16, 4], strides = [1, 1, 1]} : vector<128x16x4xf32> to vector<126x16x4xf32>
    %8 = tpu.concatenate %5, %6, %7 in 2 : vector<126x16x4xf32>, vector<126x16x4xf32>, vector<126x16x4xf32> -> vector<126x16x12xf32>
    %9 = vector.shape_cast %8 : vector<126x16x12xf32> to vector<2016x12xf32>
    %10 = arith.truncf %9 : vector<2016x12xf32> to vector<2016x12xbf16>
    %cst = arith.constant dense<0.000000e+00> : vector<2016x32xf32>
    %11 = tpu.matmul %10, %2, %cst {dimension_numbers = #tpu.dot_dimension_numbers<[1], [0], [0], [1], [0, 0, 1, 1], [], []>} : vector<2016x12xbf16>, vector<12x32xbf16>, vector<2016x32xf32> -> vector<2016x32xf32>
    %12 = vector.broadcast %4 : vector<1x32xf32> to vector<2016x32xf32>
    %13 = arith.addf %11, %12 : vector<2016x32xf32>
    %14 = vector.shape_cast %13 : vector<2016x32xf32> to vector<126x16x32xf32>
    %15 = vector.extract_strided_slice %14 {offsets = [0, 0, 0], sizes = [124, 16, 32], strides = [1, 1, 1]} : vector<126x16x32xf32> to vector<124x16x32xf32>
    %16 = vector.shape_cast %15 : vector<124x16x32xf32> to vector<62x2x16x32xf32>
    %17 = vector.extract_strided_slice %14 {offsets = [1, 0, 0], sizes = [124, 16, 32], strides = [1, 1, 1]} : vector<126x16x32xf32> to vector<124x16x32xf32>
    %18 = vector.shape_cast %17 : vector<124x16x32xf32> to vector<62x2x16x32xf32>
    %19 = vector.extract_strided_slice %16 {offsets = [0, 0, 0, 0], sizes = [62, 1, 16, 32], strides = [1, 1, 1, 1]} : vector<62x2x16x32xf32> to vector<62x1x16x32xf32>
    %20 = vector.shape_cast %19 : vector<62x1x16x32xf32> to vector<62x16x32xf32>
    %21 = vector.extract_strided_slice %16 {offsets = [0, 1, 0, 0], sizes = [62, 1, 16, 32], strides = [1, 1, 1, 1]} : vector<62x2x16x32xf32> to vector<62x1x16x32xf32>
    %22 = vector.shape_cast %21 : vector<62x1x16x32xf32> to vector<62x16x32xf32>
    %23 = arith.maximumf %20, %22 : vector<62x16x32xf32>
    %24 = vector.extract_strided_slice %18 {offsets = [0, 1, 0, 0], sizes = [62, 1, 16, 32], strides = [1, 1, 1, 1]} : vector<62x2x16x32xf32> to vector<62x1x16x32xf32>
    %25 = vector.shape_cast %24 : vector<62x1x16x32xf32> to vector<62x16x32xf32>
    %26 = arith.maximumf %23, %25 : vector<62x16x32xf32>
    %cst_7 = arith.constant 0.000000e+00 : f32
    %27 = vector.broadcast %cst_7 : f32 to vector<62x16x32xf32>
    %28 = arith.maximumf %26, %27 : vector<62x16x32xf32>
    %c0_8 = arith.constant 0 : index
    %c0_9 = arith.constant 0 : index
    %c0_10 = arith.constant 0 : index
    %29 = vector.load %arg3[%c0_8, %c0_9, %c0_10] : memref<5x96x32xbf16, #tpu.memory_space<vmem>>, vector<1x96x32xbf16>
    %30 = vector.shape_cast %29 : vector<1x96x32xbf16> to vector<96x32xbf16>
    %c1 = arith.constant 1 : index
    %c0_11 = arith.constant 0 : index
    %c0_12 = arith.constant 0 : index
    %31 = vector.load %arg4[%c1, %c0_11, %c0_12] : memref<6x1x32xf32, #tpu.memory_space<vmem>>, vector<1x1x32xf32>
    %32 = vector.shape_cast %31 : vector<1x1x32xf32> to vector<1x32xf32>
    %33 = vector.extract_strided_slice %28 {offsets = [0, 0, 0], sizes = [60, 16, 32], strides = [1, 1, 1]} : vector<62x16x32xf32> to vector<60x16x32xf32>
    %34 = vector.extract_strided_slice %28 {offsets = [1, 0, 0], sizes = [60, 16, 32], strides = [1, 1, 1]} : vector<62x16x32xf32> to vector<60x16x32xf32>
    %35 = vector.extract_strided_slice %28 {offsets = [2, 0, 0], sizes = [60, 16, 32], strides = [1, 1, 1]} : vector<62x16x32xf32> to vector<60x16x32xf32>
    %36 = tpu.concatenate %33, %34, %35 in 2 : vector<60x16x32xf32>, vector<60x16x32xf32>, vector<60x16x32xf32> -> vector<60x16x96xf32>
    %37 = vector.shape_cast %36 : vector<60x16x96xf32> to vector<960x96xf32>
    %38 = arith.truncf %37 : vector<960x96xf32> to vector<960x96xbf16>
    %cst_13 = arith.constant dense<0.000000e+00> : vector<960x32xf32>
    %39 = tpu.matmul %38, %30, %cst_13 {dimension_numbers = #tpu.dot_dimension_numbers<[1], [0], [0], [1], [0, 0, 1, 1], [], []>} : vector<960x96xbf16>, vector<96x32xbf16>, vector<960x32xf32> -> vector<960x32xf32>
    %40 = vector.broadcast %32 : vector<1x32xf32> to vector<960x32xf32>
    %41 = arith.addf %39, %40 : vector<960x32xf32>
    %42 = vector.shape_cast %41 : vector<960x32xf32> to vector<60x16x32xf32>
    %43 = vector.extract_strided_slice %42 {offsets = [0, 0, 0], sizes = [58, 16, 32], strides = [1, 1, 1]} : vector<60x16x32xf32> to vector<58x16x32xf32>
    %44 = vector.shape_cast %43 : vector<58x16x32xf32> to vector<29x2x16x32xf32>
    %45 = vector.extract_strided_slice %42 {offsets = [1, 0, 0], sizes = [58, 16, 32], strides = [1, 1, 1]} : vector<60x16x32xf32> to vector<58x16x32xf32>
    %46 = vector.shape_cast %45 : vector<58x16x32xf32> to vector<29x2x16x32xf32>
    %47 = vector.extract_strided_slice %44 {offsets = [0, 0, 0, 0], sizes = [29, 1, 16, 32], strides = [1, 1, 1, 1]} : vector<29x2x16x32xf32> to vector<29x1x16x32xf32>
    %48 = vector.shape_cast %47 : vector<29x1x16x32xf32> to vector<29x16x32xf32>
    %49 = vector.extract_strided_slice %44 {offsets = [0, 1, 0, 0], sizes = [29, 1, 16, 32], strides = [1, 1, 1, 1]} : vector<29x2x16x32xf32> to vector<29x1x16x32xf32>
    %50 = vector.shape_cast %49 : vector<29x1x16x32xf32> to vector<29x16x32xf32>
    %51 = arith.maximumf %48, %50 : vector<29x16x32xf32>
    %52 = vector.extract_strided_slice %46 {offsets = [0, 1, 0, 0], sizes = [29, 1, 16, 32], strides = [1, 1, 1, 1]} : vector<29x2x16x32xf32> to vector<29x1x16x32xf32>
    %53 = vector.shape_cast %52 : vector<29x1x16x32xf32> to vector<29x16x32xf32>
    %54 = arith.maximumf %51, %53 : vector<29x16x32xf32>
    %cst_14 = arith.constant 0.000000e+00 : f32
    %55 = vector.broadcast %cst_14 : f32 to vector<29x16x32xf32>
    %56 = arith.maximumf %54, %55 : vector<29x16x32xf32>
    %c1_15 = arith.constant 1 : index
    %c0_16 = arith.constant 0 : index
    %c0_17 = arith.constant 0 : index
    %57 = vector.load %arg3[%c1_15, %c0_16, %c0_17] : memref<5x96x32xbf16, #tpu.memory_space<vmem>>, vector<1x96x32xbf16>
    %58 = vector.shape_cast %57 : vector<1x96x32xbf16> to vector<96x32xbf16>
    %c2 = arith.constant 2 : index
    %c0_18 = arith.constant 0 : index
    %c0_19 = arith.constant 0 : index
    %59 = vector.load %arg4[%c2, %c0_18, %c0_19] : memref<6x1x32xf32, #tpu.memory_space<vmem>>, vector<1x1x32xf32>
    %60 = vector.shape_cast %59 : vector<1x1x32xf32> to vector<1x32xf32>
    %61 = vector.extract_strided_slice %56 {offsets = [0, 0, 0], sizes = [27, 16, 32], strides = [1, 1, 1]} : vector<29x16x32xf32> to vector<27x16x32xf32>
    %62 = vector.extract_strided_slice %56 {offsets = [1, 0, 0], sizes = [27, 16, 32], strides = [1, 1, 1]} : vector<29x16x32xf32> to vector<27x16x32xf32>
    %63 = vector.extract_strided_slice %56 {offsets = [2, 0, 0], sizes = [27, 16, 32], strides = [1, 1, 1]} : vector<29x16x32xf32> to vector<27x16x32xf32>
    %64 = tpu.concatenate %61, %62, %63 in 2 : vector<27x16x32xf32>, vector<27x16x32xf32>, vector<27x16x32xf32> -> vector<27x16x96xf32>
    %65 = vector.shape_cast %64 : vector<27x16x96xf32> to vector<432x96xf32>
    %66 = arith.truncf %65 : vector<432x96xf32> to vector<432x96xbf16>
    %cst_20 = arith.constant dense<0.000000e+00> : vector<432x32xf32>
    %67 = tpu.matmul %66, %58, %cst_20 {dimension_numbers = #tpu.dot_dimension_numbers<[1], [0], [0], [1], [0, 0, 1, 1], [], []>} : vector<432x96xbf16>, vector<96x32xbf16>, vector<432x32xf32> -> vector<432x32xf32>
    %68 = vector.broadcast %60 : vector<1x32xf32> to vector<432x32xf32>
    %69 = arith.addf %67, %68 : vector<432x32xf32>
    %70 = vector.shape_cast %69 : vector<432x32xf32> to vector<27x16x32xf32>
    %71 = vector.extract_strided_slice %70 {offsets = [0, 0, 0], sizes = [26, 16, 32], strides = [1, 1, 1]} : vector<27x16x32xf32> to vector<26x16x32xf32>
    %72 = vector.shape_cast %71 : vector<26x16x32xf32> to vector<13x2x16x32xf32>
    %73 = vector.extract_strided_slice %70 {offsets = [1, 0, 0], sizes = [26, 16, 32], strides = [1, 1, 1]} : vector<27x16x32xf32> to vector<26x16x32xf32>
    %74 = vector.shape_cast %73 : vector<26x16x32xf32> to vector<13x2x16x32xf32>
    %75 = vector.extract_strided_slice %72 {offsets = [0, 0, 0, 0], sizes = [13, 1, 16, 32], strides = [1, 1, 1, 1]} : vector<13x2x16x32xf32> to vector<13x1x16x32xf32>
    %76 = vector.shape_cast %75 : vector<13x1x16x32xf32> to vector<13x16x32xf32>
    %77 = vector.extract_strided_slice %72 {offsets = [0, 1, 0, 0], sizes = [13, 1, 16, 32], strides = [1, 1, 1, 1]} : vector<13x2x16x32xf32> to vector<13x1x16x32xf32>
    %78 = vector.shape_cast %77 : vector<13x1x16x32xf32> to vector<13x16x32xf32>
    %79 = arith.maximumf %76, %78 : vector<13x16x32xf32>
    %80 = vector.extract_strided_slice %74 {offsets = [0, 1, 0, 0], sizes = [13, 1, 16, 32], strides = [1, 1, 1, 1]} : vector<13x2x16x32xf32> to vector<13x1x16x32xf32>
    %81 = vector.shape_cast %80 : vector<13x1x16x32xf32> to vector<13x16x32xf32>
    %82 = arith.maximumf %79, %81 : vector<13x16x32xf32>
    %cst_21 = arith.constant 0.000000e+00 : f32
    %83 = vector.broadcast %cst_21 : f32 to vector<13x16x32xf32>
    %84 = arith.maximumf %82, %83 : vector<13x16x32xf32>
    %c2_22 = arith.constant 2 : index
    %c0_23 = arith.constant 0 : index
    %c0_24 = arith.constant 0 : index
    %85 = vector.load %arg3[%c2_22, %c0_23, %c0_24] : memref<5x96x32xbf16, #tpu.memory_space<vmem>>, vector<1x96x32xbf16>
    %86 = vector.shape_cast %85 : vector<1x96x32xbf16> to vector<96x32xbf16>
    %c3 = arith.constant 3 : index
    %c0_25 = arith.constant 0 : index
    %c0_26 = arith.constant 0 : index
    %87 = vector.load %arg4[%c3, %c0_25, %c0_26] : memref<6x1x32xf32, #tpu.memory_space<vmem>>, vector<1x1x32xf32>
    %88 = vector.shape_cast %87 : vector<1x1x32xf32> to vector<1x32xf32>
    %89 = vector.extract_strided_slice %84 {offsets = [0, 0, 0], sizes = [11, 16, 32], strides = [1, 1, 1]} : vector<13x16x32xf32> to vector<11x16x32xf32>
    %90 = vector.extract_strided_slice %84 {offsets = [1, 0, 0], sizes = [11, 16, 32], strides = [1, 1, 1]} : vector<13x16x32xf32> to vector<11x16x32xf32>
    %91 = vector.extract_strided_slice %84 {offsets = [2, 0, 0], sizes = [11, 16, 32], strides = [1, 1, 1]} : vector<13x16x32xf32> to vector<11x16x32xf32>
    %92 = tpu.concatenate %89, %90, %91 in 2 : vector<11x16x32xf32>, vector<11x16x32xf32>, vector<11x16x32xf32> -> vector<11x16x96xf32>
    %93 = vector.shape_cast %92 : vector<11x16x96xf32> to vector<176x96xf32>
    %94 = arith.truncf %93 : vector<176x96xf32> to vector<176x96xbf16>
    %cst_27 = arith.constant dense<0.000000e+00> : vector<176x32xf32>
    %95 = tpu.matmul %94, %86, %cst_27 {dimension_numbers = #tpu.dot_dimension_numbers<[1], [0], [0], [1], [0, 0, 1, 1], [], []>} : vector<176x96xbf16>, vector<96x32xbf16>, vector<176x32xf32> -> vector<176x32xf32>
    %96 = vector.broadcast %88 : vector<1x32xf32> to vector<176x32xf32>
    %97 = arith.addf %95, %96 : vector<176x32xf32>
    %98 = vector.shape_cast %97 : vector<176x32xf32> to vector<11x16x32xf32>
    %99 = vector.extract_strided_slice %98 {offsets = [0, 0, 0], sizes = [10, 16, 32], strides = [1, 1, 1]} : vector<11x16x32xf32> to vector<10x16x32xf32>
    %100 = vector.shape_cast %99 : vector<10x16x32xf32> to vector<5x2x16x32xf32>
    %101 = vector.extract_strided_slice %98 {offsets = [1, 0, 0], sizes = [10, 16, 32], strides = [1, 1, 1]} : vector<11x16x32xf32> to vector<10x16x32xf32>
    %102 = vector.shape_cast %101 : vector<10x16x32xf32> to vector<5x2x16x32xf32>
    %103 = vector.extract_strided_slice %100 {offsets = [0, 0, 0, 0], sizes = [5, 1, 16, 32], strides = [1, 1, 1, 1]} : vector<5x2x16x32xf32> to vector<5x1x16x32xf32>
    %104 = vector.shape_cast %103 : vector<5x1x16x32xf32> to vector<5x16x32xf32>
    %105 = vector.extract_strided_slice %100 {offsets = [0, 1, 0, 0], sizes = [5, 1, 16, 32], strides = [1, 1, 1, 1]} : vector<5x2x16x32xf32> to vector<5x1x16x32xf32>
    %106 = vector.shape_cast %105 : vector<5x1x16x32xf32> to vector<5x16x32xf32>
    %107 = arith.maximumf %104, %106 : vector<5x16x32xf32>
    %108 = vector.extract_strided_slice %102 {offsets = [0, 1, 0, 0], sizes = [5, 1, 16, 32], strides = [1, 1, 1, 1]} : vector<5x2x16x32xf32> to vector<5x1x16x32xf32>
    %109 = vector.shape_cast %108 : vector<5x1x16x32xf32> to vector<5x16x32xf32>
    %110 = arith.maximumf %107, %109 : vector<5x16x32xf32>
    %cst_28 = arith.constant 0.000000e+00 : f32
    %111 = vector.broadcast %cst_28 : f32 to vector<5x16x32xf32>
    %112 = arith.maximumf %110, %111 : vector<5x16x32xf32>
    %c3_29 = arith.constant 3 : index
    %c0_30 = arith.constant 0 : index
    %c0_31 = arith.constant 0 : index
    %113 = vector.load %arg3[%c3_29, %c0_30, %c0_31] : memref<5x96x32xbf16, #tpu.memory_space<vmem>>, vector<1x96x32xbf16>
    %114 = vector.shape_cast %113 : vector<1x96x32xbf16> to vector<96x32xbf16>
    %c4 = arith.constant 4 : index
    %c0_32 = arith.constant 0 : index
    %c0_33 = arith.constant 0 : index
    %115 = vector.load %arg4[%c4, %c0_32, %c0_33] : memref<6x1x32xf32, #tpu.memory_space<vmem>>, vector<1x1x32xf32>
    %116 = vector.shape_cast %115 : vector<1x1x32xf32> to vector<1x32xf32>
    %117 = vector.extract_strided_slice %112 {offsets = [0, 0, 0], sizes = [3, 16, 32], strides = [1, 1, 1]} : vector<5x16x32xf32> to vector<3x16x32xf32>
    %118 = vector.extract_strided_slice %112 {offsets = [1, 0, 0], sizes = [3, 16, 32], strides = [1, 1, 1]} : vector<5x16x32xf32> to vector<3x16x32xf32>
    %119 = vector.extract_strided_slice %112 {offsets = [2, 0, 0], sizes = [3, 16, 32], strides = [1, 1, 1]} : vector<5x16x32xf32> to vector<3x16x32xf32>
    %120 = tpu.concatenate %117, %118, %119 in 2 : vector<3x16x32xf32>, vector<3x16x32xf32>, vector<3x16x32xf32> -> vector<3x16x96xf32>
    %121 = vector.shape_cast %120 : vector<3x16x96xf32> to vector<48x96xf32>
    %122 = arith.truncf %121 : vector<48x96xf32> to vector<48x96xbf16>
    %cst_34 = arith.constant dense<0.000000e+00> : vector<48x32xf32>
    %123 = tpu.matmul %122, %114, %cst_34 {dimension_numbers = #tpu.dot_dimension_numbers<[1], [0], [0], [1], [0, 0, 1, 1], [], []>} : vector<48x96xbf16>, vector<96x32xbf16>, vector<48x32xf32> -> vector<48x32xf32>
    %124 = vector.broadcast %116 : vector<1x32xf32> to vector<48x32xf32>
    %125 = arith.addf %123, %124 : vector<48x32xf32>
    %126 = vector.shape_cast %125 : vector<48x32xf32> to vector<3x16x32xf32>
    %cst_35 = arith.constant 0.000000e+00 : f32
    %127 = vector.broadcast %cst_35 : f32 to vector<3x16x32xf32>
    %128 = arith.maximumf %126, %127 : vector<3x16x32xf32>
    %c4_36 = arith.constant 4 : index
    %c0_37 = arith.constant 0 : index
    %c0_38 = arith.constant 0 : index
    %129 = vector.load %arg3[%c4_36, %c0_37, %c0_38] : memref<5x96x32xbf16, #tpu.memory_space<vmem>>, vector<1x96x32xbf16>
    %130 = vector.shape_cast %129 : vector<1x96x32xbf16> to vector<96x32xbf16>
    %c5 = arith.constant 5 : index
    %c0_39 = arith.constant 0 : index
    %c0_40 = arith.constant 0 : index
    %131 = vector.load %arg4[%c5, %c0_39, %c0_40] : memref<6x1x32xf32, #tpu.memory_space<vmem>>, vector<1x1x32xf32>
    %132 = vector.shape_cast %131 : vector<1x1x32xf32> to vector<1x32xf32>
    %133 = vector.extract_strided_slice %128 {offsets = [0, 0, 0], sizes = [1, 16, 32], strides = [1, 1, 1]} : vector<3x16x32xf32> to vector<1x16x32xf32>
    %134 = vector.extract_strided_slice %128 {offsets = [1, 0, 0], sizes = [1, 16, 32], strides = [1, 1, 1]} : vector<3x16x32xf32> to vector<1x16x32xf32>
    %135 = vector.extract_strided_slice %128 {offsets = [2, 0, 0], sizes = [1, 16, 32], strides = [1, 1, 1]} : vector<3x16x32xf32> to vector<1x16x32xf32>
    %136 = tpu.concatenate %133, %134, %135 in 2 : vector<1x16x32xf32>, vector<1x16x32xf32>, vector<1x16x32xf32> -> vector<1x16x96xf32>
    %137 = vector.shape_cast %136 : vector<1x16x96xf32> to vector<16x96xf32>
    %138 = arith.truncf %137 : vector<16x96xf32> to vector<16x96xbf16>
    %cst_41 = arith.constant dense<0.000000e+00> : vector<16x32xf32>
    %139 = tpu.matmul %138, %130, %cst_41 {dimension_numbers = #tpu.dot_dimension_numbers<[1], [0], [0], [1], [0, 0, 1, 1], [], []>} : vector<16x96xbf16>, vector<96x32xbf16>, vector<16x32xf32> -> vector<16x32xf32>
    %140 = vector.broadcast %132 : vector<1x32xf32> to vector<16x32xf32>
    %141 = arith.addf %139, %140 : vector<16x32xf32>
    %142 = vector.shape_cast %141 : vector<16x32xf32> to vector<1x16x32xf32>
    %cst_42 = arith.constant 0.000000e+00 : f32
    %143 = vector.broadcast %cst_42 : f32 to vector<1x16x32xf32>
    %144 = arith.maximumf %142, %143 : vector<1x16x32xf32>
    %145 = vector.shape_cast %144 : vector<1x16x32xf32> to vector<16x32xf32>
    %146 = arith.truncf %145 : vector<16x32xf32> to vector<16x32xbf16>
    %c0_43 = arith.constant 0 : index
    %c0_44 = arith.constant 0 : index
    %147 = vector.load %arg5[%c0_43, %c0_44] : memref<32x1024xbf16, #tpu.memory_space<vmem>>, vector<32x1024xbf16>
    %cst_45 = arith.constant dense<0.000000e+00> : vector<16x1024xf32>
    %148 = tpu.matmul %146, %147, %cst_45 {dimension_numbers = #tpu.dot_dimension_numbers<[1], [0], [0], [1], [0, 0, 1, 1], [], []>} : vector<16x32xbf16>, vector<32x1024xbf16>, vector<16x1024xf32> -> vector<16x1024xf32>
    %c0_46 = arith.constant 0 : index
    %c0_47 = arith.constant 0 : index
    %149 = vector.load %arg6[%c0_46, %c0_47] : memref<1x1024xf32, #tpu.memory_space<vmem>>, vector<1x1024xf32>
    %150 = vector.broadcast %149 : vector<1x1024xf32> to vector<16x1024xf32>
    %151 = arith.addf %148, %150 : vector<16x1024xf32>
    %cst_48 = arith.constant 0.000000e+00 : f32
    %152 = vector.broadcast %cst_48 : f32 to vector<16x1024xf32>
    %153 = arith.maximumf %151, %152 : vector<16x1024xf32>
    %154 = arith.truncf %153 : vector<16x1024xf32> to vector<16x1024xbf16>
    %c0_49 = arith.constant 0 : index
    %c0_50 = arith.constant 0 : index
    %155 = vector.load %arg7[%c0_49, %c0_50] : memref<1024x128xbf16, #tpu.memory_space<vmem>>, vector<1024x128xbf16>
    %cst_51 = arith.constant dense<0.000000e+00> : vector<16x128xf32>
    %156 = tpu.matmul %154, %155, %cst_51 {dimension_numbers = #tpu.dot_dimension_numbers<[1], [0], [0], [1], [0, 0, 1, 1], [], []>} : vector<16x1024xbf16>, vector<1024x128xbf16>, vector<16x128xf32> -> vector<16x128xf32>
    %c0_52 = arith.constant 0 : index
    %c0_53 = arith.constant 0 : index
    %157 = vector.load %arg8[%c0_52, %c0_53] : memref<1x128xf32, #tpu.memory_space<vmem>>, vector<1x128xf32>
    %158 = vector.broadcast %157 : vector<1x128xf32> to vector<16x128xf32>
    %159 = arith.addf %156, %158 : vector<16x128xf32>
    %c0_54 = arith.constant 0 : index
    %c0_55 = arith.constant 0 : index
    %160 = vector.load %arg9[%c0_54, %c0_55] : memref<16x128xf32, #tpu.memory_space<vmem>>, vector<16x128xf32>
    tpu.vector_store %arg9[%c0_54, %c0_55], %159 {strides = array<i32>} : memref<16x128xf32, #tpu.memory_space<vmem>>, vector<16x128xf32>,
    return
  }
  func.func @transform_0(%arg0: i32) -> (i32, i32, i32) {
    %c0_i32 = arith.constant 0 : i32
    %c0_i32_0 = arith.constant 0 : i32
    %c0_i32_1 = arith.constant 0 : i32
    return %c0_i32, %arg0, %c0_i32_0 : i32, i32, i32
  }
  func.func @transform_1(%arg0: i32) -> (i32, i32) {
    %c0_i32 = arith.constant 0 : i32
    %c0_i32_0 = arith.constant 0 : i32
    %c0_i32_1 = arith.constant 0 : i32
    return %c0_i32, %c0_i32_0 : i32, i32
  }
  func.func @transform_2(%arg0: i32) -> (i32, i32, i32) {
    %c0_i32 = arith.constant 0 : i32
    %c0_i32_0 = arith.constant 0 : i32
    %c0_i32_1 = arith.constant 0 : i32
    %c0_i32_2 = arith.constant 0 : i32
    return %c0_i32, %c0_i32_0, %c0_i32_1 : i32, i32, i32
  }
  func.func @transform_3(%arg0: i32) -> (i32, i32, i32) {
    %c0_i32 = arith.constant 0 : i32
    %c0_i32_0 = arith.constant 0 : i32
    %c0_i32_1 = arith.constant 0 : i32
    %c0_i32_2 = arith.constant 0 : i32
    return %c0_i32, %c0_i32_0, %c0_i32_1 : i32, i32, i32
  }
  func.func @transform_4(%arg0: i32) -> (i32, i32) {
    %c0_i32 = arith.constant 0 : i32
    %c0_i32_0 = arith.constant 0 : i32
    %c0_i32_1 = arith.constant 0 : i32
    return %c0_i32, %c0_i32_0 : i32, i32
  }
  func.func @transform_5(%arg0: i32) -> (i32, i32) {
    %c0_i32 = arith.constant 0 : i32
    %c0_i32_0 = arith.constant 0 : i32
    %c0_i32_1 = arith.constant 0 : i32
    return %c0_i32, %c0_i32_0 : i32, i32
  }
  func.func @transform_6(%arg0: i32) -> (i32, i32) {
    %c0_i32 = arith.constant 0 : i32
    %c0_i32_0 = arith.constant 0 : i32
    %c0_i32_1 = arith.constant 0 : i32
    return %c0_i32, %c0_i32_0 : i32, i32
  }
  func.func @transform_7(%arg0: i32) -> (i32, i32) {
    %c0_i32 = arith.constant 0 : i32
    %c0_i32_0 = arith.constant 0 : i32
    %c0_i32_1 = arith.constant 0 : i32
    return %c0_i32, %c0_i32_0 : i32, i32
  }
  func.func @transform_8(%arg0: i32) -> (i32, i32) {
    %c0_i32 = arith.constant 0 : i32
    %c0_i32_0 = arith.constant 0 : i32
    return %arg0, %c0_i32 : i32, i32
  }
}

</mosaic_0001>

<llo_original>
// kernel: tpu_custom_call.1
$region0: #{tpu_custom_call.1}
  #allocation0 [shape = 'u32[]', space=smem, size = 0x4, offset = 0x4, fixed_abs, tag = 'smem constant byte address 0x4 - core index']
  #allocation1 [shape = 'u32[72,128]{1,0:T(1,128)}', space=vmem, size = 0x9000, scoped, tag = 'internal scratch']
  %s0 = inlined_call_operand.vmem [shape: bf16[128,16,4], index: 0, kind: input, shape index: {}]
  %s1 = inlined_call_operand.vmem [shape: bf16[12,32], index: 1, kind: input, shape index: {}]
  %s2 = inlined_call_operand.vmem [shape: bf16[5,96,32], index: 2, kind: input, shape index: {}]
  %s3 = inlined_call_operand.vmem [shape: f32[6,1,32], index: 3, kind: input, shape index: {}]
  %s4 = inlined_call_operand.vmem [shape: bf16[32,1024], index: 4, kind: input, shape index: {}]
  %s5 = inlined_call_operand.vmem [shape: f32[1,1024], index: 5, kind: input, shape index: {}]
  %s6 = inlined_call_operand.vmem [shape: bf16[1024,128], index: 6, kind: input, shape index: {}]
  %s7 = inlined_call_operand.vmem [shape: f32[1,128], index: 7, kind: input, shape index: {}]
  %s8 = inlined_call_operand.hbm [shape: f32[16,128], index: 8, kind: output, shape index: {}]
  %s9 = sld [smem:[#allocation0]]
  $region42: #{tpu_custom_call.1} parent=0
    _
  %s11 = ssub.s32 1, %s9
  %s12 = scalar_select 0, %s11, %s9
  $region1: #{tpu_custom_call.1} parent=0
    #allocation2 [shape = 'u8[8192]{0}', space=vmem, size = 0x2000, scoped, tag = 'output window, operand 0, single buffered']
    #allocation3 [shape = 's32[1]{0}', space=sflag, size = 0x4, scoped, tag = 'scoped memory for tpu_custom_call.1']
    %13 = vsyncpa [#allocation3], 0
    // Predicated region
    $region2: #{tpu_custom_call.1} parent=1 // pred_check
      _
    $region3: #{tpu_custom_call.1} parent=1 // pred_check_branch
      %15 = sbr.rel (0) target = $region5
    $region4: #{tpu_custom_call.1} parent=1 // pred_region
      _
    $region5: #{tpu_custom_call.1} parent=1 // pred_fallthru
      _
    // Predicated region
    $region6: #{tpu_custom_call.1} parent=1 // pred_check
      _
    $region7: #{tpu_custom_call.1} parent=1 // pred_check_branch
      %17 = sbr.rel (0) target = $region9
    $region8: #{tpu_custom_call.1} parent=1 // pred_region
      _
    $region9: #{tpu_custom_call.1} parent=1 // pred_fallthru
      _
    // Predicated region
    $region10: #{tpu_custom_call.1} parent=1 // pred_check
      _
    $region11: #{tpu_custom_call.1} parent=1 // pred_check_branch
      %19 = sbr.rel (0) target = $region13
    $region12: #{tpu_custom_call.1} parent=1 // pred_region
      _
    $region13: #{tpu_custom_call.1} parent=1 // pred_fallthru
      _
    // Predicated region
    $region14: #{tpu_custom_call.1} parent=1 // pred_check
      _
    $region15: #{tpu_custom_call.1} parent=1 // pred_check_branch
      %21 = sbr.rel (0) target = $region17
    $region16: #{tpu_custom_call.1} parent=1 // pred_region
      _
    $region17: #{tpu_custom_call.1} parent=1 // pred_fallthru
      _
    // Predicated region
    $region18: #{tpu_custom_call.1} parent=1 // pred_check
      _
    $region19: #{tpu_custom_call.1} parent=1 // pred_check_branch
      %23 = sbr.rel (0) target = $region21
    $region20: #{tpu_custom_call.1} parent=1 // pred_region
      _
    $region21: #{tpu_custom_call.1} parent=1 // pred_fallthru
      _
    // Predicated region
    $region22: #{tpu_custom_call.1} parent=1 // pred_check
      _
    $region23: #{tpu_custom_call.1} parent=1 // pred_check_branch
      %25 = sbr.rel (0) target = $region25
    $region24: #{tpu_custom_call.1} parent=1 // pred_region
      _
    $region25: #{tpu_custom_call.1} parent=1 // pred_fallthru
      _
    // Predicated region
    $region26: #{tpu_custom_call.1} parent=1 // pred_check
      _
    $region27: #{tpu_custom_call.1} parent=1 // pred_check_branch
      %27 = sbr.rel (0) target = $region29
    $region28: #{tpu_custom_call.1} parent=1 // pred_region
      _
    $region29: #{tpu_custom_call.1} parent=1 // pred_fallthru
      _
    // Predicated region
    $region30: #{tpu_custom_call.1} parent=1 // pred_check
      _
    $region31: #{tpu_custom_call.1} parent=1 // pred_check_branch
      %29 = sbr.rel (0) target = $region33
    $region32: #{tpu_custom_call.1} parent=1 // pred_region
      _
    $region33: #{tpu_custom_call.1} parent=1 // pred_fallthru
      _
    %v31 = vld [vmem:[%s0] sm:$0xf]
    %v32 = vld [vmem:[%s0 + $0x4] sm:$0xf]
    %v33 = vld [vmem:[%s0 + $0x8] sm:$0xf]
    %v34 = vld [vmem:[%s0 + $0xc] sm:$0xf]
    %v35 = vld [vmem:[%s0 + $0x10] sm:$0xf]
    %v36 = vld [vmem:[%s0 + $0x14] sm:$0xf]
    %v37 = vld [vmem:[%s0 + $0x18] sm:$0xf]
    %v38 = vld [vmem:[%s0 + $0x1c] sm:$0xf]
    %v39 = vld [vmem:[%s0 + $0x20] sm:$0xf]
    %v40 = vld [vmem:[%s0 + $0x24] sm:$0xf]
    %v41 = vld [vmem:[%s0 + $0x28] sm:$0xf]
    %v42 = vld [vmem:[%s0 + $0x2c] sm:$0xf]
    %v43 = vld [vmem:[%s0 + $0x30] sm:$0xf]
    %v44 = vld [vmem:[%s0 + $0x34] sm:$0xf]
    %v45 = vld [vmem:[%s0 + $0x38] sm:$0xf]
    %v46 = vld [vmem:[%s0 + $0x3c] sm:$0xf]
    %v47 = vld [vmem:[%s0 + $0x40] sm:$0xf]
    %v48 = vld [vmem:[%s0 + $0x44] sm:$0xf]
    %v49 = vld [vmem:[%s0 + $0x48] sm:$0xf]
    %v50 = vld [vmem:[%s0 + $0x4c] sm:$0xf]
    %v51 = vld [vmem:[%s0 + $0x50] sm:$0xf]
    %v52 = vld [vmem:[%s0 + $0x54] sm:$0xf]
    %v53 = vld [vmem:[%s0 + $0x58] sm:$0xf]
    %v54 = vld [vmem:[%s0 + $0x5c] sm:$0xf]
    %v55 = vld [vmem:[%s0 + $0x60] sm:$0xf]
    %v56 = vld [vmem:[%s0 + $0x64] sm:$0xf]
    %v57 = vld [vmem:[%s0 + $0x68] sm:$0xf]
    %v58 = vld [vmem:[%s0 + $0x6c] sm:$0xf]
    %v59 = vld [vmem:[%s0 + $0x70] sm:$0xf]
    %v60 = vld [vmem:[%s0 + $0x74] sm:$0xf]
    %v61 = vld [vmem:[%s0 + $0x78] sm:$0xf]
    %v62 = vld [vmem:[%s0 + $0x7c] sm:$0xf]
    %v63 = vld [vmem:[%s0 + $0x80] sm:$0xf]
    %v64 = vld [vmem:[%s0 + $0x84] sm:$0xf]
    %v65 = vld [vmem:[%s0 + $0x88] sm:$0xf]
    %v66 = vld [vmem:[%s0 + $0x8c] sm:$0xf]
    %v67 = vld [vmem:[%s0 + $0x90] sm:$0xf]
    %v68 = vld [vmem:[%s0 + $0x94] sm:$0xf]
    %v69 = vld [vmem:[%s0 + $0x98] sm:$0xf]
    %v70 = vld [vmem:[%s0 + $0x9c] sm:$0xf]
    %v71 = vld [vmem:[%s0 + $0xa0] sm:$0xf]
    %v72 = vld [vmem:[%s0 + $0xa4] sm:$0xf]
    %v73 = vld [vmem:[%s0 + $0xa8] sm:$0xf]
    %v74 = vld [vmem:[%s0 + $0xac] sm:$0xf]
    %v75 = vld [vmem:[%s0 + $0xb0] sm:$0xf]
    %v76 = vld [vmem:[%s0 + $0xb4] sm:$0xf]
    %v77 = vld [vmem:[%s0 + $0xb8] sm:$0xf]
    %v78 = vld [vmem:[%s0 + $0xbc] sm:$0xf]
    %v79 = vld [vmem:[%s0 + $0xc0] sm:$0xf]
    %v80 = vld [vmem:[%s0 + $0xc4] sm:$0xf]
    %v81 = vld [vmem:[%s0 + $0xc8] sm:$0xf]
    %v82 = vld [vmem:[%s0 + $0xcc] sm:$0xf]
    %v83 = vld [vmem:[%s0 + $0xd0] sm:$0xf]
    %v84 = vld [vmem:[%s0 + $0xd4] sm:$0xf]
    %v85 = vld [vmem:[%s0 + $0xd8] sm:$0xf]
    %v86 = vld [vmem:[%s0 + $0xdc] sm:$0xf]
    %v87 = vld [vmem:[%s0 + $0xe0] sm:$0xf]
    %v88 = vld [vmem:[%s0 + $0xe4] sm:$0xf]
    %v89 = vld [vmem:[%s0 + $0xe8] sm:$0xf]
    %v90 = vld [vmem:[%s0 + $0xec] sm:$0xf]
    %v91 = vld [vmem:[%s0 + $0xf0] sm:$0xf]
    %v92 = vld [vmem:[%s0 + $0xf4] sm:$0xf]
    %v93 = vld [vmem:[%s0 + $0xf8] sm:$0xf]
    %v94 = vld [vmem:[%s0 + $0xfc] sm:$0xf]
    %v95 = vld [vmem:[%s0 + $0x100] sm:$0xf]
    %v96 = vld [vmem:[%s0 + $0x104] sm:$0xf]
    %v97 = vld [vmem:[%s0 + $0x108] sm:$0xf]
    %v98 = vld [vmem:[%s0 + $0x10c] sm:$0xf]
    %v99 = vld [vmem:[%s0 + $0x110] sm:$0xf]
    %v100 = vld [vmem:[%s0 + $0x114] sm:$0xf]
    %v101 = vld [vmem:[%s0 + $0x118] sm:$0xf]
    %v102 = vld [vmem:[%s0 + $0x11c] sm:$0xf]
    %v103 = vld [vmem:[%s0 + $0x120] sm:$0xf]
    %v104 = vld [vmem:[%s0 + $0x124] sm:$0xf]
    %v105 = vld [vmem:[%s0 + $0x128] sm:$0xf]
    %v106 = vld [vmem:[%s0 + $0x12c] sm:$0xf]
    %v107 = vld [vmem:[%s0 + $0x130] sm:$0xf]
    %v108 = vld [vmem:[%s0 + $0x134] sm:$0xf]
    %v109 = vld [vmem:[%s0 + $0x138] sm:$0xf]
    %v110 = vld [vmem:[%s0 + $0x13c] sm:$0xf]
    %v111 = vld [vmem:[%s0 + $0x140] sm:$0xf]
    %v112 = vld [vmem:[%s0 + $0x144] sm:$0xf]
    %v113 = vld [vmem:[%s0 + $0x148] sm:$0xf]
    %v114 = vld [vmem:[%s0 + $0x14c] sm:$0xf]
    %v115 = vld [vmem:[%s0 + $0x150] sm:$0xf]
    %v116 = vld [vmem:[%s0 + $0x154] sm:$0xf]
    %v117 = vld [vmem:[%s0 + $0x158] sm:$0xf]
    %v118 = vld [vmem:[%s0 + $0x15c] sm:$0xf]
    %v119 = vld [vmem:[%s0 + $0x160] sm:$0xf]
    %v120 = vld [vmem:[%s0 + $0x164] sm:$0xf]
    %v121 = vld [vmem:[%s0 + $0x168] sm:$0xf]
    %v122 = vld [vmem:[%s0 + $0x16c] sm:$0xf]
    %v123 = vld [vmem:[%s0 + $0x170] sm:$0xf]
    %v124 = vld [vmem:[%s0 + $0x174] sm:$0xf]
    %v125 = vld [vmem:[%s0 + $0x178] sm:$0xf]
    %v126 = vld [vmem:[%s0 + $0x17c] sm:$0xf]
    %v127 = vld [vmem:[%s0 + $0x180] sm:$0xf]
    %v128 = vld [vmem:[%s0 + $0x184] sm:$0xf]
    %v129 = vld [vmem:[%s0 + $0x188] sm:$0xf]
    %v130 = vld [vmem:[%s0 + $0x18c] sm:$0xf]
    %v131 = vld [vmem:[%s0 + $0x190] sm:$0xf]
    %v132 = vld [vmem:[%s0 + $0x194] sm:$0xf]
    %v133 = vld [vmem:[%s0 + $0x198] sm:$0xf]
    %v134 = vld [vmem:[%s0 + $0x19c] sm:$0xf]
    %v135 = vld [vmem:[%s0 + $0x1a0] sm:$0xf]
    %v136 = vld [vmem:[%s0 + $0x1a4] sm:$0xf]
    %v137 = vld [vmem:[%s0 + $0x1a8] sm:$0xf]
    %v138 = vld [vmem:[%s0 + $0x1ac] sm:$0xf]
    %v139 = vld [vmem:[%s0 + $0x1b0] sm:$0xf]
    %v140 = vld [vmem:[%s0 + $0x1b4] sm:$0xf]
    %v141 = vld [vmem:[%s0 + $0x1b8] sm:$0xf]
    %v142 = vld [vmem:[%s0 + $0x1bc] sm:$0xf]
    %v143 = vld [vmem:[%s0 + $0x1c0] sm:$0xf]
    %v144 = vld [vmem:[%s0 + $0x1c4] sm:$0xf]
    %v145 = vld [vmem:[%s0 + $0x1c8] sm:$0xf]
    %v146 = vld [vmem:[%s0 + $0x1cc] sm:$0xf]
    %v147 = vld [vmem:[%s0 + $0x1d0] sm:$0xf]
    %v148 = vld [vmem:[%s0 + $0x1d4] sm:$0xf]
    %v149 = vld [vmem:[%s0 + $0x1d8] sm:$0xf]
    %v150 = vld [vmem:[%s0 + $0x1dc] sm:$0xf]
    %v151 = vld [vmem:[%s0 + $0x1e0] sm:$0xf]
    %v152 = vld [vmem:[%s0 + $0x1e4] sm:$0xf]
    %v153 = vld [vmem:[%s0 + $0x1e8] sm:$0xf]
    %v154 = vld [vmem:[%s0 + $0x1ec] sm:$0xf]
    %v155 = vld [vmem:[%s0 + $0x1f0] sm:$0xf]
    %v156 = vld [vmem:[%s0 + $0x1f4] sm:$0xf]
    %v157 = vld [vmem:[%s0 + $0x1f8] sm:$0xf]
    %v158 = vld [vmem:[%s0 + $0x1fc] sm:$0xf]
    %v159 = vld [vmem:[%s0 + $0x200] sm:$0xf]
    %v160 = vld [vmem:[%s0 + $0x204] sm:$0xf]
    %v161 = vld [vmem:[%s0 + $0x208] sm:$0xf]
    %v162 = vld [vmem:[%s0 + $0x20c] sm:$0xf]
    %v163 = vld [vmem:[%s0 + $0x210] sm:$0xf]
    %v164 = vld [vmem:[%s0 + $0x214] sm:$0xf]
    %v165 = vld [vmem:[%s0 + $0x218] sm:$0xf]
    %v166 = vld [vmem:[%s0 + $0x21c] sm:$0xf]
    %v167 = vld [vmem:[%s0 + $0x220] sm:$0xf]
    %v168 = vld [vmem:[%s0 + $0x224] sm:$0xf]
    %v169 = vld [vmem:[%s0 + $0x228] sm:$0xf]
    %v170 = vld [vmem:[%s0 + $0x22c] sm:$0xf]
    %v171 = vld [vmem:[%s0 + $0x230] sm:$0xf]
    %v172 = vld [vmem:[%s0 + $0x234] sm:$0xf]
    %v173 = vld [vmem:[%s0 + $0x238] sm:$0xf]
    %v174 = vld [vmem:[%s0 + $0x23c] sm:$0xf]
    %v175 = vld [vmem:[%s0 + $0x240] sm:$0xf]
    %v176 = vld [vmem:[%s0 + $0x244] sm:$0xf]
    %v177 = vld [vmem:[%s0 + $0x248] sm:$0xf]
    %v178 = vld [vmem:[%s0 + $0x24c] sm:$0xf]
    %v179 = vld [vmem:[%s0 + $0x250] sm:$0xf]
    %v180 = vld [vmem:[%s0 + $0x254] sm:$0xf]
    %v181 = vld [vmem:[%s0 + $0x258] sm:$0xf]
    %v182 = vld [vmem:[%s0 + $0x25c] sm:$0xf]
    %v183 = vld [vmem:[%s0 + $0x260] sm:$0xf]
    %v184 = vld [vmem:[%s0 + $0x264] sm:$0xf]
    %v185 = vld [vmem:[%s0 + $0x268] sm:$0xf]
    %v186 = vld [vmem:[%s0 + $0x26c] sm:$0xf]
    %v187 = vld [vmem:[%s0 + $0x270] sm:$0xf]
    %v188 = vld [vmem:[%s0 + $0x274] sm:$0xf]
    %v189 = vld [vmem:[%s0 + $0x278] sm:$0xf]
    %v190 = vld [vmem:[%s0 + $0x27c] sm:$0xf]
    %v191 = vld [vmem:[%s0 + $0x280] sm:$0xf]
    %v192 = vld [vmem:[%s0 + $0x284] sm:$0xf]
    %v193 = vld [vmem:[%s0 + $0x288] sm:$0xf]
    %v194 = vld [vmem:[%s0 + $0x28c] sm:$0xf]
    %v195 = vld [vmem:[%s0 + $0x290] sm:$0xf]
    %v196 = vld [vmem:[%s0 + $0x294] sm:$0xf]
    %v197 = vld [vmem:[%s0 + $0x298] sm:$0xf]
    %v198 = vld [vmem:[%s0 + $0x29c] sm:$0xf]
    %v199 = vld [vmem:[%s0 + $0x2a0] sm:$0xf]
    %v200 = vld [vmem:[%s0 + $0x2a4] sm:$0xf]
    %v201 = vld [vmem:[%s0 + $0x2a8] sm:$0xf]
    %v202 = vld [vmem:[%s0 + $0x2ac] sm:$0xf]
    %v203 = vld [vmem:[%s0 + $0x2b0] sm:$0xf]
    %v204 = vld [vmem:[%s0 + $0x2b4] sm:$0xf]
    %v205 = vld [vmem:[%s0 + $0x2b8] sm:$0xf]
    %v206 = vld [vmem:[%s0 + $0x2bc] sm:$0xf]
    %v207 = vld [vmem:[%s0 + $0x2c0] sm:$0xf]
    %v208 = vld [vmem:[%s0 + $0x2c4] sm:$0xf]
    %v209 = vld [vmem:[%s0 + $0x2c8] sm:$0xf]
    %v210 = vld [vmem:[%s0 + $0x2cc] sm:$0xf]
    %v211 = vld [vmem:[%s0 + $0x2d0] sm:$0xf]
    %v212 = vld [vmem:[%s0 + $0x2d4] sm:$0xf]
    %v213 = vld [vmem:[%s0 + $0x2d8] sm:$0xf]
    %v214 = vld [vmem:[%s0 + $0x2dc] sm:$0xf]
    %v215 = vld [vmem:[%s0 + $0x2e0] sm:$0xf]
    %v216 = vld [vmem:[%s0 + $0x2e4] sm:$0xf]
    %v217 = vld [vmem:[%s0 + $0x2e8] sm:$0xf]
    %v218 = vld [vmem:[%s0 + $0x2ec] sm:$0xf]
    %v219 = vld [vmem:[%s0 + $0x2f0] sm:$0xf]
    %v220 = vld [vmem:[%s0 + $0x2f4] sm:$0xf]
    %v221 = vld [vmem:[%s0 + $0x2f8] sm:$0xf]
    %v222 = vld [vmem:[%s0 + $0x2fc] sm:$0xf]
    %v223 = vld [vmem:[%s0 + $0x300] sm:$0xf]
    %v224 = vld [vmem:[%s0 + $0x304] sm:$0xf]
    %v225 = vld [vmem:[%s0 + $0x308] sm:$0xf]
    %v226 = vld [vmem:[%s0 + $0x30c] sm:$0xf]
    %v227 = vld [vmem:[%s0 + $0x310] sm:$0xf]
    %v228 = vld [vmem:[%s0 + $0x314] sm:$0xf]
    %v229 = vld [vmem:[%s0 + $0x318] sm:$0xf]
    %v230 = vld [vmem:[%s0 + $0x31c] sm:$0xf]
    %v231 = vld [vmem:[%s0 + $0x320] sm:$0xf]
    %v232 = vld [vmem:[%s0 + $0x324] sm:$0xf]
    %v233 = vld [vmem:[%s0 + $0x328] sm:$0xf]
    %v234 = vld [vmem:[%s0 + $0x32c] sm:$0xf]
    %v235 = vld [vmem:[%s0 + $0x330] sm:$0xf]
    %v236 = vld [vmem:[%s0 + $0x334] sm:$0xf]
    %v237 = vld [vmem:[%s0 + $0x338] sm:$0xf]
    %v238 = vld [vmem:[%s0 + $0x33c] sm:$0xf]
    %v239 = vld [vmem:[%s0 + $0x340] sm:$0xf]
    %v240 = vld [vmem:[%s0 + $0x344] sm:$0xf]
    %v241 = vld [vmem:[%s0 + $0x348] sm:$0xf]
    %v242 = vld [vmem:[%s0 + $0x34c] sm:$0xf]
    %v243 = vld [vmem:[%s0 + $0x350] sm:$0xf]
    %v244 = vld [vmem:[%s0 + $0x354] sm:$0xf]
    %v245 = vld [vmem:[%s0 + $0x358] sm:$0xf]
    %v246 = vld [vmem:[%s0 + $0x35c] sm:$0xf]
    %v247 = vld [vmem:[%s0 + $0x360] sm:$0xf]
    %v248 = vld [vmem:[%s0 + $0x364] sm:$0xf]
    %v249 = vld [vmem:[%s0 + $0x368] sm:$0xf]
    %v250 = vld [vmem:[%s0 + $0x36c] sm:$0xf]
    %v251 = vld [vmem:[%s0 + $0x370] sm:$0xf]
    %v252 = vld [vmem:[%s0 + $0x374] sm:$0xf]
    %v253 = vld [vmem:[%s0 + $0x378] sm:$0xf]
    %v254 = vld [vmem:[%s0 + $0x37c] sm:$0xf]
    %v255 = vld [vmem:[%s0 + $0x380] sm:$0xf]
    %v256 = vld [vmem:[%s0 + $0x384] sm:$0xf]
    %v257 = vld [vmem:[%s0 + $0x388] sm:$0xf]
    %v258 = vld [vmem:[%s0 + $0x38c] sm:$0xf]
    %v259 = vld [vmem:[%s0 + $0x390] sm:$0xf]
    %v260 = vld [vmem:[%s0 + $0x394] sm:$0xf]
    %v261 = vld [vmem:[%s0 + $0x398] sm:$0xf]
    %v262 = vld [vmem:[%s0 + $0x39c] sm:$0xf]
    %v263 = vld [vmem:[%s0 + $0x3a0] sm:$0xf]
    %v264 = vld [vmem:[%s0 + $0x3a4] sm:$0xf]
    %v265 = vld [vmem:[%s0 + $0x3a8] sm:$0xf]
    %v266 = vld [vmem:[%s0 + $0x3ac] sm:$0xf]
    %v267 = vld [vmem:[%s0 + $0x3b0] sm:$0xf]
    %v268 = vld [vmem:[%s0 + $0x3b4] sm:$0xf]
    %v269 = vld [vmem:[%s0 + $0x3b8] sm:$0xf]
    %v270 = vld [vmem:[%s0 + $0x3bc] sm:$0xf]
    %v271 = vld [vmem:[%s0 + $0x3c0] sm:$0xf]
    %v272 = vld [vmem:[%s0 + $0x3c4] sm:$0xf]
    %v273 = vld [vmem:[%s0 + $0x3c8] sm:$0xf]
    %v274 = vld [vmem:[%s0 + $0x3cc] sm:$0xf]
    %v275 = vld [vmem:[%s0 + $0x3d0] sm:$0xf]
    %v276 = vld [vmem:[%s0 + $0x3d4] sm:$0xf]
    %v277 = vld [vmem:[%s0 + $0x3d8] sm:$0xf]
    %v278 = vld [vmem:[%s0 + $0x3dc] sm:$0xf]
    %v279 = vld [vmem:[%s0 + $0x3e0] sm:$0xf]
    %v280 = vld [vmem:[%s0 + $0x3e4] sm:$0xf]
    %v281 = vld [vmem:[%s0 + $0x3e8] sm:$0xf]
    %v282 = vld [vmem:[%s0 + $0x3ec] sm:$0xf]
    %v283 = vld [vmem:[%s0 + $0x3f0] sm:$0xf]
    %v284 = vld [vmem:[%s0 + $0x3f4] sm:$0xf]
    %v285 = vld [vmem:[%s0 + $0x3f8] sm:$0xf]
    %v286 = vld [vmem:[%s0 + $0x3fc] sm:$0xf]
    %v287 = vunpack.c.l.bf16 %v31
    %v288 = vunpack.c.l.bf16 %v32
    %v289 = vunpack.c.l.bf16 %v33
    %v290 = vunpack.c.l.bf16 %v34
    %v291 = vunpack.c.l.bf16 %v35
    %v292 = vunpack.c.l.bf16 %v36
    %v293 = vunpack.c.l.bf16 %v37
    %v294 = vunpack.c.l.bf16 %v38
    %v295 = vunpack.c.l.bf16 %v39
    %v296 = vunpack.c.l.bf16 %v40
    %v297 = vunpack.c.l.bf16 %v41
    %v298 = vunpack.c.l.bf16 %v42
    %v299 = vunpack.c.l.bf16 %v43
    %v300 = vunpack.c.l.bf16 %v44
    %v301 = vunpack.c.l.bf16 %v45
    %v302 = vunpack.c.l.bf16 %v46
    %v303 = vunpack.c.l.bf16 %v47
    %v304 = vunpack.c.l.bf16 %v48
    %v305 = vunpack.c.l.bf16 %v49
    %v306 = vunpack.c.l.bf16 %v50
    %v307 = vunpack.c.l.bf16 %v51
    %v308 = vunpack.c.l.bf16 %v52
    %v309 = vunpack.c.l.bf16 %v53
    %v310 = vunpack.c.l.bf16 %v54
    %v311 = vunpack.c.l.bf16 %v55
    %v312 = vunpack.c.l.bf16 %v56
    %v313 = vunpack.c.l.bf16 %v57
    %v314 = vunpack.c.l.bf16 %v58
    %v315 = vunpack.c.l.bf16 %v59
    %v316 = vunpack.c.l.bf16 %v60
    %v317 = vunpack.c.l.bf16 %v61
    %v318 = vunpack.c.l.bf16 %v62
    %v319 = vunpack.c.l.bf16 %v63
    %v320 = vunpack.c.l.bf16 %v64
    %v321 = vunpack.c.l.bf16 %v65
    %v322 = vunpack.c.l.bf16 %v66
    %v323 = vunpack.c.l.bf16 %v67
    %v324 = vunpack.c.l.bf16 %v68
    %v325 = vunpack.c.l.bf16 %v69
    %v326 = vunpack.c.l.bf16 %v70
    %v327 = vunpack.c.l.bf16 %v71
    %v328 = vunpack.c.l.bf16 %v72
    %v329 = vunpack.c.l.bf16 %v73
    %v330 = vunpack.c.l.bf16 %v74
    %v331 = vunpack.c.l.bf16 %v75
    %v332 = vunpack.c.l.bf16 %v76
    %v333 = vunpack.c.l.bf16 %v77
    %v334 = vunpack.c.l.bf16 %v78
    %v335 = vunpack.c.l.bf16 %v79
    %v336 = vunpack.c.l.bf16 %v80
    %v337 = vunpack.c.l.bf16 %v81
    %v338 = vunpack.c.l.bf16 %v82
    %v339 = vunpack.c.l.bf16 %v83
    %v340 = vunpack.c.l.bf16 %v84
    %v341 = vunpack.c.l.bf16 %v85
    %v342 = vunpack.c.l.bf16 %v86
    %v343 = vunpack.c.l.bf16 %v87
    %v344 = vunpack.c.l.bf16 %v88
    %v345 = vunpack.c.l.bf16 %v89
    %v346 = vunpack.c.l.bf16 %v90
    %v347 = vunpack.c.l.bf16 %v91
    %v348 = vunpack.c.l.bf16 %v92
    %v349 = vunpack.c.l.bf16 %v93
    %v350 = vunpack.c.l.bf16 %v94
    %v351 = vunpack.c.l.bf16 %v95
    %v352 = vunpack.c.l.bf16 %v96
    %v353 = vunpack.c.l.bf16 %v97
    %v354 = vunpack.c.l.bf16 %v98
    %v355 = vunpack.c.l.bf16 %v99
    %v356 = vunpack.c.l.bf16 %v100
    %v357 = vunpack.c.l.bf16 %v101
    %v358 = vunpack.c.l.bf16 %v102
    %v359 = vunpack.c.l.bf16 %v103
    %v360 = vunpack.c.l.bf16 %v104
    %v361 = vunpack.c.l.bf16 %v105
    %v362 = vunpack.c.l.bf16 %v106
    %v363 = vunpack.c.l.bf16 %v107
    %v364 = vunpack.c.l.bf16 %v108
    %v365 = vunpack.c.l.bf16 %v109
    %v366 = vunpack.c.l.bf16 %v110
    %v367 = vunpack.c.l.bf16 %v111
    %v368 = vunpack.c.l.bf16 %v112
    %v369 = vunpack.c.l.bf16 %v113
    %v370 = vunpack.c.l.bf16 %v114
    %v371 = vunpack.c.l.bf16 %v115
    %v372 = vunpack.c.l.bf16 %v116
    %v373 = vunpack.c.l.bf16 %v117
    %v374 = vunpack.c.l.bf16 %v118
    %v375 = vunpack.c.l.bf16 %v119
    %v376 = vunpack.c.l.bf16 %v120
    %v377 = vunpack.c.l.bf16 %v121
    %v378 = vunpack.c.l.bf16 %v122
    %v379 = vunpack.c.l.bf16 %v123
    %v380 = vunpack.c.l.bf16 %v124
    %v381 = vunpack.c.l.bf16 %v125
    %v382 = vunpack.c.l.bf16 %v126
    %v383 = vunpack.c.l.bf16 %v127
    %v384 = vunpack.c.l.bf16 %v128
    %v385 = vunpack.c.l.bf16 %v129
    %v386 = vunpack.c.l.bf16 %v130
    %v387 = vunpack.c.l.bf16 %v131
    %v388 = vunpack.c.l.bf16 %v132
    %v389 = vunpack.c.l.bf16 %v133
    %v390 = vunpack.c.l.bf16 %v134
    %v391 = vunpack.c.l.bf16 %v135
    %v392 = vunpack.c.l.bf16 %v136
    %v393 = vunpack.c.l.bf16 %v137
    %v394 = vunpack.c.l.bf16 %v138
    %v395 = vunpack.c.l.bf16 %v139
    %v396 = vunpack.c.l.bf16 %v140
    %v397 = vunpack.c.l.bf16 %v141
    %v398 = vunpack.c.l.bf16 %v142
    %v399 = vunpack.c.l.bf16 %v143
    %v400 = vunpack.c.l.bf16 %v144
    %v401 = vunpack.c.l.bf16 %v145
    %v402 = vunpack.c.l.bf16 %v146
    %v403 = vunpack.c.l.bf16 %v147
    %v404 = vunpack.c.l.bf16 %v148
    %v405 = vunpack.c.l.bf16 %v149
    %v406 = vunpack.c.l.bf16 %v150
    %v407 = vunpack.c.l.bf16 %v151
    %v408 = vunpack.c.l.bf16 %v152
    %v409 = vunpack.c.l.bf16 %v153
    %v410 = vunpack.c.l.bf16 %v154
    %v411 = vunpack.c.l.bf16 %v155
    %v412 = vunpack.c.l.bf16 %v156
    %v413 = vunpack.c.l.bf16 %v157
    %v414 = vunpack.c.l.bf16 %v158
    %v415 = vunpack.c.l.bf16 %v159
    %v416 = vunpack.c.l.bf16 %v160
    %v417 = vunpack.c.l.bf16 %v161
    %v418 = vunpack.c.l.bf16 %v162
    %v419 = vunpack.c.l.bf16 %v163
    %v420 = vunpack.c.l.bf16 %v164
    %v421 = vunpack.c.l.bf16 %v165
    %v422 = vunpack.c.l.bf16 %v166
    %v423 = vunpack.c.l.bf16 %v167
    %v424 = vunpack.c.l.bf16 %v168
    %v425 = vunpack.c.l.bf16 %v169
    %v426 = vunpack.c.l.bf16 %v170
    %v427 = vunpack.c.l.bf16 %v171
    %v428 = vunpack.c.l.bf16 %v172
    %v429 = vunpack.c.l.bf16 %v173
    %v430 = vunpack.c.l.bf16 %v174
    %v431 = vunpack.c.l.bf16 %v175
    %v432 = vunpack.c.l.bf16 %v176
    %v433 = vunpack.c.l.bf16 %v177
    %v434 = vunpack.c.l.bf16 %v178
    %v435 = vunpack.c.l.bf16 %v179
    %v436 = vunpack.c.l.bf16 %v180
    %v437 = vunpack.c.l.bf16 %v181
    %v438 = vunpack.c.l.bf16 %v182
    %v439 = vunpack.c.l.bf16 %v183
    %v440 = vunpack.c.l.bf16 %v184
    %v441 = vunpack.c.l.bf16 %v185
    %v442 = vunpack.c.l.bf16 %v186
    %v443 = vunpack.c.l.bf16 %v187
    %v444 = vunpack.c.l.bf16 %v188
    %v445 = vunpack.c.l.bf16 %v189
    %v446 = vunpack.c.l.bf16 %v190
    %v447 = vunpack.c.l.bf16 %v191
    %v448 = vunpack.c.l.bf16 %v192
    %v449 = vunpack.c.l.bf16 %v193
    %v450 = vunpack.c.l.bf16 %v194
    %v451 = vunpack.c.l.bf16 %v195
    %v452 = vunpack.c.l.bf16 %v196
    %v453 = vunpack.c.l.bf16 %v197
    %v454 = vunpack.c.l.bf16 %v198
    %v455 = vunpack.c.l.bf16 %v199
    %v456 = vunpack.c.l.bf16 %v200
    %v457 = vunpack.c.l.bf16 %v201
    %v458 = vunpack.c.l.bf16 %v202
    %v459 = vunpack.c.l.bf16 %v203
    %v460 = vunpack.c.l.bf16 %v204
    %v461 = vunpack.c.l.bf16 %v205
    %v462 = vunpack.c.l.bf16 %v206
    %v463 = vunpack.c.l.bf16 %v207
    %v464 = vunpack.c.l.bf16 %v208
    %v465 = vunpack.c.l.bf16 %v209
    %v466 = vunpack.c.l.bf16 %v210
    %v467 = vunpack.c.l.bf16 %v211
    %v468 = vunpack.c.l.bf16 %v212
    %v469 = vunpack.c.l.bf16 %v213
    %v470 = vunpack.c.l.bf16 %v214
    %v471 = vunpack.c.l.bf16 %v215
    %v472 = vunpack.c.l.bf16 %v216
    %v473 = vunpack.c.l.bf16 %v217
    %v474 = vunpack.c.l.bf16 %v218
    %v475 = vunpack.c.l.bf16 %v219
    %v476 = vunpack.c.l.bf16 %v220
    %v477 = vunpack.c.l.bf16 %v221
    %v478 = vunpack.c.l.bf16 %v222
    %v479 = vunpack.c.l.bf16 %v223
    %v480 = vunpack.c.l.bf16 %v224
    %v481 = vunpack.c.l.bf16 %v225
    %v482 = vunpack.c.l.bf16 %v226
    %v483 = vunpack.c.l.bf16 %v227
    %v484 = vunpack.c.l.bf16 %v228
    %v485 = vunpack.c.l.bf16 %v229
    %v486 = vunpack.c.l.bf16 %v230
    %v487 = vunpack.c.l.bf16 %v231
    %v488 = vunpack.c.l.bf16 %v232
    %v489 = vunpack.c.l.bf16 %v233
    %v490 = vunpack.c.l.bf16 %v234
    %v491 = vunpack.c.l.bf16 %v235
    %v492 = vunpack.c.l.bf16 %v236
    %v493 = vunpack.c.l.bf16 %v237
    %v494 = vunpack.c.l.bf16 %v238
    %v495 = vunpack.c.l.bf16 %v239
    %v496 = vunpack.c.l.bf16 %v240
    %v497 = vunpack.c.l.bf16 %v241
    %v498 = vunpack.c.l.bf16 %v242
    %v499 = vunpack.c.l.bf16 %v243
    %v500 = vunpack.c.l.bf16 %v244
    %v501 = vunpack.c.l.bf16 %v245
    %v502 = vunpack.c.l.bf16 %v246
    %v503 = vunpack.c.l.bf16 %v247
    %v504 = vunpack.c.l.bf16 %v248
    %v505 = vunpack.c.l.bf16 %v249
    %v506 = vunpack.c.l.bf16 %v250
    %v507 = vunpack.c.l.bf16 %v251
    %v508 = vunpack.c.l.bf16 %v252
    %v509 = vunpack.c.l.bf16 %v253
    %v510 = vunpack.c.l.bf16 %v254
    %v511 = vunpack.c.l.bf16 %v255
    %v512 = vunpack.c.l.bf16 %v256
    %v513 = vunpack.c.l.bf16 %v257
    %v514 = vunpack.c.l.bf16 %v258
    %v515 = vunpack.c.l.bf16 %v259
    %v516 = vunpack.c.l.bf16 %v260
    %v517 = vunpack.c.l.bf16 %v261
    %v518 = vunpack.c.l.bf16 %v262
    %v519 = vunpack.c.l.bf16 %v263
    %v520 = vunpack.c.l.bf16 %v264
    %v521 = vunpack.c.l.bf16 %v265
    %v522 = vunpack.c.l.bf16 %v266
    %v523 = vunpack.c.l.bf16 %v267
    %v524 = vunpack.c.l.bf16 %v268
    %v525 = vunpack.c.l.bf16 %v269
    %v526 = vunpack.c.l.bf16 %v270
    %v527 = vunpack.c.l.bf16 %v271
    %v528 = vunpack.c.l.bf16 %v272
    %v529 = vunpack.c.l.bf16 %v273
    %v530 = vunpack.c.l.bf16 %v274
    %v531 = vunpack.c.l.bf16 %v275
    %v532 = vunpack.c.l.bf16 %v276
    %v533 = vunpack.c.l.bf16 %v277
    %v534 = vunpack.c.l.bf16 %v278
    %v535 = vunpack.c.l.bf16 %v279
    %v536 = vunpack.c.l.bf16 %v280
    %v537 = vunpack.c.l.bf16 %v281
    %v538 = vunpack.c.l.bf16 %v282
    %v539 = vunpack.c.l.bf16 %v283
    %v540 = vunpack.c.l.bf16 %v284
    %v541 = vunpack.c.l.bf16 %v285
    %v542 = vunpack.c.l.bf16 %v286
    %v543 = vld [vmem:[%s1] sm:$0xf]
    %v544 = vld [vmem:[%s1 + $0x4] sm:$0x3]
    %v545 = vld [vmem:[%s3] sm:$0x1]
    %798 = vrot.lane.b32.xlu0 %v289, 4
    %v799 = vpop.permute.xlu0 %798
    %800 = vrot.lane.b32.xlu0 %v290, 4
    %v801 = vpop.permute.xlu0 %800
    %802 = vrot.lane.b32.xlu0 %v291, 4
    %v803 = vpop.permute.xlu0 %802
    %804 = vrot.lane.b32.xlu0 %v292, 4
    %v805 = vpop.permute.xlu0 %804
    %806 = vrot.lane.b32.xlu0 %v293, 4
    %v807 = vpop.permute.xlu0 %806
    %808 = vrot.lane.b32.xlu0 %v294, 4
    %v809 = vpop.permute.xlu0 %808
    %810 = vrot.lane.b32.xlu0 %v295, 4
    %v811 = vpop.permute.xlu0 %810
    %812 = vrot.lane.b32.xlu0 %v296, 4
    %v813 = vpop.permute.xlu0 %812
    %814 = vrot.lane.b32.xlu0 %v297, 4
    %v815 = vpop.permute.xlu0 %814
    %816 = vrot.lane.b32.xlu0 %v298, 4
    %v817 = vpop.permute.xlu0 %816
    %818 = vrot.lane.b32.xlu0 %v299, 4
    %v819 = vpop.permute.xlu0 %818
    %820 = vrot.lane.b32.xlu0 %v300, 4
    %v821 = vpop.permute.xlu0 %820
    %822 = vrot.lane.b32.xlu0 %v301, 4
    %v823 = vpop.permute.xlu0 %822
    %824 = vrot.lane.b32.xlu0 %v302, 4
    %v825 = vpop.permute.xlu0 %824
    %826 = vrot.lane.b32.xlu0 %v303, 4
    %v827 = vpop.permute.xlu0 %826
    %828 = vrot.lane.b32.xlu0 %v304, 4
    %v829 = vpop.permute.xlu0 %828
    %830 = vrot.lane.b32.xlu0 %v305, 4
    %v831 = vpop.permute.xlu0 %830
    %832 = vrot.lane.b32.xlu0 %v306, 4
    %v833 = vpop.permute.xlu0 %832
    %834 = vrot.lane.b32.xlu0 %v307, 4
    %v835 = vpop.permute.xlu0 %834
    %836 = vrot.lane.b32.xlu0 %v308, 4
    %v837 = vpop.permute.xlu0 %836
    %838 = vrot.lane.b32.xlu0 %v309, 4
    %v839 = vpop.permute.xlu0 %838
    %840 = vrot.lane.b32.xlu0 %v310, 4
    %v841 = vpop.permute.xlu0 %840
    %842 = vrot.lane.b32.xlu0 %v311, 4
    %v843 = vpop.permute.xlu0 %842
    %844 = vrot.lane.b32.xlu0 %v312, 4
    %v845 = vpop.permute.xlu0 %844
    %846 = vrot.lane.b32.xlu0 %v313, 4
    %v847 = vpop.permute.xlu0 %846
    %848 = vrot.lane.b32.xlu0 %v314, 4
    %v849 = vpop.permute.xlu0 %848
    %850 = vrot.lane.b32.xlu0 %v315, 4
    %v851 = vpop.permute.xlu0 %850
    %852 = vrot.lane.b32.xlu0 %v316, 4
    %v853 = vpop.permute.xlu0 %852
    %854 = vrot.lane.b32.xlu0 %v317, 4
    %v855 = vpop.permute.xlu0 %854
    %856 = vrot.lane.b32.xlu0 %v318, 4
    %v857 = vpop.permute.xlu0 %856
    %858 = vrot.lane.b32.xlu0 %v319, 4
    %v859 = vpop.permute.xlu0 %858
    %860 = vrot.lane.b32.xlu0 %v320, 4
    %v861 = vpop.permute.xlu0 %860
    %862 = vrot.lane.b32.xlu0 %v321, 4
    %v863 = vpop.permute.xlu0 %862
    %864 = vrot.lane.b32.xlu0 %v322, 4
    %v865 = vpop.permute.xlu0 %864
    %866 = vrot.lane.b32.xlu0 %v323, 4
    %v867 = vpop.permute.xlu0 %866
    %868 = vrot.lane.b32.xlu0 %v324, 4
    %v869 = vpop.permute.xlu0 %868
    %870 = vrot.lane.b32.xlu0 %v325, 4
    %v871 = vpop.permute.xlu0 %870
    %872 = vrot.lane.b32.xlu0 %v326, 4
    %v873 = vpop.permute.xlu0 %872
    %874 = vrot.lane.b32.xlu0 %v327, 4
    %v875 = vpop.permute.xlu0 %874
    %876 = vrot.lane.b32.xlu0 %v328, 4
    %v877 = vpop.permute.xlu0 %876
    %878 = vrot.lane.b32.xlu0 %v329, 4
    %v879 = vpop.permute.xlu0 %878
    %880 = vrot.lane.b32.xlu0 %v330, 4
    %v881 = vpop.permute.xlu0 %880
    %882 = vrot.lane.b32.xlu0 %v331, 4
    %v883 = vpop.permute.xlu0 %882
    %884 = vrot.lane.b32.xlu0 %v332, 4
    %v885 = vpop.permute.xlu0 %884
    %886 = vrot.lane.b32.xlu0 %v333, 4
    %v887 = vpop.permute.xlu0 %886
    %888 = vrot.lane.b32.xlu0 %v334, 4
    %v889 = vpop.permute.xlu0 %888
    %890 = vrot.lane.b32.xlu0 %v335, 4
    %v891 = vpop.permute.xlu0 %890
    %892 = vrot.lane.b32.xlu0 %v336, 4
    %v893 = vpop.permute.xlu0 %892
    %894 = vrot.lane.b32.xlu0 %v337, 4
    %v895 = vpop.permute.xlu0 %894
    %896 = vrot.lane.b32.xlu0 %v338, 4
    %v897 = vpop.permute.xlu0 %896
    %898 = vrot.lane.b32.xlu0 %v339, 4
    %v899 = vpop.permute.xlu0 %898
    %900 = vrot.lane.b32.xlu0 %v340, 4
    %v901 = vpop.permute.xlu0 %900
    %902 = vrot.lane.b32.xlu0 %v341, 4
    %v903 = vpop.permute.xlu0 %902
    %904 = vrot.lane.b32.xlu0 %v342, 4
    %v905 = vpop.permute.xlu0 %904
    %906 = vrot.lane.b32.xlu0 %v343, 4
    %v907 = vpop.permute.xlu0 %906
    %908 = vrot.lane.b32.xlu0 %v344, 4
    %v909 = vpop.permute.xlu0 %908
    %910 = vrot.lane.b32.xlu0 %v345, 4
    %v911 = vpop.permute.xlu0 %910
    %912 = vrot.lane.b32.xlu0 %v346, 4
    %v913 = vpop.permute.xlu0 %912
    %914 = vrot.lane.b32.xlu0 %v347, 4
    %v915 = vpop.permute.xlu0 %914
    %916 = vrot.lane.b32.xlu0 %v348, 4
    %v917 = vpop.permute.xlu0 %916
    %918 = vrot.lane.b32.xlu0 %v349, 4
    %v919 = vpop.permute.xlu0 %918
    %920 = vrot.lane.b32.xlu0 %v350, 4
    %v921 = vpop.permute.xlu0 %920
    %922 = vrot.lane.b32.xlu0 %v351, 4
    %v923 = vpop.permute.xlu0 %922
    %924 = vrot.lane.b32.xlu0 %v352, 4
    %v925 = vpop.permute.xlu0 %924
    %926 = vrot.lane.b32.xlu0 %v353, 4
    %v927 = vpop.permute.xlu0 %926
    %928 = vrot.lane.b32.xlu0 %v354, 4
    %v929 = vpop.permute.xlu0 %928
    %930 = vrot.lane.b32.xlu0 %v355, 4
    %v931 = vpop.permute.xlu0 %930
    %932 = vrot.lane.b32.xlu0 %v356, 4
    %v933 = vpop.permute.xlu0 %932
    %934 = vrot.lane.b32.xlu0 %v357, 4
    %v935 = vpop.permute.xlu0 %934
    %936 = vrot.lane.b32.xlu0 %v358, 4
    %v937 = vpop.permute.xlu0 %936
    %938 = vrot.lane.b32.xlu0 %v359, 4
    %v939 = vpop.permute.xlu0 %938
    %940 = vrot.lane.b32.xlu0 %v360, 4
    %v941 = vpop.permute.xlu0 %940
    %942 = vrot.lane.b32.xlu0 %v361, 4
    %v943 = vpop.permute.xlu0 %942
    %944 = vrot.lane.b32.xlu0 %v362, 4
    %v945 = vpop.permute.xlu0 %944
    %946 = vrot.lane.b32.xlu0 %v363, 4
    %v947 = vpop.permute.xlu0 %946
    %948 = vrot.lane.b32.xlu0 %v364, 4
    %v949 = vpop.permute.xlu0 %948
    %950 = vrot.lane.b32.xlu0 %v365, 4
    %v951 = vpop.permute.xlu0 %950
    %952 = vrot.lane.b32.xlu0 %v366, 4
    %v953 = vpop.permute.xlu0 %952
    %954 = vrot.lane.b32.xlu0 %v367, 4
    %v955 = vpop.permute.xlu0 %954
    %956 = vrot.lane.b32.xlu0 %v368, 4
    %v957 = vpop.permute.xlu0 %956
    %958 = vrot.lane.b32.xlu0 %v369, 4
    %v959 = vpop.permute.xlu0 %958
    %960 = vrot.lane.b32.xlu0 %v370, 4
    %v961 = vpop.permute.xlu0 %960
    %962 = vrot.lane.b32.xlu0 %v371, 4
    %v963 = vpop.permute.xlu0 %962
    %964 = vrot.lane.b32.xlu0 %v372, 4
    %v965 = vpop.permute.xlu0 %964
    %966 = vrot.lane.b32.xlu0 %v373, 4
    %v967 = vpop.permute.xlu0 %966
    %968 = vrot.lane.b32.xlu0 %v374, 4
    %v969 = vpop.permute.xlu0 %968
    %970 = vrot.lane.b32.xlu0 %v375, 4
    %v971 = vpop.permute.xlu0 %970
    %972 = vrot.lane.b32.xlu0 %v376, 4
    %v973 = vpop.permute.xlu0 %972
    %974 = vrot.lane.b32.xlu0 %v377, 4
    %v975 = vpop.permute.xlu0 %974
    %976 = vrot.lane.b32.xlu0 %v378, 4
    %v977 = vpop.permute.xlu0 %976
    %978 = vrot.lane.b32.xlu0 %v379, 4
    %v979 = vpop.permute.xlu0 %978
    %980 = vrot.lane.b32.xlu0 %v380, 4
    %v981 = vpop.permute.xlu0 %980
    %982 = vrot.lane.b32.xlu0 %v381, 4
    %v983 = vpop.permute.xlu0 %982
    %984 = vrot.lane.b32.xlu0 %v382, 4
    %v985 = vpop.permute.xlu0 %984
    %986 = vrot.lane.b32.xlu0 %v383, 4
    %v987 = vpop.permute.xlu0 %986
    %988 = vrot.lane.b32.xlu0 %v384, 4
    %v989 = vpop.permute.xlu0 %988
    %990 = vrot.lane.b32.xlu0 %v385, 4
    %v991 = vpop.permute.xlu0 %990
    %992 = vrot.lane.b32.xlu0 %v386, 4
    %v993 = vpop.permute.xlu0 %992
    %994 = vrot.lane.b32.xlu0 %v387, 4
    %v995 = vpop.permute.xlu0 %994
    %996 = vrot.lane.b32.xlu0 %v388, 4
    %v997 = vpop.permute.xlu0 %996
    %998 = vrot.lane.b32.xlu0 %v389, 4
    %v999 = vpop.permute.xlu0 %998
    %1000 = vrot.lane.b32.xlu0 %v390, 4
    %v1001 = vpop.permute.xlu0 %1000
    %1002 = vrot.lane.b32.xlu0 %v391, 4
    %v1003 = vpop.permute.xlu0 %1002
    %1004 = vrot.lane.b32.xlu0 %v392, 4
    %v1005 = vpop.permute.xlu0 %1004
    %1006 = vrot.lane.b32.xlu0 %v393, 4
    %v1007 = vpop.permute.xlu0 %1006
    %1008 = vrot.lane.b32.xlu0 %v394, 4
    %v1009 = vpop.permute.xlu0 %1008
    %1010 = vrot.lane.b32.xlu0 %v395, 4
    %v1011 = vpop.permute.xlu0 %1010
    %1012 = vrot.lane.b32.xlu0 %v396, 4
    %v1013 = vpop.permute.xlu0 %1012
    %1014 = vrot.lane.b32.xlu0 %v397, 4
    %v1015 = vpop.permute.xlu0 %1014
    %1016 = vrot.lane.b32.xlu0 %v398, 4
    %v1017 = vpop.permute.xlu0 %1016
    %1018 = vrot.lane.b32.xlu0 %v399, 4
    %v1019 = vpop.permute.xlu0 %1018
    %1020 = vrot.lane.b32.xlu0 %v400, 4
    %v1021 = vpop.permute.xlu0 %1020
    %1022 = vrot.lane.b32.xlu0 %v401, 4
    %v1023 = vpop.permute.xlu0 %1022
    %1024 = vrot.lane.b32.xlu0 %v402, 4
    %v1025 = vpop.permute.xlu0 %1024
    %1026 = vrot.lane.b32.xlu0 %v403, 4
    %v1027 = vpop.permute.xlu0 %1026
    %1028 = vrot.lane.b32.xlu0 %v404, 4
    %v1029 = vpop.permute.xlu0 %1028
    %1030 = vrot.lane.b32.xlu0 %v405, 4
    %v1031 = vpop.permute.xlu0 %1030
    %1032 = vrot.lane.b32.xlu0 %v406, 4
    %v1033 = vpop.permute.xlu0 %1032
    %1034 = vrot.lane.b32.xlu0 %v407, 4
    %v1035 = vpop.permute.xlu0 %1034
    %1036 = vrot.lane.b32.xlu0 %v408, 4
    %v1037 = vpop.permute.xlu0 %1036
    %1038 = vrot.lane.b32.xlu0 %v409, 4
    %v1039 = vpop.permute.xlu0 %1038
    %1040 = vrot.lane.b32.xlu0 %v410, 4
    %v1041 = vpop.permute.xlu0 %1040
    %1042 = vrot.lane.b32.xlu0 %v411, 4
    %v1043 = vpop.permute.xlu0 %1042
    %1044 = vrot.lane.b32.xlu0 %v412, 4
    %v1045 = vpop.permute.xlu0 %1044
    %1046 = vrot.lane.b32.xlu0 %v413, 4
    %v1047 = vpop.permute.xlu0 %1046
    %1048 = vrot.lane.b32.xlu0 %v414, 4
    %v1049 = vpop.permute.xlu0 %1048
    %1050 = vrot.lane.b32.xlu0 %v415, 4
    %v1051 = vpop.permute.xlu0 %1050
    %1052 = vrot.lane.b32.xlu0 %v416, 4
    %v1053 = vpop.permute.xlu0 %1052
    %1054 = vrot.lane.b32.xlu0 %v417, 4
    %v1055 = vpop.permute.xlu0 %1054
    %1056 = vrot.lane.b32.xlu0 %v418, 4
    %v1057 = vpop.permute.xlu0 %1056
    %1058 = vrot.lane.b32.xlu0 %v419, 4
    %v1059 = vpop.permute.xlu0 %1058
    %1060 = vrot.lane.b32.xlu0 %v420, 4
    %v1061 = vpop.permute.xlu0 %1060
    %1062 = vrot.lane.b32.xlu0 %v421, 4
    %v1063 = vpop.permute.xlu0 %1062
    %1064 = vrot.lane.b32.xlu0 %v422, 4
    %v1065 = vpop.permute.xlu0 %1064
    %1066 = vrot.lane.b32.xlu0 %v423, 4
    %v1067 = vpop.permute.xlu0 %1066
    %1068 = vrot.lane.b32.xlu0 %v424, 4
    %v1069 = vpop.permute.xlu0 %1068
    %1070 = vrot.lane.b32.xlu0 %v425, 4
    %v1071 = vpop.permute.xlu0 %1070
    %1072 = vrot.lane.b32.xlu0 %v426, 4
    %v1073 = vpop.permute.xlu0 %1072
    %1074 = vrot.lane.b32.xlu0 %v427, 4
    %v1075 = vpop.permute.xlu0 %1074
    %1076 = vrot.lane.b32.xlu0 %v428, 4
    %v1077 = vpop.permute.xlu0 %1076
    %1078 = vrot.lane.b32.xlu0 %v429, 4
    %v1079 = vpop.permute.xlu0 %1078
    %1080 = vrot.lane.b32.xlu0 %v430, 4
    %v1081 = vpop.permute.xlu0 %1080
    %1082 = vrot.lane.b32.xlu0 %v431, 4
    %v1083 = vpop.permute.xlu0 %1082
    %1084 = vrot.lane.b32.xlu0 %v432, 4
    %v1085 = vpop.permute.xlu0 %1084
    %1086 = vrot.lane.b32.xlu0 %v433, 4
    %v1087 = vpop.permute.xlu0 %1086
    %1088 = vrot.lane.b32.xlu0 %v434, 4
    %v1089 = vpop.permute.xlu0 %1088
    %1090 = vrot.lane.b32.xlu0 %v435, 4
    %v1091 = vpop.permute.xlu0 %1090
    %1092 = vrot.lane.b32.xlu0 %v436, 4
    %v1093 = vpop.permute.xlu0 %1092
    %1094 = vrot.lane.b32.xlu0 %v437, 4
    %v1095 = vpop.permute.xlu0 %1094
    %1096 = vrot.lane.b32.xlu0 %v438, 4
    %v1097 = vpop.permute.xlu0 %1096
    %1098 = vrot.lane.b32.xlu0 %v439, 4
    %v1099 = vpop.permute.xlu0 %1098
    %1100 = vrot.lane.b32.xlu0 %v440, 4
    %v1101 = vpop.permute.xlu0 %1100
    %1102 = vrot.lane.b32.xlu0 %v441, 4
    %v1103 = vpop.permute.xlu0 %1102
    %1104 = vrot.lane.b32.xlu0 %v442, 4
    %v1105 = vpop.permute.xlu0 %1104
    %1106 = vrot.lane.b32.xlu0 %v443, 4
    %v1107 = vpop.permute.xlu0 %1106
    %1108 = vrot.lane.b32.xlu0 %v444, 4
    %v1109 = vpop.permute.xlu0 %1108
    %1110 = vrot.lane.b32.xlu0 %v445, 4
    %v1111 = vpop.permute.xlu0 %1110
    %1112 = vrot.lane.b32.xlu0 %v446, 4
    %v1113 = vpop.permute.xlu0 %1112
    %1114 = vrot.lane.b32.xlu0 %v447, 4
    %v1115 = vpop.permute.xlu0 %1114
    %1116 = vrot.lane.b32.xlu0 %v448, 4
    %v1117 = vpop.permute.xlu0 %1116
    %1118 = vrot.lane.b32.xlu0 %v449, 4
    %v1119 = vpop.permute.xlu0 %1118
    %1120 = vrot.lane.b32.xlu0 %v450, 4
    %v1121 = vpop.permute.xlu0 %1120
    %1122 = vrot.lane.b32.xlu0 %v451, 4
    %v1123 = vpop.permute.xlu0 %1122
    %1124 = vrot.lane.b32.xlu0 %v452, 4
    %v1125 = vpop.permute.xlu0 %1124
    %1126 = vrot.lane.b32.xlu0 %v453, 4
    %v1127 = vpop.permute.xlu0 %1126
    %1128 = vrot.lane.b32.xlu0 %v454, 4
    %v1129 = vpop.permute.xlu0 %1128
    %1130 = vrot.lane.b32.xlu0 %v455, 4
    %v1131 = vpop.permute.xlu0 %1130
    %1132 = vrot.lane.b32.xlu0 %v456, 4
    %v1133 = vpop.permute.xlu0 %1132
    %1134 = vrot.lane.b32.xlu0 %v457, 4
    %v1135 = vpop.permute.xlu0 %1134
    %1136 = vrot.lane.b32.xlu0 %v458, 4
    %v1137 = vpop.permute.xlu0 %1136
    %1138 = vrot.lane.b32.xlu0 %v459, 4
    %v1139 = vpop.permute.xlu0 %1138
    %1140 = vrot.lane.b32.xlu0 %v460, 4
    %v1141 = vpop.permute.xlu0 %1140
    %1142 = vrot.lane.b32.xlu0 %v461, 4
    %v1143 = vpop.permute.xlu0 %1142
    %1144 = vrot.lane.b32.xlu0 %v462, 4
    %v1145 = vpop.permute.xlu0 %1144
    %1146 = vrot.lane.b32.xlu0 %v463, 4
    %v1147 = vpop.permute.xlu0 %1146
    %1148 = vrot.lane.b32.xlu0 %v464, 4
    %v1149 = vpop.permute.xlu0 %1148
    %1150 = vrot.lane.b32.xlu0 %v465, 4
    %v1151 = vpop.permute.xlu0 %1150
    %1152 = vrot.lane.b32.xlu0 %v466, 4
    %v1153 = vpop.permute.xlu0 %1152
    %1154 = vrot.lane.b32.xlu0 %v467, 4
    %v1155 = vpop.permute.xlu0 %1154
    %1156 = vrot.lane.b32.xlu0 %v468, 4
    %v1157 = vpop.permute.xlu0 %1156
    %1158 = vrot.lane.b32.xlu0 %v469, 4
    %v1159 = vpop.permute.xlu0 %1158
    %1160 = vrot.lane.b32.xlu0 %v470, 4
    %v1161 = vpop.permute.xlu0 %1160
    %1162 = vrot.lane.b32.xlu0 %v471, 4
    %v1163 = vpop.permute.xlu0 %1162
    %1164 = vrot.lane.b32.xlu0 %v472, 4
    %v1165 = vpop.permute.xlu0 %1164
    %1166 = vrot.lane.b32.xlu0 %v473, 4
    %v1167 = vpop.permute.xlu0 %1166
    %1168 = vrot.lane.b32.xlu0 %v474, 4
    %v1169 = vpop.permute.xlu0 %1168
    %1170 = vrot.lane.b32.xlu0 %v475, 4
    %v1171 = vpop.permute.xlu0 %1170
    %1172 = vrot.lane.b32.xlu0 %v476, 4
    %v1173 = vpop.permute.xlu0 %1172
    %1174 = vrot.lane.b32.xlu0 %v477, 4
    %v1175 = vpop.permute.xlu0 %1174
    %1176 = vrot.lane.b32.xlu0 %v478, 4
    %v1177 = vpop.permute.xlu0 %1176
    %1178 = vrot.lane.b32.xlu0 %v479, 4
    %v1179 = vpop.permute.xlu0 %1178
    %1180 = vrot.lane.b32.xlu0 %v480, 4
    %v1181 = vpop.permute.xlu0 %1180
    %1182 = vrot.lane.b32.xlu0 %v481, 4
    %v1183 = vpop.permute.xlu0 %1182
    %1184 = vrot.lane.b32.xlu0 %v482, 4
    %v1185 = vpop.permute.xlu0 %1184
    %1186 = vrot.lane.b32.xlu0 %v483, 4
    %v1187 = vpop.permute.xlu0 %1186
    %1188 = vrot.lane.b32.xlu0 %v484, 4
    %v1189 = vpop.permute.xlu0 %1188
    %1190 = vrot.lane.b32.xlu0 %v485, 4
    %v1191 = vpop.permute.xlu0 %1190
    %1192 = vrot.lane.b32.xlu0 %v486, 4
    %v1193 = vpop.permute.xlu0 %1192
    %1194 = vrot.lane.b32.xlu0 %v487, 4
    %v1195 = vpop.permute.xlu0 %1194
    %1196 = vrot.lane.b32.xlu0 %v488, 4
    %v1197 = vpop.permute.xlu0 %1196
    %1198 = vrot.lane.b32.xlu0 %v489, 4
    %v1199 = vpop.permute.xlu0 %1198
    %1200 = vrot.lane.b32.xlu0 %v490, 4
    %v1201 = vpop.permute.xlu0 %1200
    %1202 = vrot.lane.b32.xlu0 %v491, 4
    %v1203 = vpop.permute.xlu0 %1202
    %1204 = vrot.lane.b32.xlu0 %v492, 4
    %v1205 = vpop.permute.xlu0 %1204
    %1206 = vrot.lane.b32.xlu0 %v493, 4
    %v1207 = vpop.permute.xlu0 %1206
    %1208 = vrot.lane.b32.xlu0 %v494, 4
    %v1209 = vpop.permute.xlu0 %1208
    %1210 = vrot.lane.b32.xlu0 %v495, 4
    %v1211 = vpop.permute.xlu0 %1210
    %1212 = vrot.lane.b32.xlu0 %v496, 4
    %v1213 = vpop.permute.xlu0 %1212
    %1214 = vrot.lane.b32.xlu0 %v497, 4
    %v1215 = vpop.permute.xlu0 %1214
    %1216 = vrot.lane.b32.xlu0 %v498, 4
    %v1217 = vpop.permute.xlu0 %1216
    %1218 = vrot.lane.b32.xlu0 %v499, 4
    %v1219 = vpop.permute.xlu0 %1218
    %1220 = vrot.lane.b32.xlu0 %v500, 4
    %v1221 = vpop.permute.xlu0 %1220
    %1222 = vrot.lane.b32.xlu0 %v501, 4
    %v1223 = vpop.permute.xlu0 %1222
    %1224 = vrot.lane.b32.xlu0 %v502, 4
    %v1225 = vpop.permute.xlu0 %1224
    %1226 = vrot.lane.b32.xlu0 %v503, 4
    %v1227 = vpop.permute.xlu0 %1226
    %1228 = vrot.lane.b32.xlu0 %v504, 4
    %v1229 = vpop.permute.xlu0 %1228
    %1230 = vrot.lane.b32.xlu0 %v505, 4
    %v1231 = vpop.permute.xlu0 %1230
    %1232 = vrot.lane.b32.xlu0 %v506, 4
    %v1233 = vpop.permute.xlu0 %1232
    %1234 = vrot.lane.b32.xlu0 %v507, 4
    %v1235 = vpop.permute.xlu0 %1234
    %1236 = vrot.lane.b32.xlu0 %v508, 4
    %v1237 = vpop.permute.xlu0 %1236
    %1238 = vrot.lane.b32.xlu0 %v509, 4
    %v1239 = vpop.permute.xlu0 %1238
    %1240 = vrot.lane.b32.xlu0 %v510, 4
    %v1241 = vpop.permute.xlu0 %1240
    %1242 = vrot.lane.b32.xlu0 %v511, 4
    %v1243 = vpop.permute.xlu0 %1242
    %1244 = vrot.lane.b32.xlu0 %v512, 4
    %v1245 = vpop.permute.xlu0 %1244
    %1246 = vrot.lane.b32.xlu0 %v513, 4
    %v1247 = vpop.permute.xlu0 %1246
    %1248 = vrot.lane.b32.xlu0 %v514, 4
    %v1249 = vpop.permute.xlu0 %1248
    %1250 = vrot.lane.b32.xlu0 %v515, 4
    %v1251 = vpop.permute.xlu0 %1250
    %1252 = vrot.lane.b32.xlu0 %v516, 4
    %v1253 = vpop.permute.xlu0 %1252
    %1254 = vrot.lane.b32.xlu0 %v517, 4
    %v1255 = vpop.permute.xlu0 %1254
    %1256 = vrot.lane.b32.xlu0 %v518, 4
    %v1257 = vpop.permute.xlu0 %1256
    %1258 = vrot.lane.b32.xlu0 %v519, 4
    %v1259 = vpop.permute.xlu0 %1258
    %1260 = vrot.lane.b32.xlu0 %v520, 4
    %v1261 = vpop.permute.xlu0 %1260
    %1262 = vrot.lane.b32.xlu0 %v521, 4
    %v1263 = vpop.permute.xlu0 %1262
    %1264 = vrot.lane.b32.xlu0 %v522, 4
    %v1265 = vpop.permute.xlu0 %1264
    %1266 = vrot.lane.b32.xlu0 %v523, 4
    %v1267 = vpop.permute.xlu0 %1266
    %1268 = vrot.lane.b32.xlu0 %v524, 4
    %v1269 = vpop.permute.xlu0 %1268
    %1270 = vrot.lane.b32.xlu0 %v525, 4
    %v1271 = vpop.permute.xlu0 %1270
    %1272 = vrot.lane.b32.xlu0 %v526, 4
    %v1273 = vpop.permute.xlu0 %1272
    %1274 = vrot.lane.b32.xlu0 %v527, 4
    %v1275 = vpop.permute.xlu0 %1274
    %1276 = vrot.lane.b32.xlu0 %v528, 4
    %v1277 = vpop.permute.xlu0 %1276
    %1278 = vrot.lane.b32.xlu0 %v529, 4
    %v1279 = vpop.permute.xlu0 %1278
    %1280 = vrot.lane.b32.xlu0 %v530, 4
    %v1281 = vpop.permute.xlu0 %1280
    %1282 = vrot.lane.b32.xlu0 %v531, 4
    %v1283 = vpop.permute.xlu0 %1282
    %1284 = vrot.lane.b32.xlu0 %v532, 4
    %v1285 = vpop.permute.xlu0 %1284
    %1286 = vrot.lane.b32.xlu0 %v533, 4
    %v1287 = vpop.permute.xlu0 %1286
    %1288 = vrot.lane.b32.xlu0 %v534, 4
    %v1289 = vpop.permute.xlu0 %1288
    %1290 = vrot.lane.b32.xlu0 %v535, 4
    %v1291 = vpop.permute.xlu0 %1290
    %1292 = vrot.lane.b32.xlu0 %v536, 4
    %v1293 = vpop.permute.xlu0 %1292
    %1294 = vrot.lane.b32.xlu0 %v537, 4
    %v1295 = vpop.permute.xlu0 %1294
    %1296 = vrot.lane.b32.xlu0 %v538, 4
    %v1297 = vpop.permute.xlu0 %1296
    %1298 = vrot.lane.b32.xlu0 %v539, 4
    %v1299 = vpop.permute.xlu0 %1298
    %1300 = vrot.lane.b32.xlu0 %v540, 4
    %v1301 = vpop.permute.xlu0 %1300
    %1556 = vrot.lane.b32.xlu0 %v291, 8
    %v1557 = vpop.permute.xlu0 %1556
    %1558 = vrot.lane.b32.xlu0 %v292, 8
    %v1559 = vpop.permute.xlu0 %1558
    %1560 = vrot.lane.b32.xlu0 %v293, 8
    %v1561 = vpop.permute.xlu0 %1560
    %1562 = vrot.lane.b32.xlu0 %v294, 8
    %v1563 = vpop.permute.xlu0 %1562
    %1564 = vrot.lane.b32.xlu0 %v295, 8
    %v1565 = vpop.permute.xlu0 %1564
    %1566 = vrot.lane.b32.xlu0 %v296, 8
    %v1567 = vpop.permute.xlu0 %1566
    %1568 = vrot.lane.b32.xlu0 %v297, 8
    %v1569 = vpop.permute.xlu0 %1568
    %1570 = vrot.lane.b32.xlu0 %v298, 8
    %v1571 = vpop.permute.xlu0 %1570
    %1572 = vrot.lane.b32.xlu0 %v299, 8
    %v1573 = vpop.permute.xlu0 %1572
    %1574 = vrot.lane.b32.xlu0 %v300, 8
    %v1575 = vpop.permute.xlu0 %1574
    %1576 = vrot.lane.b32.xlu0 %v301, 8
    %v1577 = vpop.permute.xlu0 %1576
    %1578 = vrot.lane.b32.xlu0 %v302, 8
    %v1579 = vpop.permute.xlu0 %1578
    %1580 = vrot.lane.b32.xlu0 %v303, 8
    %v1581 = vpop.permute.xlu0 %1580
    %1582 = vrot.lane.b32.xlu0 %v304, 8
    %v1583 = vpop.permute.xlu0 %1582
    %1584 = vrot.lane.b32.xlu0 %v305, 8
    %v1585 = vpop.permute.xlu0 %1584
    %1586 = vrot.lane.b32.xlu0 %v306, 8
    %v1587 = vpop.permute.xlu0 %1586
    %1588 = vrot.lane.b32.xlu0 %v307, 8
    %v1589 = vpop.permute.xlu0 %1588
    %1590 = vrot.lane.b32.xlu0 %v308, 8
    %v1591 = vpop.permute.xlu0 %1590
    %1592 = vrot.lane.b32.xlu0 %v309, 8
    %v1593 = vpop.permute.xlu0 %1592
    %1594 = vrot.lane.b32.xlu0 %v310, 8
    %v1595 = vpop.permute.xlu0 %1594
    %1596 = vrot.lane.b32.xlu0 %v311, 8
    %v1597 = vpop.permute.xlu0 %1596
    %1598 = vrot.lane.b32.xlu0 %v312, 8
    %v1599 = vpop.permute.xlu0 %1598
    %1600 = vrot.lane.b32.xlu0 %v313, 8
    %v1601 = vpop.permute.xlu0 %1600
    %1602 = vrot.lane.b32.xlu0 %v314, 8
    %v1603 = vpop.permute.xlu0 %1602
    %1604 = vrot.lane.b32.xlu0 %v315, 8
    %v1605 = vpop.permute.xlu0 %1604
    %1606 = vrot.lane.b32.xlu0 %v316, 8
    %v1607 = vpop.permute.xlu0 %1606
    %1608 = vrot.lane.b32.xlu0 %v317, 8
    %v1609 = vpop.permute.xlu0 %1608
    %1610 = vrot.lane.b32.xlu0 %v318, 8
    %v1611 = vpop.permute.xlu0 %1610
    %1612 = vrot.lane.b32.xlu0 %v319, 8
    %v1613 = vpop.permute.xlu0 %1612
    %1614 = vrot.lane.b32.xlu0 %v320, 8
    %v1615 = vpop.permute.xlu0 %1614
    %1616 = vrot.lane.b32.xlu0 %v321, 8
    %v1617 = vpop.permute.xlu0 %1616
    %1618 = vrot.lane.b32.xlu0 %v322, 8
    %v1619 = vpop.permute.xlu0 %1618
    %1620 = vrot.lane.b32.xlu0 %v323, 8
    %v1621 = vpop.permute.xlu0 %1620
    %1622 = vrot.lane.b32.xlu0 %v324, 8
    %v1623 = vpop.permute.xlu0 %1622
    %1624 = vrot.lane.b32.xlu0 %v325, 8
    %v1625 = vpop.permute.xlu0 %1624
    %1626 = vrot.lane.b32.xlu0 %v326, 8
    %v1627 = vpop.permute.xlu0 %1626
    %1628 = vrot.lane.b32.xlu0 %v327, 8
    %v1629 = vpop.permute.xlu0 %1628
    %1630 = vrot.lane.b32.xlu0 %v328, 8
    %v1631 = vpop.permute.xlu0 %1630
    %1632 = vrot.lane.b32.xlu0 %v329, 8
    %v1633 = vpop.permute.xlu0 %1632
    %1634 = vrot.lane.b32.xlu0 %v330, 8
    %v1635 = vpop.permute.xlu0 %1634
    %1636 = vrot.lane.b32.xlu0 %v331, 8
    %v1637 = vpop.permute.xlu0 %1636
    %1638 = vrot.lane.b32.xlu0 %v332, 8
    %v1639 = vpop.permute.xlu0 %1638
    %1640 = vrot.lane.b32.xlu0 %v333, 8
    %v1641 = vpop.permute.xlu0 %1640
    %1642 = vrot.lane.b32.xlu0 %v334, 8
    %v1643 = vpop.permute.xlu0 %1642
    %1644 = vrot.lane.b32.xlu0 %v335, 8
    %v1645 = vpop.permute.xlu0 %1644
    %1646 = vrot.lane.b32.xlu0 %v336, 8
    %v1647 = vpop.permute.xlu0 %1646
    %1648 = vrot.lane.b32.xlu0 %v337, 8
    %v1649 = vpop.permute.xlu0 %1648
    %1650 = vrot.lane.b32.xlu0 %v338, 8
    %v1651 = vpop.permute.xlu0 %1650
    %1652 = vrot.lane.b32.xlu0 %v339, 8
    %v1653 = vpop.permute.xlu0 %1652
    %1654 = vrot.lane.b32.xlu0 %v340, 8
    %v1655 = vpop.permute.xlu0 %1654
    %1656 = vrot.lane.b32.xlu0 %v341, 8
    %v1657 = vpop.permute.xlu0 %1656
    %1658 = vrot.lane.b32.xlu0 %v342, 8
    %v1659 = vpop.permute.xlu0 %1658
    %1660 = vrot.lane.b32.xlu0 %v343, 8
    %v1661 = vpop.permute.xlu0 %1660
    %1662 = vrot.lane.b32.xlu0 %v344, 8
    %v1663 = vpop.permute.xlu0 %1662
    %1664 = vrot.lane.b32.xlu0 %v345, 8
    %v1665 = vpop.permute.xlu0 %1664
    %1666 = vrot.lane.b32.xlu0 %v346, 8
    %v1667 = vpop.permute.xlu0 %1666
    %1668 = vrot.lane.b32.xlu0 %v347, 8
    %v1669 = vpop.permute.xlu0 %1668
    %1670 = vrot.lane.b32.xlu0 %v348, 8
    %v1671 = vpop.permute.xlu0 %1670
    %1672 = vrot.lane.b32.xlu0 %v349, 8
    %v1673 = vpop.permute.xlu0 %1672
    %1674 = vrot.lane.b32.xlu0 %v350, 8
    %v1675 = vpop.permute.xlu0 %1674
    %1676 = vrot.lane.b32.xlu0 %v351, 8
    %v1677 = vpop.permute.xlu0 %1676
    %1678 = vrot.lane.b32.xlu0 %v352, 8
    %v1679 = vpop.permute.xlu0 %1678
    %1680 = vrot.lane.b32.xlu0 %v353, 8
    %v1681 = vpop.permute.xlu0 %1680
    %1682 = vrot.lane.b32.xlu0 %v354, 8
    %v1683 = vpop.permute.xlu0 %1682
    %1684 = vrot.lane.b32.xlu0 %v355, 8
    %v1685 = vpop.permute.xlu0 %1684
    %1686 = vrot.lane.b32.xlu0 %v356, 8
    %v1687 = vpop.permute.xlu0 %1686
    %1688 = vrot.lane.b32.xlu0 %v357, 8
    %v1689 = vpop.permute.xlu0 %1688
    %1690 = vrot.lane.b32.xlu0 %v358, 8
    %v1691 = vpop.permute.xlu0 %1690
    %1692 = vrot.lane.b32.xlu0 %v359, 8
    %v1693 = vpop.permute.xlu0 %1692
    %1694 = vrot.lane.b32.xlu0 %v360, 8
    %v1695 = vpop.permute.xlu0 %1694
    %1696 = vrot.lane.b32.xlu0 %v361, 8
    %v1697 = vpop.permute.xlu0 %1696
    %1698 = vrot.lane.b32.xlu0 %v362, 8
    %v1699 = vpop.permute.xlu0 %1698
    %1700 = vrot.lane.b32.xlu0 %v363, 8
    %v1701 = vpop.permute.xlu0 %1700
    %1702 = vrot.lane.b32.xlu0 %v364, 8
    %v1703 = vpop.permute.xlu0 %1702
    %1704 = vrot.lane.b32.xlu0 %v365, 8
    %v1705 = vpop.permute.xlu0 %1704
    %1706 = vrot.lane.b32.xlu0 %v366, 8
    %v1707 = vpop.permute.xlu0 %1706
    %1708 = vrot.lane.b32.xlu0 %v367, 8
    %v1709 = vpop.permute.xlu0 %1708
    %1710 = vrot.lane.b32.xlu0 %v368, 8
    %v1711 = vpop.permute.xlu0 %1710
    %1712 = vrot.lane.b32.xlu0 %v369, 8
    %v1713 = vpop.permute.xlu0 %1712
    %1714 = vrot.lane.b32.xlu0 %v370, 8
    %v1715 = vpop.permute.xlu0 %1714
    %1716 = vrot.lane.b32.xlu0 %v371, 8
    %v1717 = vpop.permute.xlu0 %1716
    %1718 = vrot.lane.b32.xlu0 %v372, 8
    %v1719 = vpop.permute.xlu0 %1718
    %1720 = vrot.lane.b32.xlu0 %v373, 8
    %v1721 = vpop.permute.xlu0 %1720
    %1722 = vrot.lane.b32.xlu0 %v374, 8
    %v1723 = vpop.permute.xlu0 %1722
    %1724 = vrot.lane.b32.xlu0 %v375, 8
    %v1725 = vpop.permute.xlu0 %1724
    %1726 = vrot.lane.b32.xlu0 %v376, 8
    %v1727 = vpop.permute.xlu0 %1726
    %1728 = vrot.lane.b32.xlu0 %v377, 8
    %v1729 = vpop.permute.xlu0 %1728
    %1730 = vrot.lane.b32.xlu0 %v378, 8
    %v1731 = vpop.permute.xlu0 %1730
    %1732 = vrot.lane.b32.xlu0 %v379, 8
    %v1733 = vpop.permute.xlu0 %1732
    %1734 = vrot.lane.b32.xlu0 %v380, 8
    %v1735 = vpop.permute.xlu0 %1734
    %1736 = vrot.lane.b32.xlu0 %v381, 8
    %v1737 = vpop.permute.xlu0 %1736
    %1738 = vrot.lane.b32.xlu0 %v382, 8
    %v1739 = vpop.permute.xlu0 %1738
    %1740 = vrot.lane.b32.xlu0 %v383, 8
    %v1741 = vpop.permute.xlu0 %1740
    %1742 = vrot.lane.b32.xlu0 %v384, 8
    %v1743 = vpop.permute.xlu0 %1742
    %1744 = vrot.lane.b32.xlu0 %v385, 8
    %v1745 = vpop.permute.xlu0 %1744
    %1746 = vrot.lane.b32.xlu0 %v386, 8
    %v1747 = vpop.permute.xlu0 %1746
    %1748 = vrot.lane.b32.xlu0 %v387, 8
    %v1749 = vpop.permute.xlu0 %1748
    %1750 = vrot.lane.b32.xlu0 %v388, 8
    %v1751 = vpop.permute.xlu0 %1750
    %1752 = vrot.lane.b32.xlu0 %v389, 8
    %v1753 = vpop.permute.xlu0 %1752
    %1754 = vrot.lane.b32.xlu0 %v390, 8
    %v1755 = vpop.permute.xlu0 %1754
    %1756 = vrot.lane.b32.xlu0 %v391, 8
    %v1757 = vpop.permute.xlu0 %1756
    %1758 = vrot.lane.b32.xlu0 %v392, 8
    %v1759 = vpop.permute.xlu0 %1758
    %1760 = vrot.lane.b32.xlu0 %v393, 8
    %v1761 = vpop.permute.xlu0 %1760
    %1762 = vrot.lane.b32.xlu0 %v394, 8
    %v1763 = vpop.permute.xlu0 %1762
    %1764 = vrot.lane.b32.xlu0 %v395, 8
    %v1765 = vpop.permute.xlu0 %1764
    %1766 = vrot.lane.b32.xlu0 %v396, 8
    %v1767 = vpop.permute.xlu0 %1766
    %1768 = vrot.lane.b32.xlu0 %v397, 8
    %v1769 = vpop.permute.xlu0 %1768
    %1770 = vrot.lane.b32.xlu0 %v398, 8
    %v1771 = vpop.permute.xlu0 %1770
    %1772 = vrot.lane.b32.xlu0 %v399, 8
    %v1773 = vpop.permute.xlu0 %1772
    %1774 = vrot.lane.b32.xlu0 %v400, 8
    %v1775 = vpop.permute.xlu0 %1774
    %1776 = vrot.lane.b32.xlu0 %v401, 8
    %v1777 = vpop.permute.xlu0 %1776
    %1778 = vrot.lane.b32.xlu0 %v402, 8
    %v1779 = vpop.permute.xlu0 %1778
    %1780 = vrot.lane.b32.xlu0 %v403, 8
    %v1781 = vpop.permute.xlu0 %1780
    %1782 = vrot.lane.b32.xlu0 %v404, 8
    %v1783 = vpop.permute.xlu0 %1782
    %1784 = vrot.lane.b32.xlu0 %v405, 8
    %v1785 = vpop.permute.xlu0 %1784
    %1786 = vrot.lane.b32.xlu0 %v406, 8
    %v1787 = vpop.permute.xlu0 %1786
    %1788 = vrot.lane.b32.xlu0 %v407, 8
    %v1789 = vpop.permute.xlu0 %1788
    %1790 = vrot.lane.b32.xlu0 %v408, 8
    %v1791 = vpop.permute.xlu0 %1790
    %1792 = vrot.lane.b32.xlu0 %v409, 8
    %v1793 = vpop.permute.xlu0 %1792
    %1794 = vrot.lane.b32.xlu0 %v410, 8
    %v1795 = vpop.permute.xlu0 %1794
    %1796 = vrot.lane.b32.xlu0 %v411, 8
    %v1797 = vpop.permute.xlu0 %1796
    %1798 = vrot.lane.b32.xlu0 %v412, 8
    %v1799 = vpop.permute.xlu0 %1798
    %1800 = vrot.lane.b32.xlu0 %v413, 8
    %v1801 = vpop.permute.xlu0 %1800
    %1802 = vrot.lane.b32.xlu0 %v414, 8
    %v1803 = vpop.permute.xlu0 %1802
    %1804 = vrot.lane.b32.xlu0 %v415, 8
    %v1805 = vpop.permute.xlu0 %1804
    %1806 = vrot.lane.b32.xlu0 %v416, 8
    %v1807 = vpop.permute.xlu0 %1806
    %1808 = vrot.lane.b32.xlu0 %v417, 8
    %v1809 = vpop.permute.xlu0 %1808
    %1810 = vrot.lane.b32.xlu0 %v418, 8
    %v1811 = vpop.permute.xlu0 %1810
    %1812 = vrot.lane.b32.xlu0 %v419, 8
    %v1813 = vpop.permute.xlu0 %1812
    %1814 = vrot.lane.b32.xlu0 %v420, 8
    %v1815 = vpop.permute.xlu0 %1814
    %1816 = vrot.lane.b32.xlu0 %v421, 8
    %v1817 = vpop.permute.xlu0 %1816
    %1818 = vrot.lane.b32.xlu0 %v422, 8
    %v1819 = vpop.permute.xlu0 %1818
    %1820 = vrot.lane.b32.xlu0 %v423, 8
    %v1821 = vpop.permute.xlu0 %1820
    %1822 = vrot.lane.b32.xlu0 %v424, 8
    %v1823 = vpop.permute.xlu0 %1822
    %1824 = vrot.lane.b32.xlu0 %v425, 8
    %v1825 = vpop.permute.xlu0 %1824
    %1826 = vrot.lane.b32.xlu0 %v426, 8
    %v1827 = vpop.permute.xlu0 %1826
    %1828 = vrot.lane.b32.xlu0 %v427, 8
    %v1829 = vpop.permute.xlu0 %1828
    %1830 = vrot.lane.b32.xlu0 %v428, 8
    %v1831 = vpop.permute.xlu0 %1830
    %1832 = vrot.lane.b32.xlu0 %v429, 8
    %v1833 = vpop.permute.xlu0 %1832
    %1834 = vrot.lane.b32.xlu0 %v430, 8
    %v1835 = vpop.permute.xlu0 %1834
    %1836 = vrot.lane.b32.xlu0 %v431, 8
    %v1837 = vpop.permute.xlu0 %1836
    %1838 = vrot.lane.b32.xlu0 %v432, 8
    %v1839 = vpop.permute.xlu0 %1838
    %1840 = vrot.lane.b32.xlu0 %v433, 8
    %v1841 = vpop.permute.xlu0 %1840
    %1842 = vrot.lane.b32.xlu0 %v434, 8
    %v1843 = vpop.permute.xlu0 %1842
    %1844 = vrot.lane.b32.xlu0 %v435, 8
    %v1845 = vpop.permute.xlu0 %1844
    %1846 = vrot.lane.b32.xlu0 %v436, 8
    %v1847 = vpop.permute.xlu0 %1846
    %1848 = vrot.lane.b32.xlu0 %v437, 8
    %v1849 = vpop.permute.xlu0 %1848
    %1850 = vrot.lane.b32.xlu0 %v438, 8
    %v1851 = vpop.permute.xlu0 %1850
    %1852 = vrot.lane.b32.xlu0 %v439, 8
    %v1853 = vpop.permute.xlu0 %1852
    %1854 = vrot.lane.b32.xlu0 %v440, 8
    %v1855 = vpop.permute.xlu0 %1854
    %1856 = vrot.lane.b32.xlu0 %v441, 8
    %v1857 = vpop.permute.xlu0 %1856
    %1858 = vrot.lane.b32.xlu0 %v442, 8
    %v1859 = vpop.permute.xlu0 %1858
    %1860 = vrot.lane.b32.xlu0 %v443, 8
    %v1861 = vpop.permute.xlu0 %1860
    %1862 = vrot.lane.b32.xlu0 %v444, 8
    %v1863 = vpop.permute.xlu0 %1862
    %1864 = vrot.lane.b32.xlu0 %v445, 8
    %v1865 = vpop.permute.xlu0 %1864
    %1866 = vrot.lane.b32.xlu0 %v446, 8
    %v1867 = vpop.permute.xlu0 %1866
    %1868 = vrot.lane.b32.xlu0 %v447, 8
    %v1869 = vpop.permute.xlu0 %1868
    %1870 = vrot.lane.b32.xlu0 %v448, 8
    %v1871 = vpop.permute.xlu0 %1870
    %1872 = vrot.lane.b32.xlu0 %v449, 8
    %v1873 = vpop.permute.xlu0 %1872
    %1874 = vrot.lane.b32.xlu0 %v450, 8
    %v1875 = vpop.permute.xlu0 %1874
    %1876 = vrot.lane.b32.xlu0 %v451, 8
    %v1877 = vpop.permute.xlu0 %1876
    %1878 = vrot.lane.b32.xlu0 %v452, 8
    %v1879 = vpop.permute.xlu0 %1878
    %1880 = vrot.lane.b32.xlu0 %v453, 8
    %v1881 = vpop.permute.xlu0 %1880
    %1882 = vrot.lane.b32.xlu0 %v454, 8
    %v1883 = vpop.permute.xlu0 %1882
    %1884 = vrot.lane.b32.xlu0 %v455, 8
    %v1885 = vpop.permute.xlu0 %1884
    %1886 = vrot.lane.b32.xlu0 %v456, 8
    %v1887 = vpop.permute.xlu0 %1886
    %1888 = vrot.lane.b32.xlu0 %v457, 8
    %v1889 = vpop.permute.xlu0 %1888
    %1890 = vrot.lane.b32.xlu0 %v458, 8
    %v1891 = vpop.permute.xlu0 %1890
    %1892 = vrot.lane.b32.xlu0 %v459, 8
    %v1893 = vpop.permute.xlu0 %1892
    %1894 = vrot.lane.b32.xlu0 %v460, 8
    %v1895 = vpop.permute.xlu0 %1894
    %1896 = vrot.lane.b32.xlu0 %v461, 8
    %v1897 = vpop.permute.xlu0 %1896
    %1898 = vrot.lane.b32.xlu0 %v462, 8
    %v1899 = vpop.permute.xlu0 %1898
    %1900 = vrot.lane.b32.xlu0 %v463, 8
    %v1901 = vpop.permute.xlu0 %1900
    %1902 = vrot.lane.b32.xlu0 %v464, 8
    %v1903 = vpop.permute.xlu0 %1902
    %1904 = vrot.lane.b32.xlu0 %v465, 8
    %v1905 = vpop.permute.xlu0 %1904
    %1906 = vrot.lane.b32.xlu0 %v466, 8
    %v1907 = vpop.permute.xlu0 %1906
    %1908 = vrot.lane.b32.xlu0 %v467, 8
    %v1909 = vpop.permute.xlu0 %1908
    %1910 = vrot.lane.b32.xlu0 %v468, 8
    %v1911 = vpop.permute.xlu0 %1910
    %1912 = vrot.lane.b32.xlu0 %v469, 8
    %v1913 = vpop.permute.xlu0 %1912
    %1914 = vrot.lane.b32.xlu0 %v470, 8
    %v1915 = vpop.permute.xlu0 %1914
    %1916 = vrot.lane.b32.xlu0 %v471, 8
    %v1917 = vpop.permute.xlu0 %1916
    %1918 = vrot.lane.b32.xlu0 %v472, 8
    %v1919 = vpop.permute.xlu0 %1918
    %1920 = vrot.lane.b32.xlu0 %v473, 8
    %v1921 = vpop.permute.xlu0 %1920
    %1922 = vrot.lane.b32.xlu0 %v474, 8
    %v1923 = vpop.permute.xlu0 %1922
    %1924 = vrot.lane.b32.xlu0 %v475, 8
    %v1925 = vpop.permute.xlu0 %1924
    %1926 = vrot.lane.b32.xlu0 %v476, 8
    %v1927 = vpop.permute.xlu0 %1926
    %1928 = vrot.lane.b32.xlu0 %v477, 8
    %v1929 = vpop.permute.xlu0 %1928
    %1930 = vrot.lane.b32.xlu0 %v478, 8
    %v1931 = vpop.permute.xlu0 %1930
    %1932 = vrot.lane.b32.xlu0 %v479, 8
    %v1933 = vpop.permute.xlu0 %1932
    %1934 = vrot.lane.b32.xlu0 %v480, 8
    %v1935 = vpop.permute.xlu0 %1934
    %1936 = vrot.lane.b32.xlu0 %v481, 8
    %v1937 = vpop.permute.xlu0 %1936
    %1938 = vrot.lane.b32.xlu0 %v482, 8
    %v1939 = vpop.permute.xlu0 %1938
    %1940 = vrot.lane.b32.xlu0 %v483, 8
    %v1941 = vpop.permute.xlu0 %1940
    %1942 = vrot.lane.b32.xlu0 %v484, 8
    %v1943 = vpop.permute.xlu0 %1942
    %1944 = vrot.lane.b32.xlu0 %v485, 8
    %v1945 = vpop.permute.xlu0 %1944
    %1946 = vrot.lane.b32.xlu0 %v486, 8
    %v1947 = vpop.permute.xlu0 %1946
    %1948 = vrot.lane.b32.xlu0 %v487, 8
    %v1949 = vpop.permute.xlu0 %1948
    %1950 = vrot.lane.b32.xlu0 %v488, 8
    %v1951 = vpop.permute.xlu0 %1950
    %1952 = vrot.lane.b32.xlu0 %v489, 8
    %v1953 = vpop.permute.xlu0 %1952
    %1954 = vrot.lane.b32.xlu0 %v490, 8
    %v1955 = vpop.permute.xlu0 %1954
    %1956 = vrot.lane.b32.xlu0 %v491, 8
    %v1957 = vpop.permute.xlu0 %1956
    %1958 = vrot.lane.b32.xlu0 %v492, 8
    %v1959 = vpop.permute.xlu0 %1958
    %1960 = vrot.lane.b32.xlu0 %v493, 8
    %v1961 = vpop.permute.xlu0 %1960
    %1962 = vrot.lane.b32.xlu0 %v494, 8
    %v1963 = vpop.permute.xlu0 %1962
    %1964 = vrot.lane.b32.xlu0 %v495, 8
    %v1965 = vpop.permute.xlu0 %1964
    %1966 = vrot.lane.b32.xlu0 %v496, 8
    %v1967 = vpop.permute.xlu0 %1966
    %1968 = vrot.lane.b32.xlu0 %v497, 8
    %v1969 = vpop.permute.xlu0 %1968
    %1970 = vrot.lane.b32.xlu0 %v498, 8
    %v1971 = vpop.permute.xlu0 %1970
    %1972 = vrot.lane.b32.xlu0 %v499, 8
    %v1973 = vpop.permute.xlu0 %1972
    %1974 = vrot.lane.b32.xlu0 %v500, 8
    %v1975 = vpop.permute.xlu0 %1974
    %1976 = vrot.lane.b32.xlu0 %v501, 8
    %v1977 = vpop.permute.xlu0 %1976
    %1978 = vrot.lane.b32.xlu0 %v502, 8
    %v1979 = vpop.permute.xlu0 %1978
    %1980 = vrot.lane.b32.xlu0 %v503, 8
    %v1981 = vpop.permute.xlu0 %1980
    %1982 = vrot.lane.b32.xlu0 %v504, 8
    %v1983 = vpop.permute.xlu0 %1982
    %1984 = vrot.lane.b32.xlu0 %v505, 8
    %v1985 = vpop.permute.xlu0 %1984
    %1986 = vrot.lane.b32.xlu0 %v506, 8
    %v1987 = vpop.permute.xlu0 %1986
    %1988 = vrot.lane.b32.xlu0 %v507, 8
    %v1989 = vpop.permute.xlu0 %1988
    %1990 = vrot.lane.b32.xlu0 %v508, 8
    %v1991 = vpop.permute.xlu0 %1990
    %1992 = vrot.lane.b32.xlu0 %v509, 8
    %v1993 = vpop.permute.xlu0 %1992
    %1994 = vrot.lane.b32.xlu0 %v510, 8
    %v1995 = vpop.permute.xlu0 %1994
    %1996 = vrot.lane.b32.xlu0 %v511, 8
    %v1997 = vpop.permute.xlu0 %1996
    %1998 = vrot.lane.b32.xlu0 %v512, 8
    %v1999 = vpop.permute.xlu0 %1998
    %2000 = vrot.lane.b32.xlu0 %v513, 8
    %v2001 = vpop.permute.xlu0 %2000
    %2002 = vrot.lane.b32.xlu0 %v514, 8
    %v2003 = vpop.permute.xlu0 %2002
    %2004 = vrot.lane.b32.xlu0 %v515, 8
    %v2005 = vpop.permute.xlu0 %2004
    %2006 = vrot.lane.b32.xlu0 %v516, 8
    %v2007 = vpop.permute.xlu0 %2006
    %2008 = vrot.lane.b32.xlu0 %v517, 8
    %v2009 = vpop.permute.xlu0 %2008
    %2010 = vrot.lane.b32.xlu0 %v518, 8
    %v2011 = vpop.permute.xlu0 %2010
    %2012 = vrot.lane.b32.xlu0 %v519, 8
    %v2013 = vpop.permute.xlu0 %2012
    %2014 = vrot.lane.b32.xlu0 %v520, 8
    %v2015 = vpop.permute.xlu0 %2014
    %2016 = vrot.lane.b32.xlu0 %v521, 8
    %v2017 = vpop.permute.xlu0 %2016
    %2018 = vrot.lane.b32.xlu0 %v522, 8
    %v2019 = vpop.permute.xlu0 %2018
    %2020 = vrot.lane.b32.xlu0 %v523, 8
    %v2021 = vpop.permute.xlu0 %2020
    %2022 = vrot.lane.b32.xlu0 %v524, 8
    %v2023 = vpop.permute.xlu0 %2022
    %2024 = vrot.lane.b32.xlu0 %v525, 8
    %v2025 = vpop.permute.xlu0 %2024
    %2026 = vrot.lane.b32.xlu0 %v526, 8
    %v2027 = vpop.permute.xlu0 %2026
    %2028 = vrot.lane.b32.xlu0 %v527, 8
    %v2029 = vpop.permute.xlu0 %2028
    %2030 = vrot.lane.b32.xlu0 %v528, 8
    %v2031 = vpop.permute.xlu0 %2030
    %2032 = vrot.lane.b32.xlu0 %v529, 8
    %v2033 = vpop.permute.xlu0 %2032
    %2034 = vrot.lane.b32.xlu0 %v530, 8
    %v2035 = vpop.permute.xlu0 %2034
    %2036 = vrot.lane.b32.xlu0 %v531, 8
    %v2037 = vpop.permute.xlu0 %2036
    %2038 = vrot.lane.b32.xlu0 %v532, 8
    %v2039 = vpop.permute.xlu0 %2038
    %2040 = vrot.lane.b32.xlu0 %v533, 8
    %v2041 = vpop.permute.xlu0 %2040
    %2042 = vrot.lane.b32.xlu0 %v534, 8
    %v2043 = vpop.permute.xlu0 %2042
    %2044 = vrot.lane.b32.xlu0 %v535, 8
    %v2045 = vpop.permute.xlu0 %2044
    %2046 = vrot.lane.b32.xlu0 %v536, 8
    %v2047 = vpop.permute.xlu0 %2046
    %2048 = vrot.lane.b32.xlu0 %v537, 8
    %v2049 = vpop.permute.xlu0 %2048
    %2050 = vrot.lane.b32.xlu0 %v538, 8
    %v2051 = vpop.permute.xlu0 %2050
    %2052 = vrot.lane.b32.xlu0 %v539, 8
    %v2053 = vpop.permute.xlu0 %2052
    %2054 = vrot.lane.b32.xlu0 %v540, 8
    %v2055 = vpop.permute.xlu0 %2054
    %2056 = vrot.lane.b32.xlu0 %v541, 8
    %v2057 = vpop.permute.xlu0 %2056
    %2058 = vrot.lane.b32.xlu0 %v542, 8
    %v2059 = vpop.permute.xlu0 %2058
    %vm2312 = vcmask 31744
    %v2313 = vsel %vm2312, %v287, %v799
    %v2314 = vsel %vm2312, %v288, %v801
    %v2315 = vsel %vm2312, %v289, %v803
    %v2316 = vsel %vm2312, %v290, %v805
    %v2317 = vsel %vm2312, %v291, %v807
    %v2318 = vsel %vm2312, %v292, %v809
    %v2319 = vsel %vm2312, %v293, %v811
    %v2320 = vsel %vm2312, %v294, %v813
    %v2321 = vsel %vm2312, %v295, %v815
    %v2322 = vsel %vm2312, %v296, %v817
    %v2323 = vsel %vm2312, %v297, %v819
    %v2324 = vsel %vm2312, %v298, %v821
    %v2325 = vsel %vm2312, %v299, %v823
    %v2326 = vsel %vm2312, %v300, %v825
    %v2327 = vsel %vm2312, %v301, %v827
    %v2328 = vsel %vm2312, %v302, %v829
    %v2329 = vsel %vm2312, %v303, %v831
    %v2330 = vsel %vm2312, %v304, %v833
    %v2331 = vsel %vm2312, %v305, %v835
    %v2332 = vsel %vm2312, %v306, %v837
    %v2333 = vsel %vm2312, %v307, %v839
    %v2334 = vsel %vm2312, %v308, %v841
    %v2335 = vsel %vm2312, %v309, %v843
    %v2336 = vsel %vm2312, %v310, %v845
    %v2337 = vsel %vm2312, %v311, %v847
    %v2338 = vsel %vm2312, %v312, %v849
    %v2339 = vsel %vm2312, %v313, %v851
    %v2340 = vsel %vm2312, %v314, %v853
    %v2341 = vsel %vm2312, %v315, %v855
    %v2342 = vsel %vm2312, %v316, %v857
    %v2343 = vsel %vm2312, %v317, %v859
    %v2344 = vsel %vm2312, %v318, %v861
    %v2345 = vsel %vm2312, %v319, %v863
    %v2346 = vsel %vm2312, %v320, %v865
    %v2347 = vsel %vm2312, %v321, %v867
    %v2348 = vsel %vm2312, %v322, %v869
    %v2349 = vsel %vm2312, %v323, %v871
    %v2350 = vsel %vm2312, %v324, %v873
    %v2351 = vsel %vm2312, %v325, %v875
    %v2352 = vsel %vm2312, %v326, %v877
    %v2353 = vsel %vm2312, %v327, %v879
    %v2354 = vsel %vm2312, %v328, %v881
    %v2355 = vsel %vm2312, %v329, %v883
    %v2356 = vsel %vm2312, %v330, %v885
    %v2357 = vsel %vm2312, %v331, %v887
    %v2358 = vsel %vm2312, %v332, %v889
    %v2359 = vsel %vm2312, %v333, %v891
    %v2360 = vsel %vm2312, %v334, %v893
    %v2361 = vsel %vm2312, %v335, %v895
    %v2362 = vsel %vm2312, %v336, %v897
    %v2363 = vsel %vm2312, %v337, %v899
    %v2364 = vsel %vm2312, %v338, %v901
    %v2365 = vsel %vm2312, %v339, %v903
    %v2366 = vsel %vm2312, %v340, %v905
    %v2367 = vsel %vm2312, %v341, %v907
    %v2368 = vsel %vm2312, %v342, %v909
    %v2369 = vsel %vm2312, %v343, %v911
    %v2370 = vsel %vm2312, %v344, %v913
    %v2371 = vsel %vm2312, %v345, %v915
    %v2372 = vsel %vm2312, %v346, %v917
    %v2373 = vsel %vm2312, %v347, %v919
    %v2374 = vsel %vm2312, %v348, %v921
    %v2375 = vsel %vm2312, %v349, %v923
    %v2376 = vsel %vm2312, %v350, %v925
    %v2377 = vsel %vm2312, %v351, %v927
    %v2378 = vsel %vm2312, %v352, %v929
    %v2379 = vsel %vm2312, %v353, %v931
    %v2380 = vsel %vm2312, %v354, %v933
    %v2381 = vsel %vm2312, %v355, %v935
    %v2382 = vsel %vm2312, %v356, %v937
    %v2383 = vsel %vm2312, %v357, %v939
    %v2384 = vsel %vm2312, %v358, %v941
    %v2385 = vsel %vm2312, %v359, %v943
    %v2386 = vsel %vm2312, %v360, %v945
    %v2387 = vsel %vm2312, %v361, %v947
    %v2388 = vsel %vm2312, %v362, %v949
    %v2389 = vsel %vm2312, %v363, %v951
    %v2390 = vsel %vm2312, %v364, %v953
    %v2391 = vsel %vm2312, %v365, %v955
    %v2392 = vsel %vm2312, %v366, %v957
    %v2393 = vsel %vm2312, %v367, %v959
    %v2394 = vsel %vm2312, %v368, %v961
    %v2395 = vsel %vm2312, %v369, %v963
    %v2396 = vsel %vm2312, %v370, %v965
    %v2397 = vsel %vm2312, %v371, %v967
    %v2398 = vsel %vm2312, %v372, %v969
    %v2399 = vsel %vm2312, %v373, %v971
    %v2400 = vsel %vm2312, %v374, %v973
    %v2401 = vsel %vm2312, %v375, %v975
    %v2402 = vsel %vm2312, %v376, %v977
    %v2403 = vsel %vm2312, %v377, %v979
    %v2404 = vsel %vm2312, %v378, %v981
    %v2405 = vsel %vm2312, %v379, %v983
    %v2406 = vsel %vm2312, %v380, %v985
    %v2407 = vsel %vm2312, %v381, %v987
    %v2408 = vsel %vm2312, %v382, %v989
    %v2409 = vsel %vm2312, %v383, %v991
    %v2410 = vsel %vm2312, %v384, %v993
    %v2411 = vsel %vm2312, %v385, %v995
    %v2412 = vsel %vm2312, %v386, %v997
    %v2413 = vsel %vm2312, %v387, %v999
    %v2414 = vsel %vm2312, %v388, %v1001
    %v2415 = vsel %vm2312, %v389, %v1003
    %v2416 = vsel %vm2312, %v390, %v1005
    %v2417 = vsel %vm2312, %v391, %v1007
    %v2418 = vsel %vm2312, %v392, %v1009
    %v2419 = vsel %vm2312, %v393, %v1011
    %v2420 = vsel %vm2312, %v394, %v1013
    %v2421 = vsel %vm2312, %v395, %v1015
    %v2422 = vsel %vm2312, %v396, %v1017
    %v2423 = vsel %vm2312, %v397, %v1019
    %v2424 = vsel %vm2312, %v398, %v1021
    %v2425 = vsel %vm2312, %v399, %v1023
    %v2426 = vsel %vm2312, %v400, %v1025
    %v2427 = vsel %vm2312, %v401, %v1027
    %v2428 = vsel %vm2312, %v402, %v1029
    %v2429 = vsel %vm2312, %v403, %v1031
    %v2430 = vsel %vm2312, %v404, %v1033
    %v2431 = vsel %vm2312, %v405, %v1035
    %v2432 = vsel %vm2312, %v406, %v1037
    %v2433 = vsel %vm2312, %v407, %v1039
    %v2434 = vsel %vm2312, %v408, %v1041
    %v2435 = vsel %vm2312, %v409, %v1043
    %v2436 = vsel %vm2312, %v410, %v1045
    %v2437 = vsel %vm2312, %v411, %v1047
    %v2438 = vsel %vm2312, %v412, %v1049
    %v2439 = vsel %vm2312, %v413, %v1051
    %v2440 = vsel %vm2312, %v414, %v1053
    %v2441 = vsel %vm2312, %v415, %v1055
    %v2442 = vsel %vm2312, %v416, %v1057
    %v2443 = vsel %vm2312, %v417, %v1059
    %v2444 = vsel %vm2312, %v418, %v1061
    %v2445 = vsel %vm2312, %v419, %v1063
    %v2446 = vsel %vm2312, %v420, %v1065
    %v2447 = vsel %vm2312, %v421, %v1067
    %v2448 = vsel %vm2312, %v422, %v1069
    %v2449 = vsel %vm2312, %v423, %v1071
    %v2450 = vsel %vm2312, %v424, %v1073
    %v2451 = vsel %vm2312, %v425, %v1075
    %v2452 = vsel %vm2312, %v426, %v1077
    %v2453 = vsel %vm2312, %v427, %v1079
    %v2454 = vsel %vm2312, %v428, %v1081
    %v2455 = vsel %vm2312, %v429, %v1083
    %v2456 = vsel %vm2312, %v430, %v1085
    %v2457 = vsel %vm2312, %v431, %v1087
    %v2458 = vsel %vm2312, %v432, %v1089
    %v2459 = vsel %vm2312, %v433, %v1091
    %v2460 = vsel %vm2312, %v434, %v1093
    %v2461 = vsel %vm2312, %v435, %v1095
    %v2462 = vsel %vm2312, %v436, %v1097
    %v2463 = vsel %vm2312, %v437, %v1099
    %v2464 = vsel %vm2312, %v438, %v1101
    %v2465 = vsel %vm2312, %v439, %v1103
    %v2466 = vsel %vm2312, %v440, %v1105
    %v2467 = vsel %vm2312, %v441, %v1107
    %v2468 = vsel %vm2312, %v442, %v1109
    %v2469 = vsel %vm2312, %v443, %v1111
    %v2470 = vsel %vm2312, %v444, %v1113
    %v2471 = vsel %vm2312, %v445, %v1115
    %v2472 = vsel %vm2312, %v446, %v1117
    %v2473 = vsel %vm2312, %v447, %v1119
    %v2474 = vsel %vm2312, %v448, %v1121
    %v2475 = vsel %vm2312, %v449, %v1123
    %v2476 = vsel %vm2312, %v450, %v1125
    %v2477 = vsel %vm2312, %v451, %v1127
    %v2478 = vsel %vm2312, %v452, %v1129
    %v2479 = vsel %vm2312, %v453, %v1131
    %v2480 = vsel %vm2312, %v454, %v1133
    %v2481 = vsel %vm2312, %v455, %v1135
    %v2482 = vsel %vm2312, %v456, %v1137
    %v2483 = vsel %vm2312, %v457, %v1139
    %v2484 = vsel %vm2312, %v458, %v1141
    %v2485 = vsel %vm2312, %v459, %v1143
    %v2486 = vsel %vm2312, %v460, %v1145
    %v2487 = vsel %vm2312, %v461, %v1147
    %v2488 = vsel %vm2312, %v462, %v1149
    %v2489 = vsel %vm2312, %v463, %v1151
    %v2490 = vsel %vm2312, %v464, %v1153
    %v2491 = vsel %vm2312, %v465, %v1155
    %v2492 = vsel %vm2312, %v466, %v1157
    %v2493 = vsel %vm2312, %v467, %v1159
    %v2494 = vsel %vm2312, %v468, %v1161
    %v2495 = vsel %vm2312, %v469, %v1163
    %v2496 = vsel %vm2312, %v470, %v1165
    %v2497 = vsel %vm2312, %v471, %v1167
    %v2498 = vsel %vm2312, %v472, %v1169
    %v2499 = vsel %vm2312, %v473, %v1171
    %v2500 = vsel %vm2312, %v474, %v1173
    %v2501 = vsel %vm2312, %v475, %v1175
    %v2502 = vsel %vm2312, %v476, %v1177
    %v2503 = vsel %vm2312, %v477, %v1179
    %v2504 = vsel %vm2312, %v478, %v1181
    %v2505 = vsel %vm2312, %v479, %v1183
    %v2506 = vsel %vm2312, %v480, %v1185
    %v2507 = vsel %vm2312, %v481, %v1187
    %v2508 = vsel %vm2312, %v482, %v1189
    %v2509 = vsel %vm2312, %v483, %v1191
    %v2510 = vsel %vm2312, %v484, %v1193
    %v2511 = vsel %vm2312, %v485, %v1195
    %v2512 = vsel %vm2312, %v486, %v1197
    %v2513 = vsel %vm2312, %v487, %v1199
    %v2514 = vsel %vm2312, %v488, %v1201
    %v2515 = vsel %vm2312, %v489, %v1203
    %v2516 = vsel %vm2312, %v490, %v1205
    %v2517 = vsel %vm2312, %v491, %v1207
    %v2518 = vsel %vm2312, %v492, %v1209
    %v2519 = vsel %vm2312, %v493, %v1211
    %v2520 = vsel %vm2312, %v494, %v1213
    %v2521 = vsel %vm2312, %v495, %v1215
    %v2522 = vsel %vm2312, %v496, %v1217
    %v2523 = vsel %vm2312, %v497, %v1219
    %v2524 = vsel %vm2312, %v498, %v1221
    %v2525 = vsel %vm2312, %v499, %v1223
    %v2526 = vsel %vm2312, %v500, %v1225
    %v2527 = vsel %vm2312, %v501, %v1227
    %v2528 = vsel %vm2312, %v502, %v1229
    %v2529 = vsel %vm2312, %v503, %v1231
    %v2530 = vsel %vm2312, %v504, %v1233
    %v2531 = vsel %vm2312, %v505, %v1235
    %v2532 = vsel %vm2312, %v506, %v1237
    %v2533 = vsel %vm2312, %v507, %v1239
    %v2534 = vsel %vm2312, %v508, %v1241
    %v2535 = vsel %vm2312, %v509, %v1243
    %v2536 = vsel %vm2312, %v510, %v1245
    %v2537 = vsel %vm2312, %v511, %v1247
    %v2538 = vsel %vm2312, %v512, %v1249
    %v2539 = vsel %vm2312, %v513, %v1251
    %v2540 = vsel %vm2312, %v514, %v1253
    %v2541 = vsel %vm2312, %v515, %v1255
    %v2542 = vsel %vm2312, %v516, %v1257
    %v2543 = vsel %vm2312, %v517, %v1259
    %v2544 = vsel %vm2312, %v518, %v1261
    %v2545 = vsel %vm2312, %v519, %v1263
    %v2546 = vsel %vm2312, %v520, %v1265
    %v2547 = vsel %vm2312, %v521, %v1267
    %v2548 = vsel %vm2312, %v522, %v1269
    %v2549 = vsel %vm2312, %v523, %v1271
    %v2550 = vsel %vm2312, %v524, %v1273
    %v2551 = vsel %vm2312, %v525, %v1275
    %v2552 = vsel %vm2312, %v526, %v1277
    %v2553 = vsel %vm2312, %v527, %v1279
    %v2554 = vsel %vm2312, %v528, %v1281
    %v2555 = vsel %vm2312, %v529, %v1283
    %v2556 = vsel %vm2312, %v530, %v1285
    %v2557 = vsel %vm2312, %v531, %v1287
    %v2558 = vsel %vm2312, %v532, %v1289
    %v2559 = vsel %vm2312, %v533, %v1291
    %v2560 = vsel %vm2312, %v534, %v1293
    %v2561 = vsel %vm2312, %v535, %v1295
    %v2562 = vsel %vm2312, %v536, %v1297
    %v2563 = vsel %vm2312, %v537, %v1299
    %v2564 = vsel %vm2312, %v538, %v1301
    %vm2565 = vcmask 64512
    %v2566 = vsel %vm2565, %v2313, %v1557
    %v2567 = vsel %vm2565, %v2314, %v1559
    %v2568 = vsel %vm2565, %v2315, %v1561
    %v2569 = vsel %vm2565, %v2316, %v1563
    %v2570 = vsel %vm2565, %v2317, %v1565
    %v2571 = vsel %vm2565, %v2318, %v1567
    %v2572 = vsel %vm2565, %v2319, %v1569
    %v2573 = vsel %vm2565, %v2320, %v1571
    %v2574 = vsel %vm2565, %v2321, %v1573
    %v2575 = vsel %vm2565, %v2322, %v1575
    %v2576 = vsel %vm2565, %v2323, %v1577
    %v2577 = vsel %vm2565, %v2324, %v1579
    %v2578 = vsel %vm2565, %v2325, %v1581
    %v2579 = vsel %vm2565, %v2326, %v1583
    %v2580 = vsel %vm2565, %v2327, %v1585
    %v2581 = vsel %vm2565, %v2328, %v1587
    %v2582 = vsel %vm2565, %v2329, %v1589
    %v2583 = vsel %vm2565, %v2330, %v1591
    %v2584 = vsel %vm2565, %v2331, %v1593
    %v2585 = vsel %vm2565, %v2332, %v1595
    %v2586 = vsel %vm2565, %v2333, %v1597
    %v2587 = vsel %vm2565, %v2334, %v1599
    %v2588 = vsel %vm2565, %v2335, %v1601
    %v2589 = vsel %vm2565, %v2336, %v1603
    %v2590 = vsel %vm2565, %v2337, %v1605
    %v2591 = vsel %vm2565, %v2338, %v1607
    %v2592 = vsel %vm2565, %v2339, %v1609
    %v2593 = vsel %vm2565, %v2340, %v1611
    %v2594 = vsel %vm2565, %v2341, %v1613
    %v2595 = vsel %vm2565, %v2342, %v1615
    %v2596 = vsel %vm2565, %v2343, %v1617
    %v2597 = vsel %vm2565, %v2344, %v1619
    %v2598 = vsel %vm2565, %v2345, %v1621
    %v2599 = vsel %vm2565, %v2346, %v1623
    %v2600 = vsel %vm2565, %v2347, %v1625
    %v2601 = vsel %vm2565, %v2348, %v1627
    %v2602 = vsel %vm2565, %v2349, %v1629
    %v2603 = vsel %vm2565, %v2350, %v1631
    %v2604 = vsel %vm2565, %v2351, %v1633
    %v2605 = vsel %vm2565, %v2352, %v1635
    %v2606 = vsel %vm2565, %v2353, %v1637
    %v2607 = vsel %vm2565, %v2354, %v1639
    %v2608 = vsel %vm2565, %v2355, %v1641
    %v2609 = vsel %vm2565, %v2356, %v1643
    %v2610 = vsel %vm2565, %v2357, %v1645
    %v2611 = vsel %vm2565, %v2358, %v1647
    %v2612 = vsel %vm2565, %v2359, %v1649
    %v2613 = vsel %vm2565, %v2360, %v1651
    %v2614 = vsel %vm2565, %v2361, %v1653
    %v2615 = vsel %vm2565, %v2362, %v1655
    %v2616 = vsel %vm2565, %v2363, %v1657
    %v2617 = vsel %vm2565, %v2364, %v1659
    %v2618 = vsel %vm2565, %v2365, %v1661
    %v2619 = vsel %vm2565, %v2366, %v1663
    %v2620 = vsel %vm2565, %v2367, %v1665
    %v2621 = vsel %vm2565, %v2368, %v1667
    %v2622 = vsel %vm2565, %v2369, %v1669
    %v2623 = vsel %vm2565, %v2370, %v1671
    %v2624 = vsel %vm2565, %v2371, %v1673
    %v2625 = vsel %vm2565, %v2372, %v1675
    %v2626 = vsel %vm2565, %v2373, %v1677
    %v2627 = vsel %vm2565, %v2374, %v1679
    %v2628 = vsel %vm2565, %v2375, %v1681
    %v2629 = vsel %vm2565, %v2376, %v1683
    %v2630 = vsel %vm2565, %v2377, %v1685
    %v2631 = vsel %vm2565, %v2378, %v1687
    %v2632 = vsel %vm2565, %v2379, %v1689
    %v2633 = vsel %vm2565, %v2380, %v1691
    %v2634 = vsel %vm2565, %v2381, %v1693
    %v2635 = vsel %vm2565, %v2382, %v1695
    %v2636 = vsel %vm2565, %v2383, %v1697
    %v2637 = vsel %vm2565, %v2384, %v1699
    %v2638 = vsel %vm2565, %v2385, %v1701
    %v2639 = vsel %vm2565, %v2386, %v1703
    %v2640 = vsel %vm2565, %v2387, %v1705
    %v2641 = vsel %vm2565, %v2388, %v1707
    %v2642 = vsel %vm2565, %v2389, %v1709
    %v2643 = vsel %vm2565, %v2390, %v1711
    %v2644 = vsel %vm2565, %v2391, %v1713
    %v2645 = vsel %vm2565, %v2392, %v1715
    %v2646 = vsel %vm2565, %v2393, %v1717
    %v2647 = vsel %vm2565, %v2394, %v1719
    %v2648 = vsel %vm2565, %v2395, %v1721
    %v2649 = vsel %vm2565, %v2396, %v1723
    %v2650 = vsel %vm2565, %v2397, %v1725
    %v2651 = vsel %vm2565, %v2398, %v1727
    %v2652 = vsel %vm2565, %v2399, %v1729
    %v2653 = vsel %vm2565, %v2400, %v1731
    %v2654 = vsel %vm2565, %v2401, %v1733
    %v2655 = vsel %vm2565, %v2402, %v1735
    %v2656 = vsel %vm2565, %v2403, %v1737
    %v2657 = vsel %vm2565, %v2404, %v1739
    %v2658 = vsel %vm2565, %v2405, %v1741
    %v2659 = vsel %vm2565, %v2406, %v1743
    %v2660 = vsel %vm2565, %v2407, %v1745
    %v2661 = vsel %vm2565, %v2408, %v1747
    %v2662 = vsel %vm2565, %v2409, %v1749
    %v2663 = vsel %vm2565, %v2410, %v1751
    %v2664 = vsel %vm2565, %v2411, %v1753
    %v2665 = vsel %vm2565, %v2412, %v1755
    %v2666 = vsel %vm2565, %v2413, %v1757
    %v2667 = vsel %vm2565, %v2414, %v1759
    %v2668 = vsel %vm2565, %v2415, %v1761
    %v2669 = vsel %vm2565, %v2416, %v1763
    %v2670 = vsel %vm2565, %v2417, %v1765
    %v2671 = vsel %vm2565, %v2418, %v1767
    %v2672 = vsel %vm2565, %v2419, %v1769
    %v2673 = vsel %vm2565, %v2420, %v1771
    %v2674 = vsel %vm2565, %v2421, %v1773
    %v2675 = vsel %vm2565, %v2422, %v1775
    %v2676 = vsel %vm2565, %v2423, %v1777
    %v2677 = vsel %vm2565, %v2424, %v1779
    %v2678 = vsel %vm2565, %v2425, %v1781
    %v2679 = vsel %vm2565, %v2426, %v1783
    %v2680 = vsel %vm2565, %v2427, %v1785
    %v2681 = vsel %vm2565, %v2428, %v1787
    %v2682 = vsel %vm2565, %v2429, %v1789
    %v2683 = vsel %vm2565, %v2430, %v1791
    %v2684 = vsel %vm2565, %v2431, %v1793
    %v2685 = vsel %vm2565, %v2432, %v1795
    %v2686 = vsel %vm2565, %v2433, %v1797
    %v2687 = vsel %vm2565, %v2434, %v1799
    %v2688 = vsel %vm2565, %v2435, %v1801
    %v2689 = vsel %vm2565, %v2436, %v1803
    %v2690 = vsel %vm2565, %v2437, %v1805
    %v2691 = vsel %vm2565, %v2438, %v1807
    %v2692 = vsel %vm2565, %v2439, %v1809
    %v2693 = vsel %vm2565, %v2440, %v1811
    %v2694 = vsel %vm2565, %v2441, %v1813
    %v2695 = vsel %vm2565, %v2442, %v1815
    %v2696 = vsel %vm2565, %v2443, %v1817
    %v2697 = vsel %vm2565, %v2444, %v1819
    %v2698 = vsel %vm2565, %v2445, %v1821
    %v2699 = vsel %vm2565, %v2446, %v1823
    %v2700 = vsel %vm2565, %v2447, %v1825
    %v2701 = vsel %vm2565, %v2448, %v1827
    %v2702 = vsel %vm2565, %v2449, %v1829
    %v2703 = vsel %vm2565, %v2450, %v1831
    %v2704 = vsel %vm2565, %v2451, %v1833
    %v2705 = vsel %vm2565, %v2452, %v1835
    %v2706 = vsel %vm2565, %v2453, %v1837
    %v2707 = vsel %vm2565, %v2454, %v1839
    %v2708 = vsel %vm2565, %v2455, %v1841
    %v2709 = vsel %vm2565, %v2456, %v1843
    %v2710 = vsel %vm2565, %v2457, %v1845
    %v2711 = vsel %vm2565, %v2458, %v1847
    %v2712 = vsel %vm2565, %v2459, %v1849
    %v2713 = vsel %vm2565, %v2460, %v1851
    %v2714 = vsel %vm2565, %v2461, %v1853
    %v2715 = vsel %vm2565, %v2462, %v1855
    %v2716 = vsel %vm2565, %v2463, %v1857
    %v2717 = vsel %vm2565, %v2464, %v1859
    %v2718 = vsel %vm2565, %v2465, %v1861
    %v2719 = vsel %vm2565, %v2466, %v1863
    %v2720 = vsel %vm2565, %v2467, %v1865
    %v2721 = vsel %vm2565, %v2468, %v1867
    %v2722 = vsel %vm2565, %v2469, %v1869
    %v2723 = vsel %vm2565, %v2470, %v1871
    %v2724 = vsel %vm2565, %v2471, %v1873
    %v2725 = vsel %vm2565, %v2472, %v1875
    %v2726 = vsel %vm2565, %v2473, %v1877
    %v2727 = vsel %vm2565, %v2474, %v1879
    %v2728 = vsel %vm2565, %v2475, %v1881
    %v2729 = vsel %vm2565, %v2476, %v1883
    %v2730 = vsel %vm2565, %v2477, %v1885
    %v2731 = vsel %vm2565, %v2478, %v1887
    %v2732 = vsel %vm2565, %v2479, %v1889
    %v2733 = vsel %vm2565, %v2480, %v1891
    %v2734 = vsel %vm2565, %v2481, %v1893
    %v2735 = vsel %vm2565, %v2482, %v1895
    %v2736 = vsel %vm2565, %v2483, %v1897
    %v2737 = vsel %vm2565, %v2484, %v1899
    %v2738 = vsel %vm2565, %v2485, %v1901
    %v2739 = vsel %vm2565, %v2486, %v1903
    %v2740 = vsel %vm2565, %v2487, %v1905
    %v2741 = vsel %vm2565, %v2488, %v1907
    %v2742 = vsel %vm2565, %v2489, %v1909
    %v2743 = vsel %vm2565, %v2490, %v1911
    %v2744 = vsel %vm2565, %v2491, %v1913
    %v2745 = vsel %vm2565, %v2492, %v1915
    %v2746 = vsel %vm2565, %v2493, %v1917
    %v2747 = vsel %vm2565, %v2494, %v1919
    %v2748 = vsel %vm2565, %v2495, %v1921
    %v2749 = vsel %vm2565, %v2496, %v1923
    %v2750 = vsel %vm2565, %v2497, %v1925
    %v2751 = vsel %vm2565, %v2498, %v1927
    %v2752 = vsel %vm2565, %v2499, %v1929
    %v2753 = vsel %vm2565, %v2500, %v1931
    %v2754 = vsel %vm2565, %v2501, %v1933
    %v2755 = vsel %vm2565, %v2502, %v1935
    %v2756 = vsel %vm2565, %v2503, %v1937
    %v2757 = vsel %vm2565, %v2504, %v1939
    %v2758 = vsel %vm2565, %v2505, %v1941
    %v2759 = vsel %vm2565, %v2506, %v1943
    %v2760 = vsel %vm2565, %v2507, %v1945
    %v2761 = vsel %vm2565, %v2508, %v1947
    %v2762 = vsel %vm2565, %v2509, %v1949
    %v2763 = vsel %vm2565, %v2510, %v1951
    %v2764 = vsel %vm2565, %v2511, %v1953
    %v2765 = vsel %vm2565, %v2512, %v1955
    %v2766 = vsel %vm2565, %v2513, %v1957
    %v2767 = vsel %vm2565, %v2514, %v1959
    %v2768 = vsel %vm2565, %v2515, %v1961
    %v2769 = vsel %vm2565, %v2516, %v1963
    %v2770 = vsel %vm2565, %v2517, %v1965
    %v2771 = vsel %vm2565, %v2518, %v1967
    %v2772 = vsel %vm2565, %v2519, %v1969
    %v2773 = vsel %vm2565, %v2520, %v1971
    %v2774 = vsel %vm2565, %v2521, %v1973
    %v2775 = vsel %vm2565, %v2522, %v1975
    %v2776 = vsel %vm2565, %v2523, %v1977
    %v2777 = vsel %vm2565, %v2524, %v1979
    %v2778 = vsel %vm2565, %v2525, %v1981
    %v2779 = vsel %vm2565, %v2526, %v1983
    %v2780 = vsel %vm2565, %v2527, %v1985
    %v2781 = vsel %vm2565, %v2528, %v1987
    %v2782 = vsel %vm2565, %v2529, %v1989
    %v2783 = vsel %vm2565, %v2530, %v1991
    %v2784 = vsel %vm2565, %v2531, %v1993
    %v2785 = vsel %vm2565, %v2532, %v1995
    %v2786 = vsel %vm2565, %v2533, %v1997
    %v2787 = vsel %vm2565, %v2534, %v1999
    %v2788 = vsel %vm2565, %v2535, %v2001
    %v2789 = vsel %vm2565, %v2536, %v2003
    %v2790 = vsel %vm2565, %v2537, %v2005
    %v2791 = vsel %vm2565, %v2538, %v2007
    %v2792 = vsel %vm2565, %v2539, %v2009
    %v2793 = vsel %vm2565, %v2540, %v2011
    %v2794 = vsel %vm2565, %v2541, %v2013
    %v2795 = vsel %vm2565, %v2542, %v2015
    %v2796 = vsel %vm2565, %v2543, %v2017
    %v2797 = vsel %vm2565, %v2544, %v2019
    %v2798 = vsel %vm2565, %v2545, %v2021
    %v2799 = vsel %vm2565, %v2546, %v2023
    %v2800 = vsel %vm2565, %v2547, %v2025
    %v2801 = vsel %vm2565, %v2548, %v2027
    %v2802 = vsel %vm2565, %v2549, %v2029
    %v2803 = vsel %vm2565, %v2550, %v2031
    %v2804 = vsel %vm2565, %v2551, %v2033
    %v2805 = vsel %vm2565, %v2552, %v2035
    %v2806 = vsel %vm2565, %v2553, %v2037
    %v2807 = vsel %vm2565, %v2554, %v2039
    %v2808 = vsel %vm2565, %v2555, %v2041
    %v2809 = vsel %vm2565, %v2556, %v2043
    %v2810 = vsel %vm2565, %v2557, %v2045
    %v2811 = vsel %vm2565, %v2558, %v2047
    %v2812 = vsel %vm2565, %v2559, %v2049
    %v2813 = vsel %vm2565, %v2560, %v2051
    %v2814 = vsel %vm2565, %v2561, %v2053
    %v2815 = vsel %vm2565, %v2562, %v2055
    %v2816 = vsel %vm2565, %v2563, %v2057
    %v2817 = vsel %vm2565, %v2564, %v2059
    %v2818 = vpack.c.bf16 %v2567, %v2566
    %v2819 = vpack.c.bf16 %v2569, %v2568
    %v2820 = vpack.c.bf16 %v2571, %v2570
    %v2821 = vpack.c.bf16 %v2573, %v2572
    %v2822 = vpack.c.bf16 %v2575, %v2574
    %v2823 = vpack.c.bf16 %v2577, %v2576
    %v2824 = vpack.c.bf16 %v2579, %v2578
    %v2825 = vpack.c.bf16 %v2581, %v2580
    %v2826 = vpack.c.bf16 %v2583, %v2582
    %v2827 = vpack.c.bf16 %v2585, %v2584
    %v2828 = vpack.c.bf16 %v2587, %v2586
    %v2829 = vpack.c.bf16 %v2589, %v2588
    %v2830 = vpack.c.bf16 %v2591, %v2590
    %v2831 = vpack.c.bf16 %v2593, %v2592
    %v2832 = vpack.c.bf16 %v2595, %v2594
    %v2833 = vpack.c.bf16 %v2597, %v2596
    %v2834 = vpack.c.bf16 %v2599, %v2598
    %v2835 = vpack.c.bf16 %v2601, %v2600
    %v2836 = vpack.c.bf16 %v2603, %v2602
    %v2837 = vpack.c.bf16 %v2605, %v2604
    %v2838 = vpack.c.bf16 %v2607, %v2606
    %v2839 = vpack.c.bf16 %v2609, %v2608
    %v2840 = vpack.c.bf16 %v2611, %v2610
    %v2841 = vpack.c.bf16 %v2613, %v2612
    %v2842 = vpack.c.bf16 %v2615, %v2614
    %v2843 = vpack.c.bf16 %v2617, %v2616
    %v2844 = vpack.c.bf16 %v2619, %v2618
    %v2845 = vpack.c.bf16 %v2621, %v2620
    %v2846 = vpack.c.bf16 %v2623, %v2622
    %v2847 = vpack.c.bf16 %v2625, %v2624
    %v2848 = vpack.c.bf16 %v2627, %v2626
    %v2849 = vpack.c.bf16 %v2629, %v2628
    %v2850 = vpack.c.bf16 %v2631, %v2630
    %v2851 = vpack.c.bf16 %v2633, %v2632
    %v2852 = vpack.c.bf16 %v2635, %v2634
    %v2853 = vpack.c.bf16 %v2637, %v2636
    %v2854 = vpack.c.bf16 %v2639, %v2638
    %v2855 = vpack.c.bf16 %v2641, %v2640
    %v2856 = vpack.c.bf16 %v2643, %v2642
    %v2857 = vpack.c.bf16 %v2645, %v2644
    %v2858 = vpack.c.bf16 %v2647, %v2646
    %v2859 = vpack.c.bf16 %v2649, %v2648
    %v2860 = vpack.c.bf16 %v2651, %v2650
    %v2861 = vpack.c.bf16 %v2653, %v2652
    %v2862 = vpack.c.bf16 %v2655, %v2654
    %v2863 = vpack.c.bf16 %v2657, %v2656
    %v2864 = vpack.c.bf16 %v2659, %v2658
    %v2865 = vpack.c.bf16 %v2661, %v2660
    %v2866 = vpack.c.bf16 %v2663, %v2662
    %v2867 = vpack.c.bf16 %v2665, %v2664
    %v2868 = vpack.c.bf16 %v2667, %v2666
    %v2869 = vpack.c.bf16 %v2669, %v2668
    %v2870 = vpack.c.bf16 %v2671, %v2670
    %v2871 = vpack.c.bf16 %v2673, %v2672
    %v2872 = vpack.c.bf16 %v2675, %v2674
    %v2873 = vpack.c.bf16 %v2677, %v2676
    %v2874 = vpack.c.bf16 %v2679, %v2678
    %v2875 = vpack.c.bf16 %v2681, %v2680
    %v2876 = vpack.c.bf16 %v2683, %v2682
    %v2877 = vpack.c.bf16 %v2685, %v2684
    %v2878 = vpack.c.bf16 %v2687, %v2686
    %v2879 = vpack.c.bf16 %v2689, %v2688
    %v2880 = vpack.c.bf16 %v2691, %v2690
    %v2881 = vpack.c.bf16 %v2693, %v2692
    %v2882 = vpack.c.bf16 %v2695, %v2694
    %v2883 = vpack.c.bf16 %v2697, %v2696
    %v2884 = vpack.c.bf16 %v2699, %v2698
    %v2885 = vpack.c.bf16 %v2701, %v2700
    %v2886 = vpack.c.bf16 %v2703, %v2702
    %v2887 = vpack.c.bf16 %v2705, %v2704
    %v2888 = vpack.c.bf16 %v2707, %v2706
    %v2889 = vpack.c.bf16 %v2709, %v2708
    %v2890 = vpack.c.bf16 %v2711, %v2710
    %v2891 = vpack.c.bf16 %v2713, %v2712
    %v2892 = vpack.c.bf16 %v2715, %v2714
    %v2893 = vpack.c.bf16 %v2717, %v2716
    %v2894 = vpack.c.bf16 %v2719, %v2718
    %v2895 = vpack.c.bf16 %v2721, %v2720
    %v2896 = vpack.c.bf16 %v2723, %v2722
    %v2897 = vpack.c.bf16 %v2725, %v2724
    %v2898 = vpack.c.bf16 %v2727, %v2726
    %v2899 = vpack.c.bf16 %v2729, %v2728
    %v2900 = vpack.c.bf16 %v2731, %v2730
    %v2901 = vpack.c.bf16 %v2733, %v2732
    %v2902 = vpack.c.bf16 %v2735, %v2734
    %v2903 = vpack.c.bf16 %v2737, %v2736
    %v2904 = vpack.c.bf16 %v2739, %v2738
    %v2905 = vpack.c.bf16 %v2741, %v2740
    %v2906 = vpack.c.bf16 %v2743, %v2742
    %v2907 = vpack.c.bf16 %v2745, %v2744
    %v2908 = vpack.c.bf16 %v2747, %v2746
    %v2909 = vpack.c.bf16 %v2749, %v2748
    %v2910 = vpack.c.bf16 %v2751, %v2750
    %v2911 = vpack.c.bf16 %v2753, %v2752
    %v2912 = vpack.c.bf16 %v2755, %v2754
    %v2913 = vpack.c.bf16 %v2757, %v2756
    %v2914 = vpack.c.bf16 %v2759, %v2758
    %v2915 = vpack.c.bf16 %v2761, %v2760
    %v2916 = vpack.c.bf16 %v2763, %v2762
    %v2917 = vpack.c.bf16 %v2765, %v2764
    %v2918 = vpack.c.bf16 %v2767, %v2766
    %v2919 = vpack.c.bf16 %v2769, %v2768
    %v2920 = vpack.c.bf16 %v2771, %v2770
    %v2921 = vpack.c.bf16 %v2773, %v2772
    %v2922 = vpack.c.bf16 %v2775, %v2774
    %v2923 = vpack.c.bf16 %v2777, %v2776
    %v2924 = vpack.c.bf16 %v2779, %v2778
    %v2925 = vpack.c.bf16 %v2781, %v2780
    %v2926 = vpack.c.bf16 %v2783, %v2782
    %v2927 = vpack.c.bf16 %v2785, %v2784
    %v2928 = vpack.c.bf16 %v2787, %v2786
    %v2929 = vpack.c.bf16 %v2789, %v2788
    %v2930 = vpack.c.bf16 %v2791, %v2790
    %v2931 = vpack.c.bf16 %v2793, %v2792
    %v2932 = vpack.c.bf16 %v2795, %v2794
    %v2933 = vpack.c.bf16 %v2797, %v2796
    %v2934 = vpack.c.bf16 %v2799, %v2798
    %v2935 = vpack.c.bf16 %v2801, %v2800
    %v2936 = vpack.c.bf16 %v2803, %v2802
    %v2937 = vpack.c.bf16 %v2805, %v2804
    %v2938 = vpack.c.bf16 %v2807, %v2806
    %v2939 = vpack.c.bf16 %v2809, %v2808
    %v2940 = vpack.c.bf16 %v2811, %v2810
    %v2941 = vpack.c.bf16 %v2813, %v2812
    %v2942 = vpack.c.bf16 %v2815, %v2814
    %v2943 = vpack.c.bf16 %v2817, %v2816
    %v2945 = vperm.slane %v545, 0
    %v2949 = vunpack.c.l.b16 %v543
    %v2950 = vunpack.c.l.b16 %v544
    %v2951 = vpack.c.b16 %v2950, %v2949
    %vm2952 = vcmask 97280
    %v2954 = vsel %vm2952, %v2818, 0
    %v2957 = vsel %vm2952, %v2819, 0
    %v2960 = vsel %vm2952, %v2820, 0
    %v2963 = vsel %vm2952, %v2821, 0
    %v2966 = vsel %vm2952, %v2822, 0
    %v2969 = vsel %vm2952, %v2823, 0
    %v2972 = vsel %vm2952, %v2824, 0
    %v2975 = vsel %vm2952, %v2825, 0
    %v2978 = vsel %vm2952, %v2826, 0
    %v2981 = vsel %vm2952, %v2827, 0
    %v2984 = vsel %vm2952, %v2828, 0
    %v2987 = vsel %vm2952, %v2829, 0
    %v2990 = vsel %vm2952, %v2830, 0
    %v2993 = vsel %vm2952, %v2831, 0
    %v2996 = vsel %vm2952, %v2832, 0
    %v2999 = vsel %vm2952, %v2833, 0
    %v3002 = vsel %vm2952, %v2834, 0
    %v3005 = vsel %vm2952, %v2835, 0
    %v3008 = vsel %vm2952, %v2836, 0
    %v3011 = vsel %vm2952, %v2837, 0
    %v3014 = vsel %vm2952, %v2838, 0
    %v3017 = vsel %vm2952, %v2839, 0
    %v3020 = vsel %vm2952, %v2840, 0
    %v3023 = vsel %vm2952, %v2841, 0
    %v3026 = vsel %vm2952, %v2842, 0
    %v3029 = vsel %vm2952, %v2843, 0
    %v3032 = vsel %vm2952, %v2844, 0
    %v3035 = vsel %vm2952, %v2845, 0
    %v3038 = vsel %vm2952, %v2846, 0
    %v3041 = vsel %vm2952, %v2847, 0
    %v3044 = vsel %vm2952, %v2848, 0
    %v3047 = vsel %vm2952, %v2849, 0
    %v3050 = vsel %vm2952, %v2850, 0
    %v3053 = vsel %vm2952, %v2851, 0
    %v3056 = vsel %vm2952, %v2852, 0
    %v3059 = vsel %vm2952, %v2853, 0
    %v3062 = vsel %vm2952, %v2854, 0
    %v3065 = vsel %vm2952, %v2855, 0
    %v3068 = vsel %vm2952, %v2856, 0
    %v3071 = vsel %vm2952, %v2857, 0
    %v3074 = vsel %vm2952, %v2858, 0
    %v3077 = vsel %vm2952, %v2859, 0
    %v3080 = vsel %vm2952, %v2860, 0
    %v3083 = vsel %vm2952, %v2861, 0
    %v3086 = vsel %vm2952, %v2862, 0
    %v3089 = vsel %vm2952, %v2863, 0
    %v3092 = vsel %vm2952, %v2864, 0
    %v3095 = vsel %vm2952, %v2865, 0
    %v3098 = vsel %vm2952, %v2866, 0
    %v3101 = vsel %vm2952, %v2867, 0
    %v3104 = vsel %vm2952, %v2868, 0
    %v3107 = vsel %vm2952, %v2869, 0
    %v3110 = vsel %vm2952, %v2870, 0
    %v3113 = vsel %vm2952, %v2871, 0
    %v3116 = vsel %vm2952, %v2872, 0
    %v3119 = vsel %vm2952, %v2873, 0
    %v3122 = vsel %vm2952, %v2874, 0
    %v3125 = vsel %vm2952, %v2875, 0
    %v3128 = vsel %vm2952, %v2876, 0
    %v3131 = vsel %vm2952, %v2877, 0
    %v3134 = vsel %vm2952, %v2878, 0
    %v3137 = vsel %vm2952, %v2879, 0
    %v3140 = vsel %vm2952, %v2880, 0
    %v3143 = vsel %vm2952, %v2881, 0
    %v3146 = vsel %vm2952, %v2882, 0
    %v3149 = vsel %vm2952, %v2883, 0
    %v3152 = vsel %vm2952, %v2884, 0
    %v3155 = vsel %vm2952, %v2885, 0
    %v3158 = vsel %vm2952, %v2886, 0
    %v3161 = vsel %vm2952, %v2887, 0
    %v3164 = vsel %vm2952, %v2888, 0
    %v3167 = vsel %vm2952, %v2889, 0
    %v3170 = vsel %vm2952, %v2890, 0
    %v3173 = vsel %vm2952, %v2891, 0
    %v3176 = vsel %vm2952, %v2892, 0
    %v3179 = vsel %vm2952, %v2893, 0
    %v3182 = vsel %vm2952, %v2894, 0
    %v3185 = vsel %vm2952, %v2895, 0
    %v3188 = vsel %vm2952, %v2896, 0
    %v3191 = vsel %vm2952, %v2897, 0
    %v3194 = vsel %vm2952, %v2898, 0
    %v3197 = vsel %vm2952, %v2899, 0
    %v3200 = vsel %vm2952, %v2900, 0
    %v3203 = vsel %vm2952, %v2901, 0
    %v3206 = vsel %vm2952, %v2902, 0
    %v3209 = vsel %vm2952, %v2903, 0
    %v3212 = vsel %vm2952, %v2904, 0
    %v3215 = vsel %vm2952, %v2905, 0
    %v3218 = vsel %vm2952, %v2906, 0
    %v3221 = vsel %vm2952, %v2907, 0
    %v3224 = vsel %vm2952, %v2908, 0
    %v3227 = vsel %vm2952, %v2909, 0
    %v3230 = vsel %vm2952, %v2910, 0
    %v3233 = vsel %vm2952, %v2911, 0
    %v3236 = vsel %vm2952, %v2912, 0
    %v3239 = vsel %vm2952, %v2913, 0
    %v3242 = vsel %vm2952, %v2914, 0
    %v3245 = vsel %vm2952, %v2915, 0
    %v3248 = vsel %vm2952, %v2916, 0
    %v3251 = vsel %vm2952, %v2917, 0
    %v3254 = vsel %vm2952, %v2918, 0
    %v3257 = vsel %vm2952, %v2919, 0
    %v3260 = vsel %vm2952, %v2920, 0
    %v3263 = vsel %vm2952, %v2921, 0
    %v3266 = vsel %vm2952, %v2922, 0
    %v3269 = vsel %vm2952, %v2923, 0
    %v3272 = vsel %vm2952, %v2924, 0
    %v3275 = vsel %vm2952, %v2925, 0
    %v3278 = vsel %vm2952, %v2926, 0
    %v3281 = vsel %vm2952, %v2927, 0
    %v3284 = vsel %vm2952, %v2928, 0
    %v3287 = vsel %vm2952, %v2929, 0
    %v3290 = vsel %vm2952, %v2930, 0
    %v3293 = vsel %vm2952, %v2931, 0
    %v3296 = vsel %vm2952, %v2932, 0
    %v3299 = vsel %vm2952, %v2933, 0
    %v3302 = vsel %vm2952, %v2934, 0
    %v3305 = vsel %vm2952, %v2935, 0
    %v3308 = vsel %vm2952, %v2936, 0
    %v3311 = vsel %vm2952, %v2937, 0
    %v3314 = vsel %vm2952, %v2938, 0
    %v3317 = vsel %vm2952, %v2939, 0
    %v3320 = vsel %vm2952, %v2940, 0
    %v3323 = vsel %vm2952, %v2941, 0
    %v3326 = vsel %vm2952, %v2942, 0
    %v3329 = vsel %vm2952, %v2943, 0
    %vm3331 = vcmask 1045504
    %v3333 = vsel %vm3331, %v2951, 0
    %3335 = vmatpush.bf16.msra.mxu0 0
    %3336 = vmatpush.bf16.msra.mxu0 0
    %3337 = vmatpush.bf16.msra.mxu0 0
    %3338 = vmatpush.bf16.msra.mxu0 0
    %3339 = vmatpush.bf16.msra.mxu0 0
    %3340 = vmatpush.bf16.msra.mxu0 0
    %3341 = vmatpush.bf16.msra.mxu0 0
    %3342 = vmatpush.bf16.msra.mxu0 %v3333
    %3343 = vmatmul.bf16.gmra.mxu0 %v2954
    %v3344 = vpop.f32.mrf.mxu0
    %v3345 = vadd.f32 %v2945, %v3344
    %v3346 = vpop.f32.mrf.mxu0
    %v3347 = vadd.f32 %v2945, %v3346
    %3348 = vmatmul.bf16.gmra.mxu0 %v2957
    %v3349 = vpop.f32.mrf.mxu0
    %v3350 = vadd.f32 %v2945, %v3349
    %v3351 = vpop.f32.mrf.mxu0
    %v3352 = vadd.f32 %v2945, %v3351
    %3353 = vmatmul.bf16.gmra.mxu0 %v2960
    %v3354 = vpop.f32.mrf.mxu0
    %v3355 = vadd.f32 %v2945, %v3354
    %v3356 = vpop.f32.mrf.mxu0
    %v3357 = vadd.f32 %v2945, %v3356
    %3358 = vmatmul.bf16.gmra.mxu0 %v2963
    %v3359 = vpop.f32.mrf.mxu0
    %v3360 = vadd.f32 %v2945, %v3359
    %v3361 = vpop.f32.mrf.mxu0
    %v3362 = vadd.f32 %v2945, %v3361
    %3363 = vmatmul.bf16.gmra.mxu0 %v2966
    %v3364 = vpop.f32.mrf.mxu0
    %v3365 = vadd.f32 %v2945, %v3364
    %v3366 = vpop.f32.mrf.mxu0
    %v3367 = vadd.f32 %v2945, %v3366
    %3368 = vmatmul.bf16.gmra.mxu0 %v2969
    %v3369 = vpop.f32.mrf.mxu0
    %v3370 = vadd.f32 %v2945, %v3369
    %v3371 = vpop.f32.mrf.mxu0
    %v3372 = vadd.f32 %v2945, %v3371
    %3373 = vmatmul.bf16.gmra.mxu0 %v2972
    %v3374 = vpop.f32.mrf.mxu0
    %v3375 = vadd.f32 %v2945, %v3374
    %v3376 = vpop.f32.mrf.mxu0
    %v3377 = vadd.f32 %v2945, %v3376
    %3378 = vmatmul.bf16.gmra.mxu0 %v2975
    %v3379 = vpop.f32.mrf.mxu0
    %v3380 = vadd.f32 %v2945, %v3379
    %v3381 = vpop.f32.mrf.mxu0
    %v3382 = vadd.f32 %v2945, %v3381
    %3383 = vmatmul.bf16.gmra.mxu0 %v2978
    %v3384 = vpop.f32.mrf.mxu0
    %v3385 = vadd.f32 %v2945, %v3384
    %v3386 = vpop.f32.mrf.mxu0
    %v3387 = vadd.f32 %v2945, %v3386
    %3388 = vmatmul.bf16.gmra.mxu0 %v2981
    %v3389 = vpop.f32.mrf.mxu0
    %v3390 = vadd.f32 %v2945, %v3389
    %v3391 = vpop.f32.mrf.mxu0
    %v3392 = vadd.f32 %v2945, %v3391
    %3393 = vmatmul.bf16.gmra.mxu0 %v2984
    %v3394 = vpop.f32.mrf.mxu0
    %v3395 = vadd.f32 %v2945, %v3394
    %v3396 = vpop.f32.mrf.mxu0
    %v3397 = vadd.f32 %v2945, %v3396
    %3398 = vmatmul.bf16.gmra.mxu0 %v2987
    %v3399 = vpop.f32.mrf.mxu0
    %v3400 = vadd.f32 %v2945, %v3399
    %v3401 = vpop.f32.mrf.mxu0
    %v3402 = vadd.f32 %v2945, %v3401
    %3403 = vmatmul.bf16.gmra.mxu0 %v2990
    %v3404 = vpop.f32.mrf.mxu0
    %v3405 = vadd.f32 %v2945, %v3404
    %v3406 = vpop.f32.mrf.mxu0
    %v3407 = vadd.f32 %v2945, %v3406
    %3408 = vmatmul.bf16.gmra.mxu0 %v2993
    %v3409 = vpop.f32.mrf.mxu0
    %v3410 = vadd.f32 %v2945, %v3409
    %v3411 = vpop.f32.mrf.mxu0
    %v3412 = vadd.f32 %v2945, %v3411
    %3413 = vmatmul.bf16.gmra.mxu0 %v2996
    %v3414 = vpop.f32.mrf.mxu0
    %v3415 = vadd.f32 %v2945, %v3414
    %v3416 = vpop.f32.mrf.mxu0
    %v3417 = vadd.f32 %v2945, %v3416
    %3418 = vmatmul.bf16.gmra.mxu0 %v2999
    %v3419 = vpop.f32.mrf.mxu0
    %v3420 = vadd.f32 %v2945, %v3419
    %v3421 = vpop.f32.mrf.mxu0
    %v3422 = vadd.f32 %v2945, %v3421
    %3423 = vmatmul.bf16.gmra.mxu0 %v3002
    %v3424 = vpop.f32.mrf.mxu0
    %v3425 = vadd.f32 %v2945, %v3424
    %v3426 = vpop.f32.mrf.mxu0
    %v3427 = vadd.f32 %v2945, %v3426
    %3428 = vmatmul.bf16.gmra.mxu0 %v3005
    %v3429 = vpop.f32.mrf.mxu0
    %v3430 = vadd.f32 %v2945, %v3429
    %v3431 = vpop.f32.mrf.mxu0
    %v3432 = vadd.f32 %v2945, %v3431
    %3433 = vmatmul.bf16.gmra.mxu0 %v3008
    %v3434 = vpop.f32.mrf.mxu0
    %v3435 = vadd.f32 %v2945, %v3434
    %v3436 = vpop.f32.mrf.mxu0
    %v3437 = vadd.f32 %v2945, %v3436
    %3438 = vmatmul.bf16.gmra.mxu0 %v3011
    %v3439 = vpop.f32.mrf.mxu0
    %v3440 = vadd.f32 %v2945, %v3439
    %v3441 = vpop.f32.mrf.mxu0
    %v3442 = vadd.f32 %v2945, %v3441
    %3443 = vmatmul.bf16.gmra.mxu0 %v3014
    %v3444 = vpop.f32.mrf.mxu0
    %v3445 = vadd.f32 %v2945, %v3444
    %v3446 = vpop.f32.mrf.mxu0
    %v3447 = vadd.f32 %v2945, %v3446
    %3448 = vmatmul.bf16.gmra.mxu0 %v3017
    %v3449 = vpop.f32.mrf.mxu0
    %v3450 = vadd.f32 %v2945, %v3449
    %v3451 = vpop.f32.mrf.mxu0
    %v3452 = vadd.f32 %v2945, %v3451
    %3453 = vmatmul.bf16.gmra.mxu0 %v3020
    %v3454 = vpop.f32.mrf.mxu0
    %v3455 = vadd.f32 %v2945, %v3454
    %v3456 = vpop.f32.mrf.mxu0
    %v3457 = vadd.f32 %v2945, %v3456
    %3458 = vmatmul.bf16.gmra.mxu0 %v3023
    %v3459 = vpop.f32.mrf.mxu0
    %v3460 = vadd.f32 %v2945, %v3459
    %v3461 = vpop.f32.mrf.mxu0
    %v3462 = vadd.f32 %v2945, %v3461
    %3463 = vmatmul.bf16.gmra.mxu0 %v3026
    %v3464 = vpop.f32.mrf.mxu0
    %v3465 = vadd.f32 %v2945, %v3464
    %v3466 = vpop.f32.mrf.mxu0
    %v3467 = vadd.f32 %v2945, %v3466
    %3468 = vmatmul.bf16.gmra.mxu0 %v3029
    %v3469 = vpop.f32.mrf.mxu0
    %v3470 = vadd.f32 %v2945, %v3469
    %v3471 = vpop.f32.mrf.mxu0
    %v3472 = vadd.f32 %v2945, %v3471
    %3473 = vmatmul.bf16.gmra.mxu0 %v3032
    %v3474 = vpop.f32.mrf.mxu0
    %v3475 = vadd.f32 %v2945, %v3474
    %v3476 = vpop.f32.mrf.mxu0
    %v3477 = vadd.f32 %v2945, %v3476
    %3478 = vmatmul.bf16.gmra.mxu0 %v3035
    %v3479 = vpop.f32.mrf.mxu0
    %v3480 = vadd.f32 %v2945, %v3479
    %v3481 = vpop.f32.mrf.mxu0
    %v3482 = vadd.f32 %v2945, %v3481
    %3483 = vmatmul.bf16.gmra.mxu0 %v3038
    %v3484 = vpop.f32.mrf.mxu0
    %v3485 = vadd.f32 %v2945, %v3484
    %v3486 = vpop.f32.mrf.mxu0
    %v3487 = vadd.f32 %v2945, %v3486
    %3488 = vmatmul.bf16.gmra.mxu0 %v3041
    %v3489 = vpop.f32.mrf.mxu0
    %v3490 = vadd.f32 %v2945, %v3489
    %v3491 = vpop.f32.mrf.mxu0
    %v3492 = vadd.f32 %v2945, %v3491
    %3493 = vmatmul.bf16.gmra.mxu0 %v3044
    %v3494 = vpop.f32.mrf.mxu0
    %v3495 = vadd.f32 %v2945, %v3494
    %v3496 = vpop.f32.mrf.mxu0
    %v3497 = vadd.f32 %v2945, %v3496
    %3498 = vmatmul.bf16.gmra.mxu0 %v3047
    %v3499 = vpop.f32.mrf.mxu0
    %v3500 = vadd.f32 %v2945, %v3499
    %v3501 = vpop.f32.mrf.mxu0
    %v3502 = vadd.f32 %v2945, %v3501
    %3503 = vmatmul.bf16.gmra.mxu0 %v3050
    %v3504 = vpop.f32.mrf.mxu0
    %v3505 = vadd.f32 %v2945, %v3504
    %v3506 = vpop.f32.mrf.mxu0
    %v3507 = vadd.f32 %v2945, %v3506
    %3508 = vmatmul.bf16.gmra.mxu0 %v3053
    %v3509 = vpop.f32.mrf.mxu0
    %v3510 = vadd.f32 %v2945, %v3509
    %v3511 = vpop.f32.mrf.mxu0
    %v3512 = vadd.f32 %v2945, %v3511
    %3513 = vmatmul.bf16.gmra.mxu0 %v3056
    %v3514 = vpop.f32.mrf.mxu0
    %v3515 = vadd.f32 %v2945, %v3514
    %v3516 = vpop.f32.mrf.mxu0
    %v3517 = vadd.f32 %v2945, %v3516
    %3518 = vmatmul.bf16.gmra.mxu0 %v3059
    %v3519 = vpop.f32.mrf.mxu0
    %v3520 = vadd.f32 %v2945, %v3519
    %v3521 = vpop.f32.mrf.mxu0
    %v3522 = vadd.f32 %v2945, %v3521
    %3523 = vmatmul.bf16.gmra.mxu0 %v3062
    %v3524 = vpop.f32.mrf.mxu0
    %v3525 = vadd.f32 %v2945, %v3524
    %v3526 = vpop.f32.mrf.mxu0
    %v3527 = vadd.f32 %v2945, %v3526
    %3528 = vmatmul.bf16.gmra.mxu0 %v3065
    %v3529 = vpop.f32.mrf.mxu0
    %v3530 = vadd.f32 %v2945, %v3529
    %v3531 = vpop.f32.mrf.mxu0
    %v3532 = vadd.f32 %v2945, %v3531
    %3533 = vmatmul.bf16.gmra.mxu0 %v3068
    %v3534 = vpop.f32.mrf.mxu0
    %v3535 = vadd.f32 %v2945, %v3534
    %v3536 = vpop.f32.mrf.mxu0
    %v3537 = vadd.f32 %v2945, %v3536
    %3538 = vmatmul.bf16.gmra.mxu0 %v3071
    %v3539 = vpop.f32.mrf.mxu0
    %v3540 = vadd.f32 %v2945, %v3539
    %v3541 = vpop.f32.mrf.mxu0
    %v3542 = vadd.f32 %v2945, %v3541
    %3543 = vmatmul.bf16.gmra.mxu0 %v3074
    %v3544 = vpop.f32.mrf.mxu0
    %v3545 = vadd.f32 %v2945, %v3544
    %v3546 = vpop.f32.mrf.mxu0
    %v3547 = vadd.f32 %v2945, %v3546
    %3548 = vmatmul.bf16.gmra.mxu0 %v3077
    %v3549 = vpop.f32.mrf.mxu0
    %v3550 = vadd.f32 %v2945, %v3549
    %v3551 = vpop.f32.mrf.mxu0
    %v3552 = vadd.f32 %v2945, %v3551
    %3553 = vmatmul.bf16.gmra.mxu0 %v3080
    %v3554 = vpop.f32.mrf.mxu0
    %v3555 = vadd.f32 %v2945, %v3554
    %v3556 = vpop.f32.mrf.mxu0
    %v3557 = vadd.f32 %v2945, %v3556
    %3558 = vmatmul.bf16.gmra.mxu0 %v3083
    %v3559 = vpop.f32.mrf.mxu0
    %v3560 = vadd.f32 %v2945, %v3559
    %v3561 = vpop.f32.mrf.mxu0
    %v3562 = vadd.f32 %v2945, %v3561
    %3563 = vmatmul.bf16.gmra.mxu0 %v3086
    %v3564 = vpop.f32.mrf.mxu0
    %v3565 = vadd.f32 %v2945, %v3564
    %v3566 = vpop.f32.mrf.mxu0
    %v3567 = vadd.f32 %v2945, %v3566
    %3568 = vmatmul.bf16.gmra.mxu0 %v3089
    %v3569 = vpop.f32.mrf.mxu0
    %v3570 = vadd.f32 %v2945, %v3569
    %v3571 = vpop.f32.mrf.mxu0
    %v3572 = vadd.f32 %v2945, %v3571
    %3573 = vmatmul.bf16.gmra.mxu0 %v3092
    %v3574 = vpop.f32.mrf.mxu0
    %v3575 = vadd.f32 %v2945, %v3574
    %v3576 = vpop.f32.mrf.mxu0
    %v3577 = vadd.f32 %v2945, %v3576
    %3578 = vmatmul.bf16.gmra.mxu0 %v3095
    %v3579 = vpop.f32.mrf.mxu0
    %v3580 = vadd.f32 %v2945, %v3579
    %v3581 = vpop.f32.mrf.mxu0
    %v3582 = vadd.f32 %v2945, %v3581
    %3583 = vmatmul.bf16.gmra.mxu0 %v3098
    %v3584 = vpop.f32.mrf.mxu0
    %v3585 = vadd.f32 %v2945, %v3584
    %v3586 = vpop.f32.mrf.mxu0
    %v3587 = vadd.f32 %v2945, %v3586
    %3588 = vmatmul.bf16.gmra.mxu0 %v3101
    %v3589 = vpop.f32.mrf.mxu0
    %v3590 = vadd.f32 %v2945, %v3589
    %v3591 = vpop.f32.mrf.mxu0
    %v3592 = vadd.f32 %v2945, %v3591
    %3593 = vmatmul.bf16.gmra.mxu0 %v3104
    %v3594 = vpop.f32.mrf.mxu0
    %v3595 = vadd.f32 %v2945, %v3594
    %v3596 = vpop.f32.mrf.mxu0
    %v3597 = vadd.f32 %v2945, %v3596
    %3598 = vmatmul.bf16.gmra.mxu0 %v3107
    %v3599 = vpop.f32.mrf.mxu0
    %v3600 = vadd.f32 %v2945, %v3599
    %v3601 = vpop.f32.mrf.mxu0
    %v3602 = vadd.f32 %v2945, %v3601
    %3603 = vmatmul.bf16.gmra.mxu0 %v3110
    %v3604 = vpop.f32.mrf.mxu0
    %v3605 = vadd.f32 %v2945, %v3604
    %v3606 = vpop.f32.mrf.mxu0
    %v3607 = vadd.f32 %v2945, %v3606
    %3608 = vmatmul.bf16.gmra.mxu0 %v3113
    %v3609 = vpop.f32.mrf.mxu0
    %v3610 = vadd.f32 %v2945, %v3609
    %v3611 = vpop.f32.mrf.mxu0
    %v3612 = vadd.f32 %v2945, %v3611
    %3613 = vmatmul.bf16.gmra.mxu0 %v3116
    %v3614 = vpop.f32.mrf.mxu0
    %v3615 = vadd.f32 %v2945, %v3614
    %v3616 = vpop.f32.mrf.mxu0
    %v3617 = vadd.f32 %v2945, %v3616
    %3618 = vmatmul.bf16.gmra.mxu0 %v3119
    %v3619 = vpop.f32.mrf.mxu0
    %v3620 = vadd.f32 %v2945, %v3619
    %v3621 = vpop.f32.mrf.mxu0
    %v3622 = vadd.f32 %v2945, %v3621
    %3623 = vmatmul.bf16.gmra.mxu0 %v3122
    %v3624 = vpop.f32.mrf.mxu0
    %v3625 = vadd.f32 %v2945, %v3624
    %v3626 = vpop.f32.mrf.mxu0
    %v3627 = vadd.f32 %v2945, %v3626
    %3628 = vmatmul.bf16.gmra.mxu0 %v3125
    %v3629 = vpop.f32.mrf.mxu0
    %v3630 = vadd.f32 %v2945, %v3629
    %v3631 = vpop.f32.mrf.mxu0
    %v3632 = vadd.f32 %v2945, %v3631
    %3633 = vmatmul.bf16.gmra.mxu0 %v3128
    %v3634 = vpop.f32.mrf.mxu0
    %v3635 = vadd.f32 %v2945, %v3634
    %v3636 = vpop.f32.mrf.mxu0
    %v3637 = vadd.f32 %v2945, %v3636
    %3638 = vmatmul.bf16.gmra.mxu0 %v3131
    %v3639 = vpop.f32.mrf.mxu0
    %v3640 = vadd.f32 %v2945, %v3639
    %v3641 = vpop.f32.mrf.mxu0
    %v3642 = vadd.f32 %v2945, %v3641
    %3643 = vmatmul.bf16.gmra.mxu0 %v3134
    %v3644 = vpop.f32.mrf.mxu0
    %v3645 = vadd.f32 %v2945, %v3644
    %v3646 = vpop.f32.mrf.mxu0
    %v3647 = vadd.f32 %v2945, %v3646
    %3648 = vmatmul.bf16.gmra.mxu0 %v3137
    %v3649 = vpop.f32.mrf.mxu0
    %v3650 = vadd.f32 %v2945, %v3649
    %v3651 = vpop.f32.mrf.mxu0
    %v3652 = vadd.f32 %v2945, %v3651
    %3653 = vmatmul.bf16.gmra.mxu0 %v3140
    %v3654 = vpop.f32.mrf.mxu0
    %v3655 = vadd.f32 %v2945, %v3654
    %v3656 = vpop.f32.mrf.mxu0
    %v3657 = vadd.f32 %v2945, %v3656
    %3658 = vmatmul.bf16.gmra.mxu0 %v3143
    %v3659 = vpop.f32.mrf.mxu0
    %v3660 = vadd.f32 %v2945, %v3659
    %v3661 = vpop.f32.mrf.mxu0
    %v3662 = vadd.f32 %v2945, %v3661
    %3663 = vmatmul.bf16.gmra.mxu0 %v3146
    %v3664 = vpop.f32.mrf.mxu0
    %v3665 = vadd.f32 %v2945, %v3664
    %v3666 = vpop.f32.mrf.mxu0
    %v3667 = vadd.f32 %v2945, %v3666
    %3668 = vmatmul.bf16.gmra.mxu0 %v3149
    %v3669 = vpop.f32.mrf.mxu0
    %v3670 = vadd.f32 %v2945, %v3669
    %v3671 = vpop.f32.mrf.mxu0
    %v3672 = vadd.f32 %v2945, %v3671
    %3673 = vmatmul.bf16.gmra.mxu0 %v3152
    %v3674 = vpop.f32.mrf.mxu0
    %v3675 = vadd.f32 %v2945, %v3674
    %v3676 = vpop.f32.mrf.mxu0
    %v3677 = vadd.f32 %v2945, %v3676
    %3678 = vmatmul.bf16.gmra.mxu0 %v3155
    %v3679 = vpop.f32.mrf.mxu0
    %v3680 = vadd.f32 %v2945, %v3679
    %v3681 = vpop.f32.mrf.mxu0
    %v3682 = vadd.f32 %v2945, %v3681
    %3683 = vmatmul.bf16.gmra.mxu0 %v3158
    %v3684 = vpop.f32.mrf.mxu0
    %v3685 = vadd.f32 %v2945, %v3684
    %v3686 = vpop.f32.mrf.mxu0
    %v3687 = vadd.f32 %v2945, %v3686
    %3688 = vmatmul.bf16.gmra.mxu0 %v3161
    %v3689 = vpop.f32.mrf.mxu0
    %v3690 = vadd.f32 %v2945, %v3689
    %v3691 = vpop.f32.mrf.mxu0
    %v3692 = vadd.f32 %v2945, %v3691
    %3693 = vmatmul.bf16.gmra.mxu0 %v3164
    %v3694 = vpop.f32.mrf.mxu0
    %v3695 = vadd.f32 %v2945, %v3694
    %v3696 = vpop.f32.mrf.mxu0
    %v3697 = vadd.f32 %v2945, %v3696
    %3698 = vmatmul.bf16.gmra.mxu0 %v3167
    %v3699 = vpop.f32.mrf.mxu0
    %v3700 = vadd.f32 %v2945, %v3699
    %v3701 = vpop.f32.mrf.mxu0
    %v3702 = vadd.f32 %v2945, %v3701
    %3703 = vmatmul.bf16.gmra.mxu0 %v3170
    %v3704 = vpop.f32.mrf.mxu0
    %v3705 = vadd.f32 %v2945, %v3704
    %v3706 = vpop.f32.mrf.mxu0
    %v3707 = vadd.f32 %v2945, %v3706
    %3708 = vmatmul.bf16.gmra.mxu0 %v3173
    %v3709 = vpop.f32.mrf.mxu0
    %v3710 = vadd.f32 %v2945, %v3709
    %v3711 = vpop.f32.mrf.mxu0
    %v3712 = vadd.f32 %v2945, %v3711
    %3713 = vmatmul.bf16.gmra.mxu0 %v3176
    %v3714 = vpop.f32.mrf.mxu0
    %v3715 = vadd.f32 %v2945, %v3714
    %v3716 = vpop.f32.mrf.mxu0
    %v3717 = vadd.f32 %v2945, %v3716
    %3718 = vmatmul.bf16.gmra.mxu0 %v3179
    %v3719 = vpop.f32.mrf.mxu0
    %v3720 = vadd.f32 %v2945, %v3719
    %v3721 = vpop.f32.mrf.mxu0
    %v3722 = vadd.f32 %v2945, %v3721
    %3723 = vmatmul.bf16.gmra.mxu0 %v3182
    %v3724 = vpop.f32.mrf.mxu0
    %v3725 = vadd.f32 %v2945, %v3724
    %v3726 = vpop.f32.mrf.mxu0
    %v3727 = vadd.f32 %v2945, %v3726
    %3728 = vmatmul.bf16.gmra.mxu0 %v3185
    %v3729 = vpop.f32.mrf.mxu0
    %v3730 = vadd.f32 %v2945, %v3729
    %v3731 = vpop.f32.mrf.mxu0
    %v3732 = vadd.f32 %v2945, %v3731
    %3733 = vmatmul.bf16.gmra.mxu0 %v3188
    %v3734 = vpop.f32.mrf.mxu0
    %v3735 = vadd.f32 %v2945, %v3734
    %v3736 = vpop.f32.mrf.mxu0
    %v3737 = vadd.f32 %v2945, %v3736
    %3738 = vmatmul.bf16.gmra.mxu0 %v3191
    %v3739 = vpop.f32.mrf.mxu0
    %v3740 = vadd.f32 %v2945, %v3739
    %v3741 = vpop.f32.mrf.mxu0
    %v3742 = vadd.f32 %v2945, %v3741
    %3743 = vmatmul.bf16.gmra.mxu0 %v3194
    %v3744 = vpop.f32.mrf.mxu0
    %v3745 = vadd.f32 %v2945, %v3744
    %v3746 = vpop.f32.mrf.mxu0
    %v3747 = vadd.f32 %v2945, %v3746
    %3748 = vmatmul.bf16.gmra.mxu0 %v3197
    %v3749 = vpop.f32.mrf.mxu0
    %v3750 = vadd.f32 %v2945, %v3749
    %v3751 = vpop.f32.mrf.mxu0
    %v3752 = vadd.f32 %v2945, %v3751
    %3753 = vmatmul.bf16.gmra.mxu0 %v3200
    %v3754 = vpop.f32.mrf.mxu0
    %v3755 = vadd.f32 %v2945, %v3754
    %v3756 = vpop.f32.mrf.mxu0
    %v3757 = vadd.f32 %v2945, %v3756
    %3758 = vmatmul.bf16.gmra.mxu0 %v3203
    %v3759 = vpop.f32.mrf.mxu0
    %v3760 = vadd.f32 %v2945, %v3759
    %v3761 = vpop.f32.mrf.mxu0
    %v3762 = vadd.f32 %v2945, %v3761
    %3763 = vmatmul.bf16.gmra.mxu0 %v3206
    %v3764 = vpop.f32.mrf.mxu0
    %v3765 = vadd.f32 %v2945, %v3764
    %v3766 = vpop.f32.mrf.mxu0
    %v3767 = vadd.f32 %v2945, %v3766
    %3768 = vmatmul.bf16.gmra.mxu0 %v3209
    %v3769 = vpop.f32.mrf.mxu0
    %v3770 = vadd.f32 %v2945, %v3769
    %v3771 = vpop.f32.mrf.mxu0
    %v3772 = vadd.f32 %v2945, %v3771
    %3773 = vmatmul.bf16.gmra.mxu0 %v3212
    %v3774 = vpop.f32.mrf.mxu0
    %v3775 = vadd.f32 %v2945, %v3774
    %v3776 = vpop.f32.mrf.mxu0
    %v3777 = vadd.f32 %v2945, %v3776
    %3778 = vmatmul.bf16.gmra.mxu0 %v3215
    %v3779 = vpop.f32.mrf.mxu0
    %v3780 = vadd.f32 %v2945, %v3779
    %v3781 = vpop.f32.mrf.mxu0
    %v3782 = vadd.f32 %v2945, %v3781
    %3783 = vmatmul.bf16.gmra.mxu0 %v3218
    %v3784 = vpop.f32.mrf.mxu0
    %v3785 = vadd.f32 %v2945, %v3784
    %v3786 = vpop.f32.mrf.mxu0
    %v3787 = vadd.f32 %v2945, %v3786
    %3788 = vmatmul.bf16.gmra.mxu0 %v3221
    %v3789 = vpop.f32.mrf.mxu0
    %v3790 = vadd.f32 %v2945, %v3789
    %v3791 = vpop.f32.mrf.mxu0
    %v3792 = vadd.f32 %v2945, %v3791
    %3793 = vmatmul.bf16.gmra.mxu0 %v3224
    %v3794 = vpop.f32.mrf.mxu0
    %v3795 = vadd.f32 %v2945, %v3794
    %v3796 = vpop.f32.mrf.mxu0
    %v3797 = vadd.f32 %v2945, %v3796
    %3798 = vmatmul.bf16.gmra.mxu0 %v3227
    %v3799 = vpop.f32.mrf.mxu0
    %v3800 = vadd.f32 %v2945, %v3799
    %v3801 = vpop.f32.mrf.mxu0
    %v3802 = vadd.f32 %v2945, %v3801
    %3803 = vmatmul.bf16.gmra.mxu0 %v3230
    %v3804 = vpop.f32.mrf.mxu0
    %v3805 = vadd.f32 %v2945, %v3804
    %v3806 = vpop.f32.mrf.mxu0
    %v3807 = vadd.f32 %v2945, %v3806
    %3808 = vmatmul.bf16.gmra.mxu0 %v3233
    %v3809 = vpop.f32.mrf.mxu0
    %v3810 = vadd.f32 %v2945, %v3809
    %v3811 = vpop.f32.mrf.mxu0
    %v3812 = vadd.f32 %v2945, %v3811
    %3813 = vmatmul.bf16.gmra.mxu0 %v3236
    %v3814 = vpop.f32.mrf.mxu0
    %v3815 = vadd.f32 %v2945, %v3814
    %v3816 = vpop.f32.mrf.mxu0
    %v3817 = vadd.f32 %v2945, %v3816
    %3818 = vmatmul.bf16.gmra.mxu0 %v3239
    %v3819 = vpop.f32.mrf.mxu0
    %v3820 = vadd.f32 %v2945, %v3819
    %v3821 = vpop.f32.mrf.mxu0
    %v3822 = vadd.f32 %v2945, %v3821
    %3823 = vmatmul.bf16.gmra.mxu0 %v3242
    %v3824 = vpop.f32.mrf.mxu0
    %v3825 = vadd.f32 %v2945, %v3824
    %v3826 = vpop.f32.mrf.mxu0
    %v3827 = vadd.f32 %v2945, %v3826
    %3828 = vmatmul.bf16.gmra.mxu0 %v3245
    %v3829 = vpop.f32.mrf.mxu0
    %v3830 = vadd.f32 %v2945, %v3829
    %v3831 = vpop.f32.mrf.mxu0
    %v3832 = vadd.f32 %v2945, %v3831
    %3833 = vmatmul.bf16.gmra.mxu0 %v3248
    %v3834 = vpop.f32.mrf.mxu0
    %v3835 = vadd.f32 %v2945, %v3834
    %v3836 = vpop.f32.mrf.mxu0
    %v3837 = vadd.f32 %v2945, %v3836
    %3838 = vmatmul.bf16.gmra.mxu0 %v3251
    %v3839 = vpop.f32.mrf.mxu0
    %v3840 = vadd.f32 %v2945, %v3839
    %v3841 = vpop.f32.mrf.mxu0
    %v3842 = vadd.f32 %v2945, %v3841
    %3843 = vmatmul.bf16.gmra.mxu0 %v3254
    %v3844 = vpop.f32.mrf.mxu0
    %v3845 = vadd.f32 %v2945, %v3844
    %v3846 = vpop.f32.mrf.mxu0
    %v3847 = vadd.f32 %v2945, %v3846
    %3848 = vmatmul.bf16.gmra.mxu0 %v3257
    %v3849 = vpop.f32.mrf.mxu0
    %v3850 = vadd.f32 %v2945, %v3849
    %v3851 = vpop.f32.mrf.mxu0
    %v3852 = vadd.f32 %v2945, %v3851
    %3853 = vmatmul.bf16.gmra.mxu0 %v3260
    %v3854 = vpop.f32.mrf.mxu0
    %v3855 = vadd.f32 %v2945, %v3854
    %v3856 = vpop.f32.mrf.mxu0
    %v3857 = vadd.f32 %v2945, %v3856
    %3858 = vmatmul.bf16.gmra.mxu0 %v3263
    %v3859 = vpop.f32.mrf.mxu0
    %v3860 = vadd.f32 %v2945, %v3859
    %v3861 = vpop.f32.mrf.mxu0
    %v3862 = vadd.f32 %v2945, %v3861
    %3863 = vmatmul.bf16.gmra.mxu0 %v3266
    %v3864 = vpop.f32.mrf.mxu0
    %v3865 = vadd.f32 %v2945, %v3864
    %v3866 = vpop.f32.mrf.mxu0
    %v3867 = vadd.f32 %v2945, %v3866
    %3868 = vmatmul.bf16.gmra.mxu0 %v3269
    %v3869 = vpop.f32.mrf.mxu0
    %v3870 = vadd.f32 %v2945, %v3869
    %v3871 = vpop.f32.mrf.mxu0
    %v3872 = vadd.f32 %v2945, %v3871
    %3873 = vmatmul.bf16.gmra.mxu0 %v3272
    %v3874 = vpop.f32.mrf.mxu0
    %v3875 = vadd.f32 %v2945, %v3874
    %v3876 = vpop.f32.mrf.mxu0
    %v3877 = vadd.f32 %v2945, %v3876
    %3878 = vmatmul.bf16.gmra.mxu0 %v3275
    %v3879 = vpop.f32.mrf.mxu0
    %v3880 = vadd.f32 %v2945, %v3879
    %v3881 = vpop.f32.mrf.mxu0
    %v3882 = vadd.f32 %v2945, %v3881
    %3883 = vmatmul.bf16.gmra.mxu0 %v3278
    %v3884 = vpop.f32.mrf.mxu0
    %v3885 = vadd.f32 %v2945, %v3884
    %v3886 = vpop.f32.mrf.mxu0
    %v3887 = vadd.f32 %v2945, %v3886
    %3888 = vmatmul.bf16.gmra.mxu0 %v3281
    %v3889 = vpop.f32.mrf.mxu0
    %v3890 = vadd.f32 %v2945, %v3889
    %v3891 = vpop.f32.mrf.mxu0
    %v3892 = vadd.f32 %v2945, %v3891
    %3893 = vmatmul.bf16.gmra.mxu0 %v3284
    %v3894 = vpop.f32.mrf.mxu0
    %v3895 = vadd.f32 %v2945, %v3894
    %v3896 = vpop.f32.mrf.mxu0
    %v3897 = vadd.f32 %v2945, %v3896
    %3898 = vmatmul.bf16.gmra.mxu0 %v3287
    %v3899 = vpop.f32.mrf.mxu0
    %v3900 = vadd.f32 %v2945, %v3899
    %v3901 = vpop.f32.mrf.mxu0
    %v3902 = vadd.f32 %v2945, %v3901
    %3903 = vmatmul.bf16.gmra.mxu0 %v3290
    %v3904 = vpop.f32.mrf.mxu0
    %v3905 = vadd.f32 %v2945, %v3904
    %v3906 = vpop.f32.mrf.mxu0
    %v3907 = vadd.f32 %v2945, %v3906
    %3908 = vmatmul.bf16.gmra.mxu0 %v3293
    %v3909 = vpop.f32.mrf.mxu0
    %v3910 = vadd.f32 %v2945, %v3909
    %v3911 = vpop.f32.mrf.mxu0
    %v3912 = vadd.f32 %v2945, %v3911
    %3913 = vmatmul.bf16.gmra.mxu0 %v3296
    %v3914 = vpop.f32.mrf.mxu0
    %v3915 = vadd.f32 %v2945, %v3914
    %v3916 = vpop.f32.mrf.mxu0
    %v3917 = vadd.f32 %v2945, %v3916
    %3918 = vmatmul.bf16.gmra.mxu0 %v3299
    %v3919 = vpop.f32.mrf.mxu0
    %v3920 = vadd.f32 %v2945, %v3919
    %v3921 = vpop.f32.mrf.mxu0
    %v3922 = vadd.f32 %v2945, %v3921
    %3923 = vmatmul.bf16.gmra.mxu0 %v3302
    %v3924 = vpop.f32.mrf.mxu0
    %v3925 = vadd.f32 %v2945, %v3924
    %v3926 = vpop.f32.mrf.mxu0
    %v3927 = vadd.f32 %v2945, %v3926
    %3928 = vmatmul.bf16.gmra.mxu0 %v3305
    %v3929 = vpop.f32.mrf.mxu0
    %v3930 = vadd.f32 %v2945, %v3929
    %v3931 = vpop.f32.mrf.mxu0
    %v3932 = vadd.f32 %v2945, %v3931
    %3933 = vmatmul.bf16.gmra.mxu0 %v3308
    %v3934 = vpop.f32.mrf.mxu0
    %v3935 = vadd.f32 %v2945, %v3934
    %v3936 = vpop.f32.mrf.mxu0
    %v3937 = vadd.f32 %v2945, %v3936
    %3938 = vmatmul.bf16.gmra.mxu0 %v3311
    %v3939 = vpop.f32.mrf.mxu0
    %v3940 = vadd.f32 %v2945, %v3939
    %v3941 = vpop.f32.mrf.mxu0
    %v3942 = vadd.f32 %v2945, %v3941
    %3943 = vmatmul.bf16.gmra.mxu0 %v3314
    %v3944 = vpop.f32.mrf.mxu0
    %v3945 = vadd.f32 %v2945, %v3944
    %v3946 = vpop.f32.mrf.mxu0
    %v3947 = vadd.f32 %v2945, %v3946
    %3948 = vmatmul.bf16.gmra.mxu0 %v3317
    %v3949 = vpop.f32.mrf.mxu0
    %v3950 = vadd.f32 %v2945, %v3949
    %v3951 = vpop.f32.mrf.mxu0
    %v3952 = vadd.f32 %v2945, %v3951
    %3953 = vmatmul.bf16.gmra.mxu0 %v3320
    %v3954 = vpop.f32.mrf.mxu0
    %v3955 = vadd.f32 %v2945, %v3954
    %v3956 = vpop.f32.mrf.mxu0
    %v3957 = vadd.f32 %v2945, %v3956
    %3958 = vmatmul.bf16.gmra.mxu0 %v3323
    %v3959 = vpop.f32.mrf.mxu0
    %v3960 = vadd.f32 %v2945, %v3959
    %v3961 = vpop.f32.mrf.mxu0
    %v3962 = vadd.f32 %v2945, %v3961
    %3963 = vmatmul.bf16.gmra.mxu0 %v3326
    %v3964 = vpop.f32.mrf.mxu0
    %v3965 = vadd.f32 %v2945, %v3964
    %v3966 = vpop.f32.mrf.mxu0
    %v3967 = vadd.f32 %v2945, %v3966
    %3968 = vmatmul.bf16.gmra.mxu0 %v3329
    %v3969 = vpop.f32.mrf.mxu0
    %v3970 = vpop.f32.mrf.mxu0
    %3971 = vdwg.mxu0
    %v3972 = vmax.f32 %v3345, %v3350
    %v3973 = vmax.f32 %v3347, %v3352
    %v3974 = vmax.f32 %v3355, %v3360
    %v3975 = vmax.f32 %v3357, %v3362
    %v3976 = vmax.f32 %v3365, %v3370
    %v3977 = vmax.f32 %v3367, %v3372
    %v3978 = vmax.f32 %v3375, %v3380
    %v3979 = vmax.f32 %v3377, %v3382
    %v3980 = vmax.f32 %v3385, %v3390
    %v3981 = vmax.f32 %v3387, %v3392
    %v3982 = vmax.f32 %v3395, %v3400
    %v3983 = vmax.f32 %v3397, %v3402
    %v3984 = vmax.f32 %v3405, %v3410
    %v3985 = vmax.f32 %v3407, %v3412
    %v3986 = vmax.f32 %v3415, %v3420
    %v3987 = vmax.f32 %v3417, %v3422
    %v3988 = vmax.f32 %v3425, %v3430
    %v3989 = vmax.f32 %v3427, %v3432
    %v3990 = vmax.f32 %v3435, %v3440
    %v3991 = vmax.f32 %v3437, %v3442
    %v3992 = vmax.f32 %v3445, %v3450
    %v3993 = vmax.f32 %v3447, %v3452
    %v3994 = vmax.f32 %v3455, %v3460
    %v3995 = vmax.f32 %v3457, %v3462
    %v3996 = vmax.f32 %v3465, %v3470
    %v3997 = vmax.f32 %v3467, %v3472
    %v3998 = vmax.f32 %v3475, %v3480
    %v3999 = vmax.f32 %v3477, %v3482
    %v4000 = vmax.f32 %v3485, %v3490
    %v4001 = vmax.f32 %v3487, %v3492
    %v4002 = vmax.f32 %v3495, %v3500
    %v4003 = vmax.f32 %v3497, %v3502
    %v4004 = vmax.f32 %v3505, %v3510
    %v4005 = vmax.f32 %v3507, %v3512
    %v4006 = vmax.f32 %v3515, %v3520
    %v4007 = vmax.f32 %v3517, %v3522
    %v4008 = vmax.f32 %v3525, %v3530
    %v4009 = vmax.f32 %v3527, %v3532
    %v4010 = vmax.f32 %v3535, %v3540
    %v4011 = vmax.f32 %v3537, %v3542
    %v4012 = vmax.f32 %v3545, %v3550
    %v4013 = vmax.f32 %v3547, %v3552
    %v4014 = vmax.f32 %v3555, %v3560
    %v4015 = vmax.f32 %v3557, %v3562
    %v4016 = vmax.f32 %v3565, %v3570
    %v4017 = vmax.f32 %v3567, %v3572
    %v4018 = vmax.f32 %v3575, %v3580
    %v4019 = vmax.f32 %v3577, %v3582
    %v4020 = vmax.f32 %v3585, %v3590
    %v4021 = vmax.f32 %v3587, %v3592
    %v4022 = vmax.f32 %v3595, %v3600
    %v4023 = vmax.f32 %v3597, %v3602
    %v4024 = vmax.f32 %v3605, %v3610
    %v4025 = vmax.f32 %v3607, %v3612
    %v4026 = vmax.f32 %v3615, %v3620
    %v4027 = vmax.f32 %v3617, %v3622
    %v4028 = vmax.f32 %v3625, %v3630
    %v4029 = vmax.f32 %v3627, %v3632
    %v4030 = vmax.f32 %v3635, %v3640
    %v4031 = vmax.f32 %v3637, %v3642
    %v4032 = vmax.f32 %v3645, %v3650
    %v4033 = vmax.f32 %v3647, %v3652
    %v4034 = vmax.f32 %v3655, %v3660
    %v4035 = vmax.f32 %v3657, %v3662
    %v4036 = vmax.f32 %v3665, %v3670
    %v4037 = vmax.f32 %v3667, %v3672
    %v4038 = vmax.f32 %v3675, %v3680
    %v4039 = vmax.f32 %v3677, %v3682
    %v4040 = vmax.f32 %v3685, %v3690
    %v4041 = vmax.f32 %v3687, %v3692
    %v4042 = vmax.f32 %v3695, %v3700
    %v4043 = vmax.f32 %v3697, %v3702
    %v4044 = vmax.f32 %v3705, %v3710
    %v4045 = vmax.f32 %v3707, %v3712
    %v4046 = vmax.f32 %v3715, %v3720
    %v4047 = vmax.f32 %v3717, %v3722
    %v4048 = vmax.f32 %v3725, %v3730
    %v4049 = vmax.f32 %v3727, %v3732
    %v4050 = vmax.f32 %v3735, %v3740
    %v4051 = vmax.f32 %v3737, %v3742
    %v4052 = vmax.f32 %v3745, %v3750
    %v4053 = vmax.f32 %v3747, %v3752
    %v4054 = vmax.f32 %v3755, %v3760
    %v4055 = vmax.f32 %v3757, %v3762
    %v4056 = vmax.f32 %v3765, %v3770
    %v4057 = vmax.f32 %v3767, %v3772
    %v4058 = vmax.f32 %v3775, %v3780
    %v4059 = vmax.f32 %v3777, %v3782
    %v4060 = vmax.f32 %v3785, %v3790
    %v4061 = vmax.f32 %v3787, %v3792
    %v4062 = vmax.f32 %v3795, %v3800
    %v4063 = vmax.f32 %v3797, %v3802
    %v4064 = vmax.f32 %v3805, %v3810
    %v4065 = vmax.f32 %v3807, %v3812
    %v4066 = vmax.f32 %v3815, %v3820
    %v4067 = vmax.f32 %v3817, %v3822
    %v4068 = vmax.f32 %v3825, %v3830
    %v4069 = vmax.f32 %v3827, %v3832
    %v4070 = vmax.f32 %v3835, %v3840
    %v4071 = vmax.f32 %v3837, %v3842
    %v4072 = vmax.f32 %v3845, %v3850
    %v4073 = vmax.f32 %v3847, %v3852
    %v4074 = vmax.f32 %v3855, %v3860
    %v4075 = vmax.f32 %v3857, %v3862
    %v4076 = vmax.f32 %v3865, %v3870
    %v4077 = vmax.f32 %v3867, %v3872
    %v4078 = vmax.f32 %v3875, %v3880
    %v4079 = vmax.f32 %v3877, %v3882
    %v4080 = vmax.f32 %v3885, %v3890
    %v4081 = vmax.f32 %v3887, %v3892
    %v4082 = vmax.f32 %v3895, %v3900
    %v4083 = vmax.f32 %v3897, %v3902
    %v4084 = vmax.f32 %v3905, %v3910
    %v4085 = vmax.f32 %v3907, %v3912
    %v4086 = vmax.f32 %v3915, %v3920
    %v4087 = vmax.f32 %v3917, %v3922
    %v4088 = vmax.f32 %v3925, %v3930
    %v4089 = vmax.f32 %v3927, %v3932
    %v4090 = vmax.f32 %v3935, %v3940
    %v4091 = vmax.f32 %v3937, %v3942
    %v4092 = vmax.f32 %v3945, %v3950
    %v4093 = vmax.f32 %v3947, %v3952
    %v4094 = vmax.f32 %v3955, %v3960
    %v4095 = vmax.f32 %v3957, %v3962
    %v4096 = vmax.f32 %v3972, %v3355
    %v4097 = vmax.f32 %v3973, %v3357
    %v4098 = vmax.f32 %v3974, %v3365
    %v4099 = vmax.f32 %v3975, %v3367
    %v4100 = vmax.f32 %v3976, %v3375
    %v4101 = vmax.f32 %v3977, %v3377
    %v4102 = vmax.f32 %v3978, %v3385
    %v4103 = vmax.f32 %v3979, %v3387
    %v4104 = vmax.f32 %v3980, %v3395
    %v4105 = vmax.f32 %v3981, %v3397
    %v4106 = vmax.f32 %v3982, %v3405
    %v4107 = vmax.f32 %v3983, %v3407
    %v4108 = vmax.f32 %v3984, %v3415
    %v4109 = vmax.f32 %v3985, %v3417
    %v4110 = vmax.f32 %v3986, %v3425
    %v4111 = vmax.f32 %v3987, %v3427
    %v4112 = vmax.f32 %v3988, %v3435
    %v4113 = vmax.f32 %v3989, %v3437
    %v4114 = vmax.f32 %v3990, %v3445
    %v4115 = vmax.f32 %v3991, %v3447
    %v4116 = vmax.f32 %v3992, %v3455
    %v4117 = vmax.f32 %v3993, %v3457
    %v4118 = vmax.f32 %v3994, %v3465
    %v4119 = vmax.f32 %v3995, %v3467
    %v4120 = vmax.f32 %v3996, %v3475
    %v4121 = vmax.f32 %v3997, %v3477
    %v4122 = vmax.f32 %v3998, %v3485
    %v4123 = vmax.f32 %v3999, %v3487
    %v4124 = vmax.f32 %v4000, %v3495
    %v4125 = vmax.f32 %v4001, %v3497
    %v4126 = vmax.f32 %v4002, %v3505
    %v4127 = vmax.f32 %v4003, %v3507
    %v4128 = vmax.f32 %v4004, %v3515
    %v4129 = vmax.f32 %v4005, %v3517
    %v4130 = vmax.f32 %v4006, %v3525
    %v4131 = vmax.f32 %v4007, %v3527
    %v4132 = vmax.f32 %v4008, %v3535
    %v4133 = vmax.f32 %v4009, %v3537
    %v4134 = vmax.f32 %v4010, %v3545
    %v4135 = vmax.f32 %v4011, %v3547
    %v4136 = vmax.f32 %v4012, %v3555
    %v4137 = vmax.f32 %v4013, %v3557
    %v4138 = vmax.f32 %v4014, %v3565
    %v4139 = vmax.f32 %v4015, %v3567
    %v4140 = vmax.f32 %v4016, %v3575
    %v4141 = vmax.f32 %v4017, %v3577
    %v4142 = vmax.f32 %v4018, %v3585
    %v4143 = vmax.f32 %v4019, %v3587
    %v4144 = vmax.f32 %v4020, %v3595
    %v4145 = vmax.f32 %v4021, %v3597
    %v4146 = vmax.f32 %v4022, %v3605
    %v4147 = vmax.f32 %v4023, %v3607
    %v4148 = vmax.f32 %v4024, %v3615
    %v4149 = vmax.f32 %v4025, %v3617
    %v4150 = vmax.f32 %v4026, %v3625
    %v4151 = vmax.f32 %v4027, %v3627
    %v4152 = vmax.f32 %v4028, %v3635
    %v4153 = vmax.f32 %v4029, %v3637
    %v4154 = vmax.f32 %v4030, %v3645
    %v4155 = vmax.f32 %v4031, %v3647
    %v4156 = vmax.f32 %v4032, %v3655
    %v4157 = vmax.f32 %v4033, %v3657
    %v4158 = vmax.f32 %v4034, %v3665
    %v4159 = vmax.f32 %v4035, %v3667
    %v4160 = vmax.f32 %v4036, %v3675
    %v4161 = vmax.f32 %v4037, %v3677
    %v4162 = vmax.f32 %v4038, %v3685
    %v4163 = vmax.f32 %v4039, %v3687
    %v4164 = vmax.f32 %v4040, %v3695
    %v4165 = vmax.f32 %v4041, %v3697
    %v4166 = vmax.f32 %v4042, %v3705
    %v4167 = vmax.f32 %v4043, %v3707
    %v4168 = vmax.f32 %v4044, %v3715
    %v4169 = vmax.f32 %v4045, %v3717
    %v4170 = vmax.f32 %v4046, %v3725
    %v4171 = vmax.f32 %v4047, %v3727
    %v4172 = vmax.f32 %v4048, %v3735
    %v4173 = vmax.f32 %v4049, %v3737
    %v4174 = vmax.f32 %v4050, %v3745
    %v4175 = vmax.f32 %v4051, %v3747
    %v4176 = vmax.f32 %v4052, %v3755
    %v4177 = vmax.f32 %v4053, %v3757
    %v4178 = vmax.f32 %v4054, %v3765
    %v4179 = vmax.f32 %v4055, %v3767
    %v4180 = vmax.f32 %v4056, %v3775
    %v4181 = vmax.f32 %v4057, %v3777
    %v4182 = vmax.f32 %v4058, %v3785
    %v4183 = vmax.f32 %v4059, %v3787
    %v4184 = vmax.f32 %v4060, %v3795
    %v4185 = vmax.f32 %v4061, %v3797
    %v4186 = vmax.f32 %v4062, %v3805
    %v4187 = vmax.f32 %v4063, %v3807
    %v4188 = vmax.f32 %v4064, %v3815
    %v4189 = vmax.f32 %v4065, %v3817
    %v4190 = vmax.f32 %v4066, %v3825
    %v4191 = vmax.f32 %v4067, %v3827
    %v4192 = vmax.f32 %v4068, %v3835
    %v4193 = vmax.f32 %v4069, %v3837
    %v4194 = vmax.f32 %v4070, %v3845
    %v4195 = vmax.f32 %v4071, %v3847
    %v4196 = vmax.f32 %v4072, %v3855
    %v4197 = vmax.f32 %v4073, %v3857
    %v4198 = vmax.f32 %v4074, %v3865
    %v4199 = vmax.f32 %v4075, %v3867
    %v4200 = vmax.f32 %v4076, %v3875
    %v4201 = vmax.f32 %v4077, %v3877
    %v4202 = vmax.f32 %v4078, %v3885
    %v4203 = vmax.f32 %v4079, %v3887
    %v4204 = vmax.f32 %v4080, %v3895
    %v4205 = vmax.f32 %v4081, %v3897
    %v4206 = vmax.f32 %v4082, %v3905
    %v4207 = vmax.f32 %v4083, %v3907
    %v4208 = vmax.f32 %v4084, %v3915
    %v4209 = vmax.f32 %v4085, %v3917
    %v4210 = vmax.f32 %v4086, %v3925
    %v4211 = vmax.f32 %v4087, %v3927
    %v4212 = vmax.f32 %v4088, %v3935
    %v4213 = vmax.f32 %v4089, %v3937
    %v4214 = vmax.f32 %v4090, %v3945
    %v4215 = vmax.f32 %v4091, %v3947
    %v4216 = vmax.f32 %v4092, %v3955
    %v4217 = vmax.f32 %v4093, %v3957
    %v4218 = vmax.f32 %v4094, %v3965
    %v4219 = vmax.f32 %v4095, %v3967
    %v4220 = vmax.f32 %v4096, 0.0
    %v4221 = vmax.f32 %v4097, 0.0
    %v4222 = vmax.f32 %v4098, 0.0
    %v4223 = vmax.f32 %v4099, 0.0
    %v4224 = vmax.f32 %v4100, 0.0
    %v4225 = vmax.f32 %v4101, 0.0
    %v4226 = vmax.f32 %v4102, 0.0
    %v4227 = vmax.f32 %v4103, 0.0
    %v4228 = vmax.f32 %v4104, 0.0
    %v4229 = vmax.f32 %v4105, 0.0
    %v4230 = vmax.f32 %v4106, 0.0
    %v4231 = vmax.f32 %v4107, 0.0
    %v4232 = vmax.f32 %v4108, 0.0
    %v4233 = vmax.f32 %v4109, 0.0
    %v4234 = vmax.f32 %v4110, 0.0
    %v4235 = vmax.f32 %v4111, 0.0
    %v4236 = vmax.f32 %v4112, 0.0
    %v4237 = vmax.f32 %v4113, 0.0
    %v4238 = vmax.f32 %v4114, 0.0
    %v4239 = vmax.f32 %v4115, 0.0
    %v4240 = vmax.f32 %v4116, 0.0
    %v4241 = vmax.f32 %v4117, 0.0
    %v4242 = vmax.f32 %v4118, 0.0
    %v4243 = vmax.f32 %v4119, 0.0
    %v4244 = vmax.f32 %v4120, 0.0
    %v4245 = vmax.f32 %v4121, 0.0
    %v4246 = vmax.f32 %v4122, 0.0
    %v4247 = vmax.f32 %v4123, 0.0
    %v4248 = vmax.f32 %v4124, 0.0
    %v4249 = vmax.f32 %v4125, 0.0
    %v4250 = vmax.f32 %v4126, 0.0
    %v4251 = vmax.f32 %v4127, 0.0
    %v4252 = vmax.f32 %v4128, 0.0
    %v4253 = vmax.f32 %v4129, 0.0
    %v4254 = vmax.f32 %v4130, 0.0
    %v4255 = vmax.f32 %v4131, 0.0
    %v4256 = vmax.f32 %v4132, 0.0
    %v4257 = vmax.f32 %v4133, 0.0
    %v4258 = vmax.f32 %v4134, 0.0
    %v4259 = vmax.f32 %v4135, 0.0
    %v4260 = vmax.f32 %v4136, 0.0
    %v4261 = vmax.f32 %v4137, 0.0
    %v4262 = vmax.f32 %v4138, 0.0
    %v4263 = vmax.f32 %v4139, 0.0
    %v4264 = vmax.f32 %v4140, 0.0
    %v4265 = vmax.f32 %v4141, 0.0
    %v4266 = vmax.f32 %v4142, 0.0
    %v4267 = vmax.f32 %v4143, 0.0
    %v4268 = vmax.f32 %v4144, 0.0
    %v4269 = vmax.f32 %v4145, 0.0
    %v4270 = vmax.f32 %v4146, 0.0
    %v4271 = vmax.f32 %v4147, 0.0
    %v4272 = vmax.f32 %v4148, 0.0
    %v4273 = vmax.f32 %v4149, 0.0
    %v4274 = vmax.f32 %v4150, 0.0
    %v4275 = vmax.f32 %v4151, 0.0
    %v4276 = vmax.f32 %v4152, 0.0
    %v4277 = vmax.f32 %v4153, 0.0
    %v4278 = vmax.f32 %v4154, 0.0
    %v4279 = vmax.f32 %v4155, 0.0
    %v4280 = vmax.f32 %v4156, 0.0
    %v4281 = vmax.f32 %v4157, 0.0
    %v4282 = vmax.f32 %v4158, 0.0
    %v4283 = vmax.f32 %v4159, 0.0
    %v4284 = vmax.f32 %v4160, 0.0
    %v4285 = vmax.f32 %v4161, 0.0
    %v4286 = vmax.f32 %v4162, 0.0
    %v4287 = vmax.f32 %v4163, 0.0
    %v4288 = vmax.f32 %v4164, 0.0
    %v4289 = vmax.f32 %v4165, 0.0
    %v4290 = vmax.f32 %v4166, 0.0
    %v4291 = vmax.f32 %v4167, 0.0
    %v4292 = vmax.f32 %v4168, 0.0
    %v4293 = vmax.f32 %v4169, 0.0
    %v4294 = vmax.f32 %v4170, 0.0
    %v4295 = vmax.f32 %v4171, 0.0
    %v4296 = vmax.f32 %v4172, 0.0
    %v4297 = vmax.f32 %v4173, 0.0
    %v4298 = vmax.f32 %v4174, 0.0
    %v4299 = vmax.f32 %v4175, 0.0
    %v4300 = vmax.f32 %v4176, 0.0
    %v4301 = vmax.f32 %v4177, 0.0
    %v4302 = vmax.f32 %v4178, 0.0
    %v4303 = vmax.f32 %v4179, 0.0
    %v4304 = vmax.f32 %v4180, 0.0
    %v4305 = vmax.f32 %v4181, 0.0
    %v4306 = vmax.f32 %v4182, 0.0
    %v4307 = vmax.f32 %v4183, 0.0
    %v4308 = vmax.f32 %v4184, 0.0
    %v4309 = vmax.f32 %v4185, 0.0
    %v4310 = vmax.f32 %v4186, 0.0
    %v4311 = vmax.f32 %v4187, 0.0
    %v4312 = vmax.f32 %v4188, 0.0
    %v4313 = vmax.f32 %v4189, 0.0
    %v4314 = vmax.f32 %v4190, 0.0
    %v4315 = vmax.f32 %v4191, 0.0
    %v4316 = vmax.f32 %v4192, 0.0
    %v4317 = vmax.f32 %v4193, 0.0
    %v4318 = vmax.f32 %v4194, 0.0
    %v4319 = vmax.f32 %v4195, 0.0
    %v4320 = vmax.f32 %v4196, 0.0
    %v4321 = vmax.f32 %v4197, 0.0
    %v4322 = vmax.f32 %v4198, 0.0
    %v4323 = vmax.f32 %v4199, 0.0
    %v4324 = vmax.f32 %v4200, 0.0
    %v4325 = vmax.f32 %v4201, 0.0
    %v4326 = vmax.f32 %v4202, 0.0
    %v4327 = vmax.f32 %v4203, 0.0
    %v4328 = vmax.f32 %v4204, 0.0
    %v4329 = vmax.f32 %v4205, 0.0
    %v4330 = vmax.f32 %v4206, 0.0
    %v4331 = vmax.f32 %v4207, 0.0
    %v4332 = vmax.f32 %v4208, 0.0
    %v4333 = vmax.f32 %v4209, 0.0
    %v4334 = vmax.f32 %v4210, 0.0
    %v4335 = vmax.f32 %v4211, 0.0
    %v4336 = vmax.f32 %v4212, 0.0
    %v4337 = vmax.f32 %v4213, 0.0
    %v4338 = vmax.f32 %v4214, 0.0
    %v4339 = vmax.f32 %v4215, 0.0
    %v4340 = vmax.f32 %v4216, 0.0
    %v4341 = vmax.f32 %v4217, 0.0
    %v4342 = vmax.f32 %v4218, 0.0
    %v4343 = vmax.f32 %v4219, 0.0
    %v4344 = vld [vmem:[%s2] sm:$0xf]
    %v4345 = vld [vmem:[%s2 + $0x4] sm:$0xf]
    %v4346 = vld [vmem:[%s2 + $0x8] sm:$0xf]
    %v4347 = vld [vmem:[%s2 + $0xc] sm:$0xf]
    %v4348 = vld [vmem:[%s2 + $0x10] sm:$0xf]
    %v4349 = vld [vmem:[%s2 + $0x14] sm:$0xf]
    %v4350 = vld [vmem:[%s2 + $0x18] sm:$0xf]
    %v4351 = vld [vmem:[%s2 + $0x1c] sm:$0xf]
    %v4352 = vld [vmem:[%s2 + $0x20] sm:$0xf]
    %v4353 = vld [vmem:[%s2 + $0x24] sm:$0xf]
    %v4354 = vld [vmem:[%s2 + $0x28] sm:$0xf]
    %v4355 = vld [vmem:[%s2 + $0x2c] sm:$0xf]
    %s4356 = scalar_lea.vmem %s3, 1
    %v4357 = vld [vmem:[%s4356] sm:$0x1]
    %4478 = vrot.lane.b32.xlu0 %v4222, 32
    %v4479 = vpop.permute.xlu0 %4478
    %4480 = vrot.lane.b32.xlu0 %v4223, 32
    %v4481 = vpop.permute.xlu0 %4480
    %4482 = vrot.lane.b32.xlu0 %v4224, 32
    %v4483 = vpop.permute.xlu0 %4482
    %4484 = vrot.lane.b32.xlu0 %v4225, 32
    %v4485 = vpop.permute.xlu0 %4484
    %4486 = vrot.lane.b32.xlu0 %v4226, 32
    %v4487 = vpop.permute.xlu0 %4486
    %4488 = vrot.lane.b32.xlu0 %v4227, 32
    %v4489 = vpop.permute.xlu0 %4488
    %4490 = vrot.lane.b32.xlu0 %v4228, 32
    %v4491 = vpop.permute.xlu0 %4490
    %4492 = vrot.lane.b32.xlu0 %v4229, 32
    %v4493 = vpop.permute.xlu0 %4492
    %4494 = vrot.lane.b32.xlu0 %v4230, 32
    %v4495 = vpop.permute.xlu0 %4494
    %4496 = vrot.lane.b32.xlu0 %v4231, 32
    %v4497 = vpop.permute.xlu0 %4496
    %4498 = vrot.lane.b32.xlu0 %v4232, 32
    %v4499 = vpop.permute.xlu0 %4498
    %4500 = vrot.lane.b32.xlu0 %v4233, 32
    %v4501 = vpop.permute.xlu0 %4500
    %4502 = vrot.lane.b32.xlu0 %v4234, 32
    %v4503 = vpop.permute.xlu0 %4502
    %4504 = vrot.lane.b32.xlu0 %v4235, 32
    %v4505 = vpop.permute.xlu0 %4504
    %4506 = vrot.lane.b32.xlu0 %v4236, 32
    %v4507 = vpop.permute.xlu0 %4506
    %4508 = vrot.lane.b32.xlu0 %v4237, 32
    %v4509 = vpop.permute.xlu0 %4508
    %4510 = vrot.lane.b32.xlu0 %v4238, 32
    %v4511 = vpop.permute.xlu0 %4510
    %4512 = vrot.lane.b32.xlu0 %v4239, 32
    %v4513 = vpop.permute.xlu0 %4512
    %4514 = vrot.lane.b32.xlu0 %v4240, 32
    %v4515 = vpop.permute.xlu0 %4514
    %4516 = vrot.lane.b32.xlu0 %v4241, 32
    %v4517 = vpop.permute.xlu0 %4516
    %4518 = vrot.lane.b32.xlu0 %v4242, 32
    %v4519 = vpop.permute.xlu0 %4518
    %4520 = vrot.lane.b32.xlu0 %v4243, 32
    %v4521 = vpop.permute.xlu0 %4520
    %4522 = vrot.lane.b32.xlu0 %v4244, 32
    %v4523 = vpop.permute.xlu0 %4522
    %4524 = vrot.lane.b32.xlu0 %v4245, 32
    %v4525 = vpop.permute.xlu0 %4524
    %4526 = vrot.lane.b32.xlu0 %v4246, 32
    %v4527 = vpop.permute.xlu0 %4526
    %4528 = vrot.lane.b32.xlu0 %v4247, 32
    %v4529 = vpop.permute.xlu0 %4528
    %4530 = vrot.lane.b32.xlu0 %v4248, 32
    %v4531 = vpop.permute.xlu0 %4530
    %4532 = vrot.lane.b32.xlu0 %v4249, 32
    %v4533 = vpop.permute.xlu0 %4532
    %4534 = vrot.lane.b32.xlu0 %v4250, 32
    %v4535 = vpop.permute.xlu0 %4534
    %4536 = vrot.lane.b32.xlu0 %v4251, 32
    %v4537 = vpop.permute.xlu0 %4536
    %4538 = vrot.lane.b32.xlu0 %v4252, 32
    %v4539 = vpop.permute.xlu0 %4538
    %4540 = vrot.lane.b32.xlu0 %v4253, 32
    %v4541 = vpop.permute.xlu0 %4540
    %4542 = vrot.lane.b32.xlu0 %v4254, 32
    %v4543 = vpop.permute.xlu0 %4542
    %4544 = vrot.lane.b32.xlu0 %v4255, 32
    %v4545 = vpop.permute.xlu0 %4544
    %4546 = vrot.lane.b32.xlu0 %v4256, 32
    %v4547 = vpop.permute.xlu0 %4546
    %4548 = vrot.lane.b32.xlu0 %v4257, 32
    %v4549 = vpop.permute.xlu0 %4548
    %4550 = vrot.lane.b32.xlu0 %v4258, 32
    %v4551 = vpop.permute.xlu0 %4550
    %4552 = vrot.lane.b32.xlu0 %v4259, 32
    %v4553 = vpop.permute.xlu0 %4552
    %4554 = vrot.lane.b32.xlu0 %v4260, 32
    %v4555 = vpop.permute.xlu0 %4554
    %4556 = vrot.lane.b32.xlu0 %v4261, 32
    %v4557 = vpop.permute.xlu0 %4556
    %4558 = vrot.lane.b32.xlu0 %v4262, 32
    %v4559 = vpop.permute.xlu0 %4558
    %4560 = vrot.lane.b32.xlu0 %v4263, 32
    %v4561 = vpop.permute.xlu0 %4560
    %4562 = vrot.lane.b32.xlu0 %v4264, 32
    %v4563 = vpop.permute.xlu0 %4562
    %4564 = vrot.lane.b32.xlu0 %v4265, 32
    %v4565 = vpop.permute.xlu0 %4564
    %4566 = vrot.lane.b32.xlu0 %v4266, 32
    %v4567 = vpop.permute.xlu0 %4566
    %4568 = vrot.lane.b32.xlu0 %v4267, 32
    %v4569 = vpop.permute.xlu0 %4568
    %4570 = vrot.lane.b32.xlu0 %v4268, 32
    %v4571 = vpop.permute.xlu0 %4570
    %4572 = vrot.lane.b32.xlu0 %v4269, 32
    %v4573 = vpop.permute.xlu0 %4572
    %4574 = vrot.lane.b32.xlu0 %v4270, 32
    %v4575 = vpop.permute.xlu0 %4574
    %4576 = vrot.lane.b32.xlu0 %v4271, 32
    %v4577 = vpop.permute.xlu0 %4576
    %4578 = vrot.lane.b32.xlu0 %v4272, 32
    %v4579 = vpop.permute.xlu0 %4578
    %4580 = vrot.lane.b32.xlu0 %v4273, 32
    %v4581 = vpop.permute.xlu0 %4580
    %4582 = vrot.lane.b32.xlu0 %v4274, 32
    %v4583 = vpop.permute.xlu0 %4582
    %4584 = vrot.lane.b32.xlu0 %v4275, 32
    %v4585 = vpop.permute.xlu0 %4584
    %4586 = vrot.lane.b32.xlu0 %v4276, 32
    %v4587 = vpop.permute.xlu0 %4586
    %4588 = vrot.lane.b32.xlu0 %v4277, 32
    %v4589 = vpop.permute.xlu0 %4588
    %4590 = vrot.lane.b32.xlu0 %v4278, 32
    %v4591 = vpop.permute.xlu0 %4590
    %4592 = vrot.lane.b32.xlu0 %v4279, 32
    %v4593 = vpop.permute.xlu0 %4592
    %4594 = vrot.lane.b32.xlu0 %v4280, 32
    %v4595 = vpop.permute.xlu0 %4594
    %4596 = vrot.lane.b32.xlu0 %v4281, 32
    %v4597 = vpop.permute.xlu0 %4596
    %4598 = vrot.lane.b32.xlu0 %v4282, 32
    %v4599 = vpop.permute.xlu0 %4598
    %4600 = vrot.lane.b32.xlu0 %v4283, 32
    %v4601 = vpop.permute.xlu0 %4600
    %4602 = vrot.lane.b32.xlu0 %v4284, 32
    %v4603 = vpop.permute.xlu0 %4602
    %4604 = vrot.lane.b32.xlu0 %v4285, 32
    %v4605 = vpop.permute.xlu0 %4604
    %4606 = vrot.lane.b32.xlu0 %v4286, 32
    %v4607 = vpop.permute.xlu0 %4606
    %4608 = vrot.lane.b32.xlu0 %v4287, 32
    %v4609 = vpop.permute.xlu0 %4608
    %4610 = vrot.lane.b32.xlu0 %v4288, 32
    %v4611 = vpop.permute.xlu0 %4610
    %4612 = vrot.lane.b32.xlu0 %v4289, 32
    %v4613 = vpop.permute.xlu0 %4612
    %4614 = vrot.lane.b32.xlu0 %v4290, 32
    %v4615 = vpop.permute.xlu0 %4614
    %4616 = vrot.lane.b32.xlu0 %v4291, 32
    %v4617 = vpop.permute.xlu0 %4616
    %4618 = vrot.lane.b32.xlu0 %v4292, 32
    %v4619 = vpop.permute.xlu0 %4618
    %4620 = vrot.lane.b32.xlu0 %v4293, 32
    %v4621 = vpop.permute.xlu0 %4620
    %4622 = vrot.lane.b32.xlu0 %v4294, 32
    %v4623 = vpop.permute.xlu0 %4622
    %4624 = vrot.lane.b32.xlu0 %v4295, 32
    %v4625 = vpop.permute.xlu0 %4624
    %4626 = vrot.lane.b32.xlu0 %v4296, 32
    %v4627 = vpop.permute.xlu0 %4626
    %4628 = vrot.lane.b32.xlu0 %v4297, 32
    %v4629 = vpop.permute.xlu0 %4628
    %4630 = vrot.lane.b32.xlu0 %v4298, 32
    %v4631 = vpop.permute.xlu0 %4630
    %4632 = vrot.lane.b32.xlu0 %v4299, 32
    %v4633 = vpop.permute.xlu0 %4632
    %4634 = vrot.lane.b32.xlu0 %v4300, 32
    %v4635 = vpop.permute.xlu0 %4634
    %4636 = vrot.lane.b32.xlu0 %v4301, 32
    %v4637 = vpop.permute.xlu0 %4636
    %4638 = vrot.lane.b32.xlu0 %v4302, 32
    %v4639 = vpop.permute.xlu0 %4638
    %4640 = vrot.lane.b32.xlu0 %v4303, 32
    %v4641 = vpop.permute.xlu0 %4640
    %4642 = vrot.lane.b32.xlu0 %v4304, 32
    %v4643 = vpop.permute.xlu0 %4642
    %4644 = vrot.lane.b32.xlu0 %v4305, 32
    %v4645 = vpop.permute.xlu0 %4644
    %4646 = vrot.lane.b32.xlu0 %v4306, 32
    %v4647 = vpop.permute.xlu0 %4646
    %4648 = vrot.lane.b32.xlu0 %v4307, 32
    %v4649 = vpop.permute.xlu0 %4648
    %4650 = vrot.lane.b32.xlu0 %v4308, 32
    %v4651 = vpop.permute.xlu0 %4650
    %4652 = vrot.lane.b32.xlu0 %v4309, 32
    %v4653 = vpop.permute.xlu0 %4652
    %4654 = vrot.lane.b32.xlu0 %v4310, 32
    %v4655 = vpop.permute.xlu0 %4654
    %4656 = vrot.lane.b32.xlu0 %v4311, 32
    %v4657 = vpop.permute.xlu0 %4656
    %4658 = vrot.lane.b32.xlu0 %v4312, 32
    %v4659 = vpop.permute.xlu0 %4658
    %4660 = vrot.lane.b32.xlu0 %v4313, 32
    %v4661 = vpop.permute.xlu0 %4660
    %4662 = vrot.lane.b32.xlu0 %v4314, 32
    %v4663 = vpop.permute.xlu0 %4662
    %4664 = vrot.lane.b32.xlu0 %v4315, 32
    %v4665 = vpop.permute.xlu0 %4664
    %4666 = vrot.lane.b32.xlu0 %v4316, 32
    %v4667 = vpop.permute.xlu0 %4666
    %4668 = vrot.lane.b32.xlu0 %v4317, 32
    %v4669 = vpop.permute.xlu0 %4668
    %4670 = vrot.lane.b32.xlu0 %v4318, 32
    %v4671 = vpop.permute.xlu0 %4670
    %4672 = vrot.lane.b32.xlu0 %v4319, 32
    %v4673 = vpop.permute.xlu0 %4672
    %4674 = vrot.lane.b32.xlu0 %v4320, 32
    %v4675 = vpop.permute.xlu0 %4674
    %4676 = vrot.lane.b32.xlu0 %v4321, 32
    %v4677 = vpop.permute.xlu0 %4676
    %4678 = vrot.lane.b32.xlu0 %v4322, 32
    %v4679 = vpop.permute.xlu0 %4678
    %4680 = vrot.lane.b32.xlu0 %v4323, 32
    %v4681 = vpop.permute.xlu0 %4680
    %4682 = vrot.lane.b32.xlu0 %v4324, 32
    %v4683 = vpop.permute.xlu0 %4682
    %4684 = vrot.lane.b32.xlu0 %v4325, 32
    %v4685 = vpop.permute.xlu0 %4684
    %4686 = vrot.lane.b32.xlu0 %v4326, 32
    %v4687 = vpop.permute.xlu0 %4686
    %4688 = vrot.lane.b32.xlu0 %v4327, 32
    %v4689 = vpop.permute.xlu0 %4688
    %4690 = vrot.lane.b32.xlu0 %v4328, 32
    %v4691 = vpop.permute.xlu0 %4690
    %4692 = vrot.lane.b32.xlu0 %v4329, 32
    %v4693 = vpop.permute.xlu0 %4692
    %4694 = vrot.lane.b32.xlu0 %v4330, 32
    %v4695 = vpop.permute.xlu0 %4694
    %4696 = vrot.lane.b32.xlu0 %v4331, 32
    %v4697 = vpop.permute.xlu0 %4696
    %4698 = vrot.lane.b32.xlu0 %v4332, 32
    %v4699 = vpop.permute.xlu0 %4698
    %4700 = vrot.lane.b32.xlu0 %v4333, 32
    %v4701 = vpop.permute.xlu0 %4700
    %4702 = vrot.lane.b32.xlu0 %v4334, 32
    %v4703 = vpop.permute.xlu0 %4702
    %4704 = vrot.lane.b32.xlu0 %v4335, 32
    %v4705 = vpop.permute.xlu0 %4704
    %4706 = vrot.lane.b32.xlu0 %v4336, 32
    %v4707 = vpop.permute.xlu0 %4706
    %4708 = vrot.lane.b32.xlu0 %v4337, 32
    %v4709 = vpop.permute.xlu0 %4708
    %4710 = vrot.lane.b32.xlu0 %v4338, 32
    %v4711 = vpop.permute.xlu0 %4710
    %4712 = vrot.lane.b32.xlu0 %v4339, 32
    %v4713 = vpop.permute.xlu0 %4712
    %4714 = vrot.lane.b32.xlu0 %v4340, 32
    %v4715 = vpop.permute.xlu0 %4714
    %4716 = vrot.lane.b32.xlu0 %v4341, 32
    %v4717 = vpop.permute.xlu0 %4716
    %4840 = vrot.lane.b32.xlu0 %v4224, 64
    %v4841 = vpop.permute.xlu0 %4840
    %4842 = vrot.lane.b32.xlu0 %v4225, 64
    %v4843 = vpop.permute.xlu0 %4842
    %4844 = vrot.lane.b32.xlu0 %v4226, 64
    %v4845 = vpop.permute.xlu0 %4844
    %4846 = vrot.lane.b32.xlu0 %v4227, 64
    %v4847 = vpop.permute.xlu0 %4846
    %4848 = vrot.lane.b32.xlu0 %v4228, 64
    %v4849 = vpop.permute.xlu0 %4848
    %4850 = vrot.lane.b32.xlu0 %v4229, 64
    %v4851 = vpop.permute.xlu0 %4850
    %4852 = vrot.lane.b32.xlu0 %v4230, 64
    %v4853 = vpop.permute.xlu0 %4852
    %4854 = vrot.lane.b32.xlu0 %v4231, 64
    %v4855 = vpop.permute.xlu0 %4854
    %4856 = vrot.lane.b32.xlu0 %v4232, 64
    %v4857 = vpop.permute.xlu0 %4856
    %4858 = vrot.lane.b32.xlu0 %v4233, 64
    %v4859 = vpop.permute.xlu0 %4858
    %4860 = vrot.lane.b32.xlu0 %v4234, 64
    %v4861 = vpop.permute.xlu0 %4860
    %4862 = vrot.lane.b32.xlu0 %v4235, 64
    %v4863 = vpop.permute.xlu0 %4862
    %4864 = vrot.lane.b32.xlu0 %v4236, 64
    %v4865 = vpop.permute.xlu0 %4864
    %4866 = vrot.lane.b32.xlu0 %v4237, 64
    %v4867 = vpop.permute.xlu0 %4866
    %4868 = vrot.lane.b32.xlu0 %v4238, 64
    %v4869 = vpop.permute.xlu0 %4868
    %4870 = vrot.lane.b32.xlu0 %v4239, 64
    %v4871 = vpop.permute.xlu0 %4870
    %4872 = vrot.lane.b32.xlu0 %v4240, 64
    %v4873 = vpop.permute.xlu0 %4872
    %4874 = vrot.lane.b32.xlu0 %v4241, 64
    %v4875 = vpop.permute.xlu0 %4874
    %4876 = vrot.lane.b32.xlu0 %v4242, 64
    %v4877 = vpop.permute.xlu0 %4876
    %4878 = vrot.lane.b32.xlu0 %v4243, 64
    %v4879 = vpop.permute.xlu0 %4878
    %4880 = vrot.lane.b32.xlu0 %v4244, 64
    %v4881 = vpop.permute.xlu0 %4880
    %4882 = vrot.lane.b32.xlu0 %v4245, 64
    %v4883 = vpop.permute.xlu0 %4882
    %4884 = vrot.lane.b32.xlu0 %v4246, 64
    %v4885 = vpop.permute.xlu0 %4884
    %4886 = vrot.lane.b32.xlu0 %v4247, 64
    %v4887 = vpop.permute.xlu0 %4886
    %4888 = vrot.lane.b32.xlu0 %v4248, 64
    %v4889 = vpop.permute.xlu0 %4888
    %4890 = vrot.lane.b32.xlu0 %v4249, 64
    %v4891 = vpop.permute.xlu0 %4890
    %4892 = vrot.lane.b32.xlu0 %v4250, 64
    %v4893 = vpop.permute.xlu0 %4892
    %4894 = vrot.lane.b32.xlu0 %v4251, 64
    %v4895 = vpop.permute.xlu0 %4894
    %4896 = vrot.lane.b32.xlu0 %v4252, 64
    %v4897 = vpop.permute.xlu0 %4896
    %4898 = vrot.lane.b32.xlu0 %v4253, 64
    %v4899 = vpop.permute.xlu0 %4898
    %4900 = vrot.lane.b32.xlu0 %v4254, 64
    %v4901 = vpop.permute.xlu0 %4900
    %4902 = vrot.lane.b32.xlu0 %v4255, 64
    %v4903 = vpop.permute.xlu0 %4902
    %4904 = vrot.lane.b32.xlu0 %v4256, 64
    %v4905 = vpop.permute.xlu0 %4904
    %4906 = vrot.lane.b32.xlu0 %v4257, 64
    %v4907 = vpop.permute.xlu0 %4906
    %4908 = vrot.lane.b32.xlu0 %v4258, 64
    %v4909 = vpop.permute.xlu0 %4908
    %4910 = vrot.lane.b32.xlu0 %v4259, 64
    %v4911 = vpop.permute.xlu0 %4910
    %4912 = vrot.lane.b32.xlu0 %v4260, 64
    %v4913 = vpop.permute.xlu0 %4912
    %4914 = vrot.lane.b32.xlu0 %v4261, 64
    %v4915 = vpop.permute.xlu0 %4914
    %4916 = vrot.lane.b32.xlu0 %v4262, 64
    %v4917 = vpop.permute.xlu0 %4916
    %4918 = vrot.lane.b32.xlu0 %v4263, 64
    %v4919 = vpop.permute.xlu0 %4918
    %4920 = vrot.lane.b32.xlu0 %v4264, 64
    %v4921 = vpop.permute.xlu0 %4920
    %4922 = vrot.lane.b32.xlu0 %v4265, 64
    %v4923 = vpop.permute.xlu0 %4922
    %4924 = vrot.lane.b32.xlu0 %v4266, 64
    %v4925 = vpop.permute.xlu0 %4924
    %4926 = vrot.lane.b32.xlu0 %v4267, 64
    %v4927 = vpop.permute.xlu0 %4926
    %4928 = vrot.lane.b32.xlu0 %v4268, 64
    %v4929 = vpop.permute.xlu0 %4928
    %4930 = vrot.lane.b32.xlu0 %v4269, 64
    %v4931 = vpop.permute.xlu0 %4930
    %4932 = vrot.lane.b32.xlu0 %v4270, 64
    %v4933 = vpop.permute.xlu0 %4932
    %4934 = vrot.lane.b32.xlu0 %v4271, 64
    %v4935 = vpop.permute.xlu0 %4934
    %4936 = vrot.lane.b32.xlu0 %v4272, 64
    %v4937 = vpop.permute.xlu0 %4936
    %4938 = vrot.lane.b32.xlu0 %v4273, 64
    %v4939 = vpop.permute.xlu0 %4938
    %4940 = vrot.lane.b32.xlu0 %v4274, 64
    %v4941 = vpop.permute.xlu0 %4940
    %4942 = vrot.lane.b32.xlu0 %v4275, 64
    %v4943 = vpop.permute.xlu0 %4942
    %4944 = vrot.lane.b32.xlu0 %v4276, 64
    %v4945 = vpop.permute.xlu0 %4944
    %4946 = vrot.lane.b32.xlu0 %v4277, 64
    %v4947 = vpop.permute.xlu0 %4946
    %4948 = vrot.lane.b32.xlu0 %v4278, 64
    %v4949 = vpop.permute.xlu0 %4948
    %4950 = vrot.lane.b32.xlu0 %v4279, 64
    %v4951 = vpop.permute.xlu0 %4950
    %4952 = vrot.lane.b32.xlu0 %v4280, 64
    %v4953 = vpop.permute.xlu0 %4952
    %4954 = vrot.lane.b32.xlu0 %v4281, 64
    %v4955 = vpop.permute.xlu0 %4954
    %4956 = vrot.lane.b32.xlu0 %v4282, 64
    %v4957 = vpop.permute.xlu0 %4956
    %4958 = vrot.lane.b32.xlu0 %v4283, 64
    %v4959 = vpop.permute.xlu0 %4958
    %4960 = vrot.lane.b32.xlu0 %v4284, 64
    %v4961 = vpop.permute.xlu0 %4960
    %4962 = vrot.lane.b32.xlu0 %v4285, 64
    %v4963 = vpop.permute.xlu0 %4962
    %4964 = vrot.lane.b32.xlu0 %v4286, 64
    %v4965 = vpop.permute.xlu0 %4964
    %4966 = vrot.lane.b32.xlu0 %v4287, 64
    %v4967 = vpop.permute.xlu0 %4966
    %4968 = vrot.lane.b32.xlu0 %v4288, 64
    %v4969 = vpop.permute.xlu0 %4968
    %4970 = vrot.lane.b32.xlu0 %v4289, 64
    %v4971 = vpop.permute.xlu0 %4970
    %4972 = vrot.lane.b32.xlu0 %v4290, 64
    %v4973 = vpop.permute.xlu0 %4972
    %4974 = vrot.lane.b32.xlu0 %v4291, 64
    %v4975 = vpop.permute.xlu0 %4974
    %4976 = vrot.lane.b32.xlu0 %v4292, 64
    %v4977 = vpop.permute.xlu0 %4976
    %4978 = vrot.lane.b32.xlu0 %v4293, 64
    %v4979 = vpop.permute.xlu0 %4978
    %4980 = vrot.lane.b32.xlu0 %v4294, 64
    %v4981 = vpop.permute.xlu0 %4980
    %4982 = vrot.lane.b32.xlu0 %v4295, 64
    %v4983 = vpop.permute.xlu0 %4982
    %4984 = vrot.lane.b32.xlu0 %v4296, 64
    %v4985 = vpop.permute.xlu0 %4984
    %4986 = vrot.lane.b32.xlu0 %v4297, 64
    %v4987 = vpop.permute.xlu0 %4986
    %4988 = vrot.lane.b32.xlu0 %v4298, 64
    %v4989 = vpop.permute.xlu0 %4988
    %4990 = vrot.lane.b32.xlu0 %v4299, 64
    %v4991 = vpop.permute.xlu0 %4990
    %4992 = vrot.lane.b32.xlu0 %v4300, 64
    %v4993 = vpop.permute.xlu0 %4992
    %4994 = vrot.lane.b32.xlu0 %v4301, 64
    %v4995 = vpop.permute.xlu0 %4994
    %4996 = vrot.lane.b32.xlu0 %v4302, 64
    %v4997 = vpop.permute.xlu0 %4996
    %4998 = vrot.lane.b32.xlu0 %v4303, 64
    %v4999 = vpop.permute.xlu0 %4998
    %5000 = vrot.lane.b32.xlu0 %v4304, 64
    %v5001 = vpop.permute.xlu0 %5000
    %5002 = vrot.lane.b32.xlu0 %v4305, 64
    %v5003 = vpop.permute.xlu0 %5002
    %5004 = vrot.lane.b32.xlu0 %v4306, 64
    %v5005 = vpop.permute.xlu0 %5004
    %5006 = vrot.lane.b32.xlu0 %v4307, 64
    %v5007 = vpop.permute.xlu0 %5006
    %5008 = vrot.lane.b32.xlu0 %v4308, 64
    %v5009 = vpop.permute.xlu0 %5008
    %5010 = vrot.lane.b32.xlu0 %v4309, 64
    %v5011 = vpop.permute.xlu0 %5010
    %5012 = vrot.lane.b32.xlu0 %v4310, 64
    %v5013 = vpop.permute.xlu0 %5012
    %5014 = vrot.lane.b32.xlu0 %v4311, 64
    %v5015 = vpop.permute.xlu0 %5014
    %5016 = vrot.lane.b32.xlu0 %v4312, 64
    %v5017 = vpop.permute.xlu0 %5016
    %5018 = vrot.lane.b32.xlu0 %v4313, 64
    %v5019 = vpop.permute.xlu0 %5018
    %5020 = vrot.lane.b32.xlu0 %v4314, 64
    %v5021 = vpop.permute.xlu0 %5020
    %5022 = vrot.lane.b32.xlu0 %v4315, 64
    %v5023 = vpop.permute.xlu0 %5022
    %5024 = vrot.lane.b32.xlu0 %v4316, 64
    %v5025 = vpop.permute.xlu0 %5024
    %5026 = vrot.lane.b32.xlu0 %v4317, 64
    %v5027 = vpop.permute.xlu0 %5026
    %5028 = vrot.lane.b32.xlu0 %v4318, 64
    %v5029 = vpop.permute.xlu0 %5028
    %5030 = vrot.lane.b32.xlu0 %v4319, 64
    %v5031 = vpop.permute.xlu0 %5030
    %5032 = vrot.lane.b32.xlu0 %v4320, 64
    %v5033 = vpop.permute.xlu0 %5032
    %5034 = vrot.lane.b32.xlu0 %v4321, 64
    %v5035 = vpop.permute.xlu0 %5034
    %5036 = vrot.lane.b32.xlu0 %v4322, 64
    %v5037 = vpop.permute.xlu0 %5036
    %5038 = vrot.lane.b32.xlu0 %v4323, 64
    %v5039 = vpop.permute.xlu0 %5038
    %5040 = vrot.lane.b32.xlu0 %v4324, 64
    %v5041 = vpop.permute.xlu0 %5040
    %5042 = vrot.lane.b32.xlu0 %v4325, 64
    %v5043 = vpop.permute.xlu0 %5042
    %5044 = vrot.lane.b32.xlu0 %v4326, 64
    %v5045 = vpop.permute.xlu0 %5044
    %5046 = vrot.lane.b32.xlu0 %v4327, 64
    %v5047 = vpop.permute.xlu0 %5046
    %5048 = vrot.lane.b32.xlu0 %v4328, 64
    %v5049 = vpop.permute.xlu0 %5048
    %5050 = vrot.lane.b32.xlu0 %v4329, 64
    %v5051 = vpop.permute.xlu0 %5050
    %5052 = vrot.lane.b32.xlu0 %v4330, 64
    %v5053 = vpop.permute.xlu0 %5052
    %5054 = vrot.lane.b32.xlu0 %v4331, 64
    %v5055 = vpop.permute.xlu0 %5054
    %5056 = vrot.lane.b32.xlu0 %v4332, 64
    %v5057 = vpop.permute.xlu0 %5056
    %5058 = vrot.lane.b32.xlu0 %v4333, 64
    %v5059 = vpop.permute.xlu0 %5058
    %5060 = vrot.lane.b32.xlu0 %v4334, 64
    %v5061 = vpop.permute.xlu0 %5060
    %5062 = vrot.lane.b32.xlu0 %v4335, 64
    %v5063 = vpop.permute.xlu0 %5062
    %5064 = vrot.lane.b32.xlu0 %v4336, 64
    %v5065 = vpop.permute.xlu0 %5064
    %5066 = vrot.lane.b32.xlu0 %v4337, 64
    %v5067 = vpop.permute.xlu0 %5066
    %5068 = vrot.lane.b32.xlu0 %v4338, 64
    %v5069 = vpop.permute.xlu0 %5068
    %5070 = vrot.lane.b32.xlu0 %v4339, 64
    %v5071 = vpop.permute.xlu0 %5070
    %5072 = vrot.lane.b32.xlu0 %v4340, 64
    %v5073 = vpop.permute.xlu0 %5072
    %5074 = vrot.lane.b32.xlu0 %v4341, 64
    %v5075 = vpop.permute.xlu0 %5074
    %5076 = vrot.lane.b32.xlu0 %v4342, 64
    %v5077 = vpop.permute.xlu0 %5076
    %5078 = vrot.lane.b32.xlu0 %v4343, 64
    %v5079 = vpop.permute.xlu0 %5078
    %vm5200 = vcmask 261120
    %v5201 = vsel %vm5200, %v4220, %v4479
    %v5202 = vsel %vm5200, %v4221, %v4481
    %v5203 = vsel %vm5200, %v4222, %v4483
    %v5204 = vsel %vm5200, %v4223, %v4485
    %v5205 = vsel %vm5200, %v4224, %v4487
    %v5206 = vsel %vm5200, %v4225, %v4489
    %v5207 = vsel %vm5200, %v4226, %v4491
    %v5208 = vsel %vm5200, %v4227, %v4493
    %v5209 = vsel %vm5200, %v4228, %v4495
    %v5210 = vsel %vm5200, %v4229, %v4497
    %v5211 = vsel %vm5200, %v4230, %v4499
    %v5212 = vsel %vm5200, %v4231, %v4501
    %v5213 = vsel %vm5200, %v4232, %v4503
    %v5214 = vsel %vm5200, %v4233, %v4505
    %v5215 = vsel %vm5200, %v4234, %v4507
    %v5216 = vsel %vm5200, %v4235, %v4509
    %v5217 = vsel %vm5200, %v4236, %v4511
    %v5218 = vsel %vm5200, %v4237, %v4513
    %v5219 = vsel %vm5200, %v4238, %v4515
    %v5220 = vsel %vm5200, %v4239, %v4517
    %v5221 = vsel %vm5200, %v4240, %v4519
    %v5222 = vsel %vm5200, %v4241, %v4521
    %v5223 = vsel %vm5200, %v4242, %v4523
    %v5224 = vsel %vm5200, %v4243, %v4525
    %v5225 = vsel %vm5200, %v4244, %v4527
    %v5226 = vsel %vm5200, %v4245, %v4529
    %v5227 = vsel %vm5200, %v4246, %v4531
    %v5228 = vsel %vm5200, %v4247, %v4533
    %v5229 = vsel %vm5200, %v4248, %v4535
    %v5230 = vsel %vm5200, %v4249, %v4537
    %v5231 = vsel %vm5200, %v4250, %v4539
    %v5232 = vsel %vm5200, %v4251, %v4541
    %v5233 = vsel %vm5200, %v4252, %v4543
    %v5234 = vsel %vm5200, %v4253, %v4545
    %v5235 = vsel %vm5200, %v4254, %v4547
    %v5236 = vsel %vm5200, %v4255, %v4549
    %v5237 = vsel %vm5200, %v4256, %v4551
    %v5238 = vsel %vm5200, %v4257, %v4553
    %v5239 = vsel %vm5200, %v4258, %v4555
    %v5240 = vsel %vm5200, %v4259, %v4557
    %v5241 = vsel %vm5200, %v4260, %v4559
    %v5242 = vsel %vm5200, %v4261, %v4561
    %v5243 = vsel %vm5200, %v4262, %v4563
    %v5244 = vsel %vm5200, %v4263, %v4565
    %v5245 = vsel %vm5200, %v4264, %v4567
    %v5246 = vsel %vm5200, %v4265, %v4569
    %v5247 = vsel %vm5200, %v4266, %v4571
    %v5248 = vsel %vm5200, %v4267, %v4573
    %v5249 = vsel %vm5200, %v4268, %v4575
    %v5250 = vsel %vm5200, %v4269, %v4577
    %v5251 = vsel %vm5200, %v4270, %v4579
    %v5252 = vsel %vm5200, %v4271, %v4581
    %v5253 = vsel %vm5200, %v4272, %v4583
    %v5254 = vsel %vm5200, %v4273, %v4585
    %v5255 = vsel %vm5200, %v4274, %v4587
    %v5256 = vsel %vm5200, %v4275, %v4589
    %v5257 = vsel %vm5200, %v4276, %v4591
    %v5258 = vsel %vm5200, %v4277, %v4593
    %v5259 = vsel %vm5200, %v4278, %v4595
    %v5260 = vsel %vm5200, %v4279, %v4597
    %v5261 = vsel %vm5200, %v4280, %v4599
    %v5262 = vsel %vm5200, %v4281, %v4601
    %v5263 = vsel %vm5200, %v4282, %v4603
    %v5264 = vsel %vm5200, %v4283, %v4605
    %v5265 = vsel %vm5200, %v4284, %v4607
    %v5266 = vsel %vm5200, %v4285, %v4609
    %v5267 = vsel %vm5200, %v4286, %v4611
    %v5268 = vsel %vm5200, %v4287, %v4613
    %v5269 = vsel %vm5200, %v4288, %v4615
    %v5270 = vsel %vm5200, %v4289, %v4617
    %v5271 = vsel %vm5200, %v4290, %v4619
    %v5272 = vsel %vm5200, %v4291, %v4621
    %v5273 = vsel %vm5200, %v4292, %v4623
    %v5274 = vsel %vm5200, %v4293, %v4625
    %v5275 = vsel %vm5200, %v4294, %v4627
    %v5276 = vsel %vm5200, %v4295, %v4629
    %v5277 = vsel %vm5200, %v4296, %v4631
    %v5278 = vsel %vm5200, %v4297, %v4633
    %v5279 = vsel %vm5200, %v4298, %v4635
    %v5280 = vsel %vm5200, %v4299, %v4637
    %v5281 = vsel %vm5200, %v4300, %v4639
    %v5282 = vsel %vm5200, %v4301, %v4641
    %v5283 = vsel %vm5200, %v4302, %v4643
    %v5284 = vsel %vm5200, %v4303, %v4645
    %v5285 = vsel %vm5200, %v4304, %v4647
    %v5286 = vsel %vm5200, %v4305, %v4649
    %v5287 = vsel %vm5200, %v4306, %v4651
    %v5288 = vsel %vm5200, %v4307, %v4653
    %v5289 = vsel %vm5200, %v4308, %v4655
    %v5290 = vsel %vm5200, %v4309, %v4657
    %v5291 = vsel %vm5200, %v4310, %v4659
    %v5292 = vsel %vm5200, %v4311, %v4661
    %v5293 = vsel %vm5200, %v4312, %v4663
    %v5294 = vsel %vm5200, %v4313, %v4665
    %v5295 = vsel %vm5200, %v4314, %v4667
    %v5296 = vsel %vm5200, %v4315, %v4669
    %v5297 = vsel %vm5200, %v4316, %v4671
    %v5298 = vsel %vm5200, %v4317, %v4673
    %v5299 = vsel %vm5200, %v4318, %v4675
    %v5300 = vsel %vm5200, %v4319, %v4677
    %v5301 = vsel %vm5200, %v4320, %v4679
    %v5302 = vsel %vm5200, %v4321, %v4681
    %v5303 = vsel %vm5200, %v4322, %v4683
    %v5304 = vsel %vm5200, %v4323, %v4685
    %v5305 = vsel %vm5200, %v4324, %v4687
    %v5306 = vsel %vm5200, %v4325, %v4689
    %v5307 = vsel %vm5200, %v4326, %v4691
    %v5308 = vsel %vm5200, %v4327, %v4693
    %v5309 = vsel %vm5200, %v4328, %v4695
    %v5310 = vsel %vm5200, %v4329, %v4697
    %v5311 = vsel %vm5200, %v4330, %v4699
    %v5312 = vsel %vm5200, %v4331, %v4701
    %v5313 = vsel %vm5200, %v4332, %v4703
    %v5314 = vsel %vm5200, %v4333, %v4705
    %v5315 = vsel %vm5200, %v4334, %v4707
    %v5316 = vsel %vm5200, %v4335, %v4709
    %v5317 = vsel %vm5200, %v4336, %v4711
    %v5318 = vsel %vm5200, %v4337, %v4713
    %v5319 = vsel %vm5200, %v4338, %v4715
    %v5320 = vsel %vm5200, %v4339, %v4717
    %vm5321 = vcmask 523264
    %v5322 = vsel %vm5321, %v5201, %v4841
    %v5323 = vsel %vm5321, %v5202, %v4843
    %v5324 = vsel %vm5321, %v5203, %v4845
    %v5325 = vsel %vm5321, %v5204, %v4847
    %v5326 = vsel %vm5321, %v5205, %v4849
    %v5327 = vsel %vm5321, %v5206, %v4851
    %v5328 = vsel %vm5321, %v5207, %v4853
    %v5329 = vsel %vm5321, %v5208, %v4855
    %v5330 = vsel %vm5321, %v5209, %v4857
    %v5331 = vsel %vm5321, %v5210, %v4859
    %v5332 = vsel %vm5321, %v5211, %v4861
    %v5333 = vsel %vm5321, %v5212, %v4863
    %v5334 = vsel %vm5321, %v5213, %v4865
    %v5335 = vsel %vm5321, %v5214, %v4867
    %v5336 = vsel %vm5321, %v5215, %v4869
    %v5337 = vsel %vm5321, %v5216, %v4871
    %v5338 = vsel %vm5321, %v5217, %v4873
    %v5339 = vsel %vm5321, %v5218, %v4875
    %v5340 = vsel %vm5321, %v5219, %v4877
    %v5341 = vsel %vm5321, %v5220, %v4879
    %v5342 = vsel %vm5321, %v5221, %v4881
    %v5343 = vsel %vm5321, %v5222, %v4883
    %v5344 = vsel %vm5321, %v5223, %v4885
    %v5345 = vsel %vm5321, %v5224, %v4887
    %v5346 = vsel %vm5321, %v5225, %v4889
    %v5347 = vsel %vm5321, %v5226, %v4891
    %v5348 = vsel %vm5321, %v5227, %v4893
    %v5349 = vsel %vm5321, %v5228, %v4895
    %v5350 = vsel %vm5321, %v5229, %v4897
    %v5351 = vsel %vm5321, %v5230, %v4899
    %v5352 = vsel %vm5321, %v5231, %v4901
    %v5353 = vsel %vm5321, %v5232, %v4903
    %v5354 = vsel %vm5321, %v5233, %v4905
    %v5355 = vsel %vm5321, %v5234, %v4907
    %v5356 = vsel %vm5321, %v5235, %v4909
    %v5357 = vsel %vm5321, %v5236, %v4911
    %v5358 = vsel %vm5321, %v5237, %v4913
    %v5359 = vsel %vm5321, %v5238, %v4915
    %v5360 = vsel %vm5321, %v5239, %v4917
    %v5361 = vsel %vm5321, %v5240, %v4919
    %v5362 = vsel %vm5321, %v5241, %v4921
    %v5363 = vsel %vm5321, %v5242, %v4923
    %v5364 = vsel %vm5321, %v5243, %v4925
    %v5365 = vsel %vm5321, %v5244, %v4927
    %v5366 = vsel %vm5321, %v5245, %v4929
    %v5367 = vsel %vm5321, %v5246, %v4931
    %v5368 = vsel %vm5321, %v5247, %v4933
    %v5369 = vsel %vm5321, %v5248, %v4935
    %v5370 = vsel %vm5321, %v5249, %v4937
    %v5371 = vsel %vm5321, %v5250, %v4939
    %v5372 = vsel %vm5321, %v5251, %v4941
    %v5373 = vsel %vm5321, %v5252, %v4943
    %v5374 = vsel %vm5321, %v5253, %v4945
    %v5375 = vsel %vm5321, %v5254, %v4947
    %v5376 = vsel %vm5321, %v5255, %v4949
    %v5377 = vsel %vm5321, %v5256, %v4951
    %v5378 = vsel %vm5321, %v5257, %v4953
    %v5379 = vsel %vm5321, %v5258, %v4955
    %v5380 = vsel %vm5321, %v5259, %v4957
    %v5381 = vsel %vm5321, %v5260, %v4959
    %v5382 = vsel %vm5321, %v5261, %v4961
    %v5383 = vsel %vm5321, %v5262, %v4963
    %v5384 = vsel %vm5321, %v5263, %v4965
    %v5385 = vsel %vm5321, %v5264, %v4967
    %v5386 = vsel %vm5321, %v5265, %v4969
    %v5387 = vsel %vm5321, %v5266, %v4971
    %v5388 = vsel %vm5321, %v5267, %v4973
    %v5389 = vsel %vm5321, %v5268, %v4975
    %v5390 = vsel %vm5321, %v5269, %v4977
    %v5391 = vsel %vm5321, %v5270, %v4979
    %v5392 = vsel %vm5321, %v5271, %v4981
    %v5393 = vsel %vm5321, %v5272, %v4983
    %v5394 = vsel %vm5321, %v5273, %v4985
    %v5395 = vsel %vm5321, %v5274, %v4987
    %v5396 = vsel %vm5321, %v5275, %v4989
    %v5397 = vsel %vm5321, %v5276, %v4991
    %v5398 = vsel %vm5321, %v5277, %v4993
    %v5399 = vsel %vm5321, %v5278, %v4995
    %v5400 = vsel %vm5321, %v5279, %v4997
    %v5401 = vsel %vm5321, %v5280, %v4999
    %v5402 = vsel %vm5321, %v5281, %v5001
    %v5403 = vsel %vm5321, %v5282, %v5003
    %v5404 = vsel %vm5321, %v5283, %v5005
    %v5405 = vsel %vm5321, %v5284, %v5007
    %v5406 = vsel %vm5321, %v5285, %v5009
    %v5407 = vsel %vm5321, %v5286, %v5011
    %v5408 = vsel %vm5321, %v5287, %v5013
    %v5409 = vsel %vm5321, %v5288, %v5015
    %v5410 = vsel %vm5321, %v5289, %v5017
    %v5411 = vsel %vm5321, %v5290, %v5019
    %v5412 = vsel %vm5321, %v5291, %v5021
    %v5413 = vsel %vm5321, %v5292, %v5023
    %v5414 = vsel %vm5321, %v5293, %v5025
    %v5415 = vsel %vm5321, %v5294, %v5027
    %v5416 = vsel %vm5321, %v5295, %v5029
    %v5417 = vsel %vm5321, %v5296, %v5031
    %v5418 = vsel %vm5321, %v5297, %v5033
    %v5419 = vsel %vm5321, %v5298, %v5035
    %v5420 = vsel %vm5321, %v5299, %v5037
    %v5421 = vsel %vm5321, %v5300, %v5039
    %v5422 = vsel %vm5321, %v5301, %v5041
    %v5423 = vsel %vm5321, %v5302, %v5043
    %v5424 = vsel %vm5321, %v5303, %v5045
    %v5425 = vsel %vm5321, %v5304, %v5047
    %v5426 = vsel %vm5321, %v5305, %v5049
    %v5427 = vsel %vm5321, %v5306, %v5051
    %v5428 = vsel %vm5321, %v5307, %v5053
    %v5429 = vsel %vm5321, %v5308, %v5055
    %v5430 = vsel %vm5321, %v5309, %v5057
    %v5431 = vsel %vm5321, %v5310, %v5059
    %v5432 = vsel %vm5321, %v5311, %v5061
    %v5433 = vsel %vm5321, %v5312, %v5063
    %v5434 = vsel %vm5321, %v5313, %v5065
    %v5435 = vsel %vm5321, %v5314, %v5067
    %v5436 = vsel %vm5321, %v5315, %v5069
    %v5437 = vsel %vm5321, %v5316, %v5071
    %v5438 = vsel %vm5321, %v5317, %v5073
    %v5439 = vsel %vm5321, %v5318, %v5075
    %v5440 = vsel %vm5321, %v5319, %v5077
    %v5441 = vsel %vm5321, %v5320, %v5079
    %v5442 = vpack.c.bf16 %v5323, %v5322
    %v5443 = vpack.c.bf16 %v5325, %v5324
    %v5444 = vpack.c.bf16 %v5327, %v5326
    %v5445 = vpack.c.bf16 %v5329, %v5328
    %v5446 = vpack.c.bf16 %v5331, %v5330
    %v5447 = vpack.c.bf16 %v5333, %v5332
    %v5448 = vpack.c.bf16 %v5335, %v5334
    %v5449 = vpack.c.bf16 %v5337, %v5336
    %v5450 = vpack.c.bf16 %v5339, %v5338
    %v5451 = vpack.c.bf16 %v5341, %v5340
    %v5452 = vpack.c.bf16 %v5343, %v5342
    %v5453 = vpack.c.bf16 %v5345, %v5344
    %v5454 = vpack.c.bf16 %v5347, %v5346
    %v5455 = vpack.c.bf16 %v5349, %v5348
    %v5456 = vpack.c.bf16 %v5351, %v5350
    %v5457 = vpack.c.bf16 %v5353, %v5352
    %v5458 = vpack.c.bf16 %v5355, %v5354
    %v5459 = vpack.c.bf16 %v5357, %v5356
    %v5460 = vpack.c.bf16 %v5359, %v5358
    %v5461 = vpack.c.bf16 %v5361, %v5360
    %v5462 = vpack.c.bf16 %v5363, %v5362
    %v5463 = vpack.c.bf16 %v5365, %v5364
    %v5464 = vpack.c.bf16 %v5367, %v5366
    %v5465 = vpack.c.bf16 %v5369, %v5368
    %v5466 = vpack.c.bf16 %v5371, %v5370
    %v5467 = vpack.c.bf16 %v5373, %v5372
    %v5468 = vpack.c.bf16 %v5375, %v5374
    %v5469 = vpack.c.bf16 %v5377, %v5376
    %v5470 = vpack.c.bf16 %v5379, %v5378
    %v5471 = vpack.c.bf16 %v5381, %v5380
    %v5472 = vpack.c.bf16 %v5383, %v5382
    %v5473 = vpack.c.bf16 %v5385, %v5384
    %v5474 = vpack.c.bf16 %v5387, %v5386
    %v5475 = vpack.c.bf16 %v5389, %v5388
    %v5476 = vpack.c.bf16 %v5391, %v5390
    %v5477 = vpack.c.bf16 %v5393, %v5392
    %v5478 = vpack.c.bf16 %v5395, %v5394
    %v5479 = vpack.c.bf16 %v5397, %v5396
    %v5480 = vpack.c.bf16 %v5399, %v5398
    %v5481 = vpack.c.bf16 %v5401, %v5400
    %v5482 = vpack.c.bf16 %v5403, %v5402
    %v5483 = vpack.c.bf16 %v5405, %v5404
    %v5484 = vpack.c.bf16 %v5407, %v5406
    %v5485 = vpack.c.bf16 %v5409, %v5408
    %v5486 = vpack.c.bf16 %v5411, %v5410
    %v5487 = vpack.c.bf16 %v5413, %v5412
    %v5488 = vpack.c.bf16 %v5415, %v5414
    %v5489 = vpack.c.bf16 %v5417, %v5416
    %v5490 = vpack.c.bf16 %v5419, %v5418
    %v5491 = vpack.c.bf16 %v5421, %v5420
    %v5492 = vpack.c.bf16 %v5423, %v5422
    %v5493 = vpack.c.bf16 %v5425, %v5424
    %v5494 = vpack.c.bf16 %v5427, %v5426
    %v5495 = vpack.c.bf16 %v5429, %v5428
    %v5496 = vpack.c.bf16 %v5431, %v5430
    %v5497 = vpack.c.bf16 %v5433, %v5432
    %v5498 = vpack.c.bf16 %v5435, %v5434
    %v5499 = vpack.c.bf16 %v5437, %v5436
    %v5500 = vpack.c.bf16 %v5439, %v5438
    %v5501 = vpack.c.bf16 %v5441, %v5440
    %v5503 = vperm.slane %v4357, 0
    %v5517 = vunpack.c.l.b16 %v4344
    %v5518 = vunpack.c.l.b16 %v4345
    %v5519 = vunpack.c.l.b16 %v4346
    %v5520 = vunpack.c.l.b16 %v4347
    %v5521 = vunpack.c.l.b16 %v4348
    %v5522 = vunpack.c.l.b16 %v4349
    %v5523 = vunpack.c.l.b16 %v4350
    %v5524 = vunpack.c.l.b16 %v4351
    %v5525 = vunpack.c.l.b16 %v4352
    %v5526 = vunpack.c.l.b16 %v4353
    %v5527 = vunpack.c.l.b16 %v4354
    %v5528 = vunpack.c.l.b16 %v4355
    %v5529 = vpack.c.b16 %v5518, %v5517
    %v5530 = vpack.c.b16 %v5520, %v5519
    %v5531 = vpack.c.b16 %v5522, %v5521
    %v5532 = vpack.c.b16 %v5524, %v5523
    %v5533 = vpack.c.b16 %v5526, %v5525
    %v5534 = vpack.c.b16 %v5528, %v5527
    %vm5541 = vcmask 785408
    %v5543 = vsel %vm5541, %v5442, 0
    %v5546 = vsel %vm5541, %v5443, 0
    %v5549 = vsel %vm5541, %v5444, 0
    %v5552 = vsel %vm5541, %v5445, 0
    %v5555 = vsel %vm5541, %v5446, 0
    %v5558 = vsel %vm5541, %v5447, 0
    %v5561 = vsel %vm5541, %v5448, 0
    %v5564 = vsel %vm5541, %v5449, 0
    %v5567 = vsel %vm5541, %v5450, 0
    %v5570 = vsel %vm5541, %v5451, 0
    %v5573 = vsel %vm5541, %v5452, 0
    %v5576 = vsel %vm5541, %v5453, 0
    %v5579 = vsel %vm5541, %v5454, 0
    %v5582 = vsel %vm5541, %v5455, 0
    %v5585 = vsel %vm5541, %v5456, 0
    %v5588 = vsel %vm5541, %v5457, 0
    %v5591 = vsel %vm5541, %v5458, 0
    %v5594 = vsel %vm5541, %v5459, 0
    %v5597 = vsel %vm5541, %v5460, 0
    %v5600 = vsel %vm5541, %v5461, 0
    %v5603 = vsel %vm5541, %v5462, 0
    %v5606 = vsel %vm5541, %v5463, 0
    %v5609 = vsel %vm5541, %v5464, 0
    %v5612 = vsel %vm5541, %v5465, 0
    %v5615 = vsel %vm5541, %v5466, 0
    %v5618 = vsel %vm5541, %v5467, 0
    %v5621 = vsel %vm5541, %v5468, 0
    %v5624 = vsel %vm5541, %v5469, 0
    %v5627 = vsel %vm5541, %v5470, 0
    %v5630 = vsel %vm5541, %v5471, 0
    %v5633 = vsel %vm5541, %v5472, 0
    %v5636 = vsel %vm5541, %v5473, 0
    %v5639 = vsel %vm5541, %v5474, 0
    %v5642 = vsel %vm5541, %v5475, 0
    %v5645 = vsel %vm5541, %v5476, 0
    %v5648 = vsel %vm5541, %v5477, 0
    %v5651 = vsel %vm5541, %v5478, 0
    %v5654 = vsel %vm5541, %v5479, 0
    %v5657 = vsel %vm5541, %v5480, 0
    %v5660 = vsel %vm5541, %v5481, 0
    %v5663 = vsel %vm5541, %v5482, 0
    %v5666 = vsel %vm5541, %v5483, 0
    %v5669 = vsel %vm5541, %v5484, 0
    %v5672 = vsel %vm5541, %v5485, 0
    %v5675 = vsel %vm5541, %v5486, 0
    %v5678 = vsel %vm5541, %v5487, 0
    %v5681 = vsel %vm5541, %v5488, 0
    %v5684 = vsel %vm5541, %v5489, 0
    %v5687 = vsel %vm5541, %v5490, 0
    %v5690 = vsel %vm5541, %v5491, 0
    %v5693 = vsel %vm5541, %v5492, 0
    %v5696 = vsel %vm5541, %v5493, 0
    %v5699 = vsel %vm5541, %v5494, 0
    %v5702 = vsel %vm5541, %v5495, 0
    %v5705 = vsel %vm5541, %v5496, 0
    %v5708 = vsel %vm5541, %v5497, 0
    %v5711 = vsel %vm5541, %v5498, 0
    %v5714 = vsel %vm5541, %v5499, 0
    %v5717 = vsel %vm5541, %v5500, 0
    %v5720 = vsel %vm5541, %v5501, 0
    %5722 = vmatpush.bf16.msra.mxu0 0
    %5723 = vmatpush.bf16.msra.mxu0 0
    %5724 = vmatpush.bf16.msra.mxu0 %v5534
    %5725 = vmatpush.bf16.msra.mxu0 %v5533
    %5726 = vmatpush.bf16.msra.mxu0 %v5532
    %5727 = vmatpush.bf16.msra.mxu0 %v5531
    %5728 = vmatpush.bf16.msra.mxu0 %v5530
    %5729 = vmatpush.bf16.msra.mxu0 %v5529
    %5730 = vmatmul.bf16.gmra.mxu0 %v5543
    %v5731 = vpop.f32.mrf.mxu0
    %v5732 = vadd.f32 %v5503, %v5731
    %v5733 = vpop.f32.mrf.mxu0
    %v5734 = vadd.f32 %v5503, %v5733
    %5735 = vmatmul.bf16.gmra.mxu0 %v5546
    %v5736 = vpop.f32.mrf.mxu0
    %v5737 = vadd.f32 %v5503, %v5736
    %v5738 = vpop.f32.mrf.mxu0
    %v5739 = vadd.f32 %v5503, %v5738
    %5740 = vmatmul.bf16.gmra.mxu0 %v5549
    %v5741 = vpop.f32.mrf.mxu0
    %v5742 = vadd.f32 %v5503, %v5741
    %v5743 = vpop.f32.mrf.mxu0
    %v5744 = vadd.f32 %v5503, %v5743
    %5745 = vmatmul.bf16.gmra.mxu0 %v5552
    %v5746 = vpop.f32.mrf.mxu0
    %v5747 = vadd.f32 %v5503, %v5746
    %v5748 = vpop.f32.mrf.mxu0
    %v5749 = vadd.f32 %v5503, %v5748
    %5750 = vmatmul.bf16.gmra.mxu0 %v5555
    %v5751 = vpop.f32.mrf.mxu0
    %v5752 = vadd.f32 %v5503, %v5751
    %v5753 = vpop.f32.mrf.mxu0
    %v5754 = vadd.f32 %v5503, %v5753
    %5755 = vmatmul.bf16.gmra.mxu0 %v5558
    %v5756 = vpop.f32.mrf.mxu0
    %v5757 = vadd.f32 %v5503, %v5756
    %v5758 = vpop.f32.mrf.mxu0
    %v5759 = vadd.f32 %v5503, %v5758
    %5760 = vmatmul.bf16.gmra.mxu0 %v5561
    %v5761 = vpop.f32.mrf.mxu0
    %v5762 = vadd.f32 %v5503, %v5761
    %v5763 = vpop.f32.mrf.mxu0
    %v5764 = vadd.f32 %v5503, %v5763
    %5765 = vmatmul.bf16.gmra.mxu0 %v5564
    %v5766 = vpop.f32.mrf.mxu0
    %v5767 = vadd.f32 %v5503, %v5766
    %v5768 = vpop.f32.mrf.mxu0
    %v5769 = vadd.f32 %v5503, %v5768
    %5770 = vmatmul.bf16.gmra.mxu0 %v5567
    %v5771 = vpop.f32.mrf.mxu0
    %v5772 = vadd.f32 %v5503, %v5771
    %v5773 = vpop.f32.mrf.mxu0
    %v5774 = vadd.f32 %v5503, %v5773
    %5775 = vmatmul.bf16.gmra.mxu0 %v5570
    %v5776 = vpop.f32.mrf.mxu0
    %v5777 = vadd.f32 %v5503, %v5776
    %v5778 = vpop.f32.mrf.mxu0
    %v5779 = vadd.f32 %v5503, %v5778
    %5780 = vmatmul.bf16.gmra.mxu0 %v5573
    %v5781 = vpop.f32.mrf.mxu0
    %v5782 = vadd.f32 %v5503, %v5781
    %v5783 = vpop.f32.mrf.mxu0
    %v5784 = vadd.f32 %v5503, %v5783
    %5785 = vmatmul.bf16.gmra.mxu0 %v5576
    %v5786 = vpop.f32.mrf.mxu0
    %v5787 = vadd.f32 %v5503, %v5786
    %v5788 = vpop.f32.mrf.mxu0
    %v5789 = vadd.f32 %v5503, %v5788
    %5790 = vmatmul.bf16.gmra.mxu0 %v5579
    %v5791 = vpop.f32.mrf.mxu0
    %v5792 = vadd.f32 %v5503, %v5791
    %v5793 = vpop.f32.mrf.mxu0
    %v5794 = vadd.f32 %v5503, %v5793
    %5795 = vmatmul.bf16.gmra.mxu0 %v5582
    %v5796 = vpop.f32.mrf.mxu0
    %v5797 = vadd.f32 %v5503, %v5796
    %v5798 = vpop.f32.mrf.mxu0
    %v5799 = vadd.f32 %v5503, %v5798
    %5800 = vmatmul.bf16.gmra.mxu0 %v5585
    %v5801 = vpop.f32.mrf.mxu0
    %v5802 = vadd.f32 %v5503, %v5801
    %v5803 = vpop.f32.mrf.mxu0
    %v5804 = vadd.f32 %v5503, %v5803
    %5805 = vmatmul.bf16.gmra.mxu0 %v5588
    %v5806 = vpop.f32.mrf.mxu0
    %v5807 = vadd.f32 %v5503, %v5806
    %v5808 = vpop.f32.mrf.mxu0
    %v5809 = vadd.f32 %v5503, %v5808
    %5810 = vmatmul.bf16.gmra.mxu0 %v5591
    %v5811 = vpop.f32.mrf.mxu0
    %v5812 = vadd.f32 %v5503, %v5811
    %v5813 = vpop.f32.mrf.mxu0
    %v5814 = vadd.f32 %v5503, %v5813
    %5815 = vmatmul.bf16.gmra.mxu0 %v5594
    %v5816 = vpop.f32.mrf.mxu0
    %v5817 = vadd.f32 %v5503, %v5816
    %v5818 = vpop.f32.mrf.mxu0
    %v5819 = vadd.f32 %v5503, %v5818
    %5820 = vmatmul.bf16.gmra.mxu0 %v5597
    %v5821 = vpop.f32.mrf.mxu0
    %v5822 = vadd.f32 %v5503, %v5821
    %v5823 = vpop.f32.mrf.mxu0
    %v5824 = vadd.f32 %v5503, %v5823
    %5825 = vmatmul.bf16.gmra.mxu0 %v5600
    %v5826 = vpop.f32.mrf.mxu0
    %v5827 = vadd.f32 %v5503, %v5826
    %v5828 = vpop.f32.mrf.mxu0
    %v5829 = vadd.f32 %v5503, %v5828
    %5830 = vmatmul.bf16.gmra.mxu0 %v5603
    %v5831 = vpop.f32.mrf.mxu0
    %v5832 = vadd.f32 %v5503, %v5831
    %v5833 = vpop.f32.mrf.mxu0
    %v5834 = vadd.f32 %v5503, %v5833
    %5835 = vmatmul.bf16.gmra.mxu0 %v5606
    %v5836 = vpop.f32.mrf.mxu0
    %v5837 = vadd.f32 %v5503, %v5836
    %v5838 = vpop.f32.mrf.mxu0
    %v5839 = vadd.f32 %v5503, %v5838
    %5840 = vmatmul.bf16.gmra.mxu0 %v5609
    %v5841 = vpop.f32.mrf.mxu0
    %v5842 = vadd.f32 %v5503, %v5841
    %v5843 = vpop.f32.mrf.mxu0
    %v5844 = vadd.f32 %v5503, %v5843
    %5845 = vmatmul.bf16.gmra.mxu0 %v5612
    %v5846 = vpop.f32.mrf.mxu0
    %v5847 = vadd.f32 %v5503, %v5846
    %v5848 = vpop.f32.mrf.mxu0
    %v5849 = vadd.f32 %v5503, %v5848
    %5850 = vmatmul.bf16.gmra.mxu0 %v5615
    %v5851 = vpop.f32.mrf.mxu0
    %v5852 = vadd.f32 %v5503, %v5851
    %v5853 = vpop.f32.mrf.mxu0
    %v5854 = vadd.f32 %v5503, %v5853
    %5855 = vmatmul.bf16.gmra.mxu0 %v5618
    %v5856 = vpop.f32.mrf.mxu0
    %v5857 = vadd.f32 %v5503, %v5856
    %v5858 = vpop.f32.mrf.mxu0
    %v5859 = vadd.f32 %v5503, %v5858
    %5860 = vmatmul.bf16.gmra.mxu0 %v5621
    %v5861 = vpop.f32.mrf.mxu0
    %v5862 = vadd.f32 %v5503, %v5861
    %v5863 = vpop.f32.mrf.mxu0
    %v5864 = vadd.f32 %v5503, %v5863
    %5865 = vmatmul.bf16.gmra.mxu0 %v5624
    %v5866 = vpop.f32.mrf.mxu0
    %v5867 = vadd.f32 %v5503, %v5866
    %v5868 = vpop.f32.mrf.mxu0
    %v5869 = vadd.f32 %v5503, %v5868
    %5870 = vmatmul.bf16.gmra.mxu0 %v5627
    %v5871 = vpop.f32.mrf.mxu0
    %v5872 = vadd.f32 %v5503, %v5871
    %v5873 = vpop.f32.mrf.mxu0
    %v5874 = vadd.f32 %v5503, %v5873
    %5875 = vmatmul.bf16.gmra.mxu0 %v5630
    %v5876 = vpop.f32.mrf.mxu0
    %v5877 = vadd.f32 %v5503, %v5876
    %v5878 = vpop.f32.mrf.mxu0
    %v5879 = vadd.f32 %v5503, %v5878
    %5880 = vmatmul.bf16.gmra.mxu0 %v5633
    %v5881 = vpop.f32.mrf.mxu0
    %v5882 = vadd.f32 %v5503, %v5881
    %v5883 = vpop.f32.mrf.mxu0
    %v5884 = vadd.f32 %v5503, %v5883
    %5885 = vmatmul.bf16.gmra.mxu0 %v5636
    %v5886 = vpop.f32.mrf.mxu0
    %v5887 = vadd.f32 %v5503, %v5886
    %v5888 = vpop.f32.mrf.mxu0
    %v5889 = vadd.f32 %v5503, %v5888
    %5890 = vmatmul.bf16.gmra.mxu0 %v5639
    %v5891 = vpop.f32.mrf.mxu0
    %v5892 = vadd.f32 %v5503, %v5891
    %v5893 = vpop.f32.mrf.mxu0
    %v5894 = vadd.f32 %v5503, %v5893
    %5895 = vmatmul.bf16.gmra.mxu0 %v5642
    %v5896 = vpop.f32.mrf.mxu0
    %v5897 = vadd.f32 %v5503, %v5896
    %v5898 = vpop.f32.mrf.mxu0
    %v5899 = vadd.f32 %v5503, %v5898
    %5900 = vmatmul.bf16.gmra.mxu0 %v5645
    %v5901 = vpop.f32.mrf.mxu0
    %v5902 = vadd.f32 %v5503, %v5901
    %v5903 = vpop.f32.mrf.mxu0
    %v5904 = vadd.f32 %v5503, %v5903
    %5905 = vmatmul.bf16.gmra.mxu0 %v5648
    %v5906 = vpop.f32.mrf.mxu0
    %v5907 = vadd.f32 %v5503, %v5906
    %v5908 = vpop.f32.mrf.mxu0
    %v5909 = vadd.f32 %v5503, %v5908
    %5910 = vmatmul.bf16.gmra.mxu0 %v5651
    %v5911 = vpop.f32.mrf.mxu0
    %v5912 = vadd.f32 %v5503, %v5911
    %v5913 = vpop.f32.mrf.mxu0
    %v5914 = vadd.f32 %v5503, %v5913
    %5915 = vmatmul.bf16.gmra.mxu0 %v5654
    %v5916 = vpop.f32.mrf.mxu0
    %v5917 = vadd.f32 %v5503, %v5916
    %v5918 = vpop.f32.mrf.mxu0
    %v5919 = vadd.f32 %v5503, %v5918
    %5920 = vmatmul.bf16.gmra.mxu0 %v5657
    %v5921 = vpop.f32.mrf.mxu0
    %v5922 = vadd.f32 %v5503, %v5921
    %v5923 = vpop.f32.mrf.mxu0
    %v5924 = vadd.f32 %v5503, %v5923
    %5925 = vmatmul.bf16.gmra.mxu0 %v5660
    %v5926 = vpop.f32.mrf.mxu0
    %v5927 = vadd.f32 %v5503, %v5926
    %v5928 = vpop.f32.mrf.mxu0
    %v5929 = vadd.f32 %v5503, %v5928
    %5930 = vmatmul.bf16.gmra.mxu0 %v5663
    %v5931 = vpop.f32.mrf.mxu0
    %v5932 = vadd.f32 %v5503, %v5931
    %v5933 = vpop.f32.mrf.mxu0
    %v5934 = vadd.f32 %v5503, %v5933
    %5935 = vmatmul.bf16.gmra.mxu0 %v5666
    %v5936 = vpop.f32.mrf.mxu0
    %v5937 = vadd.f32 %v5503, %v5936
    %v5938 = vpop.f32.mrf.mxu0
    %v5939 = vadd.f32 %v5503, %v5938
    %5940 = vmatmul.bf16.gmra.mxu0 %v5669
    %v5941 = vpop.f32.mrf.mxu0
    %v5942 = vadd.f32 %v5503, %v5941
    %v5943 = vpop.f32.mrf.mxu0
    %v5944 = vadd.f32 %v5503, %v5943
    %5945 = vmatmul.bf16.gmra.mxu0 %v5672
    %v5946 = vpop.f32.mrf.mxu0
    %v5947 = vadd.f32 %v5503, %v5946
    %v5948 = vpop.f32.mrf.mxu0
    %v5949 = vadd.f32 %v5503, %v5948
    %5950 = vmatmul.bf16.gmra.mxu0 %v5675
    %v5951 = vpop.f32.mrf.mxu0
    %v5952 = vadd.f32 %v5503, %v5951
    %v5953 = vpop.f32.mrf.mxu0
    %v5954 = vadd.f32 %v5503, %v5953
    %5955 = vmatmul.bf16.gmra.mxu0 %v5678
    %v5956 = vpop.f32.mrf.mxu0
    %v5957 = vadd.f32 %v5503, %v5956
    %v5958 = vpop.f32.mrf.mxu0
    %v5959 = vadd.f32 %v5503, %v5958
    %5960 = vmatmul.bf16.gmra.mxu0 %v5681
    %v5961 = vpop.f32.mrf.mxu0
    %v5962 = vadd.f32 %v5503, %v5961
    %v5963 = vpop.f32.mrf.mxu0
    %v5964 = vadd.f32 %v5503, %v5963
    %5965 = vmatmul.bf16.gmra.mxu0 %v5684
    %v5966 = vpop.f32.mrf.mxu0
    %v5967 = vadd.f32 %v5503, %v5966
    %v5968 = vpop.f32.mrf.mxu0
    %v5969 = vadd.f32 %v5503, %v5968
    %5970 = vmatmul.bf16.gmra.mxu0 %v5687
    %v5971 = vpop.f32.mrf.mxu0
    %v5972 = vadd.f32 %v5503, %v5971
    %v5973 = vpop.f32.mrf.mxu0
    %v5974 = vadd.f32 %v5503, %v5973
    %5975 = vmatmul.bf16.gmra.mxu0 %v5690
    %v5976 = vpop.f32.mrf.mxu0
    %v5977 = vadd.f32 %v5503, %v5976
    %v5978 = vpop.f32.mrf.mxu0
    %v5979 = vadd.f32 %v5503, %v5978
    %5980 = vmatmul.bf16.gmra.mxu0 %v5693
    %v5981 = vpop.f32.mrf.mxu0
    %v5982 = vadd.f32 %v5503, %v5981
    %v5983 = vpop.f32.mrf.mxu0
    %v5984 = vadd.f32 %v5503, %v5983
    %5985 = vmatmul.bf16.gmra.mxu0 %v5696
    %v5986 = vpop.f32.mrf.mxu0
    %v5987 = vadd.f32 %v5503, %v5986
    %v5988 = vpop.f32.mrf.mxu0
    %v5989 = vadd.f32 %v5503, %v5988
    %5990 = vmatmul.bf16.gmra.mxu0 %v5699
    %v5991 = vpop.f32.mrf.mxu0
    %v5992 = vadd.f32 %v5503, %v5991
    %v5993 = vpop.f32.mrf.mxu0
    %v5994 = vadd.f32 %v5503, %v5993
    %5995 = vmatmul.bf16.gmra.mxu0 %v5702
    %v5996 = vpop.f32.mrf.mxu0
    %v5997 = vadd.f32 %v5503, %v5996
    %v5998 = vpop.f32.mrf.mxu0
    %v5999 = vadd.f32 %v5503, %v5998
    %6000 = vmatmul.bf16.gmra.mxu0 %v5705
    %v6001 = vpop.f32.mrf.mxu0
    %v6002 = vadd.f32 %v5503, %v6001
    %v6003 = vpop.f32.mrf.mxu0
    %v6004 = vadd.f32 %v5503, %v6003
    %6005 = vmatmul.bf16.gmra.mxu0 %v5708
    %v6006 = vpop.f32.mrf.mxu0
    %v6007 = vadd.f32 %v5503, %v6006
    %v6008 = vpop.f32.mrf.mxu0
    %v6009 = vadd.f32 %v5503, %v6008
    %6010 = vmatmul.bf16.gmra.mxu0 %v5711
    %v6011 = vpop.f32.mrf.mxu0
    %v6012 = vadd.f32 %v5503, %v6011
    %v6013 = vpop.f32.mrf.mxu0
    %v6014 = vadd.f32 %v5503, %v6013
    %6015 = vmatmul.bf16.gmra.mxu0 %v5714
    %v6016 = vpop.f32.mrf.mxu0
    %v6017 = vadd.f32 %v5503, %v6016
    %v6018 = vpop.f32.mrf.mxu0
    %v6019 = vadd.f32 %v5503, %v6018
    %6020 = vmatmul.bf16.gmra.mxu0 %v5717
    %v6021 = vpop.f32.mrf.mxu0
    %v6022 = vadd.f32 %v5503, %v6021
    %v6023 = vpop.f32.mrf.mxu0
    %v6024 = vadd.f32 %v5503, %v6023
    %6025 = vmatmul.bf16.gmra.mxu0 %v5720
    %v6026 = vpop.f32.mrf.mxu0
    %v6027 = vpop.f32.mrf.mxu0
    %6028 = vdwg.mxu0
    %v6029 = vmax.f32 %v5732, %v5737
    %v6030 = vmax.f32 %v5734, %v5739
    %v6031 = vmax.f32 %v5742, %v5747
    %v6032 = vmax.f32 %v5744, %v5749
    %v6033 = vmax.f32 %v5752, %v5757
    %v6034 = vmax.f32 %v5754, %v5759
    %v6035 = vmax.f32 %v5762, %v5767
    %v6036 = vmax.f32 %v5764, %v5769
    %v6037 = vmax.f32 %v5772, %v5777
    %v6038 = vmax.f32 %v5774, %v5779
    %v6039 = vmax.f32 %v5782, %v5787
    %v6040 = vmax.f32 %v5784, %v5789
    %v6041 = vmax.f32 %v5792, %v5797
    %v6042 = vmax.f32 %v5794, %v5799
    %v6043 = vmax.f32 %v5802, %v5807
    %v6044 = vmax.f32 %v5804, %v5809
    %v6045 = vmax.f32 %v5812, %v5817
    %v6046 = vmax.f32 %v5814, %v5819
    %v6047 = vmax.f32 %v5822, %v5827
    %v6048 = vmax.f32 %v5824, %v5829
    %v6049 = vmax.f32 %v5832, %v5837
    %v6050 = vmax.f32 %v5834, %v5839
    %v6051 = vmax.f32 %v5842, %v5847
    %v6052 = vmax.f32 %v5844, %v5849
    %v6053 = vmax.f32 %v5852, %v5857
    %v6054 = vmax.f32 %v5854, %v5859
    %v6055 = vmax.f32 %v5862, %v5867
    %v6056 = vmax.f32 %v5864, %v5869
    %v6057 = vmax.f32 %v5872, %v5877
    %v6058 = vmax.f32 %v5874, %v5879
    %v6059 = vmax.f32 %v5882, %v5887
    %v6060 = vmax.f32 %v5884, %v5889
    %v6061 = vmax.f32 %v5892, %v5897
    %v6062 = vmax.f32 %v5894, %v5899
    %v6063 = vmax.f32 %v5902, %v5907
    %v6064 = vmax.f32 %v5904, %v5909
    %v6065 = vmax.f32 %v5912, %v5917
    %v6066 = vmax.f32 %v5914, %v5919
    %v6067 = vmax.f32 %v5922, %v5927
    %v6068 = vmax.f32 %v5924, %v5929
    %v6069 = vmax.f32 %v5932, %v5937
    %v6070 = vmax.f32 %v5934, %v5939
    %v6071 = vmax.f32 %v5942, %v5947
    %v6072 = vmax.f32 %v5944, %v5949
    %v6073 = vmax.f32 %v5952, %v5957
    %v6074 = vmax.f32 %v5954, %v5959
    %v6075 = vmax.f32 %v5962, %v5967
    %v6076 = vmax.f32 %v5964, %v5969
    %v6077 = vmax.f32 %v5972, %v5977
    %v6078 = vmax.f32 %v5974, %v5979
    %v6079 = vmax.f32 %v5982, %v5987
    %v6080 = vmax.f32 %v5984, %v5989
    %v6081 = vmax.f32 %v5992, %v5997
    %v6082 = vmax.f32 %v5994, %v5999
    %v6083 = vmax.f32 %v6002, %v6007
    %v6084 = vmax.f32 %v6004, %v6009
    %v6085 = vmax.f32 %v6012, %v6017
    %v6086 = vmax.f32 %v6014, %v6019
    %v6087 = vmax.f32 %v6029, %v5742
    %v6088 = vmax.f32 %v6030, %v5744
    %v6089 = vmax.f32 %v6031, %v5752
    %v6090 = vmax.f32 %v6032, %v5754
    %v6091 = vmax.f32 %v6033, %v5762
    %v6092 = vmax.f32 %v6034, %v5764
    %v6093 = vmax.f32 %v6035, %v5772
    %v6094 = vmax.f32 %v6036, %v5774
    %v6095 = vmax.f32 %v6037, %v5782
    %v6096 = vmax.f32 %v6038, %v5784
    %v6097 = vmax.f32 %v6039, %v5792
    %v6098 = vmax.f32 %v6040, %v5794
    %v6099 = vmax.f32 %v6041, %v5802
    %v6100 = vmax.f32 %v6042, %v5804
    %v6101 = vmax.f32 %v6043, %v5812
    %v6102 = vmax.f32 %v6044, %v5814
    %v6103 = vmax.f32 %v6045, %v5822
    %v6104 = vmax.f32 %v6046, %v5824
    %v6105 = vmax.f32 %v6047, %v5832
    %v6106 = vmax.f32 %v6048, %v5834
    %v6107 = vmax.f32 %v6049, %v5842
    %v6108 = vmax.f32 %v6050, %v5844
    %v6109 = vmax.f32 %v6051, %v5852
    %v6110 = vmax.f32 %v6052, %v5854
    %v6111 = vmax.f32 %v6053, %v5862
    %v6112 = vmax.f32 %v6054, %v5864
    %v6113 = vmax.f32 %v6055, %v5872
    %v6114 = vmax.f32 %v6056, %v5874
    %v6115 = vmax.f32 %v6057, %v5882
    %v6116 = vmax.f32 %v6058, %v5884
    %v6117 = vmax.f32 %v6059, %v5892
    %v6118 = vmax.f32 %v6060, %v5894
    %v6119 = vmax.f32 %v6061, %v5902
    %v6120 = vmax.f32 %v6062, %v5904
    %v6121 = vmax.f32 %v6063, %v5912
    %v6122 = vmax.f32 %v6064, %v5914
    %v6123 = vmax.f32 %v6065, %v5922
    %v6124 = vmax.f32 %v6066, %v5924
    %v6125 = vmax.f32 %v6067, %v5932
    %v6126 = vmax.f32 %v6068, %v5934
    %v6127 = vmax.f32 %v6069, %v5942
    %v6128 = vmax.f32 %v6070, %v5944
    %v6129 = vmax.f32 %v6071, %v5952
    %v6130 = vmax.f32 %v6072, %v5954
    %v6131 = vmax.f32 %v6073, %v5962
    %v6132 = vmax.f32 %v6074, %v5964
    %v6133 = vmax.f32 %v6075, %v5972
    %v6134 = vmax.f32 %v6076, %v5974
    %v6135 = vmax.f32 %v6077, %v5982
    %v6136 = vmax.f32 %v6078, %v5984
    %v6137 = vmax.f32 %v6079, %v5992
    %v6138 = vmax.f32 %v6080, %v5994
    %v6139 = vmax.f32 %v6081, %v6002
    %v6140 = vmax.f32 %v6082, %v6004
    %v6141 = vmax.f32 %v6083, %v6012
    %v6142 = vmax.f32 %v6084, %v6014
    %v6143 = vmax.f32 %v6085, %v6022
    %v6144 = vmax.f32 %v6086, %v6024
    %v6145 = vmax.f32 %v6087, 0.0
    %v6146 = vmax.f32 %v6088, 0.0
    %v6147 = vmax.f32 %v6089, 0.0
    %v6148 = vmax.f32 %v6090, 0.0
    %v6149 = vmax.f32 %v6091, 0.0
    %v6150 = vmax.f32 %v6092, 0.0
    %v6151 = vmax.f32 %v6093, 0.0
    %v6152 = vmax.f32 %v6094, 0.0
    %v6153 = vmax.f32 %v6095, 0.0
    %v6154 = vmax.f32 %v6096, 0.0
    %v6155 = vmax.f32 %v6097, 0.0
    %v6156 = vmax.f32 %v6098, 0.0
    %v6157 = vmax.f32 %v6099, 0.0
    %v6158 = vmax.f32 %v6100, 0.0
    %v6159 = vmax.f32 %v6101, 0.0
    %v6160 = vmax.f32 %v6102, 0.0
    %v6161 = vmax.f32 %v6103, 0.0
    %v6162 = vmax.f32 %v6104, 0.0
    %v6163 = vmax.f32 %v6105, 0.0
    %v6164 = vmax.f32 %v6106, 0.0
    %v6165 = vmax.f32 %v6107, 0.0
    %v6166 = vmax.f32 %v6108, 0.0
    %v6167 = vmax.f32 %v6109, 0.0
    %v6168 = vmax.f32 %v6110, 0.0
    %v6169 = vmax.f32 %v6111, 0.0
    %v6170 = vmax.f32 %v6112, 0.0
    %v6171 = vmax.f32 %v6113, 0.0
    %v6172 = vmax.f32 %v6114, 0.0
    %v6173 = vmax.f32 %v6115, 0.0
    %v6174 = vmax.f32 %v6116, 0.0
    %v6175 = vmax.f32 %v6117, 0.0
    %v6176 = vmax.f32 %v6118, 0.0
    %v6177 = vmax.f32 %v6119, 0.0
    %v6178 = vmax.f32 %v6120, 0.0
    %v6179 = vmax.f32 %v6121, 0.0
    %v6180 = vmax.f32 %v6122, 0.0
    %v6181 = vmax.f32 %v6123, 0.0
    %v6182 = vmax.f32 %v6124, 0.0
    %v6183 = vmax.f32 %v6125, 0.0
    %v6184 = vmax.f32 %v6126, 0.0
    %v6185 = vmax.f32 %v6127, 0.0
    %v6186 = vmax.f32 %v6128, 0.0
    %v6187 = vmax.f32 %v6129, 0.0
    %v6188 = vmax.f32 %v6130, 0.0
    %v6189 = vmax.f32 %v6131, 0.0
    %v6190 = vmax.f32 %v6132, 0.0
    %v6191 = vmax.f32 %v6133, 0.0
    %v6192 = vmax.f32 %v6134, 0.0
    %v6193 = vmax.f32 %v6135, 0.0
    %v6194 = vmax.f32 %v6136, 0.0
    %v6195 = vmax.f32 %v6137, 0.0
    %v6196 = vmax.f32 %v6138, 0.0
    %v6197 = vmax.f32 %v6139, 0.0
    %v6198 = vmax.f32 %v6140, 0.0
    %v6199 = vmax.f32 %v6141, 0.0
    %v6200 = vmax.f32 %v6142, 0.0
    %v6201 = vmax.f32 %v6143, 0.0
    %v6202 = vmax.f32 %v6144, 0.0
    %s6203 = scalar_lea.vmem %s2, 48
    %v6204 = vld [vmem:[%s6203] sm:$0xf]
    %v6205 = vld [vmem:[%s6203 + $0x4] sm:$0xf]
    %v6206 = vld [vmem:[%s6203 + $0x8] sm:$0xf]
    %v6207 = vld [vmem:[%s6203 + $0xc] sm:$0xf]
    %v6208 = vld [vmem:[%s6203 + $0x10] sm:$0xf]
    %v6209 = vld [vmem:[%s6203 + $0x14] sm:$0xf]
    %v6210 = vld [vmem:[%s6203 + $0x18] sm:$0xf]
    %v6211 = vld [vmem:[%s6203 + $0x1c] sm:$0xf]
    %v6212 = vld [vmem:[%s6203 + $0x20] sm:$0xf]
    %v6213 = vld [vmem:[%s6203 + $0x24] sm:$0xf]
    %v6214 = vld [vmem:[%s6203 + $0x28] sm:$0xf]
    %v6215 = vld [vmem:[%s6203 + $0x2c] sm:$0xf]
    %s6216 = scalar_lea.vmem %s3, 2
    %v6217 = vld [vmem:[%s6216] sm:$0x1]
    %6272 = vrot.lane.b32.xlu0 %v6147, 32
    %v6273 = vpop.permute.xlu0 %6272
    %6274 = vrot.lane.b32.xlu0 %v6148, 32
    %v6275 = vpop.permute.xlu0 %6274
    %6276 = vrot.lane.b32.xlu0 %v6149, 32
    %v6277 = vpop.permute.xlu0 %6276
    %6278 = vrot.lane.b32.xlu0 %v6150, 32
    %v6279 = vpop.permute.xlu0 %6278
    %6280 = vrot.lane.b32.xlu0 %v6151, 32
    %v6281 = vpop.permute.xlu0 %6280
    %6282 = vrot.lane.b32.xlu0 %v6152, 32
    %v6283 = vpop.permute.xlu0 %6282
    %6284 = vrot.lane.b32.xlu0 %v6153, 32
    %v6285 = vpop.permute.xlu0 %6284
    %6286 = vrot.lane.b32.xlu0 %v6154, 32
    %v6287 = vpop.permute.xlu0 %6286
    %6288 = vrot.lane.b32.xlu0 %v6155, 32
    %v6289 = vpop.permute.xlu0 %6288
    %6290 = vrot.lane.b32.xlu0 %v6156, 32
    %v6291 = vpop.permute.xlu0 %6290
    %6292 = vrot.lane.b32.xlu0 %v6157, 32
    %v6293 = vpop.permute.xlu0 %6292
    %6294 = vrot.lane.b32.xlu0 %v6158, 32
    %v6295 = vpop.permute.xlu0 %6294
    %6296 = vrot.lane.b32.xlu0 %v6159, 32
    %v6297 = vpop.permute.xlu0 %6296
    %6298 = vrot.lane.b32.xlu0 %v6160, 32
    %v6299 = vpop.permute.xlu0 %6298
    %6300 = vrot.lane.b32.xlu0 %v6161, 32
    %v6301 = vpop.permute.xlu0 %6300
    %6302 = vrot.lane.b32.xlu0 %v6162, 32
    %v6303 = vpop.permute.xlu0 %6302
    %6304 = vrot.lane.b32.xlu0 %v6163, 32
    %v6305 = vpop.permute.xlu0 %6304
    %6306 = vrot.lane.b32.xlu0 %v6164, 32
    %v6307 = vpop.permute.xlu0 %6306
    %6308 = vrot.lane.b32.xlu0 %v6165, 32
    %v6309 = vpop.permute.xlu0 %6308
    %6310 = vrot.lane.b32.xlu0 %v6166, 32
    %v6311 = vpop.permute.xlu0 %6310
    %6312 = vrot.lane.b32.xlu0 %v6167, 32
    %v6313 = vpop.permute.xlu0 %6312
    %6314 = vrot.lane.b32.xlu0 %v6168, 32
    %v6315 = vpop.permute.xlu0 %6314
    %6316 = vrot.lane.b32.xlu0 %v6169, 32
    %v6317 = vpop.permute.xlu0 %6316
    %6318 = vrot.lane.b32.xlu0 %v6170, 32
    %v6319 = vpop.permute.xlu0 %6318
    %6320 = vrot.lane.b32.xlu0 %v6171, 32
    %v6321 = vpop.permute.xlu0 %6320
    %6322 = vrot.lane.b32.xlu0 %v6172, 32
    %v6323 = vpop.permute.xlu0 %6322
    %6324 = vrot.lane.b32.xlu0 %v6173, 32
    %v6325 = vpop.permute.xlu0 %6324
    %6326 = vrot.lane.b32.xlu0 %v6174, 32
    %v6327 = vpop.permute.xlu0 %6326
    %6328 = vrot.lane.b32.xlu0 %v6175, 32
    %v6329 = vpop.permute.xlu0 %6328
    %6330 = vrot.lane.b32.xlu0 %v6176, 32
    %v6331 = vpop.permute.xlu0 %6330
    %6332 = vrot.lane.b32.xlu0 %v6177, 32
    %v6333 = vpop.permute.xlu0 %6332
    %6334 = vrot.lane.b32.xlu0 %v6178, 32
    %v6335 = vpop.permute.xlu0 %6334
    %6336 = vrot.lane.b32.xlu0 %v6179, 32
    %v6337 = vpop.permute.xlu0 %6336
    %6338 = vrot.lane.b32.xlu0 %v6180, 32
    %v6339 = vpop.permute.xlu0 %6338
    %6340 = vrot.lane.b32.xlu0 %v6181, 32
    %v6341 = vpop.permute.xlu0 %6340
    %6342 = vrot.lane.b32.xlu0 %v6182, 32
    %v6343 = vpop.permute.xlu0 %6342
    %6344 = vrot.lane.b32.xlu0 %v6183, 32
    %v6345 = vpop.permute.xlu0 %6344
    %6346 = vrot.lane.b32.xlu0 %v6184, 32
    %v6347 = vpop.permute.xlu0 %6346
    %6348 = vrot.lane.b32.xlu0 %v6185, 32
    %v6349 = vpop.permute.xlu0 %6348
    %6350 = vrot.lane.b32.xlu0 %v6186, 32
    %v6351 = vpop.permute.xlu0 %6350
    %6352 = vrot.lane.b32.xlu0 %v6187, 32
    %v6353 = vpop.permute.xlu0 %6352
    %6354 = vrot.lane.b32.xlu0 %v6188, 32
    %v6355 = vpop.permute.xlu0 %6354
    %6356 = vrot.lane.b32.xlu0 %v6189, 32
    %v6357 = vpop.permute.xlu0 %6356
    %6358 = vrot.lane.b32.xlu0 %v6190, 32
    %v6359 = vpop.permute.xlu0 %6358
    %6360 = vrot.lane.b32.xlu0 %v6191, 32
    %v6361 = vpop.permute.xlu0 %6360
    %6362 = vrot.lane.b32.xlu0 %v6192, 32
    %v6363 = vpop.permute.xlu0 %6362
    %6364 = vrot.lane.b32.xlu0 %v6193, 32
    %v6365 = vpop.permute.xlu0 %6364
    %6366 = vrot.lane.b32.xlu0 %v6194, 32
    %v6367 = vpop.permute.xlu0 %6366
    %6368 = vrot.lane.b32.xlu0 %v6195, 32
    %v6369 = vpop.permute.xlu0 %6368
    %6370 = vrot.lane.b32.xlu0 %v6196, 32
    %v6371 = vpop.permute.xlu0 %6370
    %6372 = vrot.lane.b32.xlu0 %v6197, 32
    %v6373 = vpop.permute.xlu0 %6372
    %6374 = vrot.lane.b32.xlu0 %v6198, 32
    %v6375 = vpop.permute.xlu0 %6374
    %6376 = vrot.lane.b32.xlu0 %v6199, 32
    %v6377 = vpop.permute.xlu0 %6376
    %6378 = vrot.lane.b32.xlu0 %v6200, 32
    %v6379 = vpop.permute.xlu0 %6378
    %6436 = vrot.lane.b32.xlu0 %v6149, 64
    %v6437 = vpop.permute.xlu0 %6436
    %6438 = vrot.lane.b32.xlu0 %v6150, 64
    %v6439 = vpop.permute.xlu0 %6438
    %6440 = vrot.lane.b32.xlu0 %v6151, 64
    %v6441 = vpop.permute.xlu0 %6440
    %6442 = vrot.lane.b32.xlu0 %v6152, 64
    %v6443 = vpop.permute.xlu0 %6442
    %6444 = vrot.lane.b32.xlu0 %v6153, 64
    %v6445 = vpop.permute.xlu0 %6444
    %6446 = vrot.lane.b32.xlu0 %v6154, 64
    %v6447 = vpop.permute.xlu0 %6446
    %6448 = vrot.lane.b32.xlu0 %v6155, 64
    %v6449 = vpop.permute.xlu0 %6448
    %6450 = vrot.lane.b32.xlu0 %v6156, 64
    %v6451 = vpop.permute.xlu0 %6450
    %6452 = vrot.lane.b32.xlu0 %v6157, 64
    %v6453 = vpop.permute.xlu0 %6452
    %6454 = vrot.lane.b32.xlu0 %v6158, 64
    %v6455 = vpop.permute.xlu0 %6454
    %6456 = vrot.lane.b32.xlu0 %v6159, 64
    %v6457 = vpop.permute.xlu0 %6456
    %6458 = vrot.lane.b32.xlu0 %v6160, 64
    %v6459 = vpop.permute.xlu0 %6458
    %6460 = vrot.lane.b32.xlu0 %v6161, 64
    %v6461 = vpop.permute.xlu0 %6460
    %6462 = vrot.lane.b32.xlu0 %v6162, 64
    %v6463 = vpop.permute.xlu0 %6462
    %6464 = vrot.lane.b32.xlu0 %v6163, 64
    %v6465 = vpop.permute.xlu0 %6464
    %6466 = vrot.lane.b32.xlu0 %v6164, 64
    %v6467 = vpop.permute.xlu0 %6466
    %6468 = vrot.lane.b32.xlu0 %v6165, 64
    %v6469 = vpop.permute.xlu0 %6468
    %6470 = vrot.lane.b32.xlu0 %v6166, 64
    %v6471 = vpop.permute.xlu0 %6470
    %6472 = vrot.lane.b32.xlu0 %v6167, 64
    %v6473 = vpop.permute.xlu0 %6472
    %6474 = vrot.lane.b32.xlu0 %v6168, 64
    %v6475 = vpop.permute.xlu0 %6474
    %6476 = vrot.lane.b32.xlu0 %v6169, 64
    %v6477 = vpop.permute.xlu0 %6476
    %6478 = vrot.lane.b32.xlu0 %v6170, 64
    %v6479 = vpop.permute.xlu0 %6478
    %6480 = vrot.lane.b32.xlu0 %v6171, 64
    %v6481 = vpop.permute.xlu0 %6480
    %6482 = vrot.lane.b32.xlu0 %v6172, 64
    %v6483 = vpop.permute.xlu0 %6482
    %6484 = vrot.lane.b32.xlu0 %v6173, 64
    %v6485 = vpop.permute.xlu0 %6484
    %6486 = vrot.lane.b32.xlu0 %v6174, 64
    %v6487 = vpop.permute.xlu0 %6486
    %6488 = vrot.lane.b32.xlu0 %v6175, 64
    %v6489 = vpop.permute.xlu0 %6488
    %6490 = vrot.lane.b32.xlu0 %v6176, 64
    %v6491 = vpop.permute.xlu0 %6490
    %6492 = vrot.lane.b32.xlu0 %v6177, 64
    %v6493 = vpop.permute.xlu0 %6492
    %6494 = vrot.lane.b32.xlu0 %v6178, 64
    %v6495 = vpop.permute.xlu0 %6494
    %6496 = vrot.lane.b32.xlu0 %v6179, 64
    %v6497 = vpop.permute.xlu0 %6496
    %6498 = vrot.lane.b32.xlu0 %v6180, 64
    %v6499 = vpop.permute.xlu0 %6498
    %6500 = vrot.lane.b32.xlu0 %v6181, 64
    %v6501 = vpop.permute.xlu0 %6500
    %6502 = vrot.lane.b32.xlu0 %v6182, 64
    %v6503 = vpop.permute.xlu0 %6502
    %6504 = vrot.lane.b32.xlu0 %v6183, 64
    %v6505 = vpop.permute.xlu0 %6504
    %6506 = vrot.lane.b32.xlu0 %v6184, 64
    %v6507 = vpop.permute.xlu0 %6506
    %6508 = vrot.lane.b32.xlu0 %v6185, 64
    %v6509 = vpop.permute.xlu0 %6508
    %6510 = vrot.lane.b32.xlu0 %v6186, 64
    %v6511 = vpop.permute.xlu0 %6510
    %6512 = vrot.lane.b32.xlu0 %v6187, 64
    %v6513 = vpop.permute.xlu0 %6512
    %6514 = vrot.lane.b32.xlu0 %v6188, 64
    %v6515 = vpop.permute.xlu0 %6514
    %6516 = vrot.lane.b32.xlu0 %v6189, 64
    %v6517 = vpop.permute.xlu0 %6516
    %6518 = vrot.lane.b32.xlu0 %v6190, 64
    %v6519 = vpop.permute.xlu0 %6518
    %6520 = vrot.lane.b32.xlu0 %v6191, 64
    %v6521 = vpop.permute.xlu0 %6520
    %6522 = vrot.lane.b32.xlu0 %v6192, 64
    %v6523 = vpop.permute.xlu0 %6522
    %6524 = vrot.lane.b32.xlu0 %v6193, 64
    %v6525 = vpop.permute.xlu0 %6524
    %6526 = vrot.lane.b32.xlu0 %v6194, 64
    %v6527 = vpop.permute.xlu0 %6526
    %6528 = vrot.lane.b32.xlu0 %v6195, 64
    %v6529 = vpop.permute.xlu0 %6528
    %6530 = vrot.lane.b32.xlu0 %v6196, 64
    %v6531 = vpop.permute.xlu0 %6530
    %6532 = vrot.lane.b32.xlu0 %v6197, 64
    %v6533 = vpop.permute.xlu0 %6532
    %6534 = vrot.lane.b32.xlu0 %v6198, 64
    %v6535 = vpop.permute.xlu0 %6534
    %6536 = vrot.lane.b32.xlu0 %v6199, 64
    %v6537 = vpop.permute.xlu0 %6536
    %6538 = vrot.lane.b32.xlu0 %v6200, 64
    %v6539 = vpop.permute.xlu0 %6538
    %6540 = vrot.lane.b32.xlu0 %v6201, 64
    %v6541 = vpop.permute.xlu0 %6540
    %6542 = vrot.lane.b32.xlu0 %v6202, 64
    %v6543 = vpop.permute.xlu0 %6542
    %v6598 = vsel %vm5200, %v6145, %v6273
    %v6599 = vsel %vm5200, %v6146, %v6275
    %v6600 = vsel %vm5200, %v6147, %v6277
    %v6601 = vsel %vm5200, %v6148, %v6279
    %v6602 = vsel %vm5200, %v6149, %v6281
    %v6603 = vsel %vm5200, %v6150, %v6283
    %v6604 = vsel %vm5200, %v6151, %v6285
    %v6605 = vsel %vm5200, %v6152, %v6287
    %v6606 = vsel %vm5200, %v6153, %v6289
    %v6607 = vsel %vm5200, %v6154, %v6291
    %v6608 = vsel %vm5200, %v6155, %v6293
    %v6609 = vsel %vm5200, %v6156, %v6295
    %v6610 = vsel %vm5200, %v6157, %v6297
    %v6611 = vsel %vm5200, %v6158, %v6299
    %v6612 = vsel %vm5200, %v6159, %v6301
    %v6613 = vsel %vm5200, %v6160, %v6303
    %v6614 = vsel %vm5200, %v6161, %v6305
    %v6615 = vsel %vm5200, %v6162, %v6307
    %v6616 = vsel %vm5200, %v6163, %v6309
    %v6617 = vsel %vm5200, %v6164, %v6311
    %v6618 = vsel %vm5200, %v6165, %v6313
    %v6619 = vsel %vm5200, %v6166, %v6315
    %v6620 = vsel %vm5200, %v6167, %v6317
    %v6621 = vsel %vm5200, %v6168, %v6319
    %v6622 = vsel %vm5200, %v6169, %v6321
    %v6623 = vsel %vm5200, %v6170, %v6323
    %v6624 = vsel %vm5200, %v6171, %v6325
    %v6625 = vsel %vm5200, %v6172, %v6327
    %v6626 = vsel %vm5200, %v6173, %v6329
    %v6627 = vsel %vm5200, %v6174, %v6331
    %v6628 = vsel %vm5200, %v6175, %v6333
    %v6629 = vsel %vm5200, %v6176, %v6335
    %v6630 = vsel %vm5200, %v6177, %v6337
    %v6631 = vsel %vm5200, %v6178, %v6339
    %v6632 = vsel %vm5200, %v6179, %v6341
    %v6633 = vsel %vm5200, %v6180, %v6343
    %v6634 = vsel %vm5200, %v6181, %v6345
    %v6635 = vsel %vm5200, %v6182, %v6347
    %v6636 = vsel %vm5200, %v6183, %v6349
    %v6637 = vsel %vm5200, %v6184, %v6351
    %v6638 = vsel %vm5200, %v6185, %v6353
    %v6639 = vsel %vm5200, %v6186, %v6355
    %v6640 = vsel %vm5200, %v6187, %v6357
    %v6641 = vsel %vm5200, %v6188, %v6359
    %v6642 = vsel %vm5200, %v6189, %v6361
    %v6643 = vsel %vm5200, %v6190, %v6363
    %v6644 = vsel %vm5200, %v6191, %v6365
    %v6645 = vsel %vm5200, %v6192, %v6367
    %v6646 = vsel %vm5200, %v6193, %v6369
    %v6647 = vsel %vm5200, %v6194, %v6371
    %v6648 = vsel %vm5200, %v6195, %v6373
    %v6649 = vsel %vm5200, %v6196, %v6375
    %v6650 = vsel %vm5200, %v6197, %v6377
    %v6651 = vsel %vm5200, %v6198, %v6379
    %v6652 = vsel %vm5321, %v6598, %v6437
    %v6653 = vsel %vm5321, %v6599, %v6439
    %v6654 = vsel %vm5321, %v6600, %v6441
    %v6655 = vsel %vm5321, %v6601, %v6443
    %v6656 = vsel %vm5321, %v6602, %v6445
    %v6657 = vsel %vm5321, %v6603, %v6447
    %v6658 = vsel %vm5321, %v6604, %v6449
    %v6659 = vsel %vm5321, %v6605, %v6451
    %v6660 = vsel %vm5321, %v6606, %v6453
    %v6661 = vsel %vm5321, %v6607, %v6455
    %v6662 = vsel %vm5321, %v6608, %v6457
    %v6663 = vsel %vm5321, %v6609, %v6459
    %v6664 = vsel %vm5321, %v6610, %v6461
    %v6665 = vsel %vm5321, %v6611, %v6463
    %v6666 = vsel %vm5321, %v6612, %v6465
    %v6667 = vsel %vm5321, %v6613, %v6467
    %v6668 = vsel %vm5321, %v6614, %v6469
    %v6669 = vsel %vm5321, %v6615, %v6471
    %v6670 = vsel %vm5321, %v6616, %v6473
    %v6671 = vsel %vm5321, %v6617, %v6475
    %v6672 = vsel %vm5321, %v6618, %v6477
    %v6673 = vsel %vm5321, %v6619, %v6479
    %v6674 = vsel %vm5321, %v6620, %v6481
    %v6675 = vsel %vm5321, %v6621, %v6483
    %v6676 = vsel %vm5321, %v6622, %v6485
    %v6677 = vsel %vm5321, %v6623, %v6487
    %v6678 = vsel %vm5321, %v6624, %v6489
    %v6679 = vsel %vm5321, %v6625, %v6491
    %v6680 = vsel %vm5321, %v6626, %v6493
    %v6681 = vsel %vm5321, %v6627, %v6495
    %v6682 = vsel %vm5321, %v6628, %v6497
    %v6683 = vsel %vm5321, %v6629, %v6499
    %v6684 = vsel %vm5321, %v6630, %v6501
    %v6685 = vsel %vm5321, %v6631, %v6503
    %v6686 = vsel %vm5321, %v6632, %v6505
    %v6687 = vsel %vm5321, %v6633, %v6507
    %v6688 = vsel %vm5321, %v6634, %v6509
    %v6689 = vsel %vm5321, %v6635, %v6511
    %v6690 = vsel %vm5321, %v6636, %v6513
    %v6691 = vsel %vm5321, %v6637, %v6515
    %v6692 = vsel %vm5321, %v6638, %v6517
    %v6693 = vsel %vm5321, %v6639, %v6519
    %v6694 = vsel %vm5321, %v6640, %v6521
    %v6695 = vsel %vm5321, %v6641, %v6523
    %v6696 = vsel %vm5321, %v6642, %v6525
    %v6697 = vsel %vm5321, %v6643, %v6527
    %v6698 = vsel %vm5321, %v6644, %v6529
    %v6699 = vsel %vm5321, %v6645, %v6531
    %v6700 = vsel %vm5321, %v6646, %v6533
    %v6701 = vsel %vm5321, %v6647, %v6535
    %v6702 = vsel %vm5321, %v6648, %v6537
    %v6703 = vsel %vm5321, %v6649, %v6539
    %v6704 = vsel %vm5321, %v6650, %v6541
    %v6705 = vsel %vm5321, %v6651, %v6543
    %v6706 = vpack.c.bf16 %v6653, %v6652
    %v6707 = vpack.c.bf16 %v6655, %v6654
    %v6708 = vpack.c.bf16 %v6657, %v6656
    %v6709 = vpack.c.bf16 %v6659, %v6658
    %v6710 = vpack.c.bf16 %v6661, %v6660
    %v6711 = vpack.c.bf16 %v6663, %v6662
    %v6712 = vpack.c.bf16 %v6665, %v6664
    %v6713 = vpack.c.bf16 %v6667, %v6666
    %v6714 = vpack.c.bf16 %v6669, %v6668
    %v6715 = vpack.c.bf16 %v6671, %v6670
    %v6716 = vpack.c.bf16 %v6673, %v6672
    %v6717 = vpack.c.bf16 %v6675, %v6674
    %v6718 = vpack.c.bf16 %v6677, %v6676
    %v6719 = vpack.c.bf16 %v6679, %v6678
    %v6720 = vpack.c.bf16 %v6681, %v6680
    %v6721 = vpack.c.bf16 %v6683, %v6682
    %v6722 = vpack.c.bf16 %v6685, %v6684
    %v6723 = vpack.c.bf16 %v6687, %v6686
    %v6724 = vpack.c.bf16 %v6689, %v6688
    %v6725 = vpack.c.bf16 %v6691, %v6690
    %v6726 = vpack.c.bf16 %v6693, %v6692
    %v6727 = vpack.c.bf16 %v6695, %v6694
    %v6728 = vpack.c.bf16 %v6697, %v6696
    %v6729 = vpack.c.bf16 %v6699, %v6698
    %v6730 = vpack.c.bf16 %v6701, %v6700
    %v6731 = vpack.c.bf16 %v6703, %v6702
    %v6732 = vpack.c.bf16 %v6705, %v6704
    %v6734 = vperm.slane %v6217, 0
    %v6748 = vunpack.c.l.b16 %v6204
    %v6749 = vunpack.c.l.b16 %v6205
    %v6750 = vunpack.c.l.b16 %v6206
    %v6751 = vunpack.c.l.b16 %v6207
    %v6752 = vunpack.c.l.b16 %v6208
    %v6753 = vunpack.c.l.b16 %v6209
    %v6754 = vunpack.c.l.b16 %v6210
    %v6755 = vunpack.c.l.b16 %v6211
    %v6756 = vunpack.c.l.b16 %v6212
    %v6757 = vunpack.c.l.b16 %v6213
    %v6758 = vunpack.c.l.b16 %v6214
    %v6759 = vunpack.c.l.b16 %v6215
    %v6760 = vpack.c.b16 %v6749, %v6748
    %v6761 = vpack.c.b16 %v6751, %v6750
    %v6762 = vpack.c.b16 %v6753, %v6752
    %v6763 = vpack.c.b16 %v6755, %v6754
    %v6764 = vpack.c.b16 %v6757, %v6756
    %v6765 = vpack.c.b16 %v6759, %v6758
    %v6773 = vsel %vm5541, %v6706, 0
    %v6776 = vsel %vm5541, %v6707, 0
    %v6779 = vsel %vm5541, %v6708, 0
    %v6782 = vsel %vm5541, %v6709, 0
    %v6785 = vsel %vm5541, %v6710, 0
    %v6788 = vsel %vm5541, %v6711, 0
    %v6791 = vsel %vm5541, %v6712, 0
    %v6794 = vsel %vm5541, %v6713, 0
    %v6797 = vsel %vm5541, %v6714, 0
    %v6800 = vsel %vm5541, %v6715, 0
    %v6803 = vsel %vm5541, %v6716, 0
    %v6806 = vsel %vm5541, %v6717, 0
    %v6809 = vsel %vm5541, %v6718, 0
    %v6812 = vsel %vm5541, %v6719, 0
    %v6815 = vsel %vm5541, %v6720, 0
    %v6818 = vsel %vm5541, %v6721, 0
    %v6821 = vsel %vm5541, %v6722, 0
    %v6824 = vsel %vm5541, %v6723, 0
    %v6827 = vsel %vm5541, %v6724, 0
    %v6830 = vsel %vm5541, %v6725, 0
    %v6833 = vsel %vm5541, %v6726, 0
    %v6836 = vsel %vm5541, %v6727, 0
    %v6839 = vsel %vm5541, %v6728, 0
    %v6842 = vsel %vm5541, %v6729, 0
    %v6845 = vsel %vm5541, %v6730, 0
    %v6848 = vsel %vm5541, %v6731, 0
    %v6851 = vsel %vm5541, %v6732, 0
    %6853 = vmatpush.bf16.msra.mxu0 0
    %6854 = vmatpush.bf16.msra.mxu0 0
    %6855 = vmatpush.bf16.msra.mxu0 %v6765
    %6856 = vmatpush.bf16.msra.mxu0 %v6764
    %6857 = vmatpush.bf16.msra.mxu0 %v6763
    %6858 = vmatpush.bf16.msra.mxu0 %v6762
    %6859 = vmatpush.bf16.msra.mxu0 %v6761
    %6860 = vmatpush.bf16.msra.mxu0 %v6760
    %6861 = vmatmul.bf16.gmra.mxu0 %v6773
    %v6862 = vpop.f32.mrf.mxu0
    %v6863 = vadd.f32 %v6734, %v6862
    %v6864 = vpop.f32.mrf.mxu0
    %v6865 = vadd.f32 %v6734, %v6864
    %6866 = vmatmul.bf16.gmra.mxu0 %v6776
    %v6867 = vpop.f32.mrf.mxu0
    %v6868 = vadd.f32 %v6734, %v6867
    %v6869 = vpop.f32.mrf.mxu0
    %v6870 = vadd.f32 %v6734, %v6869
    %6871 = vmatmul.bf16.gmra.mxu0 %v6779
    %v6872 = vpop.f32.mrf.mxu0
    %v6873 = vadd.f32 %v6734, %v6872
    %v6874 = vpop.f32.mrf.mxu0
    %v6875 = vadd.f32 %v6734, %v6874
    %6876 = vmatmul.bf16.gmra.mxu0 %v6782
    %v6877 = vpop.f32.mrf.mxu0
    %v6878 = vadd.f32 %v6734, %v6877
    %v6879 = vpop.f32.mrf.mxu0
    %v6880 = vadd.f32 %v6734, %v6879
    %6881 = vmatmul.bf16.gmra.mxu0 %v6785
    %v6882 = vpop.f32.mrf.mxu0
    %v6883 = vadd.f32 %v6734, %v6882
    %v6884 = vpop.f32.mrf.mxu0
    %v6885 = vadd.f32 %v6734, %v6884
    %6886 = vmatmul.bf16.gmra.mxu0 %v6788
    %v6887 = vpop.f32.mrf.mxu0
    %v6888 = vadd.f32 %v6734, %v6887
    %v6889 = vpop.f32.mrf.mxu0
    %v6890 = vadd.f32 %v6734, %v6889
    %6891 = vmatmul.bf16.gmra.mxu0 %v6791
    %v6892 = vpop.f32.mrf.mxu0
    %v6893 = vadd.f32 %v6734, %v6892
    %v6894 = vpop.f32.mrf.mxu0
    %v6895 = vadd.f32 %v6734, %v6894
    %6896 = vmatmul.bf16.gmra.mxu0 %v6794
    %v6897 = vpop.f32.mrf.mxu0
    %v6898 = vadd.f32 %v6734, %v6897
    %v6899 = vpop.f32.mrf.mxu0
    %v6900 = vadd.f32 %v6734, %v6899
    %6901 = vmatmul.bf16.gmra.mxu0 %v6797
    %v6902 = vpop.f32.mrf.mxu0
    %v6903 = vadd.f32 %v6734, %v6902
    %v6904 = vpop.f32.mrf.mxu0
    %v6905 = vadd.f32 %v6734, %v6904
    %6906 = vmatmul.bf16.gmra.mxu0 %v6800
    %v6907 = vpop.f32.mrf.mxu0
    %v6908 = vadd.f32 %v6734, %v6907
    %v6909 = vpop.f32.mrf.mxu0
    %v6910 = vadd.f32 %v6734, %v6909
    %6911 = vmatmul.bf16.gmra.mxu0 %v6803
    %v6912 = vpop.f32.mrf.mxu0
    %v6913 = vadd.f32 %v6734, %v6912
    %v6914 = vpop.f32.mrf.mxu0
    %v6915 = vadd.f32 %v6734, %v6914
    %6916 = vmatmul.bf16.gmra.mxu0 %v6806
    %v6917 = vpop.f32.mrf.mxu0
    %v6918 = vadd.f32 %v6734, %v6917
    %v6919 = vpop.f32.mrf.mxu0
    %v6920 = vadd.f32 %v6734, %v6919
    %6921 = vmatmul.bf16.gmra.mxu0 %v6809
    %v6922 = vpop.f32.mrf.mxu0
    %v6923 = vadd.f32 %v6734, %v6922
    %v6924 = vpop.f32.mrf.mxu0
    %v6925 = vadd.f32 %v6734, %v6924
    %6926 = vmatmul.bf16.gmra.mxu0 %v6812
    %v6927 = vpop.f32.mrf.mxu0
    %v6928 = vadd.f32 %v6734, %v6927
    %v6929 = vpop.f32.mrf.mxu0
    %v6930 = vadd.f32 %v6734, %v6929
    %6931 = vmatmul.bf16.gmra.mxu0 %v6815
    %v6932 = vpop.f32.mrf.mxu0
    %v6933 = vadd.f32 %v6734, %v6932
    %v6934 = vpop.f32.mrf.mxu0
    %v6935 = vadd.f32 %v6734, %v6934
    %6936 = vmatmul.bf16.gmra.mxu0 %v6818
    %v6937 = vpop.f32.mrf.mxu0
    %v6938 = vadd.f32 %v6734, %v6937
    %v6939 = vpop.f32.mrf.mxu0
    %v6940 = vadd.f32 %v6734, %v6939
    %6941 = vmatmul.bf16.gmra.mxu0 %v6821
    %v6942 = vpop.f32.mrf.mxu0
    %v6943 = vadd.f32 %v6734, %v6942
    %v6944 = vpop.f32.mrf.mxu0
    %v6945 = vadd.f32 %v6734, %v6944
    %6946 = vmatmul.bf16.gmra.mxu0 %v6824
    %v6947 = vpop.f32.mrf.mxu0
    %v6948 = vadd.f32 %v6734, %v6947
    %v6949 = vpop.f32.mrf.mxu0
    %v6950 = vadd.f32 %v6734, %v6949
    %6951 = vmatmul.bf16.gmra.mxu0 %v6827
    %v6952 = vpop.f32.mrf.mxu0
    %v6953 = vadd.f32 %v6734, %v6952
    %v6954 = vpop.f32.mrf.mxu0
    %v6955 = vadd.f32 %v6734, %v6954
    %6956 = vmatmul.bf16.gmra.mxu0 %v6830
    %v6957 = vpop.f32.mrf.mxu0
    %v6958 = vadd.f32 %v6734, %v6957
    %v6959 = vpop.f32.mrf.mxu0
    %v6960 = vadd.f32 %v6734, %v6959
    %6961 = vmatmul.bf16.gmra.mxu0 %v6833
    %v6962 = vpop.f32.mrf.mxu0
    %v6963 = vadd.f32 %v6734, %v6962
    %v6964 = vpop.f32.mrf.mxu0
    %v6965 = vadd.f32 %v6734, %v6964
    %6966 = vmatmul.bf16.gmra.mxu0 %v6836
    %v6967 = vpop.f32.mrf.mxu0
    %v6968 = vadd.f32 %v6734, %v6967
    %v6969 = vpop.f32.mrf.mxu0
    %v6970 = vadd.f32 %v6734, %v6969
    %6971 = vmatmul.bf16.gmra.mxu0 %v6839
    %v6972 = vpop.f32.mrf.mxu0
    %v6973 = vadd.f32 %v6734, %v6972
    %v6974 = vpop.f32.mrf.mxu0
    %v6975 = vadd.f32 %v6734, %v6974
    %6976 = vmatmul.bf16.gmra.mxu0 %v6842
    %v6977 = vpop.f32.mrf.mxu0
    %v6978 = vadd.f32 %v6734, %v6977
    %v6979 = vpop.f32.mrf.mxu0
    %v6980 = vadd.f32 %v6734, %v6979
    %6981 = vmatmul.bf16.gmra.mxu0 %v6845
    %v6982 = vpop.f32.mrf.mxu0
    %v6983 = vadd.f32 %v6734, %v6982
    %v6984 = vpop.f32.mrf.mxu0
    %v6985 = vadd.f32 %v6734, %v6984
    %6986 = vmatmul.bf16.gmra.mxu0 %v6848
    %v6987 = vpop.f32.mrf.mxu0
    %v6988 = vadd.f32 %v6734, %v6987
    %v6989 = vpop.f32.mrf.mxu0
    %v6990 = vadd.f32 %v6734, %v6989
    %6991 = vmatmul.bf16.gmra.mxu0 %v6851
    %v6992 = vpop.f32.mrf.mxu0
    %v6993 = vadd.f32 %v6734, %v6992
    %v6994 = vpop.f32.mrf.mxu0
    %v6995 = vadd.f32 %v6734, %v6994
    %6996 = vdwg.mxu0
    %v6997 = vmax.f32 %v6863, %v6868
    %v6998 = vmax.f32 %v6865, %v6870
    %v6999 = vmax.f32 %v6873, %v6878
    %v7000 = vmax.f32 %v6875, %v6880
    %v7001 = vmax.f32 %v6883, %v6888
    %v7002 = vmax.f32 %v6885, %v6890
    %v7003 = vmax.f32 %v6893, %v6898
    %v7004 = vmax.f32 %v6895, %v6900
    %v7005 = vmax.f32 %v6903, %v6908
    %v7006 = vmax.f32 %v6905, %v6910
    %v7007 = vmax.f32 %v6913, %v6918
    %v7008 = vmax.f32 %v6915, %v6920
    %v7009 = vmax.f32 %v6923, %v6928
    %v7010 = vmax.f32 %v6925, %v6930
    %v7011 = vmax.f32 %v6933, %v6938
    %v7012 = vmax.f32 %v6935, %v6940
    %v7013 = vmax.f32 %v6943, %v6948
    %v7014 = vmax.f32 %v6945, %v6950
    %v7015 = vmax.f32 %v6953, %v6958
    %v7016 = vmax.f32 %v6955, %v6960
    %v7017 = vmax.f32 %v6963, %v6968
    %v7018 = vmax.f32 %v6965, %v6970
    %v7019 = vmax.f32 %v6973, %v6978
    %v7020 = vmax.f32 %v6975, %v6980
    %v7021 = vmax.f32 %v6983, %v6988
    %v7022 = vmax.f32 %v6985, %v6990
    %v7023 = vmax.f32 %v6997, %v6873
    %v7024 = vmax.f32 %v6998, %v6875
    %v7025 = vmax.f32 %v6999, %v6883
    %v7026 = vmax.f32 %v7000, %v6885
    %v7027 = vmax.f32 %v7001, %v6893
    %v7028 = vmax.f32 %v7002, %v6895
    %v7029 = vmax.f32 %v7003, %v6903
    %v7030 = vmax.f32 %v7004, %v6905
    %v7031 = vmax.f32 %v7005, %v6913
    %v7032 = vmax.f32 %v7006, %v6915
    %v7033 = vmax.f32 %v7007, %v6923
    %v7034 = vmax.f32 %v7008, %v6925
    %v7035 = vmax.f32 %v7009, %v6933
    %v7036 = vmax.f32 %v7010, %v6935
    %v7037 = vmax.f32 %v7011, %v6943
    %v7038 = vmax.f32 %v7012, %v6945
    %v7039 = vmax.f32 %v7013, %v6953
    %v7040 = vmax.f32 %v7014, %v6955
    %v7041 = vmax.f32 %v7015, %v6963
    %v7042 = vmax.f32 %v7016, %v6965
    %v7043 = vmax.f32 %v7017, %v6973
    %v7044 = vmax.f32 %v7018, %v6975
    %v7045 = vmax.f32 %v7019, %v6983
    %v7046 = vmax.f32 %v7020, %v6985
    %v7047 = vmax.f32 %v7021, %v6993
    %v7048 = vmax.f32 %v7022, %v6995
    %v7049 = vmax.f32 %v7023, 0.0
    %v7050 = vmax.f32 %v7024, 0.0
    %v7051 = vmax.f32 %v7025, 0.0
    %v7052 = vmax.f32 %v7026, 0.0
    %v7053 = vmax.f32 %v7027, 0.0
    %v7054 = vmax.f32 %v7028, 0.0
    %v7055 = vmax.f32 %v7029, 0.0
    %v7056 = vmax.f32 %v7030, 0.0
    %v7057 = vmax.f32 %v7031, 0.0
    %v7058 = vmax.f32 %v7032, 0.0
    %v7059 = vmax.f32 %v7033, 0.0
    %v7060 = vmax.f32 %v7034, 0.0
    %v7061 = vmax.f32 %v7035, 0.0
    %v7062 = vmax.f32 %v7036, 0.0
    %v7063 = vmax.f32 %v7037, 0.0
    %v7064 = vmax.f32 %v7038, 0.0
    %v7065 = vmax.f32 %v7039, 0.0
    %v7066 = vmax.f32 %v7040, 0.0
    %v7067 = vmax.f32 %v7041, 0.0
    %v7068 = vmax.f32 %v7042, 0.0
    %v7069 = vmax.f32 %v7043, 0.0
    %v7070 = vmax.f32 %v7044, 0.0
    %v7071 = vmax.f32 %v7045, 0.0
    %v7072 = vmax.f32 %v7046, 0.0
    %v7073 = vmax.f32 %v7047, 0.0
    %v7074 = vmax.f32 %v7048, 0.0
    %s7075 = scalar_lea.vmem %s2, 96
    %v7076 = vld [vmem:[%s7075] sm:$0xf]
    %v7077 = vld [vmem:[%s7075 + $0x4] sm:$0xf]
    %v7078 = vld [vmem:[%s7075 + $0x8] sm:$0xf]
    %v7079 = vld [vmem:[%s7075 + $0xc] sm:$0xf]
    %v7080 = vld [vmem:[%s7075 + $0x10] sm:$0xf]
    %v7081 = vld [vmem:[%s7075 + $0x14] sm:$0xf]
    %v7082 = vld [vmem:[%s7075 + $0x18] sm:$0xf]
    %v7083 = vld [vmem:[%s7075 + $0x1c] sm:$0xf]
    %v7084 = vld [vmem:[%s7075 + $0x20] sm:$0xf]
    %v7085 = vld [vmem:[%s7075 + $0x24] sm:$0xf]
    %v7086 = vld [vmem:[%s7075 + $0x28] sm:$0xf]
    %v7087 = vld [vmem:[%s7075 + $0x2c] sm:$0xf]
    %s7088 = scalar_lea.vmem %s3, 3
    %v7089 = vld [vmem:[%s7088] sm:$0x1]
    %7112 = vrot.lane.b32.xlu0 %v7051, 32
    %v7113 = vpop.permute.xlu0 %7112
    %7114 = vrot.lane.b32.xlu0 %v7052, 32
    %v7115 = vpop.permute.xlu0 %7114
    %7116 = vrot.lane.b32.xlu0 %v7053, 32
    %v7117 = vpop.permute.xlu0 %7116
    %7118 = vrot.lane.b32.xlu0 %v7054, 32
    %v7119 = vpop.permute.xlu0 %7118
    %7120 = vrot.lane.b32.xlu0 %v7055, 32
    %v7121 = vpop.permute.xlu0 %7120
    %7122 = vrot.lane.b32.xlu0 %v7056, 32
    %v7123 = vpop.permute.xlu0 %7122
    %7124 = vrot.lane.b32.xlu0 %v7057, 32
    %v7125 = vpop.permute.xlu0 %7124
    %7126 = vrot.lane.b32.xlu0 %v7058, 32
    %v7127 = vpop.permute.xlu0 %7126
    %7128 = vrot.lane.b32.xlu0 %v7059, 32
    %v7129 = vpop.permute.xlu0 %7128
    %7130 = vrot.lane.b32.xlu0 %v7060, 32
    %v7131 = vpop.permute.xlu0 %7130
    %7132 = vrot.lane.b32.xlu0 %v7061, 32
    %v7133 = vpop.permute.xlu0 %7132
    %7134 = vrot.lane.b32.xlu0 %v7062, 32
    %v7135 = vpop.permute.xlu0 %7134
    %7136 = vrot.lane.b32.xlu0 %v7063, 32
    %v7137 = vpop.permute.xlu0 %7136
    %7138 = vrot.lane.b32.xlu0 %v7064, 32
    %v7139 = vpop.permute.xlu0 %7138
    %7140 = vrot.lane.b32.xlu0 %v7065, 32
    %v7141 = vpop.permute.xlu0 %7140
    %7142 = vrot.lane.b32.xlu0 %v7066, 32
    %v7143 = vpop.permute.xlu0 %7142
    %7144 = vrot.lane.b32.xlu0 %v7067, 32
    %v7145 = vpop.permute.xlu0 %7144
    %7146 = vrot.lane.b32.xlu0 %v7068, 32
    %v7147 = vpop.permute.xlu0 %7146
    %7148 = vrot.lane.b32.xlu0 %v7069, 32
    %v7149 = vpop.permute.xlu0 %7148
    %7150 = vrot.lane.b32.xlu0 %v7070, 32
    %v7151 = vpop.permute.xlu0 %7150
    %7152 = vrot.lane.b32.xlu0 %v7071, 32
    %v7153 = vpop.permute.xlu0 %7152
    %7154 = vrot.lane.b32.xlu0 %v7072, 32
    %v7155 = vpop.permute.xlu0 %7154
    %7180 = vrot.lane.b32.xlu0 %v7053, 64
    %v7181 = vpop.permute.xlu0 %7180
    %7182 = vrot.lane.b32.xlu0 %v7054, 64
    %v7183 = vpop.permute.xlu0 %7182
    %7184 = vrot.lane.b32.xlu0 %v7055, 64
    %v7185 = vpop.permute.xlu0 %7184
    %7186 = vrot.lane.b32.xlu0 %v7056, 64
    %v7187 = vpop.permute.xlu0 %7186
    %7188 = vrot.lane.b32.xlu0 %v7057, 64
    %v7189 = vpop.permute.xlu0 %7188
    %7190 = vrot.lane.b32.xlu0 %v7058, 64
    %v7191 = vpop.permute.xlu0 %7190
    %7192 = vrot.lane.b32.xlu0 %v7059, 64
    %v7193 = vpop.permute.xlu0 %7192
    %7194 = vrot.lane.b32.xlu0 %v7060, 64
    %v7195 = vpop.permute.xlu0 %7194
    %7196 = vrot.lane.b32.xlu0 %v7061, 64
    %v7197 = vpop.permute.xlu0 %7196
    %7198 = vrot.lane.b32.xlu0 %v7062, 64
    %v7199 = vpop.permute.xlu0 %7198
    %7200 = vrot.lane.b32.xlu0 %v7063, 64
    %v7201 = vpop.permute.xlu0 %7200
    %7202 = vrot.lane.b32.xlu0 %v7064, 64
    %v7203 = vpop.permute.xlu0 %7202
    %7204 = vrot.lane.b32.xlu0 %v7065, 64
    %v7205 = vpop.permute.xlu0 %7204
    %7206 = vrot.lane.b32.xlu0 %v7066, 64
    %v7207 = vpop.permute.xlu0 %7206
    %7208 = vrot.lane.b32.xlu0 %v7067, 64
    %v7209 = vpop.permute.xlu0 %7208
    %7210 = vrot.lane.b32.xlu0 %v7068, 64
    %v7211 = vpop.permute.xlu0 %7210
    %7212 = vrot.lane.b32.xlu0 %v7069, 64
    %v7213 = vpop.permute.xlu0 %7212
    %7214 = vrot.lane.b32.xlu0 %v7070, 64
    %v7215 = vpop.permute.xlu0 %7214
    %7216 = vrot.lane.b32.xlu0 %v7071, 64
    %v7217 = vpop.permute.xlu0 %7216
    %7218 = vrot.lane.b32.xlu0 %v7072, 64
    %v7219 = vpop.permute.xlu0 %7218
    %7220 = vrot.lane.b32.xlu0 %v7073, 64
    %v7221 = vpop.permute.xlu0 %7220
    %7222 = vrot.lane.b32.xlu0 %v7074, 64
    %v7223 = vpop.permute.xlu0 %7222
    %v7246 = vsel %vm5200, %v7049, %v7113
    %v7247 = vsel %vm5200, %v7050, %v7115
    %v7248 = vsel %vm5200, %v7051, %v7117
    %v7249 = vsel %vm5200, %v7052, %v7119
    %v7250 = vsel %vm5200, %v7053, %v7121
    %v7251 = vsel %vm5200, %v7054, %v7123
    %v7252 = vsel %vm5200, %v7055, %v7125
    %v7253 = vsel %vm5200, %v7056, %v7127
    %v7254 = vsel %vm5200, %v7057, %v7129
    %v7255 = vsel %vm5200, %v7058, %v7131
    %v7256 = vsel %vm5200, %v7059, %v7133
    %v7257 = vsel %vm5200, %v7060, %v7135
    %v7258 = vsel %vm5200, %v7061, %v7137
    %v7259 = vsel %vm5200, %v7062, %v7139
    %v7260 = vsel %vm5200, %v7063, %v7141
    %v7261 = vsel %vm5200, %v7064, %v7143
    %v7262 = vsel %vm5200, %v7065, %v7145
    %v7263 = vsel %vm5200, %v7066, %v7147
    %v7264 = vsel %vm5200, %v7067, %v7149
    %v7265 = vsel %vm5200, %v7068, %v7151
    %v7266 = vsel %vm5200, %v7069, %v7153
    %v7267 = vsel %vm5200, %v7070, %v7155
    %v7268 = vsel %vm5321, %v7246, %v7181
    %v7269 = vsel %vm5321, %v7247, %v7183
    %v7270 = vsel %vm5321, %v7248, %v7185
    %v7271 = vsel %vm5321, %v7249, %v7187
    %v7272 = vsel %vm5321, %v7250, %v7189
    %v7273 = vsel %vm5321, %v7251, %v7191
    %v7274 = vsel %vm5321, %v7252, %v7193
    %v7275 = vsel %vm5321, %v7253, %v7195
    %v7276 = vsel %vm5321, %v7254, %v7197
    %v7277 = vsel %vm5321, %v7255, %v7199
    %v7278 = vsel %vm5321, %v7256, %v7201
    %v7279 = vsel %vm5321, %v7257, %v7203
    %v7280 = vsel %vm5321, %v7258, %v7205
    %v7281 = vsel %vm5321, %v7259, %v7207
    %v7282 = vsel %vm5321, %v7260, %v7209
    %v7283 = vsel %vm5321, %v7261, %v7211
    %v7284 = vsel %vm5321, %v7262, %v7213
    %v7285 = vsel %vm5321, %v7263, %v7215
    %v7286 = vsel %vm5321, %v7264, %v7217
    %v7287 = vsel %vm5321, %v7265, %v7219
    %v7288 = vsel %vm5321, %v7266, %v7221
    %v7289 = vsel %vm5321, %v7267, %v7223
    %v7290 = vpack.c.bf16 %v7269, %v7268
    %v7291 = vpack.c.bf16 %v7271, %v7270
    %v7292 = vpack.c.bf16 %v7273, %v7272
    %v7293 = vpack.c.bf16 %v7275, %v7274
    %v7294 = vpack.c.bf16 %v7277, %v7276
    %v7295 = vpack.c.bf16 %v7279, %v7278
    %v7296 = vpack.c.bf16 %v7281, %v7280
    %v7297 = vpack.c.bf16 %v7283, %v7282
    %v7298 = vpack.c.bf16 %v7285, %v7284
    %v7299 = vpack.c.bf16 %v7287, %v7286
    %v7300 = vpack.c.bf16 %v7289, %v7288
    %v7302 = vperm.slane %v7089, 0
    %v7316 = vunpack.c.l.b16 %v7076
    %v7317 = vunpack.c.l.b16 %v7077
    %v7318 = vunpack.c.l.b16 %v7078
    %v7319 = vunpack.c.l.b16 %v7079
    %v7320 = vunpack.c.l.b16 %v7080
    %v7321 = vunpack.c.l.b16 %v7081
    %v7322 = vunpack.c.l.b16 %v7082
    %v7323 = vunpack.c.l.b16 %v7083
    %v7324 = vunpack.c.l.b16 %v7084
    %v7325 = vunpack.c.l.b16 %v7085
    %v7326 = vunpack.c.l.b16 %v7086
    %v7327 = vunpack.c.l.b16 %v7087
    %v7328 = vpack.c.b16 %v7317, %v7316
    %v7329 = vpack.c.b16 %v7319, %v7318
    %v7330 = vpack.c.b16 %v7321, %v7320
    %v7331 = vpack.c.b16 %v7323, %v7322
    %v7332 = vpack.c.b16 %v7325, %v7324
    %v7333 = vpack.c.b16 %v7327, %v7326
    %v7341 = vsel %vm5541, %v7290, 0
    %v7344 = vsel %vm5541, %v7291, 0
    %v7347 = vsel %vm5541, %v7292, 0
    %v7350 = vsel %vm5541, %v7293, 0
    %v7353 = vsel %vm5541, %v7294, 0
    %v7356 = vsel %vm5541, %v7295, 0
    %v7359 = vsel %vm5541, %v7296, 0
    %v7362 = vsel %vm5541, %v7297, 0
    %v7365 = vsel %vm5541, %v7298, 0
    %v7368 = vsel %vm5541, %v7299, 0
    %v7371 = vsel %vm5541, %v7300, 0
    %7373 = vmatpush.bf16.msra.mxu0 0
    %7374 = vmatpush.bf16.msra.mxu0 0
    %7375 = vmatpush.bf16.msra.mxu0 %v7333
    %7376 = vmatpush.bf16.msra.mxu0 %v7332
    %7377 = vmatpush.bf16.msra.mxu0 %v7331
    %7378 = vmatpush.bf16.msra.mxu0 %v7330
    %7379 = vmatpush.bf16.msra.mxu0 %v7329
    %7380 = vmatpush.bf16.msra.mxu0 %v7328
    %7381 = vmatmul.bf16.gmra.mxu0 %v7341
    %v7382 = vpop.f32.mrf.mxu0
    %v7383 = vadd.f32 %v7302, %v7382
    %v7384 = vpop.f32.mrf.mxu0
    %v7385 = vadd.f32 %v7302, %v7384
    %7386 = vmatmul.bf16.gmra.mxu0 %v7344
    %v7387 = vpop.f32.mrf.mxu0
    %v7388 = vadd.f32 %v7302, %v7387
    %v7389 = vpop.f32.mrf.mxu0
    %v7390 = vadd.f32 %v7302, %v7389
    %7391 = vmatmul.bf16.gmra.mxu0 %v7347
    %v7392 = vpop.f32.mrf.mxu0
    %v7393 = vadd.f32 %v7302, %v7392
    %v7394 = vpop.f32.mrf.mxu0
    %v7395 = vadd.f32 %v7302, %v7394
    %7396 = vmatmul.bf16.gmra.mxu0 %v7350
    %v7397 = vpop.f32.mrf.mxu0
    %v7398 = vadd.f32 %v7302, %v7397
    %v7399 = vpop.f32.mrf.mxu0
    %v7400 = vadd.f32 %v7302, %v7399
    %7401 = vmatmul.bf16.gmra.mxu0 %v7353
    %v7402 = vpop.f32.mrf.mxu0
    %v7403 = vadd.f32 %v7302, %v7402
    %v7404 = vpop.f32.mrf.mxu0
    %v7405 = vadd.f32 %v7302, %v7404
    %7406 = vmatmul.bf16.gmra.mxu0 %v7356
    %v7407 = vpop.f32.mrf.mxu0
    %v7408 = vadd.f32 %v7302, %v7407
    %v7409 = vpop.f32.mrf.mxu0
    %v7410 = vadd.f32 %v7302, %v7409
    %7411 = vmatmul.bf16.gmra.mxu0 %v7359
    %v7412 = vpop.f32.mrf.mxu0
    %v7413 = vadd.f32 %v7302, %v7412
    %v7414 = vpop.f32.mrf.mxu0
    %v7415 = vadd.f32 %v7302, %v7414
    %7416 = vmatmul.bf16.gmra.mxu0 %v7362
    %v7417 = vpop.f32.mrf.mxu0
    %v7418 = vadd.f32 %v7302, %v7417
    %v7419 = vpop.f32.mrf.mxu0
    %v7420 = vadd.f32 %v7302, %v7419
    %7421 = vmatmul.bf16.gmra.mxu0 %v7365
    %v7422 = vpop.f32.mrf.mxu0
    %v7423 = vadd.f32 %v7302, %v7422
    %v7424 = vpop.f32.mrf.mxu0
    %v7425 = vadd.f32 %v7302, %v7424
    %7426 = vmatmul.bf16.gmra.mxu0 %v7368
    %v7427 = vpop.f32.mrf.mxu0
    %v7428 = vadd.f32 %v7302, %v7427
    %v7429 = vpop.f32.mrf.mxu0
    %v7430 = vadd.f32 %v7302, %v7429
    %7431 = vmatmul.bf16.gmra.mxu0 %v7371
    %v7432 = vpop.f32.mrf.mxu0
    %v7433 = vadd.f32 %v7302, %v7432
    %v7434 = vpop.f32.mrf.mxu0
    %v7435 = vadd.f32 %v7302, %v7434
    %7436 = vdwg.mxu0
    %v7437 = vmax.f32 %v7383, %v7388
    %v7438 = vmax.f32 %v7385, %v7390
    %v7439 = vmax.f32 %v7393, %v7398
    %v7440 = vmax.f32 %v7395, %v7400
    %v7441 = vmax.f32 %v7403, %v7408
    %v7442 = vmax.f32 %v7405, %v7410
    %v7443 = vmax.f32 %v7413, %v7418
    %v7444 = vmax.f32 %v7415, %v7420
    %v7445 = vmax.f32 %v7423, %v7428
    %v7446 = vmax.f32 %v7425, %v7430
    %v7447 = vmax.f32 %v7437, %v7393
    %v7448 = vmax.f32 %v7438, %v7395
    %v7449 = vmax.f32 %v7439, %v7403
    %v7450 = vmax.f32 %v7440, %v7405
    %v7451 = vmax.f32 %v7441, %v7413
    %v7452 = vmax.f32 %v7442, %v7415
    %v7453 = vmax.f32 %v7443, %v7423
    %v7454 = vmax.f32 %v7444, %v7425
    %v7455 = vmax.f32 %v7445, %v7433
    %v7456 = vmax.f32 %v7446, %v7435
    %v7457 = vmax.f32 %v7447, 0.0
    %v7458 = vmax.f32 %v7448, 0.0
    %v7459 = vmax.f32 %v7449, 0.0
    %v7460 = vmax.f32 %v7450, 0.0
    %v7461 = vmax.f32 %v7451, 0.0
    %v7462 = vmax.f32 %v7452, 0.0
    %v7463 = vmax.f32 %v7453, 0.0
    %v7464 = vmax.f32 %v7454, 0.0
    %v7465 = vmax.f32 %v7455, 0.0
    %v7466 = vmax.f32 %v7456, 0.0
    %s7467 = scalar_lea.vmem %s2, 144
    %v7468 = vld [vmem:[%s7467] sm:$0xf]
    %v7469 = vld [vmem:[%s7467 + $0x4] sm:$0xf]
    %v7470 = vld [vmem:[%s7467 + $0x8] sm:$0xf]
    %v7471 = vld [vmem:[%s7467 + $0xc] sm:$0xf]
    %v7472 = vld [vmem:[%s7467 + $0x10] sm:$0xf]
    %v7473 = vld [vmem:[%s7467 + $0x14] sm:$0xf]
    %v7474 = vld [vmem:[%s7467 + $0x18] sm:$0xf]
    %v7475 = vld [vmem:[%s7467 + $0x1c] sm:$0xf]
    %v7476 = vld [vmem:[%s7467 + $0x20] sm:$0xf]
    %v7477 = vld [vmem:[%s7467 + $0x24] sm:$0xf]
    %v7478 = vld [vmem:[%s7467 + $0x28] sm:$0xf]
    %v7479 = vld [vmem:[%s7467 + $0x2c] sm:$0xf]
    %s7480 = scalar_lea.vmem %s3, 4
    %v7481 = vld [vmem:[%s7480] sm:$0x1]
    %7488 = vrot.lane.b32.xlu0 %v7459, 32
    %v7489 = vpop.permute.xlu0 %7488
    %7490 = vrot.lane.b32.xlu0 %v7460, 32
    %v7491 = vpop.permute.xlu0 %7490
    %7492 = vrot.lane.b32.xlu0 %v7461, 32
    %v7493 = vpop.permute.xlu0 %7492
    %7494 = vrot.lane.b32.xlu0 %v7462, 32
    %v7495 = vpop.permute.xlu0 %7494
    %7496 = vrot.lane.b32.xlu0 %v7463, 32
    %v7497 = vpop.permute.xlu0 %7496
    %7498 = vrot.lane.b32.xlu0 %v7464, 32
    %v7499 = vpop.permute.xlu0 %7498
    %7508 = vrot.lane.b32.xlu0 %v7461, 64
    %v7509 = vpop.permute.xlu0 %7508
    %7510 = vrot.lane.b32.xlu0 %v7462, 64
    %v7511 = vpop.permute.xlu0 %7510
    %7512 = vrot.lane.b32.xlu0 %v7463, 64
    %v7513 = vpop.permute.xlu0 %7512
    %7514 = vrot.lane.b32.xlu0 %v7464, 64
    %v7515 = vpop.permute.xlu0 %7514
    %7516 = vrot.lane.b32.xlu0 %v7465, 64
    %v7517 = vpop.permute.xlu0 %7516
    %7518 = vrot.lane.b32.xlu0 %v7466, 64
    %v7519 = vpop.permute.xlu0 %7518
    %v7526 = vsel %vm5200, %v7457, %v7489
    %v7527 = vsel %vm5200, %v7458, %v7491
    %v7528 = vsel %vm5200, %v7459, %v7493
    %v7529 = vsel %vm5200, %v7460, %v7495
    %v7530 = vsel %vm5200, %v7461, %v7497
    %v7531 = vsel %vm5200, %v7462, %v7499
    %v7532 = vsel %vm5321, %v7526, %v7509
    %v7533 = vsel %vm5321, %v7527, %v7511
    %v7534 = vsel %vm5321, %v7528, %v7513
    %v7535 = vsel %vm5321, %v7529, %v7515
    %v7536 = vsel %vm5321, %v7530, %v7517
    %v7537 = vsel %vm5321, %v7531, %v7519
    %v7538 = vpack.c.bf16 %v7533, %v7532
    %v7539 = vpack.c.bf16 %v7535, %v7534
    %v7540 = vpack.c.bf16 %v7537, %v7536
    %v7542 = vperm.slane %v7481, 0
    %v7556 = vunpack.c.l.b16 %v7468
    %v7557 = vunpack.c.l.b16 %v7469
    %v7558 = vunpack.c.l.b16 %v7470
    %v7559 = vunpack.c.l.b16 %v7471
    %v7560 = vunpack.c.l.b16 %v7472
    %v7561 = vunpack.c.l.b16 %v7473
    %v7562 = vunpack.c.l.b16 %v7474
    %v7563 = vunpack.c.l.b16 %v7475
    %v7564 = vunpack.c.l.b16 %v7476
    %v7565 = vunpack.c.l.b16 %v7477
    %v7566 = vunpack.c.l.b16 %v7478
    %v7567 = vunpack.c.l.b16 %v7479
    %v7568 = vpack.c.b16 %v7557, %v7556
    %v7569 = vpack.c.b16 %v7559, %v7558
    %v7570 = vpack.c.b16 %v7561, %v7560
    %v7571 = vpack.c.b16 %v7563, %v7562
    %v7572 = vpack.c.b16 %v7565, %v7564
    %v7573 = vpack.c.b16 %v7567, %v7566
    %v7581 = vsel %vm5541, %v7538, 0
    %v7584 = vsel %vm5541, %v7539, 0
    %v7587 = vsel %vm5541, %v7540, 0
    %7589 = vmatpush.bf16.msra.mxu0 0
    %7590 = vmatpush.bf16.msra.mxu0 0
    %7591 = vmatpush.bf16.msra.mxu0 %v7573
    %7592 = vmatpush.bf16.msra.mxu0 %v7572
    %7593 = vmatpush.bf16.msra.mxu0 %v7571
    %7594 = vmatpush.bf16.msra.mxu0 %v7570
    %7595 = vmatpush.bf16.msra.mxu0 %v7569
    %7596 = vmatpush.bf16.msra.mxu0 %v7568
    %7597 = vmatmul.bf16.gmra.mxu0 %v7581
    %v7598 = vpop.f32.mrf.mxu0
    %v7599 = vadd.f32 %v7542, %v7598
    %v7600 = vpop.f32.mrf.mxu0
    %v7601 = vadd.f32 %v7542, %v7600
    %7602 = vmatmul.bf16.gmra.mxu0 %v7584
    %v7603 = vpop.f32.mrf.mxu0
    %v7604 = vadd.f32 %v7542, %v7603
    %v7605 = vpop.f32.mrf.mxu0
    %v7606 = vadd.f32 %v7542, %v7605
    %7607 = vmatmul.bf16.gmra.mxu0 %v7587
    %v7608 = vpop.f32.mrf.mxu0
    %v7609 = vadd.f32 %v7542, %v7608
    %v7610 = vpop.f32.mrf.mxu0
    %v7611 = vadd.f32 %v7542, %v7610
    %7612 = vdwg.mxu0
    %v7613 = vmax.f32 %v7599, 0.0
    %v7614 = vmax.f32 %v7601, 0.0
    %v7615 = vmax.f32 %v7604, 0.0
    %v7616 = vmax.f32 %v7606, 0.0
    %v7617 = vmax.f32 %v7609, 0.0
    %v7618 = vmax.f32 %v7611, 0.0
    %s7619 = scalar_lea.vmem %s2, 192
    %v7620 = vld [vmem:[%s7619] sm:$0xf]
    %v7621 = vld [vmem:[%s7619 + $0x4] sm:$0xf]
    %v7622 = vld [vmem:[%s7619 + $0x8] sm:$0xf]
    %v7623 = vld [vmem:[%s7619 + $0xc] sm:$0xf]
    %v7624 = vld [vmem:[%s7619 + $0x10] sm:$0xf]
    %v7625 = vld [vmem:[%s7619 + $0x14] sm:$0xf]
    %v7626 = vld [vmem:[%s7619 + $0x18] sm:$0xf]
    %v7627 = vld [vmem:[%s7619 + $0x1c] sm:$0xf]
    %v7628 = vld [vmem:[%s7619 + $0x20] sm:$0xf]
    %v7629 = vld [vmem:[%s7619 + $0x24] sm:$0xf]
    %v7630 = vld [vmem:[%s7619 + $0x28] sm:$0xf]
    %v7631 = vld [vmem:[%s7619 + $0x2c] sm:$0xf]
    %s7632 = scalar_lea.vmem %s3, 5
    %v7633 = vld [vmem:[%s7632] sm:$0x1]
    %7636 = vrot.lane.b32.xlu0 %v7615, 32
    %v7637 = vpop.permute.xlu0 %7636
    %7638 = vrot.lane.b32.xlu0 %v7616, 32
    %v7639 = vpop.permute.xlu0 %7638
    %7644 = vrot.lane.b32.xlu0 %v7617, 64
    %v7645 = vpop.permute.xlu0 %7644
    %7646 = vrot.lane.b32.xlu0 %v7618, 64
    %v7647 = vpop.permute.xlu0 %7646
    %v7650 = vsel %vm5200, %v7613, %v7637
    %v7651 = vsel %vm5200, %v7614, %v7639
    %v7652 = vsel %vm5321, %v7650, %v7645
    %v7653 = vsel %vm5321, %v7651, %v7647
    %v7654 = vpack.c.bf16 %v7653, %v7652
    %v7656 = vperm.slane %v7633, 0
    %v7670 = vunpack.c.l.b16 %v7620
    %v7671 = vunpack.c.l.b16 %v7621
    %v7672 = vunpack.c.l.b16 %v7622
    %v7673 = vunpack.c.l.b16 %v7623
    %v7674 = vunpack.c.l.b16 %v7624
    %v7675 = vunpack.c.l.b16 %v7625
    %v7676 = vunpack.c.l.b16 %v7626
    %v7677 = vunpack.c.l.b16 %v7627
    %v7678 = vunpack.c.l.b16 %v7628
    %v7679 = vunpack.c.l.b16 %v7629
    %v7680 = vunpack.c.l.b16 %v7630
    %v7681 = vunpack.c.l.b16 %v7631
    %v7682 = vpack.c.b16 %v7671, %v7670
    %v7683 = vpack.c.b16 %v7673, %v7672
    %v7684 = vpack.c.b16 %v7675, %v7674
    %v7685 = vpack.c.b16 %v7677, %v7676
    %v7686 = vpack.c.b16 %v7679, %v7678
    %v7687 = vpack.c.b16 %v7681, %v7680
    %v7695 = vsel %vm5541, %v7654, 0
    %7697 = vmatpush.bf16.msra.mxu0 0
    %7698 = vmatpush.bf16.msra.mxu0 0
    %7699 = vmatpush.bf16.msra.mxu0 %v7687
    %7700 = vmatpush.bf16.msra.mxu0 %v7686
    %7701 = vmatpush.bf16.msra.mxu0 %v7685
    %7702 = vmatpush.bf16.msra.mxu0 %v7684
    %7703 = vmatpush.bf16.msra.mxu0 %v7683
    %7704 = vmatpush.bf16.msra.mxu0 %v7682
    %7705 = vmatmul.bf16.gmra.mxu0 %v7695
    %v7706 = vpop.f32.mrf.mxu0
    %v7707 = vadd.f32 %v7656, %v7706
    %v7708 = vpop.f32.mrf.mxu0
    %v7709 = vadd.f32 %v7656, %v7708
    %7710 = vdwg.mxu0
    %v7711 = vmax.f32 %v7707, 0.0
    %v7712 = vmax.f32 %v7709, 0.0
    %v7713 = vpack.c.bf16 %v7712, %v7711
    %v7714 = vld [vmem:[%s4] sm:$0xff]
    %v7715 = vld [vmem:[%s4 + $0x8] sm:$0xff]
    %v7716 = vld [vmem:[%s4 + $0x10] sm:$0xff]
    %v7717 = vld [vmem:[%s4 + $0x18] sm:$0xff]
    %v7718 = vld [vmem:[%s4 + $0x20] sm:$0xff]
    %v7719 = vld [vmem:[%s4 + $0x28] sm:$0xff]
    %v7720 = vld [vmem:[%s4 + $0x30] sm:$0xff]
    %v7721 = vld [vmem:[%s4 + $0x38] sm:$0xff]
    %v7722 = vld [vmem:[%s4 + $0x40] sm:$0xff]
    %v7723 = vld [vmem:[%s4 + $0x48] sm:$0xff]
    %v7724 = vld [vmem:[%s4 + $0x50] sm:$0xff]
    %v7725 = vld [vmem:[%s4 + $0x58] sm:$0xff]
    %v7726 = vld [vmem:[%s4 + $0x60] sm:$0xff]
    %v7727 = vld [vmem:[%s4 + $0x68] sm:$0xff]
    %v7728 = vld [vmem:[%s4 + $0x70] sm:$0xff]
    %v7729 = vld [vmem:[%s4 + $0x78] sm:$0xff]
    %v7730 = vld [vmem:[%s5] sm:$0xff]
    %v7732 = vperm.slane %v7730, 0
    %v7733 = vperm.slane %v7730, 1
    %v7734 = vperm.slane %v7730, 2
    %v7735 = vperm.slane %v7730, 3
    %v7736 = vperm.slane %v7730, 4
    %v7737 = vperm.slane %v7730, 5
    %v7738 = vperm.slane %v7730, 6
    %v7739 = vperm.slane %v7730, 7
    %v7764 = vunpack.c.l.b16 %v7714
    %v7765 = vunpack.c.h.b16 %v7714
    %v7766 = vunpack.c.l.b16 %v7715
    %v7767 = vunpack.c.h.b16 %v7715
    %v7768 = vunpack.c.l.b16 %v7716
    %v7769 = vunpack.c.h.b16 %v7716
    %v7770 = vunpack.c.l.b16 %v7717
    %v7771 = vunpack.c.h.b16 %v7717
    %v7772 = vunpack.c.l.b16 %v7718
    %v7773 = vunpack.c.h.b16 %v7718
    %v7774 = vunpack.c.l.b16 %v7719
    %v7775 = vunpack.c.h.b16 %v7719
    %v7776 = vunpack.c.l.b16 %v7720
    %v7777 = vunpack.c.h.b16 %v7720
    %v7778 = vunpack.c.l.b16 %v7721
    %v7779 = vunpack.c.h.b16 %v7721
    %v7780 = vunpack.c.l.b16 %v7722
    %v7781 = vunpack.c.h.b16 %v7722
    %v7782 = vunpack.c.l.b16 %v7723
    %v7783 = vunpack.c.h.b16 %v7723
    %v7784 = vunpack.c.l.b16 %v7724
    %v7785 = vunpack.c.h.b16 %v7724
    %v7786 = vunpack.c.l.b16 %v7725
    %v7787 = vunpack.c.h.b16 %v7725
    %v7788 = vunpack.c.l.b16 %v7726
    %v7789 = vunpack.c.h.b16 %v7726
    %v7790 = vunpack.c.l.b16 %v7727
    %v7791 = vunpack.c.h.b16 %v7727
    %v7792 = vunpack.c.l.b16 %v7728
    %v7793 = vunpack.c.h.b16 %v7728
    %v7794 = vunpack.c.l.b16 %v7729
    %v7795 = vunpack.c.h.b16 %v7729
    %v7796 = vpack.c.b16 %v7772, %v7764
    %v7797 = vpack.c.b16 %v7773, %v7765
    %v7798 = vpack.c.b16 %v7774, %v7766
    %v7799 = vpack.c.b16 %v7775, %v7767
    %v7800 = vpack.c.b16 %v7776, %v7768
    %v7801 = vpack.c.b16 %v7777, %v7769
    %v7802 = vpack.c.b16 %v7778, %v7770
    %v7803 = vpack.c.b16 %v7779, %v7771
    %v7804 = vpack.c.b16 %v7788, %v7780
    %v7805 = vpack.c.b16 %v7789, %v7781
    %v7806 = vpack.c.b16 %v7790, %v7782
    %v7807 = vpack.c.b16 %v7791, %v7783
    %v7808 = vpack.c.b16 %v7792, %v7784
    %v7809 = vpack.c.b16 %v7793, %v7785
    %v7810 = vpack.c.b16 %v7794, %v7786
    %v7811 = vpack.c.b16 %v7795, %v7787
    %v7829 = vsel %vm5200, %v7713, 0
    %7831 = vmatpush.bf16.msra.mxu0 0
    %7832 = vmatpush.bf16.msra.mxu0 0
    %7833 = vmatpush.bf16.msra.mxu0 0
    %7834 = vmatpush.bf16.msra.mxu0 0
    %7835 = vmatpush.bf16.msra.mxu0 0
    %7836 = vmatpush.bf16.msra.mxu0 0
    %7837 = vmatpush.bf16.msra.mxu0 %v7804
    %7838 = vmatpush.bf16.msra.mxu0 %v7796
    %7839 = vmatmul.bf16.gmra.mxu0 %v7829
    %v7840 = vpop.f32.mrf.mxu0
    %v7841 = vadd.f32 %v7732, %v7840
    %v7842 = vpop.f32.mrf.mxu0
    %v7843 = vadd.f32 %v7732, %v7842
    %7844 = vdwg.mxu0
    %7845 = vmatpush.bf16.msra.mxu0 0
    %7846 = vmatpush.bf16.msra.mxu0 0
    %7847 = vmatpush.bf16.msra.mxu0 0
    %7848 = vmatpush.bf16.msra.mxu0 0
    %7849 = vmatpush.bf16.msra.mxu0 0
    %7850 = vmatpush.bf16.msra.mxu0 0
    %7851 = vmatpush.bf16.msra.mxu0 %v7805
    %7852 = vmatpush.bf16.msra.mxu0 %v7797
    %7853 = vmatmul.bf16.gmra.mxu0 %v7829
    %v7854 = vpop.f32.mrf.mxu0
    %v7855 = vadd.f32 %v7733, %v7854
    %v7856 = vpop.f32.mrf.mxu0
    %v7857 = vadd.f32 %v7733, %v7856
    %7858 = vdwg.mxu0
    %7859 = vmatpush.bf16.msra.mxu0 0
    %7860 = vmatpush.bf16.msra.mxu0 0
    %7861 = vmatpush.bf16.msra.mxu0 0
    %7862 = vmatpush.bf16.msra.mxu0 0
    %7863 = vmatpush.bf16.msra.mxu0 0
    %7864 = vmatpush.bf16.msra.mxu0 0
    %7865 = vmatpush.bf16.msra.mxu0 %v7806
    %7866 = vmatpush.bf16.msra.mxu0 %v7798
    %7867 = vmatmul.bf16.gmra.mxu0 %v7829
    %v7868 = vpop.f32.mrf.mxu0
    %v7869 = vadd.f32 %v7734, %v7868
    %v7870 = vpop.f32.mrf.mxu0
    %v7871 = vadd.f32 %v7734, %v7870
    %7872 = vdwg.mxu0
    %7873 = vmatpush.bf16.msra.mxu0 0
    %7874 = vmatpush.bf16.msra.mxu0 0
    %7875 = vmatpush.bf16.msra.mxu0 0
    %7876 = vmatpush.bf16.msra.mxu0 0
    %7877 = vmatpush.bf16.msra.mxu0 0
    %7878 = vmatpush.bf16.msra.mxu0 0
    %7879 = vmatpush.bf16.msra.mxu0 %v7807
    %7880 = vmatpush.bf16.msra.mxu0 %v7799
    %7881 = vmatmul.bf16.gmra.mxu0 %v7829
    %v7882 = vpop.f32.mrf.mxu0
    %v7883 = vadd.f32 %v7735, %v7882
    %v7884 = vpop.f32.mrf.mxu0
    %v7885 = vadd.f32 %v7735, %v7884
    %7886 = vdwg.mxu0
    %7887 = vmatpush.bf16.msra.mxu0 0
    %7888 = vmatpush.bf16.msra.mxu0 0
    %7889 = vmatpush.bf16.msra.mxu0 0
    %7890 = vmatpush.bf16.msra.mxu0 0
    %7891 = vmatpush.bf16.msra.mxu0 0
    %7892 = vmatpush.bf16.msra.mxu0 0
    %7893 = vmatpush.bf16.msra.mxu0 %v7808
    %7894 = vmatpush.bf16.msra.mxu0 %v7800
    %7895 = vmatmul.bf16.gmra.mxu0 %v7829
    %v7896 = vpop.f32.mrf.mxu0
    %v7897 = vadd.f32 %v7736, %v7896
    %v7898 = vpop.f32.mrf.mxu0
    %v7899 = vadd.f32 %v7736, %v7898
    %7900 = vdwg.mxu0
    %7901 = vmatpush.bf16.msra.mxu0 0
    %7902 = vmatpush.bf16.msra.mxu0 0
    %7903 = vmatpush.bf16.msra.mxu0 0
    %7904 = vmatpush.bf16.msra.mxu0 0
    %7905 = vmatpush.bf16.msra.mxu0 0
    %7906 = vmatpush.bf16.msra.mxu0 0
    %7907 = vmatpush.bf16.msra.mxu0 %v7809
    %7908 = vmatpush.bf16.msra.mxu0 %v7801
    %7909 = vmatmul.bf16.gmra.mxu0 %v7829
    %v7910 = vpop.f32.mrf.mxu0
    %v7911 = vadd.f32 %v7737, %v7910
    %v7912 = vpop.f32.mrf.mxu0
    %v7913 = vadd.f32 %v7737, %v7912
    %7914 = vdwg.mxu0
    %7915 = vmatpush.bf16.msra.mxu0 0
    %7916 = vmatpush.bf16.msra.mxu0 0
    %7917 = vmatpush.bf16.msra.mxu0 0
    %7918 = vmatpush.bf16.msra.mxu0 0
    %7919 = vmatpush.bf16.msra.mxu0 0
    %7920 = vmatpush.bf16.msra.mxu0 0
    %7921 = vmatpush.bf16.msra.mxu0 %v7810
    %7922 = vmatpush.bf16.msra.mxu0 %v7802
    %7923 = vmatmul.bf16.gmra.mxu0 %v7829
    %v7924 = vpop.f32.mrf.mxu0
    %v7925 = vadd.f32 %v7738, %v7924
    %v7926 = vpop.f32.mrf.mxu0
    %v7927 = vadd.f32 %v7738, %v7926
    %7928 = vdwg.mxu0
    %7929 = vmatpush.bf16.msra.mxu0 0
    %7930 = vmatpush.bf16.msra.mxu0 0
    %7931 = vmatpush.bf16.msra.mxu0 0
    %7932 = vmatpush.bf16.msra.mxu0 0
    %7933 = vmatpush.bf16.msra.mxu0 0
    %7934 = vmatpush.bf16.msra.mxu0 0
    %7935 = vmatpush.bf16.msra.mxu0 %v7811
    %7936 = vmatpush.bf16.msra.mxu0 %v7803
    %7937 = vmatmul.bf16.gmra.mxu0 %v7829
    %v7938 = vpop.f32.mrf.mxu0
    %v7939 = vadd.f32 %v7739, %v7938
    %v7940 = vpop.f32.mrf.mxu0
    %v7941 = vadd.f32 %v7739, %v7940
    %7942 = vdwg.mxu0
    %v7943 = vmax.f32 %v7841, 0.0
    %v7944 = vmax.f32 %v7855, 0.0
    %v7945 = vmax.f32 %v7869, 0.0
    %v7946 = vmax.f32 %v7883, 0.0
    %v7947 = vmax.f32 %v7897, 0.0
    %v7948 = vmax.f32 %v7911, 0.0
    %v7949 = vmax.f32 %v7925, 0.0
    %v7950 = vmax.f32 %v7939, 0.0
    %v7951 = vmax.f32 %v7843, 0.0
    %v7952 = vmax.f32 %v7857, 0.0
    %v7953 = vmax.f32 %v7871, 0.0
    %v7954 = vmax.f32 %v7885, 0.0
    %v7955 = vmax.f32 %v7899, 0.0
    %v7956 = vmax.f32 %v7913, 0.0
    %v7957 = vmax.f32 %v7927, 0.0
    %v7958 = vmax.f32 %v7941, 0.0
    %v7959 = vpack.c.bf16 %v7951, %v7943
    %v7960 = vpack.c.bf16 %v7952, %v7944
    %v7961 = vpack.c.bf16 %v7953, %v7945
    %v7962 = vpack.c.bf16 %v7954, %v7946
    %v7963 = vpack.c.bf16 %v7955, %v7947
    %v7964 = vpack.c.bf16 %v7956, %v7948
    %v7965 = vpack.c.bf16 %v7957, %v7949
    %v7966 = vpack.c.bf16 %v7958, %v7950
    %v7967 = vld [vmem:[%s6] sm:$0xf]
    %v7968 = vld [vmem:[%s6 + $0x4] sm:$0xf]
    %v7969 = vld [vmem:[%s6 + $0x8] sm:$0xf]
    %v7970 = vld [vmem:[%s6 + $0xc] sm:$0xf]
    %v7971 = vld [vmem:[%s6 + $0x10] sm:$0xf]
    %v7972 = vld [vmem:[%s6 + $0x14] sm:$0xf]
    %v7973 = vld [vmem:[%s6 + $0x18] sm:$0xf]
    %v7974 = vld [vmem:[%s6 + $0x1c] sm:$0xf]
    %v7975 = vld [vmem:[%s6 + $0x20] sm:$0xf]
    %v7976 = vld [vmem:[%s6 + $0x24] sm:$0xf]
    %v7977 = vld [vmem:[%s6 + $0x28] sm:$0xf]
    %v7978 = vld [vmem:[%s6 + $0x2c] sm:$0xf]
    %v7979 = vld [vmem:[%s6 + $0x30] sm:$0xf]
    %v7980 = vld [vmem:[%s6 + $0x34] sm:$0xf]
    %v7981 = vld [vmem:[%s6 + $0x38] sm:$0xf]
    %v7982 = vld [vmem:[%s6 + $0x3c] sm:$0xf]
    %v7983 = vld [vmem:[%s6 + $0x40] sm:$0xf]
    %v7984 = vld [vmem:[%s6 + $0x44] sm:$0xf]
    %v7985 = vld [vmem:[%s6 + $0x48] sm:$0xf]
    %v7986 = vld [vmem:[%s6 + $0x4c] sm:$0xf]
    %v7987 = vld [vmem:[%s6 + $0x50] sm:$0xf]
    %v7988 = vld [vmem:[%s6 + $0x54] sm:$0xf]
    %v7989 = vld [vmem:[%s6 + $0x58] sm:$0xf]
    %v7990 = vld [vmem:[%s6 + $0x5c] sm:$0xf]
    %v7991 = vld [vmem:[%s6 + $0x60] sm:$0xf]
    %v7992 = vld [vmem:[%s6 + $0x64] sm:$0xf]
    %v7993 = vld [vmem:[%s6 + $0x68] sm:$0xf]
    %v7994 = vld [vmem:[%s6 + $0x6c] sm:$0xf]
    %v7995 = vld [vmem:[%s6 + $0x70] sm:$0xf]
    %v7996 = vld [vmem:[%s6 + $0x74] sm:$0xf]
    %v7997 = vld [vmem:[%s6 + $0x78] sm:$0xf]
    %v7998 = vld [vmem:[%s6 + $0x7c] sm:$0xf]
    %v7999 = vld [vmem:[%s6 + $0x80] sm:$0xf]
    %v8000 = vld [vmem:[%s6 + $0x84] sm:$0xf]
    %v8001 = vld [vmem:[%s6 + $0x88] sm:$0xf]
    %v8002 = vld [vmem:[%s6 + $0x8c] sm:$0xf]
    %v8003 = vld [vmem:[%s6 + $0x90] sm:$0xf]
    %v8004 = vld [vmem:[%s6 + $0x94] sm:$0xf]
    %v8005 = vld [vmem:[%s6 + $0x98] sm:$0xf]
    %v8006 = vld [vmem:[%s6 + $0x9c] sm:$0xf]
    %v8007 = vld [vmem:[%s6 + $0xa0] sm:$0xf]
    %v8008 = vld [vmem:[%s6 + $0xa4] sm:$0xf]
    %v8009 = vld [vmem:[%s6 + $0xa8] sm:$0xf]
    %v8010 = vld [vmem:[%s6 + $0xac] sm:$0xf]
    %v8011 = vld [vmem:[%s6 + $0xb0] sm:$0xf]
    %v8012 = vld [vmem:[%s6 + $0xb4] sm:$0xf]
    %v8013 = vld [vmem:[%s6 + $0xb8] sm:$0xf]
    %v8014 = vld [vmem:[%s6 + $0xbc] sm:$0xf]
    %v8015 = vld [vmem:[%s6 + $0xc0] sm:$0xf]
    %v8016 = vld [vmem:[%s6 + $0xc4] sm:$0xf]
    %v8017 = vld [vmem:[%s6 + $0xc8] sm:$0xf]
    %v8018 = vld [vmem:[%s6 + $0xcc] sm:$0xf]
    %v8019 = vld [vmem:[%s6 + $0xd0] sm:$0xf]
    %v8020 = vld [vmem:[%s6 + $0xd4] sm:$0xf]
    %v8021 = vld [vmem:[%s6 + $0xd8] sm:$0xf]
    %v8022 = vld [vmem:[%s6 + $0xdc] sm:$0xf]
    %v8023 = vld [vmem:[%s6 + $0xe0] sm:$0xf]
    %v8024 = vld [vmem:[%s6 + $0xe4] sm:$0xf]
    %v8025 = vld [vmem:[%s6 + $0xe8] sm:$0xf]
    %v8026 = vld [vmem:[%s6 + $0xec] sm:$0xf]
    %v8027 = vld [vmem:[%s6 + $0xf0] sm:$0xf]
    %v8028 = vld [vmem:[%s6 + $0xf4] sm:$0xf]
    %v8029 = vld [vmem:[%s6 + $0xf8] sm:$0xf]
    %v8030 = vld [vmem:[%s6 + $0xfc] sm:$0xf]
    %v8031 = vld [vmem:[%s6 + $0x100] sm:$0xf]
    %v8032 = vld [vmem:[%s6 + $0x104] sm:$0xf]
    %v8033 = vld [vmem:[%s6 + $0x108] sm:$0xf]
    %v8034 = vld [vmem:[%s6 + $0x10c] sm:$0xf]
    %v8035 = vld [vmem:[%s6 + $0x110] sm:$0xf]
    %v8036 = vld [vmem:[%s6 + $0x114] sm:$0xf]
    %v8037 = vld [vmem:[%s6 + $0x118] sm:$0xf]
    %v8038 = vld [vmem:[%s6 + $0x11c] sm:$0xf]
    %v8039 = vld [vmem:[%s6 + $0x120] sm:$0xf]
    %v8040 = vld [vmem:[%s6 + $0x124] sm:$0xf]
    %v8041 = vld [vmem:[%s6 + $0x128] sm:$0xf]
    %v8042 = vld [vmem:[%s6 + $0x12c] sm:$0xf]
    %v8043 = vld [vmem:[%s6 + $0x130] sm:$0xf]
    %v8044 = vld [vmem:[%s6 + $0x134] sm:$0xf]
    %v8045 = vld [vmem:[%s6 + $0x138] sm:$0xf]
    %v8046 = vld [vmem:[%s6 + $0x13c] sm:$0xf]
    %v8047 = vld [vmem:[%s6 + $0x140] sm:$0xf]
    %v8048 = vld [vmem:[%s6 + $0x144] sm:$0xf]
    %v8049 = vld [vmem:[%s6 + $0x148] sm:$0xf]
    %v8050 = vld [vmem:[%s6 + $0x14c] sm:$0xf]
    %v8051 = vld [vmem:[%s6 + $0x150] sm:$0xf]
    %v8052 = vld [vmem:[%s6 + $0x154] sm:$0xf]
    %v8053 = vld [vmem:[%s6 + $0x158] sm:$0xf]
    %v8054 = vld [vmem:[%s6 + $0x15c] sm:$0xf]
    %v8055 = vld [vmem:[%s6 + $0x160] sm:$0xf]
    %v8056 = vld [vmem:[%s6 + $0x164] sm:$0xf]
    %v8057 = vld [vmem:[%s6 + $0x168] sm:$0xf]
    %v8058 = vld [vmem:[%s6 + $0x16c] sm:$0xf]
    %v8059 = vld [vmem:[%s6 + $0x170] sm:$0xf]
    %v8060 = vld [vmem:[%s6 + $0x174] sm:$0xf]
    %v8061 = vld [vmem:[%s6 + $0x178] sm:$0xf]
    %v8062 = vld [vmem:[%s6 + $0x17c] sm:$0xf]
    %v8063 = vld [vmem:[%s6 + $0x180] sm:$0xf]
    %v8064 = vld [vmem:[%s6 + $0x184] sm:$0xf]
    %v8065 = vld [vmem:[%s6 + $0x188] sm:$0xf]
    %v8066 = vld [vmem:[%s6 + $0x18c] sm:$0xf]
    %v8067 = vld [vmem:[%s6 + $0x190] sm:$0xf]
    %v8068 = vld [vmem:[%s6 + $0x194] sm:$0xf]
    %v8069 = vld [vmem:[%s6 + $0x198] sm:$0xf]
    %v8070 = vld [vmem:[%s6 + $0x19c] sm:$0xf]
    %v8071 = vld [vmem:[%s6 + $0x1a0] sm:$0xf]
    %v8072 = vld [vmem:[%s6 + $0x1a4] sm:$0xf]
    %v8073 = vld [vmem:[%s6 + $0x1a8] sm:$0xf]
    %v8074 = vld [vmem:[%s6 + $0x1ac] sm:$0xf]
    %v8075 = vld [vmem:[%s6 + $0x1b0] sm:$0xf]
    %v8076 = vld [vmem:[%s6 + $0x1b4] sm:$0xf]
    %v8077 = vld [vmem:[%s6 + $0x1b8] sm:$0xf]
    %v8078 = vld [vmem:[%s6 + $0x1bc] sm:$0xf]
    %v8079 = vld [vmem:[%s6 + $0x1c0] sm:$0xf]
    %v8080 = vld [vmem:[%s6 + $0x1c4] sm:$0xf]
    %v8081 = vld [vmem:[%s6 + $0x1c8] sm:$0xf]
    %v8082 = vld [vmem:[%s6 + $0x1cc] sm:$0xf]
    %v8083 = vld [vmem:[%s6 + $0x1d0] sm:$0xf]
    %v8084 = vld [vmem:[%s6 + $0x1d4] sm:$0xf]
    %v8085 = vld [vmem:[%s6 + $0x1d8] sm:$0xf]
    %v8086 = vld [vmem:[%s6 + $0x1dc] sm:$0xf]
    %v8087 = vld [vmem:[%s6 + $0x1e0] sm:$0xf]
    %v8088 = vld [vmem:[%s6 + $0x1e4] sm:$0xf]
    %v8089 = vld [vmem:[%s6 + $0x1e8] sm:$0xf]
    %v8090 = vld [vmem:[%s6 + $0x1ec] sm:$0xf]
    %v8091 = vld [vmem:[%s6 + $0x1f0] sm:$0xf]
    %v8092 = vld [vmem:[%s6 + $0x1f4] sm:$0xf]
    %v8093 = vld [vmem:[%s6 + $0x1f8] sm:$0xf]
    %v8094 = vld [vmem:[%s6 + $0x1fc] sm:$0xf]
    %v8095 = vld [vmem:[%s7] sm:$0x1]
    %v8097 = vperm.slane %v8095, 0
    %v8227 = vunpack.c.l.b16 %v7967
    %v8228 = vunpack.c.l.b16 %v7968
    %v8229 = vunpack.c.l.b16 %v7969
    %v8230 = vunpack.c.l.b16 %v7970
    %v8231 = vunpack.c.l.b16 %v7971
    %v8232 = vunpack.c.l.b16 %v7972
    %v8233 = vunpack.c.l.b16 %v7973
    %v8234 = vunpack.c.l.b16 %v7974
    %v8235 = vunpack.c.l.b16 %v7975
    %v8236 = vunpack.c.l.b16 %v7976
    %v8237 = vunpack.c.l.b16 %v7977
    %v8238 = vunpack.c.l.b16 %v7978
    %v8239 = vunpack.c.l.b16 %v7979
    %v8240 = vunpack.c.l.b16 %v7980
    %v8241 = vunpack.c.l.b16 %v7981
    %v8242 = vunpack.c.l.b16 %v7982
    %v8243 = vunpack.c.l.b16 %v7983
    %v8244 = vunpack.c.l.b16 %v7984
    %v8245 = vunpack.c.l.b16 %v7985
    %v8246 = vunpack.c.l.b16 %v7986
    %v8247 = vunpack.c.l.b16 %v7987
    %v8248 = vunpack.c.l.b16 %v7988
    %v8249 = vunpack.c.l.b16 %v7989
    %v8250 = vunpack.c.l.b16 %v7990
    %v8251 = vunpack.c.l.b16 %v7991
    %v8252 = vunpack.c.l.b16 %v7992
    %v8253 = vunpack.c.l.b16 %v7993
    %v8254 = vunpack.c.l.b16 %v7994
    %v8255 = vunpack.c.l.b16 %v7995
    %v8256 = vunpack.c.l.b16 %v7996
    %v8257 = vunpack.c.l.b16 %v7997
    %v8258 = vunpack.c.l.b16 %v7998
    %v8259 = vunpack.c.l.b16 %v7999
    %v8260 = vunpack.c.l.b16 %v8000
    %v8261 = vunpack.c.l.b16 %v8001
    %v8262 = vunpack.c.l.b16 %v8002
    %v8263 = vunpack.c.l.b16 %v8003
    %v8264 = vunpack.c.l.b16 %v8004
    %v8265 = vunpack.c.l.b16 %v8005
    %v8266 = vunpack.c.l.b16 %v8006
    %v8267 = vunpack.c.l.b16 %v8007
    %v8268 = vunpack.c.l.b16 %v8008
    %v8269 = vunpack.c.l.b16 %v8009
    %v8270 = vunpack.c.l.b16 %v8010
    %v8271 = vunpack.c.l.b16 %v8011
    %v8272 = vunpack.c.l.b16 %v8012
    %v8273 = vunpack.c.l.b16 %v8013
    %v8274 = vunpack.c.l.b16 %v8014
    %v8275 = vunpack.c.l.b16 %v8015
    %v8276 = vunpack.c.l.b16 %v8016
    %v8277 = vunpack.c.l.b16 %v8017
    %v8278 = vunpack.c.l.b16 %v8018
    %v8279 = vunpack.c.l.b16 %v8019
    %v8280 = vunpack.c.l.b16 %v8020
    %v8281 = vunpack.c.l.b16 %v8021
    %v8282 = vunpack.c.l.b16 %v8022
    %v8283 = vunpack.c.l.b16 %v8023
    %v8284 = vunpack.c.l.b16 %v8024
    %v8285 = vunpack.c.l.b16 %v8025
    %v8286 = vunpack.c.l.b16 %v8026
    %v8287 = vunpack.c.l.b16 %v8027
    %v8288 = vunpack.c.l.b16 %v8028
    %v8289 = vunpack.c.l.b16 %v8029
    %v8290 = vunpack.c.l.b16 %v8030
    %v8291 = vunpack.c.l.b16 %v8031
    %v8292 = vunpack.c.l.b16 %v8032
    %v8293 = vunpack.c.l.b16 %v8033
    %v8294 = vunpack.c.l.b16 %v8034
    %v8295 = vunpack.c.l.b16 %v8035
    %v8296 = vunpack.c.l.b16 %v8036
    %v8297 = vunpack.c.l.b16 %v8037
    %v8298 = vunpack.c.l.b16 %v8038
    %v8299 = vunpack.c.l.b16 %v8039
    %v8300 = vunpack.c.l.b16 %v8040
    %v8301 = vunpack.c.l.b16 %v8041
    %v8302 = vunpack.c.l.b16 %v8042
    %v8303 = vunpack.c.l.b16 %v8043
    %v8304 = vunpack.c.l.b16 %v8044
    %v8305 = vunpack.c.l.b16 %v8045
    %v8306 = vunpack.c.l.b16 %v8046
    %v8307 = vunpack.c.l.b16 %v8047
    %v8308 = vunpack.c.l.b16 %v8048
    %v8309 = vunpack.c.l.b16 %v8049
    %v8310 = vunpack.c.l.b16 %v8050
    %v8311 = vunpack.c.l.b16 %v8051
    %v8312 = vunpack.c.l.b16 %v8052
    %v8313 = vunpack.c.l.b16 %v8053
    %v8314 = vunpack.c.l.b16 %v8054
    %v8315 = vunpack.c.l.b16 %v8055
    %v8316 = vunpack.c.l.b16 %v8056
    %v8317 = vunpack.c.l.b16 %v8057
    %v8318 = vunpack.c.l.b16 %v8058
    %v8319 = vunpack.c.l.b16 %v8059
    %v8320 = vunpack.c.l.b16 %v8060
    %v8321 = vunpack.c.l.b16 %v8061
    %v8322 = vunpack.c.l.b16 %v8062
    %v8323 = vunpack.c.l.b16 %v8063
    %v8324 = vunpack.c.l.b16 %v8064
    %v8325 = vunpack.c.l.b16 %v8065
    %v8326 = vunpack.c.l.b16 %v8066
    %v8327 = vunpack.c.l.b16 %v8067
    %v8328 = vunpack.c.l.b16 %v8068
    %v8329 = vunpack.c.l.b16 %v8069
    %v8330 = vunpack.c.l.b16 %v8070
    %v8331 = vunpack.c.l.b16 %v8071
    %v8332 = vunpack.c.l.b16 %v8072
    %v8333 = vunpack.c.l.b16 %v8073
    %v8334 = vunpack.c.l.b16 %v8074
    %v8335 = vunpack.c.l.b16 %v8075
    %v8336 = vunpack.c.l.b16 %v8076
    %v8337 = vunpack.c.l.b16 %v8077
    %v8338 = vunpack.c.l.b16 %v8078
    %v8339 = vunpack.c.l.b16 %v8079
    %v8340 = vunpack.c.l.b16 %v8080
    %v8341 = vunpack.c.l.b16 %v8081
    %v8342 = vunpack.c.l.b16 %v8082
    %v8343 = vunpack.c.l.b16 %v8083
    %v8344 = vunpack.c.l.b16 %v8084
    %v8345 = vunpack.c.l.b16 %v8085
    %v8346 = vunpack.c.l.b16 %v8086
    %v8347 = vunpack.c.l.b16 %v8087
    %v8348 = vunpack.c.l.b16 %v8088
    %v8349 = vunpack.c.l.b16 %v8089
    %v8350 = vunpack.c.l.b16 %v8090
    %v8351 = vunpack.c.l.b16 %v8091
    %v8352 = vunpack.c.l.b16 %v8092
    %v8353 = vunpack.c.l.b16 %v8093
    %v8354 = vunpack.c.l.b16 %v8094
    %v8355 = vpack.c.b16 %v8228, %v8227
    %v8356 = vpack.c.b16 %v8230, %v8229
    %v8357 = vpack.c.b16 %v8232, %v8231
    %v8358 = vpack.c.b16 %v8234, %v8233
    %v8359 = vpack.c.b16 %v8236, %v8235
    %v8360 = vpack.c.b16 %v8238, %v8237
    %v8361 = vpack.c.b16 %v8240, %v8239
    %v8362 = vpack.c.b16 %v8242, %v8241
    %v8363 = vpack.c.b16 %v8244, %v8243
    %v8364 = vpack.c.b16 %v8246, %v8245
    %v8365 = vpack.c.b16 %v8248, %v8247
    %v8366 = vpack.c.b16 %v8250, %v8249
    %v8367 = vpack.c.b16 %v8252, %v8251
    %v8368 = vpack.c.b16 %v8254, %v8253
    %v8369 = vpack.c.b16 %v8256, %v8255
    %v8370 = vpack.c.b16 %v8258, %v8257
    %v8371 = vpack.c.b16 %v8260, %v8259
    %v8372 = vpack.c.b16 %v8262, %v8261
    %v8373 = vpack.c.b16 %v8264, %v8263
    %v8374 = vpack.c.b16 %v8266, %v8265
    %v8375 = vpack.c.b16 %v8268, %v8267
    %v8376 = vpack.c.b16 %v8270, %v8269
    %v8377 = vpack.c.b16 %v8272, %v8271
    %v8378 = vpack.c.b16 %v8274, %v8273
    %v8379 = vpack.c.b16 %v8276, %v8275
    %v8380 = vpack.c.b16 %v8278, %v8277
    %v8381 = vpack.c.b16 %v8280, %v8279
    %v8382 = vpack.c.b16 %v8282, %v8281
    %v8383 = vpack.c.b16 %v8284, %v8283
    %v8384 = vpack.c.b16 %v8286, %v8285
    %v8385 = vpack.c.b16 %v8288, %v8287
    %v8386 = vpack.c.b16 %v8290, %v8289
    %v8387 = vpack.c.b16 %v8292, %v8291
    %v8388 = vpack.c.b16 %v8294, %v8293
    %v8389 = vpack.c.b16 %v8296, %v8295
    %v8390 = vpack.c.b16 %v8298, %v8297
    %v8391 = vpack.c.b16 %v8300, %v8299
    %v8392 = vpack.c.b16 %v8302, %v8301
    %v8393 = vpack.c.b16 %v8304, %v8303
    %v8394 = vpack.c.b16 %v8306, %v8305
    %v8395 = vpack.c.b16 %v8308, %v8307
    %v8396 = vpack.c.b16 %v8310, %v8309
    %v8397 = vpack.c.b16 %v8312, %v8311
    %v8398 = vpack.c.b16 %v8314, %v8313
    %v8399 = vpack.c.b16 %v8316, %v8315
    %v8400 = vpack.c.b16 %v8318, %v8317
    %v8401 = vpack.c.b16 %v8320, %v8319
    %v8402 = vpack.c.b16 %v8322, %v8321
    %v8403 = vpack.c.b16 %v8324, %v8323
    %v8404 = vpack.c.b16 %v8326, %v8325
    %v8405 = vpack.c.b16 %v8328, %v8327
    %v8406 = vpack.c.b16 %v8330, %v8329
    %v8407 = vpack.c.b16 %v8332, %v8331
    %v8408 = vpack.c.b16 %v8334, %v8333
    %v8409 = vpack.c.b16 %v8336, %v8335
    %v8410 = vpack.c.b16 %v8338, %v8337
    %v8411 = vpack.c.b16 %v8340, %v8339
    %v8412 = vpack.c.b16 %v8342, %v8341
    %v8413 = vpack.c.b16 %v8344, %v8343
    %v8414 = vpack.c.b16 %v8346, %v8345
    %v8415 = vpack.c.b16 %v8348, %v8347
    %v8416 = vpack.c.b16 %v8350, %v8349
    %v8417 = vpack.c.b16 %v8352, %v8351
    %v8418 = vpack.c.b16 %v8354, %v8353
    %8483 = vmatpush.bf16.msra.mxu0 %v8362
    %8484 = vmatpush.bf16.msra.mxu0 %v8361
    %8485 = vmatpush.bf16.msra.mxu0 %v8360
    %8486 = vmatpush.bf16.msra.mxu0 %v8359
    %8487 = vmatpush.bf16.msra.mxu0 %v8358
    %8488 = vmatpush.bf16.msra.mxu0 %v8357
    %8489 = vmatpush.bf16.msra.mxu0 %v8356
    %8490 = vmatpush.bf16.msra.mxu0 %v8355
    %8491 = vmatmul.bf16.gmra.mxu0 %v7959
    %v8492 = vpop.f32.mrf.mxu0
    %v8493 = vadd.f32 %v8097, %v8492
    %v8494 = vpop.f32.mrf.mxu0
    %v8495 = vadd.f32 %v8097, %v8494
    %8496 = vdwg.mxu0
    %8497 = vmatpush.bf16.msra.mxu0 %v8370
    %8498 = vmatpush.bf16.msra.mxu0 %v8369
    %8499 = vmatpush.bf16.msra.mxu0 %v8368
    %8500 = vmatpush.bf16.msra.mxu0 %v8367
    %8501 = vmatpush.bf16.msra.mxu0 %v8366
    %8502 = vmatpush.bf16.msra.mxu0 %v8365
    %8503 = vmatpush.bf16.msra.mxu0 %v8364
    %8504 = vmatpush.bf16.msra.mxu0 %v8363
    %8505 = vmatmul.bf16.gmra.mxu0 %v7960
    %v8506 = vpop.f32.mrf.mxu0
    %v8507 = vadd.f32 %v8493, %v8506
    %v8508 = vpop.f32.mrf.mxu0
    %v8509 = vadd.f32 %v8495, %v8508
    %8510 = vdwg.mxu0
    %8511 = vmatpush.bf16.msra.mxu0 %v8378
    %8512 = vmatpush.bf16.msra.mxu0 %v8377
    %8513 = vmatpush.bf16.msra.mxu0 %v8376
    %8514 = vmatpush.bf16.msra.mxu0 %v8375
    %8515 = vmatpush.bf16.msra.mxu0 %v8374
    %8516 = vmatpush.bf16.msra.mxu0 %v8373
    %8517 = vmatpush.bf16.msra.mxu0 %v8372
    %8518 = vmatpush.bf16.msra.mxu0 %v8371
    %8519 = vmatmul.bf16.gmra.mxu0 %v7961
    %v8520 = vpop.f32.mrf.mxu0
    %v8521 = vadd.f32 %v8507, %v8520
    %v8522 = vpop.f32.mrf.mxu0
    %v8523 = vadd.f32 %v8509, %v8522
    %8524 = vdwg.mxu0
    %8525 = vmatpush.bf16.msra.mxu0 %v8386
    %8526 = vmatpush.bf16.msra.mxu0 %v8385
    %8527 = vmatpush.bf16.msra.mxu0 %v8384
    %8528 = vmatpush.bf16.msra.mxu0 %v8383
    %8529 = vmatpush.bf16.msra.mxu0 %v8382
    %8530 = vmatpush.bf16.msra.mxu0 %v8381
    %8531 = vmatpush.bf16.msra.mxu0 %v8380
    %8532 = vmatpush.bf16.msra.mxu0 %v8379
    %8533 = vmatmul.bf16.gmra.mxu0 %v7962
    %v8534 = vpop.f32.mrf.mxu0
    %v8535 = vadd.f32 %v8521, %v8534
    %v8536 = vpop.f32.mrf.mxu0
    %v8537 = vadd.f32 %v8523, %v8536
    %8538 = vdwg.mxu0
    %8539 = vmatpush.bf16.msra.mxu0 %v8394
    %8540 = vmatpush.bf16.msra.mxu0 %v8393
    %8541 = vmatpush.bf16.msra.mxu0 %v8392
    %8542 = vmatpush.bf16.msra.mxu0 %v8391
    %8543 = vmatpush.bf16.msra.mxu0 %v8390
    %8544 = vmatpush.bf16.msra.mxu0 %v8389
    %8545 = vmatpush.bf16.msra.mxu0 %v8388
    %8546 = vmatpush.bf16.msra.mxu0 %v8387
    %8547 = vmatmul.bf16.gmra.mxu0 %v7963
    %v8548 = vpop.f32.mrf.mxu0
    %v8549 = vadd.f32 %v8535, %v8548
    %v8550 = vpop.f32.mrf.mxu0
    %v8551 = vadd.f32 %v8537, %v8550
    %8552 = vdwg.mxu0
    %8553 = vmatpush.bf16.msra.mxu0 %v8402
    %8554 = vmatpush.bf16.msra.mxu0 %v8401
    %8555 = vmatpush.bf16.msra.mxu0 %v8400
    %8556 = vmatpush.bf16.msra.mxu0 %v8399
    %8557 = vmatpush.bf16.msra.mxu0 %v8398
    %8558 = vmatpush.bf16.msra.mxu0 %v8397
    %8559 = vmatpush.bf16.msra.mxu0 %v8396
    %8560 = vmatpush.bf16.msra.mxu0 %v8395
    %8561 = vmatmul.bf16.gmra.mxu0 %v7964
    %v8562 = vpop.f32.mrf.mxu0
    %v8563 = vadd.f32 %v8549, %v8562
    %v8564 = vpop.f32.mrf.mxu0
    %v8565 = vadd.f32 %v8551, %v8564
    %8566 = vdwg.mxu0
    %8567 = vmatpush.bf16.msra.mxu0 %v8410
    %8568 = vmatpush.bf16.msra.mxu0 %v8409
    %8569 = vmatpush.bf16.msra.mxu0 %v8408
    %8570 = vmatpush.bf16.msra.mxu0 %v8407
    %8571 = vmatpush.bf16.msra.mxu0 %v8406
    %8572 = vmatpush.bf16.msra.mxu0 %v8405
    %8573 = vmatpush.bf16.msra.mxu0 %v8404
    %8574 = vmatpush.bf16.msra.mxu0 %v8403
    %8575 = vmatmul.bf16.gmra.mxu0 %v7965
    %v8576 = vpop.f32.mrf.mxu0
    %v8577 = vadd.f32 %v8563, %v8576
    %v8578 = vpop.f32.mrf.mxu0
    %v8579 = vadd.f32 %v8565, %v8578
    %8580 = vdwg.mxu0
    %8581 = vmatpush.bf16.msra.mxu0 %v8418
    %8582 = vmatpush.bf16.msra.mxu0 %v8417
    %8583 = vmatpush.bf16.msra.mxu0 %v8416
    %8584 = vmatpush.bf16.msra.mxu0 %v8415
    %8585 = vmatpush.bf16.msra.mxu0 %v8414
    %8586 = vmatpush.bf16.msra.mxu0 %v8413
    %8587 = vmatpush.bf16.msra.mxu0 %v8412
    %8588 = vmatpush.bf16.msra.mxu0 %v8411
    %8589 = vmatmul.bf16.gmra.mxu0 %v7966
    %v8590 = vpop.f32.mrf.mxu0
    %v8591 = vadd.f32 %v8577, %v8590
    %v8592 = vpop.f32.mrf.mxu0
    %v8593 = vadd.f32 %v8579, %v8592
    %8594 = vdwg.mxu0
    %8595 = vst [vmem:[#allocation2] sm:$0xff] %v8591
    %8596 = vst [vmem:[#allocation2 + $0x8] sm:$0xff] %v8593
    // Predicated region
    $region34: #{tpu_custom_call.1} parent=1 // pred_check
      _
    $region35: #{tpu_custom_call.1} parent=1 // pred_check_branch
      %8598 = sbr.rel (0) target = $region37
    $region36: #{tpu_custom_call.1} parent=1 // pred_region
      %8600 = vsyncadd [#allocation3], 0
      %s8601 = sshll.u32 [#allocation2], 4
      %s8602 = int_to_ptr.vmem [resolvable:$true] %s8601
      %s8603 = sshll.u32 %s8, 4
      %s8604 = int_to_ptr.hbm [resolvable:$true] %s8603
      %8609 = dma.vmem_to_hbm [thread:$0]  %s8602, 256, %s8604, [#allocation3], 128, 128, 8
    $region37: #{tpu_custom_call.1} parent=1 // pred_fallthru
      _
    // Predicated region
    $region38: #{tpu_custom_call.1} parent=1 // pred_check
      _
    $region39: #{tpu_custom_call.1} parent=1 // pred_check_branch
      %8611 = sbr.rel (0) target = $region41
    $region40: #{tpu_custom_call.1} parent=1 // pred_region
      %8613 = dma.done [#allocation3], 256
    $region41: #{tpu_custom_call.1} parent=1 // pred_fallthru
      _
    %8614 = vsyncpa [#allocation3], 1

</llo_original>
